<compile_context>
chip_gen: v7x
topology: tpu7x:2x2x1
jax: 0.10.0
libtpu: 0.0.40
codegen_flags: <defaults>
</compile_context>

<pallas_src>
import functools

import jax
import jax.numpy as jnp
import numpy as np
from jax import lax
from jax.experimental import pallas as pl
from jax.experimental.pallas import tpu as pltpu


def _cc_attention_kernel(x_ref, wf_ref, bf_ref, o_ref, *, gamma, H, W):
    # x_ref block: (1, C, H*W)  -- lane-dense last dim
    C = x_ref.shape[1]
    x_cf = x_ref[0].astype(jnp.float32)                 # (C, H*W)
    x_hw_c = x_cf.T                                     # (H*W, C)  one XLU pass

    # Fused QKV projection: single MXU matmul (H*W, C) @ (C, 3C) + bias.
    wf = wf_ref[...].astype(jnp.float32)                # (C, 3C)
    bf = bf_ref[...].astype(jnp.float32)                # (1, 3C)
    qkv = jnp.dot(x_hw_c, wf, preferred_element_type=jnp.float32) + bf  # (H*W, 3C)

    q = qkv[:, 0 * C:1 * C].reshape(H, W, C)
    k = qkv[:, 1 * C:2 * C].reshape(H, W, C)
    v = qkv[:, 2 * C:3 * C].reshape(H, W, C)

    # ---------------- row branch (batched over y) ----------------
    e_row = jnp.einsum('yxc,yic->yxi', q, k,
                       preferred_element_type=jnp.float32)      # (H, W, W)
    m_row = jnp.max(e_row, axis=-1, keepdims=True)              # (H, W, 1)

    # ---------------- column branch (batched over x) --------------
    # Pre-transpose once to the x-major frame; both column einsums reuse it.
    qT = jnp.transpose(q, (1, 0, 2))                            # (W, H, C)
    kT = jnp.transpose(k, (1, 0, 2))                            # (W, H, C)
    vT = jnp.transpose(v, (1, 0, 2))                            # (W, H, C)

    e_colT = jnp.einsum('xyc,xjc->xyj', qT, kT,
                        preferred_element_type=jnp.float32)     # (W, H, H)

    # Self-row exclusion (j == y) as a small (H, H) additive bias; exp -> 0.
    y_ids = lax.broadcasted_iota(jnp.int32, (H, H), 0)
    j_ids = lax.broadcasted_iota(jnp.int32, (H, H), 1)
    diag_bias = jnp.where(y_ids == j_ids, jnp.float32(-1e30), jnp.float32(0.0))
    e_colT = e_colT + diag_bias[None, :, :]

    m_colT = jnp.max(e_colT, axis=-1, keepdims=True)            # (W, H, 1)

    # ------------- online softmax across the two branches -------------
    # (no concatenation / slicing of the energy tensor)
    m = jnp.maximum(m_row, jnp.transpose(m_colT, (1, 0, 2)))    # (H, W, 1)
    mT = jnp.transpose(m, (1, 0, 2))                            # (W, H, 1)

    p_row = jnp.exp(e_row - m)                                  # (H, W, W)
    p_colT = jnp.exp(e_colT - mT)                               # (W, H, H)

    denom = (jnp.sum(p_row, axis=-1, keepdims=True)
             + jnp.transpose(jnp.sum(p_colT, axis=-1, keepdims=True),
                             (1, 0, 2)))                        # (H, W, 1)

    # ------------- weighted value aggregation (un-normalized) -------------
    out_row = jnp.einsum('yxi,yic->yxc', p_row, v,
                         preferred_element_type=jnp.float32)    # (H, W, C)
    out_colT = jnp.einsum('xyj,xjc->xyc', p_colT, vT,
                          preferred_element_type=jnp.float32)   # (W, H, C)
    out = out_row + jnp.transpose(out_colT, (1, 0, 2))          # (H, W, C)

    # Softmax denominator: EUP approx reciprocal + one Newton step (accuracy).
    inv = pl.reciprocal(denom, approx=True)
    inv = inv * (jnp.float32(2.0) - denom * inv)
    out = out * inv

    res = gamma * out + x_hw_c.reshape(H, W, C)                 # (H, W, C)

    # Store lane-dense (C, H*W) block (NCHW layout, flattened spatial).
    o_ref[0] = res.reshape(H * W, C).T.astype(o_ref.dtype)


def criss_cross_attention(x_nchw, wq, bq, wk, bk, wv, bv, gamma=0.6):
    """x_nchw: (N, C, H, W) float32. Returns (N, C, H, W)."""
    N, C, H, W = x_nchw.shape

    # NCHW -> (N, C, H*W) is a metadata-only reshape: no HBM transpose round-trip.
    x_flat = x_nchw.reshape(N, C, H * W)

    # Fuse the three 1x1 conv projections (PyTorch Conv2d weight is (out, in)).
    w_fused = jnp.concatenate([wq, wk, wv], axis=0).T            # (C, 3C)
    b_fused = jnp.concatenate([bq, bk, bv]).reshape(1, 3 * C)    # (1, 3C)

    kernel = functools.partial(_cc_attention_kernel,
                               gamma=float(gamma), H=H, W=W)

    out_flat = pl.pallas_call(
        kernel,
        out_shape=jax.ShapeDtypeStruct((N, C, H * W), x_nchw.dtype),
        grid_spec=pltpu.PrefetchScalarGridSpec(
            num_scalar_prefetch=0,
            grid=(N,),
            in_specs=[
                pl.BlockSpec((1, C, H * W), lambda n: (n, 0, 0)),   # x (one image)
                pl.BlockSpec((C, 3 * C), lambda n: (0, 0)),         # fused W_qkv
                pl.BlockSpec((1, 3 * C), lambda n: (0, 0)),         # fused b_qkv
            ],
            out_specs=pl.BlockSpec((1, C, H * W), lambda n: (n, 0, 0)),
        ),
        compiler_params=pltpu.CompilerParams(
            dimension_semantics=("parallel",),
            # Above v5e's 16 MiB / v6e-v7x's 32 MiB default scoped limit but
            # comfortably under v7x's 64 MiB physical VMEM. Raise further
            # (~96 MiB) on v5e/v6e for large images.
            vmem_limit_bytes=48 * 1024 * 1024,
        ),
    )(x_flat, w_fused, b_fused)

    return out_flat.reshape(N, C, H, W)


def _reference_cc_attention(x, wq, bq, wk, bk, wv, bv, gamma):
    """Pure numpy reference that follows the CUDA kernels literally."""
    x = np.asarray(x)
    N, C, H, W = x.shape

    def conv1x1(xx, w, b):
        return np.einsum('nchw,oc->nohw', xx, np.asarray(w)) \
            + np.asarray(b)[None, :, None, None]

    t = conv1x1(x, wq, bq)
    f = conv1x1(x, wk, bk)
    g = conv1x1(x, wv, bv)

    # ca_forward: energy (N, H+W-1, H, W)
    w_row = np.einsum('ncyx,ncyi->niyx', t, f)          # (N, W, H, W)
    e_col_full = np.einsum('ncyx,ncjx->njyx', t, f)     # (N, H, H, W)
    w_col = np.zeros((N, H - 1, H, W), dtype=np.float32)
    for y in range(H):
        for i in range(H - 1):
            j = i if i < y else i + 1
            w_col[:, i, y, :] = e_col_full[:, j, y, :]
    energy = np.concatenate([w_row, w_col], axis=1)     # (N, H+W-1, H, W)

    # softmax over dim=1
    m = energy.max(axis=1, keepdims=True)
    e = np.exp(energy - m)
    attn = e / e.sum(axis=1, keepdims=True)

    # ca_map
    out = np.einsum('ncyi,niyx->ncyx', g, attn[:, :W])
    attn_col = attn[:, W:]
    for y in range(H):
        for i in range(H):
            if i == y:
                continue
            j = i if i < y else i - 1
            out[:, :, y, :] += g[:, :, i, :] * attn_col[:, j, y, :][:, None, :]
    return gamma * out + x


if __name__ == "__main__":
    N, C, H, W = 2, 4, 16, 16
    gamma = 0.6

    key = jax.random.PRNGKey(0)
    kx, kwq, kbq, kwk, kbk, kwv, kbv = jax.random.split(key, 7)

    x = jax.random.normal(kx, (N, C, H, W), dtype=jnp.float32)
    # Deterministic parameter init (Conv2d 1x1 weights are (out, in))
    wq = 0.3 * jax.random.normal(kwq, (C, C), dtype=jnp.float32)
    bq = 0.1 * jax.random.normal(kbq, (C,), dtype=jnp.float32)
    wk = 0.3 * jax.random.normal(kwk, (C, C), dtype=jnp.float32)
    bk = 0.1 * jax.random.normal(kbk, (C,), dtype=jnp.float32)
    wv = 0.3 * jax.random.normal(kwv, (C, C), dtype=jnp.float32)
    bv = 0.1 * jax.random.normal(kbv, (C,), dtype=jnp.float32)

    out = criss_cross_attention(x, wq, bq, wk, bk, wv, bv, gamma=gamma)
    out = jax.block_until_ready(out)

    ref = _reference_cc_attention(x, wq, bq, wk, bk, wv, bv, gamma)
    if not np.allclose(np.asarray(out), ref, rtol=1e-4, atol=1e-5):
        raise AssertionError(
            f"mismatch: max abs err {np.abs(np.asarray(out) - ref).max()}")

    print("KERNEL_OK")
</pallas_src>

<mosaic_0001>
module attributes {stable_mosaic.version = 11 : i64} {
  func.func @_cc_attention_kernel(%arg0: i32, %arg1: memref<1x4x256xf32, #tpu.memory_space<vmem>>, %arg2: memref<4x12xf32, #tpu.memory_space<vmem>>, %arg3: memref<1x12xf32, #tpu.memory_space<vmem>>, %arg4: memref<1x4x256xf32, #tpu.memory_space<vmem>>) attributes {dimension_semantics = [#tpu.dimension_semantics<parallel>], iteration_bounds = array<i64: 2>, scalar_prefetch = 0 : i64, scratch_operands = 0 : i64, tpu.core_type = #tpu.core_type<tc>, window_params = [{transform_indices = @transform_0, window_bounds = array<i64: 1, 4, 256>}, {pipeline_mode = #tpu.pipeline_mode<synchronous>, transform_indices = @transform_1, window_bounds = array<i64: 4, 12>}, {pipeline_mode = #tpu.pipeline_mode<synchronous>, transform_indices = @transform_2, window_bounds = array<i64: 1, 12>}, {transform_indices = @transform_3, window_bounds = array<i64: 1, 4, 256>}]} {
    %c0 = arith.constant 0 : index
    %c0_0 = arith.constant 0 : index
    %c0_1 = arith.constant 0 : index
    %0 = vector.load %arg1[%c0, %c0_0, %c0_1] : memref<1x4x256xf32, #tpu.memory_space<vmem>>, vector<1x4x256xf32>
    %1 = vector.shape_cast %0 : vector<1x4x256xf32> to vector<4x256xf32>
    %2 = tpu.transpose %1, [1, 0] : vector<4x256xf32> -> vector<256x4xf32>
    %c0_2 = arith.constant 0 : index
    %c0_3 = arith.constant 0 : index
    %3 = vector.load %arg2[%c0_2, %c0_3] : memref<4x12xf32, #tpu.memory_space<vmem>>, vector<4x12xf32>
    %c0_4 = arith.constant 0 : index
    %c0_5 = arith.constant 0 : index
    %4 = vector.load %arg3[%c0_4, %c0_5] : memref<1x12xf32, #tpu.memory_space<vmem>>, vector<1x12xf32>
    %cst = arith.constant dense<0.000000e+00> : vector<256x12xf32>
    %5 = tpu.matmul %2, %3, %cst {dimension_numbers = #tpu.dot_dimension_numbers<[1], [0], [0], [1], [0, 0, 1, 1], [], []>} : vector<256x4xf32>, vector<4x12xf32>, vector<256x12xf32> -> vector<256x12xf32>
    %6 = vector.broadcast %4 : vector<1x12xf32> to vector<256x12xf32>
    %7 = arith.addf %5, %6 : vector<256x12xf32>
    %8 = vector.extract_strided_slice %7 {offsets = [0, 0], sizes = [256, 4], strides = [1, 1]} : vector<256x12xf32> to vector<256x4xf32>
    %9 = vector.shape_cast %8 : vector<256x4xf32> to vector<16x16x4xf32>
    %10 = vector.extract_strided_slice %7 {offsets = [0, 4], sizes = [256, 4], strides = [1, 1]} : vector<256x12xf32> to vector<256x4xf32>
    %11 = vector.shape_cast %10 : vector<256x4xf32> to vector<16x16x4xf32>
    %12 = vector.extract_strided_slice %7 {offsets = [0, 8], sizes = [256, 4], strides = [1, 1]} : vector<256x12xf32> to vector<256x4xf32>
    %13 = vector.shape_cast %12 : vector<256x4xf32> to vector<16x16x4xf32>
    "tpu.trace_start"() <{level = 10 : i32, message = "yxc,yic->yxi"}> : () -> ()
    %cst_6 = arith.constant dense<0.000000e+00> : vector<16x16x16xf32>
    %14 = tpu.matmul %9, %11, %cst_6 {dimension_numbers = #tpu.dot_dimension_numbers<[2], [2], [1], [1], [0, 0, 0, 1, 1, 1], [0], [0]>} : vector<16x16x4xf32>, vector<16x16x4xf32>, vector<16x16x16xf32> -> vector<16x16x16xf32>
    "tpu.trace_stop"() : () -> ()
    %cst_7 = arith.constant dense<0xFF800000> : vector<16x16xf32>
    %15 = vector.multi_reduction <maximumf>, %14, %cst_7 [2] : vector<16x16x16xf32> to vector<16x16xf32>
    %16 = vector.shape_cast %15 : vector<16x16xf32> to vector<16x16x1xf32>
    %17 = tpu.transpose %9, [1, 0, 2] : vector<16x16x4xf32> -> vector<16x16x4xf32>
    %18 = tpu.transpose %11, [1, 0, 2] : vector<16x16x4xf32> -> vector<16x16x4xf32>
    %19 = tpu.transpose %13, [1, 0, 2] : vector<16x16x4xf32> -> vector<16x16x4xf32>
    "tpu.trace_start"() <{level = 10 : i32, message = "xyc,xjc->xyj"}> : () -> ()
    %cst_8 = arith.constant dense<0.000000e+00> : vector<16x16x16xf32>
    %20 = tpu.matmul %17, %18, %cst_8 {dimension_numbers = #tpu.dot_dimension_numbers<[2], [2], [1], [1], [0, 0, 0, 1, 1, 1], [0], [0]>} : vector<16x16x4xf32>, vector<16x16x4xf32>, vector<16x16x16xf32> -> vector<16x16x16xf32>
    "tpu.trace_stop"() : () -> ()
    %21 = tpu.iota {dimensions = array<i32: 0>} : vector<16x16xi32>
    %22 = tpu.iota {dimensions = array<i32: 1>} : vector<16x16xi32>
    %23 = arith.cmpi eq, %21, %22 : vector<16x16xi32>
    %cst_9 = arith.constant -1.000000e+30 : f32
    %cst_10 = arith.constant 0.000000e+00 : f32
    %24 = vector.broadcast %cst_9 : f32 to vector<16x16xf32>
    %25 = vector.broadcast %cst_10 : f32 to vector<16x16xf32>
    %26 = arith.select %23, %24, %25 : vector<16x16xi1>, vector<16x16xf32>
    %27 = vector.shape_cast %26 : vector<16x16xf32> to vector<1x16x16xf32>
    %28 = vector.broadcast %27 : vector<1x16x16xf32> to vector<16x16x16xf32>
    %29 = arith.addf %20, %28 : vector<16x16x16xf32>
    %cst_11 = arith.constant dense<0xFF800000> : vector<16x16xf32>
    %30 = vector.multi_reduction <maximumf>, %29, %cst_11 [2] : vector<16x16x16xf32> to vector<16x16xf32>
    %31 = vector.shape_cast %30 : vector<16x16xf32> to vector<16x16x1xf32>
    %32 = tpu.transpose %31, [1, 0, 2] : vector<16x16x1xf32> -> vector<16x16x1xf32>
    %33 = arith.maximumf %16, %32 : vector<16x16x1xf32>
    %34 = tpu.transpose %33, [1, 0, 2] : vector<16x16x1xf32> -> vector<16x16x1xf32>
    %35 = vector.broadcast %33 : vector<16x16x1xf32> to vector<16x16x16xf32>
    %36 = arith.subf %14, %35 : vector<16x16x16xf32>
    %37 = math.exp %36 : vector<16x16x16xf32>
    %38 = vector.broadcast %34 : vector<16x16x1xf32> to vector<16x16x16xf32>
    %39 = arith.subf %29, %38 : vector<16x16x16xf32>
    %40 = math.exp %39 : vector<16x16x16xf32>
    %cst_12 = arith.constant dense<0.000000e+00> : vector<16x16xf32>
    %41 = vector.multi_reduction <add>, %37, %cst_12 [2] : vector<16x16x16xf32> to vector<16x16xf32>
    %42 = vector.shape_cast %41 : vector<16x16xf32> to vector<16x16x1xf32>
    %cst_13 = arith.constant dense<0.000000e+00> : vector<16x16xf32>
    %43 = vector.multi_reduction <add>, %40, %cst_13 [2] : vector<16x16x16xf32> to vector<16x16xf32>
    %44 = vector.shape_cast %43 : vector<16x16xf32> to vector<16x16x1xf32>
    %45 = tpu.transpose %44, [1, 0, 2] : vector<16x16x1xf32> -> vector<16x16x1xf32>
    %46 = arith.addf %42, %45 : vector<16x16x1xf32>
    "tpu.trace_start"() <{level = 10 : i32, message = "yxi,yic->yxc"}> : () -> ()
    %cst_14 = arith.constant dense<0.000000e+00> : vector<16x16x4xf32>
    %47 = tpu.matmul %37, %13, %cst_14 {dimension_numbers = #tpu.dot_dimension_numbers<[2], [1], [1], [2], [0, 0, 0, 1, 1, 2], [0], [0]>} : vector<16x16x16xf32>, vector<16x16x4xf32>, vector<16x16x4xf32> -> vector<16x16x4xf32>
    "tpu.trace_stop"() : () -> ()
    "tpu.trace_start"() <{level = 10 : i32, message = "xyj,xjc->xyc"}> : () -> ()
    %cst_15 = arith.constant dense<0.000000e+00> : vector<16x16x4xf32>
    %48 = tpu.matmul %40, %19, %cst_15 {dimension_numbers = #tpu.dot_dimension_numbers<[2], [1], [1], [2], [0, 0, 0, 1, 1, 2], [0], [0]>} : vector<16x16x16xf32>, vector<16x16x4xf32>, vector<16x16x4xf32> -> vector<16x16x4xf32>
    "tpu.trace_stop"() : () -> ()
    %49 = tpu.transpose %48, [1, 0, 2] : vector<16x16x4xf32> -> vector<16x16x4xf32>
    %50 = arith.addf %47, %49 : vector<16x16x4xf32>
    %51 = tpu.reciprocal %46 {approx = true} : vector<16x16x1xf32> -> vector<16x16x1xf32>
    %52 = arith.mulf %46, %51 : vector<16x16x1xf32>
    %cst_16 = arith.constant 2.000000e+00 : f32
    %53 = vector.broadcast %cst_16 : f32 to vector<16x16x1xf32>
    %54 = arith.subf %53, %52 : vector<16x16x1xf32>
    %55 = arith.mulf %51, %54 : vector<16x16x1xf32>
    %56 = vector.broadcast %55 : vector<16x16x1xf32> to vector<16x16x4xf32>
    %57 = arith.mulf %50, %56 : vector<16x16x4xf32>
    %cst_17 = arith.constant 6.000000e-01 : f32
    %58 = vector.broadcast %cst_17 : f32 to vector<16x16x4xf32>
    %59 = arith.mulf %58, %57 : vector<16x16x4xf32>
    %60 = vector.shape_cast %2 : vector<256x4xf32> to vector<16x16x4xf32>
    %61 = arith.addf %59, %60 : vector<16x16x4xf32>
    %62 = vector.shape_cast %61 : vector<16x16x4xf32> to vector<256x4xf32>
    %63 = tpu.transpose %62, [1, 0] : vector<256x4xf32> -> vector<4x256xf32>
    %c0_18 = arith.constant 0 : index
    %c0_19 = arith.constant 0 : index
    %c0_20 = arith.constant 0 : index
    %64 = vector.load %arg4[%c0_18, %c0_19, %c0_20] : memref<1x4x256xf32, #tpu.memory_space<vmem>>, vector<1x4x256xf32>
    %65 = vector.shape_cast %64 : vector<1x4x256xf32> to vector<4x256xf32>
    %66 = vector.shape_cast %63 : vector<4x256xf32> to vector<1x4x256xf32>
    tpu.vector_store %arg4[%c0_18, %c0_19, %c0_20], %66 {strides = array<i32>} : memref<1x4x256xf32, #tpu.memory_space<vmem>>, vector<1x4x256xf32>,
    return
  }
  func.func @transform_0(%arg0: i32) -> (i32, i32, i32) {
    %c0_i32 = arith.constant 0 : i32
    %c0_i32_0 = arith.constant 0 : i32
    %c0_i32_1 = arith.constant 0 : i32
    return %arg0, %c0_i32, %c0_i32_0 : i32, i32, i32
  }
  func.func @transform_1(%arg0: i32) -> (i32, i32) {
    %c0_i32 = arith.constant 0 : i32
    %c0_i32_0 = arith.constant 0 : i32
    %c0_i32_1 = arith.constant 0 : i32
    return %c0_i32, %c0_i32_0 : i32, i32
  }
  func.func @transform_2(%arg0: i32) -> (i32, i32) {
    %c0_i32 = arith.constant 0 : i32
    %c0_i32_0 = arith.constant 0 : i32
    %c0_i32_1 = arith.constant 0 : i32
    return %c0_i32, %c0_i32_0 : i32, i32
  }
  func.func @transform_3(%arg0: i32) -> (i32, i32, i32) {
    %c0_i32 = arith.constant 0 : i32
    %c0_i32_0 = arith.constant 0 : i32
    %c0_i32_1 = arith.constant 0 : i32
    return %arg0, %c0_i32, %c0_i32_0 : i32, i32, i32
  }
}

</mosaic_0001>

<llo_original>
// kernel: tpu_custom_call.1
$region0: #{tpu_custom_call.1}
  #allocation0 [shape = 'u32[]', space=smem, size = 0x4, offset = 0x4, fixed_abs, tag = 'smem constant byte address 0x4 - core index']
  #allocation1 [shape = 'u32[144,128]{1,0:T(1,128)}', space=vmem, size = 0x12000, scoped, tag = 'internal scratch']
  %s0 = inlined_call_operand.hbm [shape: f32[2,4,256], index: 0, kind: input, shape index: {}]
  %s1 = inlined_call_operand.hbm [shape: f32[4,12], index: 1, kind: input, shape index: {}]
  %s2 = inlined_call_operand.vmem [shape: f32[1,12], index: 2, kind: input, shape index: {}]
  %s3 = inlined_call_operand.hbm [shape: f32[2,4,256], index: 3, kind: output, shape index: {}]
  %s4 = sld [smem:[#allocation0]]
  $region53: #{tpu_custom_call.1} parent=0
    _
  %s6 = ssub.s32 1, %s4
  %s7 = scalar_select 0, %s6, %s4
  $region1: #{tpu_custom_call.1} parent=0
    #allocation2 [shape = 'u8[8192]{0}', space=vmem, size = 0x2000, scoped, tag = 'input window, operand 0']
    #allocation3 [shape = 's32[2]{0}', space=sflag, size = 0x8, scoped, tag = 'scoped memory for tpu_custom_call.1']
    #allocation4 [shape = 's32[2]{0}', space=sflag, size = 0x8, scoped, tag = 'scoped memory for tpu_custom_call.1']
    #allocation5 [shape = 'u8[2048]{0}', space=vmem, size = 0x800, scoped, tag = 'input window, operand 1, single buffered']
    #allocation6 [shape = 's32[1]{0}', space=sflag, size = 0x4, scoped, tag = 'scoped memory for tpu_custom_call.1']
    #allocation7 [shape = 'u8[8192]{0}', space=vmem, size = 0x2000, scoped, tag = 'output window, operand 0']
    %8 = vsyncpa [#allocation3], 0
    %s9 = scalar_lea.sflag [#allocation3], 1
    %10 = vsyncpa %s9, 0
    %11 = vsyncpa [#allocation6], 0
    %12 = vsyncpa [#allocation4], 0
    %s13 = scalar_lea.sflag [#allocation4], 1
    %14 = vsyncpa %s13, 0
    loop: start=0, step=1, limit=4
    $region2: #{tpu_custom_call.1} parent=1 // loop_pre_header
      _
    $region3: #{tpu_custom_call.1} parent=1 // loop_header
      %s16 = sphi 0, %s20
      %p17 = scmp.ge.s32.totalorder %s16, 4
      %s26 = sphi 0, %s28
      %s29 = sphi 0, %s26
      %s30 = sphi 0, %s29
      %s46 = sphi 0, %s30
      %s50 = sphi 0, %s50
      %s52 = sphi 0, %s50
      %s53 = sphi 0, %s52
      %s67 = sphi 0, %s53
      %s71 = sphi 0, %s71
      %s73 = sphi 0, %s71
      %s74 = sphi 0, %s73
      %s88 = sphi 0, %s74
      %s94 = sphi 0, %s96
      %s97 = sphi 0, %s94
      %s98 = sphi 0, %s97
      %s114 = sphi 0, %s98
    $region4: #{tpu_custom_call.1} parent=1 // loop_header_branch
      %19 = sbr.rel (%p17) target = $region8
    $region5: #{tpu_custom_call.1} parent=1 // loop_body
      %s21 = ssub.s32 %s16, 1
      %s22 = ssub.s32 %s16, 2
      %s23 = sadd.s32 %s16, 1
      %s24 = ssub.s32 %s16, %s23
      %p25 = scmp.eq.s32.totalorder %s24, 0
      %s27 = sadd.s32 %s26, 1
      %s28 = scalar_select %p25, %s26, %s27
      %p31 = pneg %p25
      %p32 = scmp.eq.s32.totalorder %s16, 1
      %p33 = por %p31, %p32
      %p34 = scmp.ne.s32.totalorder %s26, %s29
      %p35 = scmp.eq.s32.totalorder %s16, 0
      %p36 = por %p34, %p35
      %p37 = scmp.ne.s32.totalorder %s26, %s29
      %p38 = scmp.eq.s32.totalorder %s21, 1
      %p39 = por %p37, %p38
      %p40 = scmp.ne.s32.totalorder %s29, %s30
      %p41 = scmp.eq.s32.totalorder %s21, 0
      %p42 = por %p40, %p41
      %p43 = scmp.ne.s32.totalorder %s29, %s30
      %p44 = scmp.eq.s32.totalorder %s22, 1
      %p45 = por %p43, %p44
      %p47 = scmp.ne.s32.totalorder %s30, %s46
      %p48 = scmp.eq.s32.totalorder %s22, 0
      %p49 = por %p47, %p48
      %s51 = sadd.s32 %s50, 1
      %p54 = scmp.eq.s32.totalorder %s16, 1
      %p55 = scmp.ne.s32.totalorder %s50, %s52
      %p56 = scmp.eq.s32.totalorder %s16, 0
      %p57 = por %p55, %p56
      %p58 = scmp.ne.s32.totalorder %s50, %s52
      %p59 = scmp.eq.s32.totalorder %s21, 1
      %p60 = por %p58, %p59
      %p61 = scmp.ne.s32.totalorder %s52, %s53
      %p62 = scmp.eq.s32.totalorder %s21, 0
      %p63 = por %p61, %p62
      %p64 = scmp.ne.s32.totalorder %s52, %s53
      %p65 = scmp.eq.s32.totalorder %s22, 1
      %p66 = por %p64, %p65
      %p68 = scmp.ne.s32.totalorder %s53, %s67
      %p69 = scmp.eq.s32.totalorder %s22, 0
      %p70 = por %p68, %p69
      %s72 = sadd.s32 %s71, 1
      %p75 = scmp.eq.s32.totalorder %s16, 1
      %p76 = scmp.ne.s32.totalorder %s71, %s73
      %p77 = scmp.eq.s32.totalorder %s16, 0
      %p78 = por %p76, %p77
      %p79 = scmp.ne.s32.totalorder %s71, %s73
      %p80 = scmp.eq.s32.totalorder %s21, 1
      %p81 = por %p79, %p80
      %p82 = scmp.ne.s32.totalorder %s73, %s74
      %p83 = scmp.eq.s32.totalorder %s21, 0
      %p84 = por %p82, %p83
      %p85 = scmp.ne.s32.totalorder %s73, %s74
      %p86 = scmp.eq.s32.totalorder %s22, 1
      %p87 = por %p85, %p86
      %p89 = scmp.ne.s32.totalorder %s74, %s88
      %p90 = scmp.eq.s32.totalorder %s22, 0
      %p91 = por %p89, %p90
      %s92 = ssub.s32 %s16, %s23
      %p93 = scmp.eq.s32.totalorder %s92, 0
      %s95 = sadd.s32 %s94, 1
      %s96 = scalar_select %p93, %s94, %s95
      %p99 = pneg %p93
      %p100 = scmp.eq.s32.totalorder %s16, 1
      %p101 = por %p99, %p100
      %p102 = scmp.ne.s32.totalorder %s94, %s97
      %p103 = scmp.eq.s32.totalorder %s16, 0
      %p104 = por %p102, %p103
      %p105 = scmp.ne.s32.totalorder %s94, %s97
      %p106 = scmp.eq.s32.totalorder %s21, 1
      %p107 = por %p105, %p106
      %p108 = scmp.ne.s32.totalorder %s97, %s98
      %p109 = scmp.eq.s32.totalorder %s21, 0
      %p110 = por %p108, %p109
      %p111 = scmp.ne.s32.totalorder %s97, %s98
      %p112 = scmp.eq.s32.totalorder %s22, 1
      %p113 = por %p111, %p112
      %p115 = scmp.ne.s32.totalorder %s98, %s114
      %p116 = scmp.eq.s32.totalorder %s22, 0
      %p117 = por %p115, %p116
      %p118 = scmp.le.s32.totalorder 1, %s16
      %p119 = scmp.lt.s32.totalorder %s16, 3
      %p120 = pnand %p118, %p119
      %p121 = pneg %p120
      // Predicated region
      $region9: #{tpu_custom_call.1} parent=5 // pred_check
        _
      $region10: #{tpu_custom_call.1} parent=5 // pred_check_branch
        %123 = sbr.rel (%p120) target = $region12
      $region11: #{tpu_custom_call.1} parent=5 // pred_region
        %s124 = ssub.s32 %s16, 1
        // Predicated region
        $region13: #{tpu_custom_call.1} parent=11 // pred_check
          %p125 = pneg %p63
        $region14: #{tpu_custom_call.1} parent=11 // pred_check_branch
          %127 = sbr.rel (%p125) target = $region16
        $region15: #{tpu_custom_call.1} parent=11 // pred_region
          %s129 = ssub.s32 64, 64
          %130 = vsyncadd [#allocation6], %s129
          %s132 = sshll.u32 [#allocation5], 4
          %s133 = int_to_ptr.vmem [resolvable:$true] %s132
          %135 = dma.hbm_to_vmem [thread:$0]  %s1, 64, %s133, [#allocation6]
        $region16: #{tpu_custom_call.1} parent=11 // pred_fallthru
          _
        // Predicated region
        $region17: #{tpu_custom_call.1} parent=11 // pred_check
          %p136 = pneg %p84
        $region18: #{tpu_custom_call.1} parent=11 // pred_check_branch
          %138 = sbr.rel (%p136) target = $region20
        $region19: #{tpu_custom_call.1} parent=11 // pred_region
          _
        $region20: #{tpu_custom_call.1} parent=11 // pred_fallthru
          _
      $region12: #{tpu_custom_call.1} parent=5 // pred_fallthru
        _
      %p139 = scmp.lt.s32.totalorder %s16, 2
      // Predicated region
      $region21: #{tpu_custom_call.1} parent=5 // pred_check
        %p140 = pneg %p139
      $region22: #{tpu_custom_call.1} parent=5 // pred_check_branch
        %142 = sbr.rel (%p140) target = $region24
      $region23: #{tpu_custom_call.1} parent=5 // pred_region
        // Predicated region
        $region25: #{tpu_custom_call.1} parent=23 // pred_check
          %p143 = pneg %p36
        $region26: #{tpu_custom_call.1} parent=23 // pred_check_branch
          %145 = sbr.rel (%p143) target = $region28
        $region27: #{tpu_custom_call.1} parent=23 // pred_region
          %s146 = sand.u32 %s26, 1
          %s147 = scalar_lea.sflag [#allocation3], %s146
          %s148 = sand.u32 %s26, 1
          %s149 = smul.addr %s148, 8
          %s150 = scalar_lea.vmem [#allocation2], %s149
          %s152 = ssub.s32 128, 128
          %153 = vsyncadd %s147, %s152
          %s154 = smul.addr %s16, 2
          %s155 = smul.addr %s154, 64
          %s156 = scalar_lea.hbm %s0, %s155
          %s158 = sshll.u32 %s150, 4
          %s159 = int_to_ptr.vmem [resolvable:$true] %s158
          %161 = dma.hbm_to_vmem [thread:$0]  %s156, 128, %s159, %s147
        $region28: #{tpu_custom_call.1} parent=23 // pred_fallthru
          _
      $region24: #{tpu_custom_call.1} parent=5 // pred_fallthru
        _
      %p162 = scmp.le.s32.totalorder 1, %s16
      %p163 = scmp.lt.s32.totalorder %s16, 3
      %p164 = pnand %p162, %p163
      %p165 = pneg %p164
      // Predicated region
      $region29: #{tpu_custom_call.1} parent=5 // pred_check
        _
      $region30: #{tpu_custom_call.1} parent=5 // pred_check_branch
        %167 = sbr.rel (%p164) target = $region32
      $region31: #{tpu_custom_call.1} parent=5 // pred_region
        %s168 = ssub.s32 %s16, 1
        %s169 = sand.u32 %s29, 1
        %s170 = scalar_lea.sflag [#allocation3], %s169
        %s171 = sand.u32 %s29, 1
        %s172 = smul.addr %s171, 8
        %s173 = scalar_lea.vmem [#allocation2], %s172
        // Predicated region
        $region33: #{tpu_custom_call.1} parent=31 // pred_check
          %p174 = pneg %p42
        $region34: #{tpu_custom_call.1} parent=31 // pred_check_branch
          %176 = sbr.rel (%p174) target = $region36
        $region35: #{tpu_custom_call.1} parent=31 // pred_region
          %177 = dma.done %s170, 128
        $region36: #{tpu_custom_call.1} parent=31 // pred_fallthru
          _
        // Predicated region
        $region37: #{tpu_custom_call.1} parent=31 // pred_check
          %p178 = pneg %p63
        $region38: #{tpu_custom_call.1} parent=31 // pred_check_branch
          %180 = sbr.rel (%p178) target = $region40
        $region39: #{tpu_custom_call.1} parent=31 // pred_region
          %181 = dma.done [#allocation6], 64
        $region40: #{tpu_custom_call.1} parent=31 // pred_fallthru
          _
        %s182 = sand.u32 %s29, 1
        %s183 = scalar_lea.sflag [#allocation3], %s182
        %s184 = sand.u32 %s29, 1
        %s185 = smul.addr %s184, 8
        %s186 = scalar_lea.vmem [#allocation2], %s185
        %p187 = pneg %p42
        %p188 = pneg %p39
        %p189 = pneg %p63
        %p190 = pneg %p60
        %p191 = pneg %p84
        %p192 = pneg %p81
        %p193 = pneg %p110
        %p194 = pneg %p107
        %s195 = sand.u32 %s97, 1
        %s196 = scalar_lea.sflag [#allocation4], %s195
        %s197 = sand.u32 %s97, 1
        %s198 = smul.addr %s197, 8
        %s199 = scalar_lea.vmem [#allocation7], %s198
        %v200 = vld [vmem:[%s173] sm:$0xff]
        %v202 = vcombine.high %v200, %v200
        %204 = vxpose.xlu0.b32.start [1/16] %v200, 128
        %205 = vxpose.xlu0.b32.cont [2/16] 0.0, 128
        %206 = vxpose.xlu0.b32.cont [3/16] 0.0, 128
        %207 = vxpose.xlu0.b32.cont [4/16] 0.0, 128
        %208 = vxpose.xlu0.b32.cont [5/16] 0.0, 128
        %209 = vxpose.xlu0.b32.cont [6/16] 0.0, 128
        %210 = vxpose.xlu0.b32.cont [7/16] 0.0, 128
        %211 = vxpose.xlu0.b32.cont [8/16] 0.0, 128
        %212 = vxpose.xlu0.b32.cont [9/16] 0.0, 128
        %213 = vxpose.xlu0.b32.cont [10/16] 0.0, 128
        %214 = vxpose.xlu0.b32.cont [11/16] 0.0, 128
        %215 = vxpose.xlu0.b32.cont [12/16] 0.0, 128
        %216 = vxpose.xlu0.b32.cont [13/16] 0.0, 128
        %217 = vxpose.xlu0.b32.cont [14/16] 0.0, 128
        %218 = vxpose.xlu0.b32.cont [15/16] 0.0, 128
        %219 = vxpose.xlu0.b32.end [16/16] 0.0, 128
        %v220 = vpop.trf.xlu0
        %v221 = vpop.trf.xlu0
        %v222 = vpop.trf.xlu0
        %v223 = vpop.trf.xlu0
        %v224 = vpop.trf.xlu0
        %v225 = vpop.trf.xlu0
        %v226 = vpop.trf.xlu0
        %v227 = vpop.trf.xlu0
        %v228 = vpop.trf.xlu0
        %v229 = vpop.trf.xlu0
        %v230 = vpop.trf.xlu0
        %v231 = vpop.trf.xlu0
        %v232 = vpop.trf.xlu0
        %v233 = vpop.trf.xlu0
        %v234 = vpop.trf.xlu0
        %v235 = vpop.trf.xlu0
        %236 = vxpose.xlu0.b32.start [1/16] %v202, 128
        %237 = vxpose.xlu0.b32.cont [2/16] 0.0, 128
        %238 = vxpose.xlu0.b32.cont [3/16] 0.0, 128
        %239 = vxpose.xlu0.b32.cont [4/16] 0.0, 128
        %240 = vxpose.xlu0.b32.cont [5/16] 0.0, 128
        %241 = vxpose.xlu0.b32.cont [6/16] 0.0, 128
        %242 = vxpose.xlu0.b32.cont [7/16] 0.0, 128
        %243 = vxpose.xlu0.b32.cont [8/16] 0.0, 128
        %244 = vxpose.xlu0.b32.cont [9/16] 0.0, 128
        %245 = vxpose.xlu0.b32.cont [10/16] 0.0, 128
        %246 = vxpose.xlu0.b32.cont [11/16] 0.0, 128
        %247 = vxpose.xlu0.b32.cont [12/16] 0.0, 128
        %248 = vxpose.xlu0.b32.cont [13/16] 0.0, 128
        %249 = vxpose.xlu0.b32.cont [14/16] 0.0, 128
        %250 = vxpose.xlu0.b32.cont [15/16] 0.0, 128
        %251 = vxpose.xlu0.b32.end [16/16] 0.0, 128
        %v252 = vpop.trf.xlu0
        %v253 = vpop.trf.xlu0
        %v254 = vpop.trf.xlu0
        %v255 = vpop.trf.xlu0
        %v256 = vpop.trf.xlu0
        %v257 = vpop.trf.xlu0
        %v258 = vpop.trf.xlu0
        %v259 = vpop.trf.xlu0
        %v260 = vpop.trf.xlu0
        %v261 = vpop.trf.xlu0
        %v262 = vpop.trf.xlu0
        %v263 = vpop.trf.xlu0
        %v264 = vpop.trf.xlu0
        %v265 = vpop.trf.xlu0
        %v266 = vpop.trf.xlu0
        %v267 = vpop.trf.xlu0
        %v268 = vld [vmem:[#allocation5] sm:$0xf]
        %v269 = vld [vmem:[%s2] sm:$0x1]
        %v271 = vlaneseq
        %v272 = vshrl.u32 %v271, 7
        %v273 = vsub.s32 0, %v272
        %v274 = vrot.slane %v269, %v273
        %vm276 = vcmask 31744
        %v278 = vsel %vm276, %v220, 0
        %v281 = vsel %vm276, %v221, 0
        %v284 = vsel %vm276, %v222, 0
        %v287 = vsel %vm276, %v223, 0
        %v290 = vsel %vm276, %v224, 0
        %v293 = vsel %vm276, %v225, 0
        %v296 = vsel %vm276, %v226, 0
        %v299 = vsel %vm276, %v227, 0
        %v302 = vsel %vm276, %v228, 0
        %v305 = vsel %vm276, %v229, 0
        %v308 = vsel %vm276, %v230, 0
        %v311 = vsel %vm276, %v231, 0
        %v314 = vsel %vm276, %v232, 0
        %v317 = vsel %vm276, %v233, 0
        %v320 = vsel %vm276, %v234, 0
        %v323 = vsel %vm276, %v235, 0
        %v326 = vsel %vm276, %v252, 0
        %v329 = vsel %vm276, %v253, 0
        %v332 = vsel %vm276, %v254, 0
        %v335 = vsel %vm276, %v255, 0
        %v338 = vsel %vm276, %v256, 0
        %v341 = vsel %vm276, %v257, 0
        %v344 = vsel %vm276, %v258, 0
        %v347 = vsel %vm276, %v259, 0
        %v350 = vsel %vm276, %v260, 0
        %v353 = vsel %vm276, %v261, 0
        %v356 = vsel %vm276, %v262, 0
        %v359 = vsel %vm276, %v263, 0
        %v362 = vsel %vm276, %v264, 0
        %v365 = vsel %vm276, %v265, 0
        %v368 = vsel %vm276, %v266, 0
        %v371 = vsel %vm276, %v267, 0
        %vm373 = vcmask 1043456
        %v375 = vsel %vm373, %v268, 0
        %377 = vmatprep.subr.mxu0 0.0
        %378 = vmatpush1.msra.mxu0 %v375
        %379 = vmatprep.subr.mxu0 0.0
        %380 = vmatpush1.msra.mxu0 0.0
        %381 = vmatprep.subr.mxu0 0.0
        %382 = vmatpush1.msra.mxu0 0.0
        %383 = vmatprep.subr.mxu0 0.0
        %384 = vmatpush1.msra.mxu0 0.0
        %385 = vmatprep.subr.mxu0 0.0
        %386 = vmatpush1.msra.mxu0 0.0
        %387 = vmatprep.subr.mxu0 0.0
        %388 = vmatpush1.msra.mxu0 0.0
        %389 = vmatprep.subr.mxu0 0.0
        %390 = vmatpush1.msra.mxu0 0.0
        %391 = vmatprep.subr.mxu0 0.0
        %392 = vmatpush1.msra.mxu0 0.0
        %393 = vmatprep.subr.mxu0 0.0
        %394 = vmatpush1.msra.mxu0 0.0
        %395 = vmatprep.subr.mxu0 0.0
        %396 = vmatpush1.msra.mxu0 0.0
        %397 = vmatprep.subr.mxu0 0.0
        %398 = vmatpush1.msra.mxu0 0.0
        %399 = vmatprep.subr.mxu0 0.0
        %400 = vmatpush1.msra.mxu0 0.0
        %401 = vmatprep.subr.mxu0 0.0
        %402 = vmatpush1.msra.mxu0 0.0
        %403 = vmatprep.subr.mxu0 0.0
        %404 = vmatpush1.msra.mxu0 0.0
        %405 = vmatprep.subr.mxu0 0.0
        %406 = vmatpush1.msra.mxu0 0.0
        %407 = vmatprep.subr.mxu0 0.0
        %408 = vmatpush1.msra.mxu0 0.0
        %409 = vmatprep.subr.mxu0 0.0
        %410 = vmatpush1.msra.mxu0 0.0
        %411 = vmatprep.subr.mxu0 0.0
        %412 = vmatpush1.msra.mxu0 0.0
        %413 = vmatprep.subr.mxu0 0.0
        %414 = vmatpush1.msra.mxu0 0.0
        %415 = vmatprep.subr.mxu0 0.0
        %416 = vmatpush1.msra.mxu0 0.0
        %417 = vmatprep.subr.mxu0 0.0
        %418 = vmatpush1.msra.mxu0 0.0
        %419 = vmatprep.subr.mxu0 0.0
        %420 = vmatpush1.msra.mxu0 0.0
        %421 = vmatprep.subr.mxu0 0.0
        %422 = vmatpush1.msra.mxu0 0.0
        %423 = vmatprep.subr.mxu0 0.0
        %424 = vmatpush1.msra.mxu0 0.0
        %425 = vmatprep.subr.mxu0 0.0
        %426 = vmatpush1.msra.mxu0 0.0
        %427 = vmatprep.subr.mxu0 0.0
        %428 = vmatpush1.msra.mxu0 0.0
        %429 = vmatprep.subr.mxu0 0.0
        %430 = vmatpush1.msra.mxu0 0.0
        %431 = vmatprep.subr.mxu0 0.0
        %432 = vmatpush1.msra.mxu0 0.0
        %433 = vmatprep.subr.mxu0 0.0
        %434 = vmatpush1.msra.mxu0 0.0
        %435 = vmatprep.subr.mxu0 0.0
        %436 = vmatpush1.msra.mxu0 0.0
        %437 = vmatprep.subr.mxu0 0.0
        %438 = vmatpush1.msra.mxu0 0.0
        %439 = vmatprep.subr.mxu0 0.0
        %440 = vmatpush1.msra.mxu0 0.0
        %441 = vmatprep.mubr.f32.mxu0 0.0
        %442 = vmatmul.mubr.f32.gmra.mrb[0].mxu0 %v278
        %v443 = vpop.f32.mrb[0].mxu0
        %v444 = vadd.f32 %v274, %v443
        %v445 = vpop.f32.mrb[0].mxu0
        %446 = vmatprep.mubr.f32.mxu0 0.0
        %447 = vmatmul.mubr.f32.gmra.mrb[0].mxu0 %v281
        %v448 = vpop.f32.mrb[0].mxu0
        %v449 = vadd.f32 %v274, %v448
        %v450 = vpop.f32.mrb[0].mxu0
        %451 = vmatprep.mubr.f32.mxu0 0.0
        %452 = vmatmul.mubr.f32.gmra.mrb[0].mxu0 %v284
        %v453 = vpop.f32.mrb[0].mxu0
        %v454 = vadd.f32 %v274, %v453
        %v455 = vpop.f32.mrb[0].mxu0
        %456 = vmatprep.mubr.f32.mxu0 0.0
        %457 = vmatmul.mubr.f32.gmra.mrb[0].mxu0 %v287
        %v458 = vpop.f32.mrb[0].mxu0
        %v459 = vadd.f32 %v274, %v458
        %v460 = vpop.f32.mrb[0].mxu0
        %461 = vmatprep.mubr.f32.mxu0 0.0
        %462 = vmatmul.mubr.f32.gmra.mrb[0].mxu0 %v290
        %v463 = vpop.f32.mrb[0].mxu0
        %v464 = vadd.f32 %v274, %v463
        %v465 = vpop.f32.mrb[0].mxu0
        %466 = vmatprep.mubr.f32.mxu0 0.0
        %467 = vmatmul.mubr.f32.gmra.mrb[0].mxu0 %v293
        %v468 = vpop.f32.mrb[0].mxu0
        %v469 = vadd.f32 %v274, %v468
        %v470 = vpop.f32.mrb[0].mxu0
        %471 = vmatprep.mubr.f32.mxu0 0.0
        %472 = vmatmul.mubr.f32.gmra.mrb[0].mxu0 %v296
        %v473 = vpop.f32.mrb[0].mxu0
        %v474 = vadd.f32 %v274, %v473
        %v475 = vpop.f32.mrb[0].mxu0
        %476 = vmatprep.mubr.f32.mxu0 0.0
        %477 = vmatmul.mubr.f32.gmra.mrb[0].mxu0 %v299
        %v478 = vpop.f32.mrb[0].mxu0
        %v479 = vadd.f32 %v274, %v478
        %v480 = vpop.f32.mrb[0].mxu0
        %481 = vmatprep.mubr.f32.mxu0 0.0
        %482 = vmatmul.mubr.f32.gmra.mrb[0].mxu0 %v302
        %v483 = vpop.f32.mrb[0].mxu0
        %v484 = vadd.f32 %v274, %v483
        %v485 = vpop.f32.mrb[0].mxu0
        %486 = vmatprep.mubr.f32.mxu0 0.0
        %487 = vmatmul.mubr.f32.gmra.mrb[0].mxu0 %v305
        %v488 = vpop.f32.mrb[0].mxu0
        %v489 = vadd.f32 %v274, %v488
        %v490 = vpop.f32.mrb[0].mxu0
        %491 = vmatprep.mubr.f32.mxu0 0.0
        %492 = vmatmul.mubr.f32.gmra.mrb[0].mxu0 %v308
        %v493 = vpop.f32.mrb[0].mxu0
        %v494 = vadd.f32 %v274, %v493
        %v495 = vpop.f32.mrb[0].mxu0
        %496 = vmatprep.mubr.f32.mxu0 0.0
        %497 = vmatmul.mubr.f32.gmra.mrb[0].mxu0 %v311
        %v498 = vpop.f32.mrb[0].mxu0
        %v499 = vadd.f32 %v274, %v498
        %v500 = vpop.f32.mrb[0].mxu0
        %501 = vmatprep.mubr.f32.mxu0 0.0
        %502 = vmatmul.mubr.f32.gmra.mrb[0].mxu0 %v314
        %v503 = vpop.f32.mrb[0].mxu0
        %v504 = vadd.f32 %v274, %v503
        %v505 = vpop.f32.mrb[0].mxu0
        %506 = vmatprep.mubr.f32.mxu0 0.0
        %507 = vmatmul.mubr.f32.gmra.mrb[0].mxu0 %v317
        %v508 = vpop.f32.mrb[0].mxu0
        %v509 = vadd.f32 %v274, %v508
        %v510 = vpop.f32.mrb[0].mxu0
        %511 = vmatprep.mubr.f32.mxu0 0.0
        %512 = vmatmul.mubr.f32.gmra.mrb[0].mxu0 %v320
        %v513 = vpop.f32.mrb[0].mxu0
        %v514 = vadd.f32 %v274, %v513
        %v515 = vpop.f32.mrb[0].mxu0
        %516 = vmatprep.mubr.f32.mxu0 0.0
        %517 = vmatmul.mubr.f32.gmra.mrb[0].mxu0 %v323
        %v518 = vpop.f32.mrb[0].mxu0
        %v519 = vadd.f32 %v274, %v518
        %v520 = vpop.f32.mrb[0].mxu0
        %521 = vmatprep.mubr.f32.mxu0 0.0
        %522 = vmatmul.mubr.f32.gmra.mrb[0].mxu0 %v326
        %v523 = vpop.f32.mrb[0].mxu0
        %v524 = vadd.f32 %v274, %v523
        %v525 = vpop.f32.mrb[0].mxu0
        %526 = vmatprep.mubr.f32.mxu0 0.0
        %527 = vmatmul.mubr.f32.gmra.mrb[0].mxu0 %v329
        %v528 = vpop.f32.mrb[0].mxu0
        %v529 = vadd.f32 %v274, %v528
        %v530 = vpop.f32.mrb[0].mxu0
        %531 = vmatprep.mubr.f32.mxu0 0.0
        %532 = vmatmul.mubr.f32.gmra.mrb[0].mxu0 %v332
        %v533 = vpop.f32.mrb[0].mxu0
        %v534 = vadd.f32 %v274, %v533
        %v535 = vpop.f32.mrb[0].mxu0
        %536 = vmatprep.mubr.f32.mxu0 0.0
        %537 = vmatmul.mubr.f32.gmra.mrb[0].mxu0 %v335
        %v538 = vpop.f32.mrb[0].mxu0
        %v539 = vadd.f32 %v274, %v538
        %v540 = vpop.f32.mrb[0].mxu0
        %541 = vmatprep.mubr.f32.mxu0 0.0
        %542 = vmatmul.mubr.f32.gmra.mrb[0].mxu0 %v338
        %v543 = vpop.f32.mrb[0].mxu0
        %v544 = vadd.f32 %v274, %v543
        %v545 = vpop.f32.mrb[0].mxu0
        %546 = vmatprep.mubr.f32.mxu0 0.0
        %547 = vmatmul.mubr.f32.gmra.mrb[0].mxu0 %v341
        %v548 = vpop.f32.mrb[0].mxu0
        %v549 = vadd.f32 %v274, %v548
        %v550 = vpop.f32.mrb[0].mxu0
        %551 = vmatprep.mubr.f32.mxu0 0.0
        %552 = vmatmul.mubr.f32.gmra.mrb[0].mxu0 %v344
        %v553 = vpop.f32.mrb[0].mxu0
        %v554 = vadd.f32 %v274, %v553
        %v555 = vpop.f32.mrb[0].mxu0
        %556 = vmatprep.mubr.f32.mxu0 0.0
        %557 = vmatmul.mubr.f32.gmra.mrb[0].mxu0 %v347
        %v558 = vpop.f32.mrb[0].mxu0
        %v559 = vadd.f32 %v274, %v558
        %v560 = vpop.f32.mrb[0].mxu0
        %561 = vmatprep.mubr.f32.mxu0 0.0
        %562 = vmatmul.mubr.f32.gmra.mrb[0].mxu0 %v350
        %v563 = vpop.f32.mrb[0].mxu0
        %v564 = vadd.f32 %v274, %v563
        %v565 = vpop.f32.mrb[0].mxu0
        %566 = vmatprep.mubr.f32.mxu0 0.0
        %567 = vmatmul.mubr.f32.gmra.mrb[0].mxu0 %v353
        %v568 = vpop.f32.mrb[0].mxu0
        %v569 = vadd.f32 %v274, %v568
        %v570 = vpop.f32.mrb[0].mxu0
        %571 = vmatprep.mubr.f32.mxu0 0.0
        %572 = vmatmul.mubr.f32.gmra.mrb[0].mxu0 %v356
        %v573 = vpop.f32.mrb[0].mxu0
        %v574 = vadd.f32 %v274, %v573
        %v575 = vpop.f32.mrb[0].mxu0
        %576 = vmatprep.mubr.f32.mxu0 0.0
        %577 = vmatmul.mubr.f32.gmra.mrb[0].mxu0 %v359
        %v578 = vpop.f32.mrb[0].mxu0
        %v579 = vadd.f32 %v274, %v578
        %v580 = vpop.f32.mrb[0].mxu0
        %581 = vmatprep.mubr.f32.mxu0 0.0
        %582 = vmatmul.mubr.f32.gmra.mrb[0].mxu0 %v362
        %v583 = vpop.f32.mrb[0].mxu0
        %v584 = vadd.f32 %v274, %v583
        %v585 = vpop.f32.mrb[0].mxu0
        %586 = vmatprep.mubr.f32.mxu0 0.0
        %587 = vmatmul.mubr.f32.gmra.mrb[0].mxu0 %v365
        %v588 = vpop.f32.mrb[0].mxu0
        %v589 = vadd.f32 %v274, %v588
        %v590 = vpop.f32.mrb[0].mxu0
        %591 = vmatprep.mubr.f32.mxu0 0.0
        %592 = vmatmul.mubr.f32.gmra.mrb[0].mxu0 %v368
        %v593 = vpop.f32.mrb[0].mxu0
        %v594 = vadd.f32 %v274, %v593
        %v595 = vpop.f32.mrb[0].mxu0
        %596 = vmatprep.mubr.f32.mxu0 0.0
        %597 = vmatmul.mubr.f32.gmra.mrb[0].mxu0 %v371
        %v598 = vpop.f32.mrb[0].mxu0
        %v599 = vadd.f32 %v274, %v598
        %v600 = vpop.f32.mrb[0].mxu0
        %601 = vdwg.mxu0
        %604 = vrot.lane.b32.xlu0 %v444, 124
        %v605 = vpop.permute.xlu0 %604
        %606 = vrot.lane.b32.xlu0 %v449, 124
        %v607 = vpop.permute.xlu0 %606
        %v608 = vsel %vm276, %v444, 0
        %v610 = vsel %vm276, %v449, 0
        %v612 = vsel %vm276, %v605, 0
        %v614 = vsel %vm276, %v607, 0
        %616 = vmatprep.subr.mxu0 0.0
        %617 = vmatpush1.xpose.msra.mxu0 %v612
        %618 = vmatprep.subr.mxu0 0.0
        %619 = vmatpush1.xpose.msra.mxu0 %v614
        %620 = vmatprep.subr.mxu0 0.0
        %621 = vmatpush1.xpose.msra.mxu0 0.0
        %622 = vmatprep.subr.mxu0 0.0
        %623 = vmatpush1.xpose.msra.mxu0 0.0
        %624 = vmatprep.subr.mxu0 0.0
        %625 = vmatpush1.xpose.msra.mxu0 0.0
        %626 = vmatprep.subr.mxu0 0.0
        %627 = vmatpush1.xpose.msra.mxu0 0.0
        %628 = vmatprep.subr.mxu0 0.0
        %629 = vmatpush1.xpose.msra.mxu0 0.0
        %630 = vmatprep.subr.mxu0 0.0
        %631 = vmatpush1.xpose.msra.mxu0 0.0
        %632 = vmatprep.subr.mxu0 0.0
        %633 = vmatpush1.xpose.msra.mxu0 0.0
        %634 = vmatprep.subr.mxu0 0.0
        %635 = vmatpush1.xpose.msra.mxu0 0.0
        %636 = vmatprep.subr.mxu0 0.0
        %637 = vmatpush1.xpose.msra.mxu0 0.0
        %638 = vmatprep.subr.mxu0 0.0
        %639 = vmatpush1.xpose.msra.mxu0 0.0
        %640 = vmatprep.subr.mxu0 0.0
        %641 = vmatpush1.xpose.msra.mxu0 0.0
        %642 = vmatprep.subr.mxu0 0.0
        %643 = vmatpush1.xpose.msra.mxu0 0.0
        %644 = vmatprep.subr.mxu0 0.0
        %645 = vmatpush1.xpose.msra.mxu0 0.0
        %646 = vmatprep.subr.mxu0 0.0
        %647 = vmatpush1.xpose.msra.mxu0 0.0
        %648 = vmatprep.subr.mxu0 0.0
        %649 = vmatpush1.xpose.msra.mxu0 0.0
        %650 = vmatprep.subr.mxu0 0.0
        %651 = vmatpush1.xpose.msra.mxu0 0.0
        %652 = vmatprep.subr.mxu0 0.0
        %653 = vmatpush1.xpose.msra.mxu0 0.0
        %654 = vmatprep.subr.mxu0 0.0
        %655 = vmatpush1.xpose.msra.mxu0 0.0
        %656 = vmatprep.subr.mxu0 0.0
        %657 = vmatpush1.xpose.msra.mxu0 0.0
        %658 = vmatprep.subr.mxu0 0.0
        %659 = vmatpush1.xpose.msra.mxu0 0.0
        %660 = vmatprep.subr.mxu0 0.0
        %661 = vmatpush1.xpose.msra.mxu0 0.0
        %662 = vmatprep.subr.mxu0 0.0
        %663 = vmatpush1.xpose.msra.mxu0 0.0
        %664 = vmatprep.subr.mxu0 0.0
        %665 = vmatpush1.xpose.msra.mxu0 0.0
        %666 = vmatprep.subr.mxu0 0.0
        %667 = vmatpush1.xpose.msra.mxu0 0.0
        %668 = vmatprep.subr.mxu0 0.0
        %669 = vmatpush1.xpose.msra.mxu0 0.0
        %670 = vmatprep.subr.mxu0 0.0
        %671 = vmatpush1.xpose.msra.mxu0 0.0
        %672 = vmatprep.subr.mxu0 0.0
        %673 = vmatpush1.xpose.msra.mxu0 0.0
        %674 = vmatprep.subr.mxu0 0.0
        %675 = vmatpush1.xpose.msra.mxu0 0.0
        %676 = vmatprep.subr.mxu0 0.0
        %677 = vmatpush1.xpose.msra.mxu0 0.0
        %678 = vmatprep.subr.mxu0 0.0
        %679 = vmatpush1.xpose.msra.mxu0 0.0
        %680 = vmatprep.mubr.f32.mxu0 0.0
        %681 = vmatmul.mubr.f32.gmra.mrb[0].mxu0 %v608
        %v682 = vpop.f32.mrb[0].mxu0
        %v683 = vadd.f32 0.0, %v682
        %v684 = vpop.f32.mrb[0].mxu0
        %685 = vmatprep.mubr.f32.mxu0 0.0
        %686 = vmatmul.mubr.f32.gmra.mrb[0].mxu0 %v610
        %v687 = vpop.f32.mrb[0].mxu0
        %v688 = vadd.f32 0.0, %v687
        %v689 = vpop.f32.mrb[0].mxu0
        %690 = vdwg.mxu0
        %693 = vrot.lane.b32.xlu0 %v454, 124
        %v694 = vpop.permute.xlu0 %693
        %695 = vrot.lane.b32.xlu0 %v459, 124
        %v696 = vpop.permute.xlu0 %695
        %v697 = vsel %vm276, %v454, 0
        %v699 = vsel %vm276, %v459, 0
        %v701 = vsel %vm276, %v694, 0
        %v703 = vsel %vm276, %v696, 0
        %705 = vmatprep.subr.mxu0 0.0
        %706 = vmatpush1.xpose.msra.mxu0 %v701
        %707 = vmatprep.subr.mxu0 0.0
        %708 = vmatpush1.xpose.msra.mxu0 %v703
        %709 = vmatprep.subr.mxu0 0.0
        %710 = vmatpush1.xpose.msra.mxu0 0.0
        %711 = vmatprep.subr.mxu0 0.0
        %712 = vmatpush1.xpose.msra.mxu0 0.0
        %713 = vmatprep.subr.mxu0 0.0
        %714 = vmatpush1.xpose.msra.mxu0 0.0
        %715 = vmatprep.subr.mxu0 0.0
        %716 = vmatpush1.xpose.msra.mxu0 0.0
        %717 = vmatprep.subr.mxu0 0.0
        %718 = vmatpush1.xpose.msra.mxu0 0.0
        %719 = vmatprep.subr.mxu0 0.0
        %720 = vmatpush1.xpose.msra.mxu0 0.0
        %721 = vmatprep.subr.mxu0 0.0
        %722 = vmatpush1.xpose.msra.mxu0 0.0
        %723 = vmatprep.subr.mxu0 0.0
        %724 = vmatpush1.xpose.msra.mxu0 0.0
        %725 = vmatprep.subr.mxu0 0.0
        %726 = vmatpush1.xpose.msra.mxu0 0.0
        %727 = vmatprep.subr.mxu0 0.0
        %728 = vmatpush1.xpose.msra.mxu0 0.0
        %729 = vmatprep.subr.mxu0 0.0
        %730 = vmatpush1.xpose.msra.mxu0 0.0
        %731 = vmatprep.subr.mxu0 0.0
        %732 = vmatpush1.xpose.msra.mxu0 0.0
        %733 = vmatprep.subr.mxu0 0.0
        %734 = vmatpush1.xpose.msra.mxu0 0.0
        %735 = vmatprep.subr.mxu0 0.0
        %736 = vmatpush1.xpose.msra.mxu0 0.0
        %737 = vmatprep.subr.mxu0 0.0
        %738 = vmatpush1.xpose.msra.mxu0 0.0
        %739 = vmatprep.subr.mxu0 0.0
        %740 = vmatpush1.xpose.msra.mxu0 0.0
        %741 = vmatprep.subr.mxu0 0.0
        %742 = vmatpush1.xpose.msra.mxu0 0.0
        %743 = vmatprep.subr.mxu0 0.0
        %744 = vmatpush1.xpose.msra.mxu0 0.0
        %745 = vmatprep.subr.mxu0 0.0
        %746 = vmatpush1.xpose.msra.mxu0 0.0
        %747 = vmatprep.subr.mxu0 0.0
        %748 = vmatpush1.xpose.msra.mxu0 0.0
        %749 = vmatprep.subr.mxu0 0.0
        %750 = vmatpush1.xpose.msra.mxu0 0.0
        %751 = vmatprep.subr.mxu0 0.0
        %752 = vmatpush1.xpose.msra.mxu0 0.0
        %753 = vmatprep.subr.mxu0 0.0
        %754 = vmatpush1.xpose.msra.mxu0 0.0
        %755 = vmatprep.subr.mxu0 0.0
        %756 = vmatpush1.xpose.msra.mxu0 0.0
        %757 = vmatprep.subr.mxu0 0.0
        %758 = vmatpush1.xpose.msra.mxu0 0.0
        %759 = vmatprep.subr.mxu0 0.0
        %760 = vmatpush1.xpose.msra.mxu0 0.0
        %761 = vmatprep.subr.mxu0 0.0
        %762 = vmatpush1.xpose.msra.mxu0 0.0
        %763 = vmatprep.subr.mxu0 0.0
        %764 = vmatpush1.xpose.msra.mxu0 0.0
        %765 = vmatprep.subr.mxu0 0.0
        %766 = vmatpush1.xpose.msra.mxu0 0.0
        %767 = vmatprep.subr.mxu0 0.0
        %768 = vmatpush1.xpose.msra.mxu0 0.0
        %769 = vmatprep.mubr.f32.mxu0 0.0
        %770 = vmatmul.mubr.f32.gmra.mrb[0].mxu0 %v697
        %v771 = vpop.f32.mrb[0].mxu0
        %v772 = vadd.f32 0.0, %v771
        %v773 = vpop.f32.mrb[0].mxu0
        %774 = vmatprep.mubr.f32.mxu0 0.0
        %775 = vmatmul.mubr.f32.gmra.mrb[0].mxu0 %v699
        %v776 = vpop.f32.mrb[0].mxu0
        %v777 = vadd.f32 0.0, %v776
        %v778 = vpop.f32.mrb[0].mxu0
        %779 = vdwg.mxu0
        %782 = vrot.lane.b32.xlu0 %v464, 124
        %v783 = vpop.permute.xlu0 %782
        %784 = vrot.lane.b32.xlu0 %v469, 124
        %v785 = vpop.permute.xlu0 %784
        %v786 = vsel %vm276, %v464, 0
        %v788 = vsel %vm276, %v469, 0
        %v790 = vsel %vm276, %v783, 0
        %v792 = vsel %vm276, %v785, 0
        %794 = vmatprep.subr.mxu0 0.0
        %795 = vmatpush1.xpose.msra.mxu0 %v790
        %796 = vmatprep.subr.mxu0 0.0
        %797 = vmatpush1.xpose.msra.mxu0 %v792
        %798 = vmatprep.subr.mxu0 0.0
        %799 = vmatpush1.xpose.msra.mxu0 0.0
        %800 = vmatprep.subr.mxu0 0.0
        %801 = vmatpush1.xpose.msra.mxu0 0.0
        %802 = vmatprep.subr.mxu0 0.0
        %803 = vmatpush1.xpose.msra.mxu0 0.0
        %804 = vmatprep.subr.mxu0 0.0
        %805 = vmatpush1.xpose.msra.mxu0 0.0
        %806 = vmatprep.subr.mxu0 0.0
        %807 = vmatpush1.xpose.msra.mxu0 0.0
        %808 = vmatprep.subr.mxu0 0.0
        %809 = vmatpush1.xpose.msra.mxu0 0.0
        %810 = vmatprep.subr.mxu0 0.0
        %811 = vmatpush1.xpose.msra.mxu0 0.0
        %812 = vmatprep.subr.mxu0 0.0
        %813 = vmatpush1.xpose.msra.mxu0 0.0
        %814 = vmatprep.subr.mxu0 0.0
        %815 = vmatpush1.xpose.msra.mxu0 0.0
        %816 = vmatprep.subr.mxu0 0.0
        %817 = vmatpush1.xpose.msra.mxu0 0.0
        %818 = vmatprep.subr.mxu0 0.0
        %819 = vmatpush1.xpose.msra.mxu0 0.0
        %820 = vmatprep.subr.mxu0 0.0
        %821 = vmatpush1.xpose.msra.mxu0 0.0
        %822 = vmatprep.subr.mxu0 0.0
        %823 = vmatpush1.xpose.msra.mxu0 0.0
        %824 = vmatprep.subr.mxu0 0.0
        %825 = vmatpush1.xpose.msra.mxu0 0.0
        %826 = vmatprep.subr.mxu0 0.0
        %827 = vmatpush1.xpose.msra.mxu0 0.0
        %828 = vmatprep.subr.mxu0 0.0
        %829 = vmatpush1.xpose.msra.mxu0 0.0
        %830 = vmatprep.subr.mxu0 0.0
        %831 = vmatpush1.xpose.msra.mxu0 0.0
        %832 = vmatprep.subr.mxu0 0.0
        %833 = vmatpush1.xpose.msra.mxu0 0.0
        %834 = vmatprep.subr.mxu0 0.0
        %835 = vmatpush1.xpose.msra.mxu0 0.0
        %836 = vmatprep.subr.mxu0 0.0
        %837 = vmatpush1.xpose.msra.mxu0 0.0
        %838 = vmatprep.subr.mxu0 0.0
        %839 = vmatpush1.xpose.msra.mxu0 0.0
        %840 = vmatprep.subr.mxu0 0.0
        %841 = vmatpush1.xpose.msra.mxu0 0.0
        %842 = vmatprep.subr.mxu0 0.0
        %843 = vmatpush1.xpose.msra.mxu0 0.0
        %844 = vmatprep.subr.mxu0 0.0
        %845 = vmatpush1.xpose.msra.mxu0 0.0
        %846 = vmatprep.subr.mxu0 0.0
        %847 = vmatpush1.xpose.msra.mxu0 0.0
        %848 = vmatprep.subr.mxu0 0.0
        %849 = vmatpush1.xpose.msra.mxu0 0.0
        %850 = vmatprep.subr.mxu0 0.0
        %851 = vmatpush1.xpose.msra.mxu0 0.0
        %852 = vmatprep.subr.mxu0 0.0
        %853 = vmatpush1.xpose.msra.mxu0 0.0
        %854 = vmatprep.subr.mxu0 0.0
        %855 = vmatpush1.xpose.msra.mxu0 0.0
        %856 = vmatprep.subr.mxu0 0.0
        %857 = vmatpush1.xpose.msra.mxu0 0.0
        %858 = vmatprep.mubr.f32.mxu0 0.0
        %859 = vmatmul.mubr.f32.gmra.mrb[0].mxu0 %v786
        %v860 = vpop.f32.mrb[0].mxu0
        %v861 = vadd.f32 0.0, %v860
        %v862 = vpop.f32.mrb[0].mxu0
        %863 = vmatprep.mubr.f32.mxu0 0.0
        %864 = vmatmul.mubr.f32.gmra.mrb[0].mxu0 %v788
        %v865 = vpop.f32.mrb[0].mxu0
        %v866 = vadd.f32 0.0, %v865
        %v867 = vpop.f32.mrb[0].mxu0
        %868 = vdwg.mxu0
        %871 = vrot.lane.b32.xlu0 %v474, 124
        %v872 = vpop.permute.xlu0 %871
        %873 = vrot.lane.b32.xlu0 %v479, 124
        %v874 = vpop.permute.xlu0 %873
        %v875 = vsel %vm276, %v474, 0
        %v877 = vsel %vm276, %v479, 0
        %v879 = vsel %vm276, %v872, 0
        %v881 = vsel %vm276, %v874, 0
        %883 = vmatprep.subr.mxu0 0.0
        %884 = vmatpush1.xpose.msra.mxu0 %v879
        %885 = vmatprep.subr.mxu0 0.0
        %886 = vmatpush1.xpose.msra.mxu0 %v881
        %887 = vmatprep.subr.mxu0 0.0
        %888 = vmatpush1.xpose.msra.mxu0 0.0
        %889 = vmatprep.subr.mxu0 0.0
        %890 = vmatpush1.xpose.msra.mxu0 0.0
        %891 = vmatprep.subr.mxu0 0.0
        %892 = vmatpush1.xpose.msra.mxu0 0.0
        %893 = vmatprep.subr.mxu0 0.0
        %894 = vmatpush1.xpose.msra.mxu0 0.0
        %895 = vmatprep.subr.mxu0 0.0
        %896 = vmatpush1.xpose.msra.mxu0 0.0
        %897 = vmatprep.subr.mxu0 0.0
        %898 = vmatpush1.xpose.msra.mxu0 0.0
        %899 = vmatprep.subr.mxu0 0.0
        %900 = vmatpush1.xpose.msra.mxu0 0.0
        %901 = vmatprep.subr.mxu0 0.0
        %902 = vmatpush1.xpose.msra.mxu0 0.0
        %903 = vmatprep.subr.mxu0 0.0
        %904 = vmatpush1.xpose.msra.mxu0 0.0
        %905 = vmatprep.subr.mxu0 0.0
        %906 = vmatpush1.xpose.msra.mxu0 0.0
        %907 = vmatprep.subr.mxu0 0.0
        %908 = vmatpush1.xpose.msra.mxu0 0.0
        %909 = vmatprep.subr.mxu0 0.0
        %910 = vmatpush1.xpose.msra.mxu0 0.0
        %911 = vmatprep.subr.mxu0 0.0
        %912 = vmatpush1.xpose.msra.mxu0 0.0
        %913 = vmatprep.subr.mxu0 0.0
        %914 = vmatpush1.xpose.msra.mxu0 0.0
        %915 = vmatprep.subr.mxu0 0.0
        %916 = vmatpush1.xpose.msra.mxu0 0.0
        %917 = vmatprep.subr.mxu0 0.0
        %918 = vmatpush1.xpose.msra.mxu0 0.0
        %919 = vmatprep.subr.mxu0 0.0
        %920 = vmatpush1.xpose.msra.mxu0 0.0
        %921 = vmatprep.subr.mxu0 0.0
        %922 = vmatpush1.xpose.msra.mxu0 0.0
        %923 = vmatprep.subr.mxu0 0.0
        %924 = vmatpush1.xpose.msra.mxu0 0.0
        %925 = vmatprep.subr.mxu0 0.0
        %926 = vmatpush1.xpose.msra.mxu0 0.0
        %927 = vmatprep.subr.mxu0 0.0
        %928 = vmatpush1.xpose.msra.mxu0 0.0
        %929 = vmatprep.subr.mxu0 0.0
        %930 = vmatpush1.xpose.msra.mxu0 0.0
        %931 = vmatprep.subr.mxu0 0.0
        %932 = vmatpush1.xpose.msra.mxu0 0.0
        %933 = vmatprep.subr.mxu0 0.0
        %934 = vmatpush1.xpose.msra.mxu0 0.0
        %935 = vmatprep.subr.mxu0 0.0
        %936 = vmatpush1.xpose.msra.mxu0 0.0
        %937 = vmatprep.subr.mxu0 0.0
        %938 = vmatpush1.xpose.msra.mxu0 0.0
        %939 = vmatprep.subr.mxu0 0.0
        %940 = vmatpush1.xpose.msra.mxu0 0.0
        %941 = vmatprep.subr.mxu0 0.0
        %942 = vmatpush1.xpose.msra.mxu0 0.0
        %943 = vmatprep.subr.mxu0 0.0
        %944 = vmatpush1.xpose.msra.mxu0 0.0
        %945 = vmatprep.subr.mxu0 0.0
        %946 = vmatpush1.xpose.msra.mxu0 0.0
        %947 = vmatprep.mubr.f32.mxu0 0.0
        %948 = vmatmul.mubr.f32.gmra.mrb[0].mxu0 %v875
        %v949 = vpop.f32.mrb[0].mxu0
        %v950 = vadd.f32 0.0, %v949
        %v951 = vpop.f32.mrb[0].mxu0
        %952 = vmatprep.mubr.f32.mxu0 0.0
        %953 = vmatmul.mubr.f32.gmra.mrb[0].mxu0 %v877
        %v954 = vpop.f32.mrb[0].mxu0
        %v955 = vadd.f32 0.0, %v954
        %v956 = vpop.f32.mrb[0].mxu0
        %957 = vdwg.mxu0
        %960 = vrot.lane.b32.xlu0 %v484, 124
        %v961 = vpop.permute.xlu0 %960
        %962 = vrot.lane.b32.xlu0 %v489, 124
        %v963 = vpop.permute.xlu0 %962
        %v964 = vsel %vm276, %v484, 0
        %v966 = vsel %vm276, %v489, 0
        %v968 = vsel %vm276, %v961, 0
        %v970 = vsel %vm276, %v963, 0
        %972 = vmatprep.subr.mxu0 0.0
        %973 = vmatpush1.xpose.msra.mxu0 %v968
        %974 = vmatprep.subr.mxu0 0.0
        %975 = vmatpush1.xpose.msra.mxu0 %v970
        %976 = vmatprep.subr.mxu0 0.0
        %977 = vmatpush1.xpose.msra.mxu0 0.0
        %978 = vmatprep.subr.mxu0 0.0
        %979 = vmatpush1.xpose.msra.mxu0 0.0
        %980 = vmatprep.subr.mxu0 0.0
        %981 = vmatpush1.xpose.msra.mxu0 0.0
        %982 = vmatprep.subr.mxu0 0.0
        %983 = vmatpush1.xpose.msra.mxu0 0.0
        %984 = vmatprep.subr.mxu0 0.0
        %985 = vmatpush1.xpose.msra.mxu0 0.0
        %986 = vmatprep.subr.mxu0 0.0
        %987 = vmatpush1.xpose.msra.mxu0 0.0
        %988 = vmatprep.subr.mxu0 0.0
        %989 = vmatpush1.xpose.msra.mxu0 0.0
        %990 = vmatprep.subr.mxu0 0.0
        %991 = vmatpush1.xpose.msra.mxu0 0.0
        %992 = vmatprep.subr.mxu0 0.0
        %993 = vmatpush1.xpose.msra.mxu0 0.0
        %994 = vmatprep.subr.mxu0 0.0
        %995 = vmatpush1.xpose.msra.mxu0 0.0
        %996 = vmatprep.subr.mxu0 0.0
        %997 = vmatpush1.xpose.msra.mxu0 0.0
        %998 = vmatprep.subr.mxu0 0.0
        %999 = vmatpush1.xpose.msra.mxu0 0.0
        %1000 = vmatprep.subr.mxu0 0.0
        %1001 = vmatpush1.xpose.msra.mxu0 0.0
        %1002 = vmatprep.subr.mxu0 0.0
        %1003 = vmatpush1.xpose.msra.mxu0 0.0
        %1004 = vmatprep.subr.mxu0 0.0
        %1005 = vmatpush1.xpose.msra.mxu0 0.0
        %1006 = vmatprep.subr.mxu0 0.0
        %1007 = vmatpush1.xpose.msra.mxu0 0.0
        %1008 = vmatprep.subr.mxu0 0.0
        %1009 = vmatpush1.xpose.msra.mxu0 0.0
        %1010 = vmatprep.subr.mxu0 0.0
        %1011 = vmatpush1.xpose.msra.mxu0 0.0
        %1012 = vmatprep.subr.mxu0 0.0
        %1013 = vmatpush1.xpose.msra.mxu0 0.0
        %1014 = vmatprep.subr.mxu0 0.0
        %1015 = vmatpush1.xpose.msra.mxu0 0.0
        %1016 = vmatprep.subr.mxu0 0.0
        %1017 = vmatpush1.xpose.msra.mxu0 0.0
        %1018 = vmatprep.subr.mxu0 0.0
        %1019 = vmatpush1.xpose.msra.mxu0 0.0
        %1020 = vmatprep.subr.mxu0 0.0
        %1021 = vmatpush1.xpose.msra.mxu0 0.0
        %1022 = vmatprep.subr.mxu0 0.0
        %1023 = vmatpush1.xpose.msra.mxu0 0.0
        %1024 = vmatprep.subr.mxu0 0.0
        %1025 = vmatpush1.xpose.msra.mxu0 0.0
        %1026 = vmatprep.subr.mxu0 0.0
        %1027 = vmatpush1.xpose.msra.mxu0 0.0
        %1028 = vmatprep.subr.mxu0 0.0
        %1029 = vmatpush1.xpose.msra.mxu0 0.0
        %1030 = vmatprep.subr.mxu0 0.0
        %1031 = vmatpush1.xpose.msra.mxu0 0.0
        %1032 = vmatprep.subr.mxu0 0.0
        %1033 = vmatpush1.xpose.msra.mxu0 0.0
        %1034 = vmatprep.subr.mxu0 0.0
        %1035 = vmatpush1.xpose.msra.mxu0 0.0
        %1036 = vmatprep.mubr.f32.mxu0 0.0
        %1037 = vmatmul.mubr.f32.gmra.mrb[0].mxu0 %v964
        %v1038 = vpop.f32.mrb[0].mxu0
        %v1039 = vadd.f32 0.0, %v1038
        %v1040 = vpop.f32.mrb[0].mxu0
        %1041 = vmatprep.mubr.f32.mxu0 0.0
        %1042 = vmatmul.mubr.f32.gmra.mrb[0].mxu0 %v966
        %v1043 = vpop.f32.mrb[0].mxu0
        %v1044 = vadd.f32 0.0, %v1043
        %v1045 = vpop.f32.mrb[0].mxu0
        %1046 = vdwg.mxu0
        %1049 = vrot.lane.b32.xlu0 %v494, 124
        %v1050 = vpop.permute.xlu0 %1049
        %1051 = vrot.lane.b32.xlu0 %v499, 124
        %v1052 = vpop.permute.xlu0 %1051
        %v1053 = vsel %vm276, %v494, 0
        %v1055 = vsel %vm276, %v499, 0
        %v1057 = vsel %vm276, %v1050, 0
        %v1059 = vsel %vm276, %v1052, 0
        %1061 = vmatprep.subr.mxu0 0.0
        %1062 = vmatpush1.xpose.msra.mxu0 %v1057
        %1063 = vmatprep.subr.mxu0 0.0
        %1064 = vmatpush1.xpose.msra.mxu0 %v1059
        %1065 = vmatprep.subr.mxu0 0.0
        %1066 = vmatpush1.xpose.msra.mxu0 0.0
        %1067 = vmatprep.subr.mxu0 0.0
        %1068 = vmatpush1.xpose.msra.mxu0 0.0
        %1069 = vmatprep.subr.mxu0 0.0
        %1070 = vmatpush1.xpose.msra.mxu0 0.0
        %1071 = vmatprep.subr.mxu0 0.0
        %1072 = vmatpush1.xpose.msra.mxu0 0.0
        %1073 = vmatprep.subr.mxu0 0.0
        %1074 = vmatpush1.xpose.msra.mxu0 0.0
        %1075 = vmatprep.subr.mxu0 0.0
        %1076 = vmatpush1.xpose.msra.mxu0 0.0
        %1077 = vmatprep.subr.mxu0 0.0
        %1078 = vmatpush1.xpose.msra.mxu0 0.0
        %1079 = vmatprep.subr.mxu0 0.0
        %1080 = vmatpush1.xpose.msra.mxu0 0.0
        %1081 = vmatprep.subr.mxu0 0.0
        %1082 = vmatpush1.xpose.msra.mxu0 0.0
        %1083 = vmatprep.subr.mxu0 0.0
        %1084 = vmatpush1.xpose.msra.mxu0 0.0
        %1085 = vmatprep.subr.mxu0 0.0
        %1086 = vmatpush1.xpose.msra.mxu0 0.0
        %1087 = vmatprep.subr.mxu0 0.0
        %1088 = vmatpush1.xpose.msra.mxu0 0.0
        %1089 = vmatprep.subr.mxu0 0.0
        %1090 = vmatpush1.xpose.msra.mxu0 0.0
        %1091 = vmatprep.subr.mxu0 0.0
        %1092 = vmatpush1.xpose.msra.mxu0 0.0
        %1093 = vmatprep.subr.mxu0 0.0
        %1094 = vmatpush1.xpose.msra.mxu0 0.0
        %1095 = vmatprep.subr.mxu0 0.0
        %1096 = vmatpush1.xpose.msra.mxu0 0.0
        %1097 = vmatprep.subr.mxu0 0.0
        %1098 = vmatpush1.xpose.msra.mxu0 0.0
        %1099 = vmatprep.subr.mxu0 0.0
        %1100 = vmatpush1.xpose.msra.mxu0 0.0
        %1101 = vmatprep.subr.mxu0 0.0
        %1102 = vmatpush1.xpose.msra.mxu0 0.0
        %1103 = vmatprep.subr.mxu0 0.0
        %1104 = vmatpush1.xpose.msra.mxu0 0.0
        %1105 = vmatprep.subr.mxu0 0.0
        %1106 = vmatpush1.xpose.msra.mxu0 0.0
        %1107 = vmatprep.subr.mxu0 0.0
        %1108 = vmatpush1.xpose.msra.mxu0 0.0
        %1109 = vmatprep.subr.mxu0 0.0
        %1110 = vmatpush1.xpose.msra.mxu0 0.0
        %1111 = vmatprep.subr.mxu0 0.0
        %1112 = vmatpush1.xpose.msra.mxu0 0.0
        %1113 = vmatprep.subr.mxu0 0.0
        %1114 = vmatpush1.xpose.msra.mxu0 0.0
        %1115 = vmatprep.subr.mxu0 0.0
        %1116 = vmatpush1.xpose.msra.mxu0 0.0
        %1117 = vmatprep.subr.mxu0 0.0
        %1118 = vmatpush1.xpose.msra.mxu0 0.0
        %1119 = vmatprep.subr.mxu0 0.0
        %1120 = vmatpush1.xpose.msra.mxu0 0.0
        %1121 = vmatprep.subr.mxu0 0.0
        %1122 = vmatpush1.xpose.msra.mxu0 0.0
        %1123 = vmatprep.subr.mxu0 0.0
        %1124 = vmatpush1.xpose.msra.mxu0 0.0
        %1125 = vmatprep.mubr.f32.mxu0 0.0
        %1126 = vmatmul.mubr.f32.gmra.mrb[0].mxu0 %v1053
        %v1127 = vpop.f32.mrb[0].mxu0
        %v1128 = vadd.f32 0.0, %v1127
        %v1129 = vpop.f32.mrb[0].mxu0
        %1130 = vmatprep.mubr.f32.mxu0 0.0
        %1131 = vmatmul.mubr.f32.gmra.mrb[0].mxu0 %v1055
        %v1132 = vpop.f32.mrb[0].mxu0
        %v1133 = vadd.f32 0.0, %v1132
        %v1134 = vpop.f32.mrb[0].mxu0
        %1135 = vdwg.mxu0
        %1138 = vrot.lane.b32.xlu0 %v504, 124
        %v1139 = vpop.permute.xlu0 %1138
        %1140 = vrot.lane.b32.xlu0 %v509, 124
        %v1141 = vpop.permute.xlu0 %1140
        %v1142 = vsel %vm276, %v504, 0
        %v1144 = vsel %vm276, %v509, 0
        %v1146 = vsel %vm276, %v1139, 0
        %v1148 = vsel %vm276, %v1141, 0
        %1150 = vmatprep.subr.mxu0 0.0
        %1151 = vmatpush1.xpose.msra.mxu0 %v1146
        %1152 = vmatprep.subr.mxu0 0.0
        %1153 = vmatpush1.xpose.msra.mxu0 %v1148
        %1154 = vmatprep.subr.mxu0 0.0
        %1155 = vmatpush1.xpose.msra.mxu0 0.0
        %1156 = vmatprep.subr.mxu0 0.0
        %1157 = vmatpush1.xpose.msra.mxu0 0.0
        %1158 = vmatprep.subr.mxu0 0.0
        %1159 = vmatpush1.xpose.msra.mxu0 0.0
        %1160 = vmatprep.subr.mxu0 0.0
        %1161 = vmatpush1.xpose.msra.mxu0 0.0
        %1162 = vmatprep.subr.mxu0 0.0
        %1163 = vmatpush1.xpose.msra.mxu0 0.0
        %1164 = vmatprep.subr.mxu0 0.0
        %1165 = vmatpush1.xpose.msra.mxu0 0.0
        %1166 = vmatprep.subr.mxu0 0.0
        %1167 = vmatpush1.xpose.msra.mxu0 0.0
        %1168 = vmatprep.subr.mxu0 0.0
        %1169 = vmatpush1.xpose.msra.mxu0 0.0
        %1170 = vmatprep.subr.mxu0 0.0
        %1171 = vmatpush1.xpose.msra.mxu0 0.0
        %1172 = vmatprep.subr.mxu0 0.0
        %1173 = vmatpush1.xpose.msra.mxu0 0.0
        %1174 = vmatprep.subr.mxu0 0.0
        %1175 = vmatpush1.xpose.msra.mxu0 0.0
        %1176 = vmatprep.subr.mxu0 0.0
        %1177 = vmatpush1.xpose.msra.mxu0 0.0
        %1178 = vmatprep.subr.mxu0 0.0
        %1179 = vmatpush1.xpose.msra.mxu0 0.0
        %1180 = vmatprep.subr.mxu0 0.0
        %1181 = vmatpush1.xpose.msra.mxu0 0.0
        %1182 = vmatprep.subr.mxu0 0.0
        %1183 = vmatpush1.xpose.msra.mxu0 0.0
        %1184 = vmatprep.subr.mxu0 0.0
        %1185 = vmatpush1.xpose.msra.mxu0 0.0
        %1186 = vmatprep.subr.mxu0 0.0
        %1187 = vmatpush1.xpose.msra.mxu0 0.0
        %1188 = vmatprep.subr.mxu0 0.0
        %1189 = vmatpush1.xpose.msra.mxu0 0.0
        %1190 = vmatprep.subr.mxu0 0.0
        %1191 = vmatpush1.xpose.msra.mxu0 0.0
        %1192 = vmatprep.subr.mxu0 0.0
        %1193 = vmatpush1.xpose.msra.mxu0 0.0
        %1194 = vmatprep.subr.mxu0 0.0
        %1195 = vmatpush1.xpose.msra.mxu0 0.0
        %1196 = vmatprep.subr.mxu0 0.0
        %1197 = vmatpush1.xpose.msra.mxu0 0.0
        %1198 = vmatprep.subr.mxu0 0.0
        %1199 = vmatpush1.xpose.msra.mxu0 0.0
        %1200 = vmatprep.subr.mxu0 0.0
        %1201 = vmatpush1.xpose.msra.mxu0 0.0
        %1202 = vmatprep.subr.mxu0 0.0
        %1203 = vmatpush1.xpose.msra.mxu0 0.0
        %1204 = vmatprep.subr.mxu0 0.0
        %1205 = vmatpush1.xpose.msra.mxu0 0.0
        %1206 = vmatprep.subr.mxu0 0.0
        %1207 = vmatpush1.xpose.msra.mxu0 0.0
        %1208 = vmatprep.subr.mxu0 0.0
        %1209 = vmatpush1.xpose.msra.mxu0 0.0
        %1210 = vmatprep.subr.mxu0 0.0
        %1211 = vmatpush1.xpose.msra.mxu0 0.0
        %1212 = vmatprep.subr.mxu0 0.0
        %1213 = vmatpush1.xpose.msra.mxu0 0.0
        %1214 = vmatprep.mubr.f32.mxu0 0.0
        %1215 = vmatmul.mubr.f32.gmra.mrb[0].mxu0 %v1142
        %v1216 = vpop.f32.mrb[0].mxu0
        %v1217 = vadd.f32 0.0, %v1216
        %v1218 = vpop.f32.mrb[0].mxu0
        %1219 = vmatprep.mubr.f32.mxu0 0.0
        %1220 = vmatmul.mubr.f32.gmra.mrb[0].mxu0 %v1144
        %v1221 = vpop.f32.mrb[0].mxu0
        %v1222 = vadd.f32 0.0, %v1221
        %v1223 = vpop.f32.mrb[0].mxu0
        %1224 = vdwg.mxu0
        %1227 = vrot.lane.b32.xlu0 %v514, 124
        %v1228 = vpop.permute.xlu0 %1227
        %1229 = vrot.lane.b32.xlu0 %v519, 124
        %v1230 = vpop.permute.xlu0 %1229
        %v1231 = vsel %vm276, %v514, 0
        %v1233 = vsel %vm276, %v519, 0
        %v1235 = vsel %vm276, %v1228, 0
        %v1237 = vsel %vm276, %v1230, 0
        %1239 = vmatprep.subr.mxu0 0.0
        %1240 = vmatpush1.xpose.msra.mxu0 %v1235
        %1241 = vmatprep.subr.mxu0 0.0
        %1242 = vmatpush1.xpose.msra.mxu0 %v1237
        %1243 = vmatprep.subr.mxu0 0.0
        %1244 = vmatpush1.xpose.msra.mxu0 0.0
        %1245 = vmatprep.subr.mxu0 0.0
        %1246 = vmatpush1.xpose.msra.mxu0 0.0
        %1247 = vmatprep.subr.mxu0 0.0
        %1248 = vmatpush1.xpose.msra.mxu0 0.0
        %1249 = vmatprep.subr.mxu0 0.0
        %1250 = vmatpush1.xpose.msra.mxu0 0.0
        %1251 = vmatprep.subr.mxu0 0.0
        %1252 = vmatpush1.xpose.msra.mxu0 0.0
        %1253 = vmatprep.subr.mxu0 0.0
        %1254 = vmatpush1.xpose.msra.mxu0 0.0
        %1255 = vmatprep.subr.mxu0 0.0
        %1256 = vmatpush1.xpose.msra.mxu0 0.0
        %1257 = vmatprep.subr.mxu0 0.0
        %1258 = vmatpush1.xpose.msra.mxu0 0.0
        %1259 = vmatprep.subr.mxu0 0.0
        %1260 = vmatpush1.xpose.msra.mxu0 0.0
        %1261 = vmatprep.subr.mxu0 0.0
        %1262 = vmatpush1.xpose.msra.mxu0 0.0
        %1263 = vmatprep.subr.mxu0 0.0
        %1264 = vmatpush1.xpose.msra.mxu0 0.0
        %1265 = vmatprep.subr.mxu0 0.0
        %1266 = vmatpush1.xpose.msra.mxu0 0.0
        %1267 = vmatprep.subr.mxu0 0.0
        %1268 = vmatpush1.xpose.msra.mxu0 0.0
        %1269 = vmatprep.subr.mxu0 0.0
        %1270 = vmatpush1.xpose.msra.mxu0 0.0
        %1271 = vmatprep.subr.mxu0 0.0
        %1272 = vmatpush1.xpose.msra.mxu0 0.0
        %1273 = vmatprep.subr.mxu0 0.0
        %1274 = vmatpush1.xpose.msra.mxu0 0.0
        %1275 = vmatprep.subr.mxu0 0.0
        %1276 = vmatpush1.xpose.msra.mxu0 0.0
        %1277 = vmatprep.subr.mxu0 0.0
        %1278 = vmatpush1.xpose.msra.mxu0 0.0
        %1279 = vmatprep.subr.mxu0 0.0
        %1280 = vmatpush1.xpose.msra.mxu0 0.0
        %1281 = vmatprep.subr.mxu0 0.0
        %1282 = vmatpush1.xpose.msra.mxu0 0.0
        %1283 = vmatprep.subr.mxu0 0.0
        %1284 = vmatpush1.xpose.msra.mxu0 0.0
        %1285 = vmatprep.subr.mxu0 0.0
        %1286 = vmatpush1.xpose.msra.mxu0 0.0
        %1287 = vmatprep.subr.mxu0 0.0
        %1288 = vmatpush1.xpose.msra.mxu0 0.0
        %1289 = vmatprep.subr.mxu0 0.0
        %1290 = vmatpush1.xpose.msra.mxu0 0.0
        %1291 = vmatprep.subr.mxu0 0.0
        %1292 = vmatpush1.xpose.msra.mxu0 0.0
        %1293 = vmatprep.subr.mxu0 0.0
        %1294 = vmatpush1.xpose.msra.mxu0 0.0
        %1295 = vmatprep.subr.mxu0 0.0
        %1296 = vmatpush1.xpose.msra.mxu0 0.0
        %1297 = vmatprep.subr.mxu0 0.0
        %1298 = vmatpush1.xpose.msra.mxu0 0.0
        %1299 = vmatprep.subr.mxu0 0.0
        %1300 = vmatpush1.xpose.msra.mxu0 0.0
        %1301 = vmatprep.subr.mxu0 0.0
        %1302 = vmatpush1.xpose.msra.mxu0 0.0
        %1303 = vmatprep.mubr.f32.mxu0 0.0
        %1304 = vmatmul.mubr.f32.gmra.mrb[0].mxu0 %v1231
        %v1305 = vpop.f32.mrb[0].mxu0
        %v1306 = vadd.f32 0.0, %v1305
        %v1307 = vpop.f32.mrb[0].mxu0
        %1308 = vmatprep.mubr.f32.mxu0 0.0
        %1309 = vmatmul.mubr.f32.gmra.mrb[0].mxu0 %v1233
        %v1310 = vpop.f32.mrb[0].mxu0
        %v1311 = vadd.f32 0.0, %v1310
        %v1312 = vpop.f32.mrb[0].mxu0
        %1313 = vdwg.mxu0
        %1316 = vrot.lane.b32.xlu0 %v524, 124
        %v1317 = vpop.permute.xlu0 %1316
        %1318 = vrot.lane.b32.xlu0 %v529, 124
        %v1319 = vpop.permute.xlu0 %1318
        %v1320 = vsel %vm276, %v524, 0
        %v1322 = vsel %vm276, %v529, 0
        %v1324 = vsel %vm276, %v1317, 0
        %v1326 = vsel %vm276, %v1319, 0
        %1328 = vmatprep.subr.mxu0 0.0
        %1329 = vmatpush1.xpose.msra.mxu0 %v1324
        %1330 = vmatprep.subr.mxu0 0.0
        %1331 = vmatpush1.xpose.msra.mxu0 %v1326
        %1332 = vmatprep.subr.mxu0 0.0
        %1333 = vmatpush1.xpose.msra.mxu0 0.0
        %1334 = vmatprep.subr.mxu0 0.0
        %1335 = vmatpush1.xpose.msra.mxu0 0.0
        %1336 = vmatprep.subr.mxu0 0.0
        %1337 = vmatpush1.xpose.msra.mxu0 0.0
        %1338 = vmatprep.subr.mxu0 0.0
        %1339 = vmatpush1.xpose.msra.mxu0 0.0
        %1340 = vmatprep.subr.mxu0 0.0
        %1341 = vmatpush1.xpose.msra.mxu0 0.0
        %1342 = vmatprep.subr.mxu0 0.0
        %1343 = vmatpush1.xpose.msra.mxu0 0.0
        %1344 = vmatprep.subr.mxu0 0.0
        %1345 = vmatpush1.xpose.msra.mxu0 0.0
        %1346 = vmatprep.subr.mxu0 0.0
        %1347 = vmatpush1.xpose.msra.mxu0 0.0
        %1348 = vmatprep.subr.mxu0 0.0
        %1349 = vmatpush1.xpose.msra.mxu0 0.0
        %1350 = vmatprep.subr.mxu0 0.0
        %1351 = vmatpush1.xpose.msra.mxu0 0.0
        %1352 = vmatprep.subr.mxu0 0.0
        %1353 = vmatpush1.xpose.msra.mxu0 0.0
        %1354 = vmatprep.subr.mxu0 0.0
        %1355 = vmatpush1.xpose.msra.mxu0 0.0
        %1356 = vmatprep.subr.mxu0 0.0
        %1357 = vmatpush1.xpose.msra.mxu0 0.0
        %1358 = vmatprep.subr.mxu0 0.0
        %1359 = vmatpush1.xpose.msra.mxu0 0.0
        %1360 = vmatprep.subr.mxu0 0.0
        %1361 = vmatpush1.xpose.msra.mxu0 0.0
        %1362 = vmatprep.subr.mxu0 0.0
        %1363 = vmatpush1.xpose.msra.mxu0 0.0
        %1364 = vmatprep.subr.mxu0 0.0
        %1365 = vmatpush1.xpose.msra.mxu0 0.0
        %1366 = vmatprep.subr.mxu0 0.0
        %1367 = vmatpush1.xpose.msra.mxu0 0.0
        %1368 = vmatprep.subr.mxu0 0.0
        %1369 = vmatpush1.xpose.msra.mxu0 0.0
        %1370 = vmatprep.subr.mxu0 0.0
        %1371 = vmatpush1.xpose.msra.mxu0 0.0
        %1372 = vmatprep.subr.mxu0 0.0
        %1373 = vmatpush1.xpose.msra.mxu0 0.0
        %1374 = vmatprep.subr.mxu0 0.0
        %1375 = vmatpush1.xpose.msra.mxu0 0.0
        %1376 = vmatprep.subr.mxu0 0.0
        %1377 = vmatpush1.xpose.msra.mxu0 0.0
        %1378 = vmatprep.subr.mxu0 0.0
        %1379 = vmatpush1.xpose.msra.mxu0 0.0
        %1380 = vmatprep.subr.mxu0 0.0
        %1381 = vmatpush1.xpose.msra.mxu0 0.0
        %1382 = vmatprep.subr.mxu0 0.0
        %1383 = vmatpush1.xpose.msra.mxu0 0.0
        %1384 = vmatprep.subr.mxu0 0.0
        %1385 = vmatpush1.xpose.msra.mxu0 0.0
        %1386 = vmatprep.subr.mxu0 0.0
        %1387 = vmatpush1.xpose.msra.mxu0 0.0
        %1388 = vmatprep.subr.mxu0 0.0
        %1389 = vmatpush1.xpose.msra.mxu0 0.0
        %1390 = vmatprep.subr.mxu0 0.0
        %1391 = vmatpush1.xpose.msra.mxu0 0.0
        %1392 = vmatprep.mubr.f32.mxu0 0.0
        %1393 = vmatmul.mubr.f32.gmra.mrb[0].mxu0 %v1320
        %v1394 = vpop.f32.mrb[0].mxu0
        %v1395 = vadd.f32 0.0, %v1394
        %v1396 = vpop.f32.mrb[0].mxu0
        %1397 = vmatprep.mubr.f32.mxu0 0.0
        %1398 = vmatmul.mubr.f32.gmra.mrb[0].mxu0 %v1322
        %v1399 = vpop.f32.mrb[0].mxu0
        %v1400 = vadd.f32 0.0, %v1399
        %v1401 = vpop.f32.mrb[0].mxu0
        %1402 = vdwg.mxu0
        %1405 = vrot.lane.b32.xlu0 %v534, 124
        %v1406 = vpop.permute.xlu0 %1405
        %1407 = vrot.lane.b32.xlu0 %v539, 124
        %v1408 = vpop.permute.xlu0 %1407
        %v1409 = vsel %vm276, %v534, 0
        %v1411 = vsel %vm276, %v539, 0
        %v1413 = vsel %vm276, %v1406, 0
        %v1415 = vsel %vm276, %v1408, 0
        %1417 = vmatprep.subr.mxu0 0.0
        %1418 = vmatpush1.xpose.msra.mxu0 %v1413
        %1419 = vmatprep.subr.mxu0 0.0
        %1420 = vmatpush1.xpose.msra.mxu0 %v1415
        %1421 = vmatprep.subr.mxu0 0.0
        %1422 = vmatpush1.xpose.msra.mxu0 0.0
        %1423 = vmatprep.subr.mxu0 0.0
        %1424 = vmatpush1.xpose.msra.mxu0 0.0
        %1425 = vmatprep.subr.mxu0 0.0
        %1426 = vmatpush1.xpose.msra.mxu0 0.0
        %1427 = vmatprep.subr.mxu0 0.0
        %1428 = vmatpush1.xpose.msra.mxu0 0.0
        %1429 = vmatprep.subr.mxu0 0.0
        %1430 = vmatpush1.xpose.msra.mxu0 0.0
        %1431 = vmatprep.subr.mxu0 0.0
        %1432 = vmatpush1.xpose.msra.mxu0 0.0
        %1433 = vmatprep.subr.mxu0 0.0
        %1434 = vmatpush1.xpose.msra.mxu0 0.0
        %1435 = vmatprep.subr.mxu0 0.0
        %1436 = vmatpush1.xpose.msra.mxu0 0.0
        %1437 = vmatprep.subr.mxu0 0.0
        %1438 = vmatpush1.xpose.msra.mxu0 0.0
        %1439 = vmatprep.subr.mxu0 0.0
        %1440 = vmatpush1.xpose.msra.mxu0 0.0
        %1441 = vmatprep.subr.mxu0 0.0
        %1442 = vmatpush1.xpose.msra.mxu0 0.0
        %1443 = vmatprep.subr.mxu0 0.0
        %1444 = vmatpush1.xpose.msra.mxu0 0.0
        %1445 = vmatprep.subr.mxu0 0.0
        %1446 = vmatpush1.xpose.msra.mxu0 0.0
        %1447 = vmatprep.subr.mxu0 0.0
        %1448 = vmatpush1.xpose.msra.mxu0 0.0
        %1449 = vmatprep.subr.mxu0 0.0
        %1450 = vmatpush1.xpose.msra.mxu0 0.0
        %1451 = vmatprep.subr.mxu0 0.0
        %1452 = vmatpush1.xpose.msra.mxu0 0.0
        %1453 = vmatprep.subr.mxu0 0.0
        %1454 = vmatpush1.xpose.msra.mxu0 0.0
        %1455 = vmatprep.subr.mxu0 0.0
        %1456 = vmatpush1.xpose.msra.mxu0 0.0
        %1457 = vmatprep.subr.mxu0 0.0
        %1458 = vmatpush1.xpose.msra.mxu0 0.0
        %1459 = vmatprep.subr.mxu0 0.0
        %1460 = vmatpush1.xpose.msra.mxu0 0.0
        %1461 = vmatprep.subr.mxu0 0.0
        %1462 = vmatpush1.xpose.msra.mxu0 0.0
        %1463 = vmatprep.subr.mxu0 0.0
        %1464 = vmatpush1.xpose.msra.mxu0 0.0
        %1465 = vmatprep.subr.mxu0 0.0
        %1466 = vmatpush1.xpose.msra.mxu0 0.0
        %1467 = vmatprep.subr.mxu0 0.0
        %1468 = vmatpush1.xpose.msra.mxu0 0.0
        %1469 = vmatprep.subr.mxu0 0.0
        %1470 = vmatpush1.xpose.msra.mxu0 0.0
        %1471 = vmatprep.subr.mxu0 0.0
        %1472 = vmatpush1.xpose.msra.mxu0 0.0
        %1473 = vmatprep.subr.mxu0 0.0
        %1474 = vmatpush1.xpose.msra.mxu0 0.0
        %1475 = vmatprep.subr.mxu0 0.0
        %1476 = vmatpush1.xpose.msra.mxu0 0.0
        %1477 = vmatprep.subr.mxu0 0.0
        %1478 = vmatpush1.xpose.msra.mxu0 0.0
        %1479 = vmatprep.subr.mxu0 0.0
        %1480 = vmatpush1.xpose.msra.mxu0 0.0
        %1481 = vmatprep.mubr.f32.mxu0 0.0
        %1482 = vmatmul.mubr.f32.gmra.mrb[0].mxu0 %v1409
        %v1483 = vpop.f32.mrb[0].mxu0
        %v1484 = vadd.f32 0.0, %v1483
        %v1485 = vpop.f32.mrb[0].mxu0
        %1486 = vmatprep.mubr.f32.mxu0 0.0
        %1487 = vmatmul.mubr.f32.gmra.mrb[0].mxu0 %v1411
        %v1488 = vpop.f32.mrb[0].mxu0
        %v1489 = vadd.f32 0.0, %v1488
        %v1490 = vpop.f32.mrb[0].mxu0
        %1491 = vdwg.mxu0
        %1494 = vrot.lane.b32.xlu0 %v544, 124
        %v1495 = vpop.permute.xlu0 %1494
        %1496 = vrot.lane.b32.xlu0 %v549, 124
        %v1497 = vpop.permute.xlu0 %1496
        %v1498 = vsel %vm276, %v544, 0
        %v1500 = vsel %vm276, %v549, 0
        %v1502 = vsel %vm276, %v1495, 0
        %v1504 = vsel %vm276, %v1497, 0
        %1506 = vmatprep.subr.mxu0 0.0
        %1507 = vmatpush1.xpose.msra.mxu0 %v1502
        %1508 = vmatprep.subr.mxu0 0.0
        %1509 = vmatpush1.xpose.msra.mxu0 %v1504
        %1510 = vmatprep.subr.mxu0 0.0
        %1511 = vmatpush1.xpose.msra.mxu0 0.0
        %1512 = vmatprep.subr.mxu0 0.0
        %1513 = vmatpush1.xpose.msra.mxu0 0.0
        %1514 = vmatprep.subr.mxu0 0.0
        %1515 = vmatpush1.xpose.msra.mxu0 0.0
        %1516 = vmatprep.subr.mxu0 0.0
        %1517 = vmatpush1.xpose.msra.mxu0 0.0
        %1518 = vmatprep.subr.mxu0 0.0
        %1519 = vmatpush1.xpose.msra.mxu0 0.0
        %1520 = vmatprep.subr.mxu0 0.0
        %1521 = vmatpush1.xpose.msra.mxu0 0.0
        %1522 = vmatprep.subr.mxu0 0.0
        %1523 = vmatpush1.xpose.msra.mxu0 0.0
        %1524 = vmatprep.subr.mxu0 0.0
        %1525 = vmatpush1.xpose.msra.mxu0 0.0
        %1526 = vmatprep.subr.mxu0 0.0
        %1527 = vmatpush1.xpose.msra.mxu0 0.0
        %1528 = vmatprep.subr.mxu0 0.0
        %1529 = vmatpush1.xpose.msra.mxu0 0.0
        %1530 = vmatprep.subr.mxu0 0.0
        %1531 = vmatpush1.xpose.msra.mxu0 0.0
        %1532 = vmatprep.subr.mxu0 0.0
        %1533 = vmatpush1.xpose.msra.mxu0 0.0
        %1534 = vmatprep.subr.mxu0 0.0
        %1535 = vmatpush1.xpose.msra.mxu0 0.0
        %1536 = vmatprep.subr.mxu0 0.0
        %1537 = vmatpush1.xpose.msra.mxu0 0.0
        %1538 = vmatprep.subr.mxu0 0.0
        %1539 = vmatpush1.xpose.msra.mxu0 0.0
        %1540 = vmatprep.subr.mxu0 0.0
        %1541 = vmatpush1.xpose.msra.mxu0 0.0
        %1542 = vmatprep.subr.mxu0 0.0
        %1543 = vmatpush1.xpose.msra.mxu0 0.0
        %1544 = vmatprep.subr.mxu0 0.0
        %1545 = vmatpush1.xpose.msra.mxu0 0.0
        %1546 = vmatprep.subr.mxu0 0.0
        %1547 = vmatpush1.xpose.msra.mxu0 0.0
        %1548 = vmatprep.subr.mxu0 0.0
        %1549 = vmatpush1.xpose.msra.mxu0 0.0
        %1550 = vmatprep.subr.mxu0 0.0
        %1551 = vmatpush1.xpose.msra.mxu0 0.0
        %1552 = vmatprep.subr.mxu0 0.0
        %1553 = vmatpush1.xpose.msra.mxu0 0.0
        %1554 = vmatprep.subr.mxu0 0.0
        %1555 = vmatpush1.xpose.msra.mxu0 0.0
        %1556 = vmatprep.subr.mxu0 0.0
        %1557 = vmatpush1.xpose.msra.mxu0 0.0
        %1558 = vmatprep.subr.mxu0 0.0
        %1559 = vmatpush1.xpose.msra.mxu0 0.0
        %1560 = vmatprep.subr.mxu0 0.0
        %1561 = vmatpush1.xpose.msra.mxu0 0.0
        %1562 = vmatprep.subr.mxu0 0.0
        %1563 = vmatpush1.xpose.msra.mxu0 0.0
        %1564 = vmatprep.subr.mxu0 0.0
        %1565 = vmatpush1.xpose.msra.mxu0 0.0
        %1566 = vmatprep.subr.mxu0 0.0
        %1567 = vmatpush1.xpose.msra.mxu0 0.0
        %1568 = vmatprep.subr.mxu0 0.0
        %1569 = vmatpush1.xpose.msra.mxu0 0.0
        %1570 = vmatprep.mubr.f32.mxu0 0.0
        %1571 = vmatmul.mubr.f32.gmra.mrb[0].mxu0 %v1498
        %v1572 = vpop.f32.mrb[0].mxu0
        %v1573 = vadd.f32 0.0, %v1572
        %v1574 = vpop.f32.mrb[0].mxu0
        %1575 = vmatprep.mubr.f32.mxu0 0.0
        %1576 = vmatmul.mubr.f32.gmra.mrb[0].mxu0 %v1500
        %v1577 = vpop.f32.mrb[0].mxu0
        %v1578 = vadd.f32 0.0, %v1577
        %v1579 = vpop.f32.mrb[0].mxu0
        %1580 = vdwg.mxu0
        %1583 = vrot.lane.b32.xlu0 %v554, 124
        %v1584 = vpop.permute.xlu0 %1583
        %1585 = vrot.lane.b32.xlu0 %v559, 124
        %v1586 = vpop.permute.xlu0 %1585
        %v1587 = vsel %vm276, %v554, 0
        %v1589 = vsel %vm276, %v559, 0
        %v1591 = vsel %vm276, %v1584, 0
        %v1593 = vsel %vm276, %v1586, 0
        %1595 = vmatprep.subr.mxu0 0.0
        %1596 = vmatpush1.xpose.msra.mxu0 %v1591
        %1597 = vmatprep.subr.mxu0 0.0
        %1598 = vmatpush1.xpose.msra.mxu0 %v1593
        %1599 = vmatprep.subr.mxu0 0.0
        %1600 = vmatpush1.xpose.msra.mxu0 0.0
        %1601 = vmatprep.subr.mxu0 0.0
        %1602 = vmatpush1.xpose.msra.mxu0 0.0
        %1603 = vmatprep.subr.mxu0 0.0
        %1604 = vmatpush1.xpose.msra.mxu0 0.0
        %1605 = vmatprep.subr.mxu0 0.0
        %1606 = vmatpush1.xpose.msra.mxu0 0.0
        %1607 = vmatprep.subr.mxu0 0.0
        %1608 = vmatpush1.xpose.msra.mxu0 0.0
        %1609 = vmatprep.subr.mxu0 0.0
        %1610 = vmatpush1.xpose.msra.mxu0 0.0
        %1611 = vmatprep.subr.mxu0 0.0
        %1612 = vmatpush1.xpose.msra.mxu0 0.0
        %1613 = vmatprep.subr.mxu0 0.0
        %1614 = vmatpush1.xpose.msra.mxu0 0.0
        %1615 = vmatprep.subr.mxu0 0.0
        %1616 = vmatpush1.xpose.msra.mxu0 0.0
        %1617 = vmatprep.subr.mxu0 0.0
        %1618 = vmatpush1.xpose.msra.mxu0 0.0
        %1619 = vmatprep.subr.mxu0 0.0
        %1620 = vmatpush1.xpose.msra.mxu0 0.0
        %1621 = vmatprep.subr.mxu0 0.0
        %1622 = vmatpush1.xpose.msra.mxu0 0.0
        %1623 = vmatprep.subr.mxu0 0.0
        %1624 = vmatpush1.xpose.msra.mxu0 0.0
        %1625 = vmatprep.subr.mxu0 0.0
        %1626 = vmatpush1.xpose.msra.mxu0 0.0
        %1627 = vmatprep.subr.mxu0 0.0
        %1628 = vmatpush1.xpose.msra.mxu0 0.0
        %1629 = vmatprep.subr.mxu0 0.0
        %1630 = vmatpush1.xpose.msra.mxu0 0.0
        %1631 = vmatprep.subr.mxu0 0.0
        %1632 = vmatpush1.xpose.msra.mxu0 0.0
        %1633 = vmatprep.subr.mxu0 0.0
        %1634 = vmatpush1.xpose.msra.mxu0 0.0
        %1635 = vmatprep.subr.mxu0 0.0
        %1636 = vmatpush1.xpose.msra.mxu0 0.0
        %1637 = vmatprep.subr.mxu0 0.0
        %1638 = vmatpush1.xpose.msra.mxu0 0.0
        %1639 = vmatprep.subr.mxu0 0.0
        %1640 = vmatpush1.xpose.msra.mxu0 0.0
        %1641 = vmatprep.subr.mxu0 0.0
        %1642 = vmatpush1.xpose.msra.mxu0 0.0
        %1643 = vmatprep.subr.mxu0 0.0
        %1644 = vmatpush1.xpose.msra.mxu0 0.0
        %1645 = vmatprep.subr.mxu0 0.0
        %1646 = vmatpush1.xpose.msra.mxu0 0.0
        %1647 = vmatprep.subr.mxu0 0.0
        %1648 = vmatpush1.xpose.msra.mxu0 0.0
        %1649 = vmatprep.subr.mxu0 0.0
        %1650 = vmatpush1.xpose.msra.mxu0 0.0
        %1651 = vmatprep.subr.mxu0 0.0
        %1652 = vmatpush1.xpose.msra.mxu0 0.0
        %1653 = vmatprep.subr.mxu0 0.0
        %1654 = vmatpush1.xpose.msra.mxu0 0.0
        %1655 = vmatprep.subr.mxu0 0.0
        %1656 = vmatpush1.xpose.msra.mxu0 0.0
        %1657 = vmatprep.subr.mxu0 0.0
        %1658 = vmatpush1.xpose.msra.mxu0 0.0
        %1659 = vmatprep.mubr.f32.mxu0 0.0
        %1660 = vmatmul.mubr.f32.gmra.mrb[0].mxu0 %v1587
        %v1661 = vpop.f32.mrb[0].mxu0
        %v1662 = vadd.f32 0.0, %v1661
        %v1663 = vpop.f32.mrb[0].mxu0
        %1664 = vmatprep.mubr.f32.mxu0 0.0
        %1665 = vmatmul.mubr.f32.gmra.mrb[0].mxu0 %v1589
        %v1666 = vpop.f32.mrb[0].mxu0
        %v1667 = vadd.f32 0.0, %v1666
        %v1668 = vpop.f32.mrb[0].mxu0
        %1669 = vdwg.mxu0
        %1672 = vrot.lane.b32.xlu0 %v564, 124
        %v1673 = vpop.permute.xlu0 %1672
        %1674 = vrot.lane.b32.xlu0 %v569, 124
        %v1675 = vpop.permute.xlu0 %1674
        %v1676 = vsel %vm276, %v564, 0
        %v1678 = vsel %vm276, %v569, 0
        %v1680 = vsel %vm276, %v1673, 0
        %v1682 = vsel %vm276, %v1675, 0
        %1684 = vmatprep.subr.mxu0 0.0
        %1685 = vmatpush1.xpose.msra.mxu0 %v1680
        %1686 = vmatprep.subr.mxu0 0.0
        %1687 = vmatpush1.xpose.msra.mxu0 %v1682
        %1688 = vmatprep.subr.mxu0 0.0
        %1689 = vmatpush1.xpose.msra.mxu0 0.0
        %1690 = vmatprep.subr.mxu0 0.0
        %1691 = vmatpush1.xpose.msra.mxu0 0.0
        %1692 = vmatprep.subr.mxu0 0.0
        %1693 = vmatpush1.xpose.msra.mxu0 0.0
        %1694 = vmatprep.subr.mxu0 0.0
        %1695 = vmatpush1.xpose.msra.mxu0 0.0
        %1696 = vmatprep.subr.mxu0 0.0
        %1697 = vmatpush1.xpose.msra.mxu0 0.0
        %1698 = vmatprep.subr.mxu0 0.0
        %1699 = vmatpush1.xpose.msra.mxu0 0.0
        %1700 = vmatprep.subr.mxu0 0.0
        %1701 = vmatpush1.xpose.msra.mxu0 0.0
        %1702 = vmatprep.subr.mxu0 0.0
        %1703 = vmatpush1.xpose.msra.mxu0 0.0
        %1704 = vmatprep.subr.mxu0 0.0
        %1705 = vmatpush1.xpose.msra.mxu0 0.0
        %1706 = vmatprep.subr.mxu0 0.0
        %1707 = vmatpush1.xpose.msra.mxu0 0.0
        %1708 = vmatprep.subr.mxu0 0.0
        %1709 = vmatpush1.xpose.msra.mxu0 0.0
        %1710 = vmatprep.subr.mxu0 0.0
        %1711 = vmatpush1.xpose.msra.mxu0 0.0
        %1712 = vmatprep.subr.mxu0 0.0
        %1713 = vmatpush1.xpose.msra.mxu0 0.0
        %1714 = vmatprep.subr.mxu0 0.0
        %1715 = vmatpush1.xpose.msra.mxu0 0.0
        %1716 = vmatprep.subr.mxu0 0.0
        %1717 = vmatpush1.xpose.msra.mxu0 0.0
        %1718 = vmatprep.subr.mxu0 0.0
        %1719 = vmatpush1.xpose.msra.mxu0 0.0
        %1720 = vmatprep.subr.mxu0 0.0
        %1721 = vmatpush1.xpose.msra.mxu0 0.0
        %1722 = vmatprep.subr.mxu0 0.0
        %1723 = vmatpush1.xpose.msra.mxu0 0.0
        %1724 = vmatprep.subr.mxu0 0.0
        %1725 = vmatpush1.xpose.msra.mxu0 0.0
        %1726 = vmatprep.subr.mxu0 0.0
        %1727 = vmatpush1.xpose.msra.mxu0 0.0
        %1728 = vmatprep.subr.mxu0 0.0
        %1729 = vmatpush1.xpose.msra.mxu0 0.0
        %1730 = vmatprep.subr.mxu0 0.0
        %1731 = vmatpush1.xpose.msra.mxu0 0.0
        %1732 = vmatprep.subr.mxu0 0.0
        %1733 = vmatpush1.xpose.msra.mxu0 0.0
        %1734 = vmatprep.subr.mxu0 0.0
        %1735 = vmatpush1.xpose.msra.mxu0 0.0
        %1736 = vmatprep.subr.mxu0 0.0
        %1737 = vmatpush1.xpose.msra.mxu0 0.0
        %1738 = vmatprep.subr.mxu0 0.0
        %1739 = vmatpush1.xpose.msra.mxu0 0.0
        %1740 = vmatprep.subr.mxu0 0.0
        %1741 = vmatpush1.xpose.msra.mxu0 0.0
        %1742 = vmatprep.subr.mxu0 0.0
        %1743 = vmatpush1.xpose.msra.mxu0 0.0
        %1744 = vmatprep.subr.mxu0 0.0
        %1745 = vmatpush1.xpose.msra.mxu0 0.0
        %1746 = vmatprep.subr.mxu0 0.0
        %1747 = vmatpush1.xpose.msra.mxu0 0.0
        %1748 = vmatprep.mubr.f32.mxu0 0.0
        %1749 = vmatmul.mubr.f32.gmra.mrb[0].mxu0 %v1676
        %v1750 = vpop.f32.mrb[0].mxu0
        %v1751 = vadd.f32 0.0, %v1750
        %v1752 = vpop.f32.mrb[0].mxu0
        %1753 = vmatprep.mubr.f32.mxu0 0.0
        %1754 = vmatmul.mubr.f32.gmra.mrb[0].mxu0 %v1678
        %v1755 = vpop.f32.mrb[0].mxu0
        %v1756 = vadd.f32 0.0, %v1755
        %v1757 = vpop.f32.mrb[0].mxu0
        %1758 = vdwg.mxu0
        %1761 = vrot.lane.b32.xlu0 %v574, 124
        %v1762 = vpop.permute.xlu0 %1761
        %1763 = vrot.lane.b32.xlu0 %v579, 124
        %v1764 = vpop.permute.xlu0 %1763
        %v1765 = vsel %vm276, %v574, 0
        %v1767 = vsel %vm276, %v579, 0
        %v1769 = vsel %vm276, %v1762, 0
        %v1771 = vsel %vm276, %v1764, 0
        %1773 = vmatprep.subr.mxu0 0.0
        %1774 = vmatpush1.xpose.msra.mxu0 %v1769
        %1775 = vmatprep.subr.mxu0 0.0
        %1776 = vmatpush1.xpose.msra.mxu0 %v1771
        %1777 = vmatprep.subr.mxu0 0.0
        %1778 = vmatpush1.xpose.msra.mxu0 0.0
        %1779 = vmatprep.subr.mxu0 0.0
        %1780 = vmatpush1.xpose.msra.mxu0 0.0
        %1781 = vmatprep.subr.mxu0 0.0
        %1782 = vmatpush1.xpose.msra.mxu0 0.0
        %1783 = vmatprep.subr.mxu0 0.0
        %1784 = vmatpush1.xpose.msra.mxu0 0.0
        %1785 = vmatprep.subr.mxu0 0.0
        %1786 = vmatpush1.xpose.msra.mxu0 0.0
        %1787 = vmatprep.subr.mxu0 0.0
        %1788 = vmatpush1.xpose.msra.mxu0 0.0
        %1789 = vmatprep.subr.mxu0 0.0
        %1790 = vmatpush1.xpose.msra.mxu0 0.0
        %1791 = vmatprep.subr.mxu0 0.0
        %1792 = vmatpush1.xpose.msra.mxu0 0.0
        %1793 = vmatprep.subr.mxu0 0.0
        %1794 = vmatpush1.xpose.msra.mxu0 0.0
        %1795 = vmatprep.subr.mxu0 0.0
        %1796 = vmatpush1.xpose.msra.mxu0 0.0
        %1797 = vmatprep.subr.mxu0 0.0
        %1798 = vmatpush1.xpose.msra.mxu0 0.0
        %1799 = vmatprep.subr.mxu0 0.0
        %1800 = vmatpush1.xpose.msra.mxu0 0.0
        %1801 = vmatprep.subr.mxu0 0.0
        %1802 = vmatpush1.xpose.msra.mxu0 0.0
        %1803 = vmatprep.subr.mxu0 0.0
        %1804 = vmatpush1.xpose.msra.mxu0 0.0
        %1805 = vmatprep.subr.mxu0 0.0
        %1806 = vmatpush1.xpose.msra.mxu0 0.0
        %1807 = vmatprep.subr.mxu0 0.0
        %1808 = vmatpush1.xpose.msra.mxu0 0.0
        %1809 = vmatprep.subr.mxu0 0.0
        %1810 = vmatpush1.xpose.msra.mxu0 0.0
        %1811 = vmatprep.subr.mxu0 0.0
        %1812 = vmatpush1.xpose.msra.mxu0 0.0
        %1813 = vmatprep.subr.mxu0 0.0
        %1814 = vmatpush1.xpose.msra.mxu0 0.0
        %1815 = vmatprep.subr.mxu0 0.0
        %1816 = vmatpush1.xpose.msra.mxu0 0.0
        %1817 = vmatprep.subr.mxu0 0.0
        %1818 = vmatpush1.xpose.msra.mxu0 0.0
        %1819 = vmatprep.subr.mxu0 0.0
        %1820 = vmatpush1.xpose.msra.mxu0 0.0
        %1821 = vmatprep.subr.mxu0 0.0
        %1822 = vmatpush1.xpose.msra.mxu0 0.0
        %1823 = vmatprep.subr.mxu0 0.0
        %1824 = vmatpush1.xpose.msra.mxu0 0.0
        %1825 = vmatprep.subr.mxu0 0.0
        %1826 = vmatpush1.xpose.msra.mxu0 0.0
        %1827 = vmatprep.subr.mxu0 0.0
        %1828 = vmatpush1.xpose.msra.mxu0 0.0
        %1829 = vmatprep.subr.mxu0 0.0
        %1830 = vmatpush1.xpose.msra.mxu0 0.0
        %1831 = vmatprep.subr.mxu0 0.0
        %1832 = vmatpush1.xpose.msra.mxu0 0.0
        %1833 = vmatprep.subr.mxu0 0.0
        %1834 = vmatpush1.xpose.msra.mxu0 0.0
        %1835 = vmatprep.subr.mxu0 0.0
        %1836 = vmatpush1.xpose.msra.mxu0 0.0
        %1837 = vmatprep.mubr.f32.mxu0 0.0
        %1838 = vmatmul.mubr.f32.gmra.mrb[0].mxu0 %v1765
        %v1839 = vpop.f32.mrb[0].mxu0
        %v1840 = vadd.f32 0.0, %v1839
        %v1841 = vpop.f32.mrb[0].mxu0
        %1842 = vmatprep.mubr.f32.mxu0 0.0
        %1843 = vmatmul.mubr.f32.gmra.mrb[0].mxu0 %v1767
        %v1844 = vpop.f32.mrb[0].mxu0
        %v1845 = vadd.f32 0.0, %v1844
        %v1846 = vpop.f32.mrb[0].mxu0
        %1847 = vdwg.mxu0
        %1850 = vrot.lane.b32.xlu0 %v584, 124
        %v1851 = vpop.permute.xlu0 %1850
        %1852 = vrot.lane.b32.xlu0 %v589, 124
        %v1853 = vpop.permute.xlu0 %1852
        %v1854 = vsel %vm276, %v584, 0
        %v1856 = vsel %vm276, %v589, 0
        %v1858 = vsel %vm276, %v1851, 0
        %v1860 = vsel %vm276, %v1853, 0
        %1862 = vmatprep.subr.mxu0 0.0
        %1863 = vmatpush1.xpose.msra.mxu0 %v1858
        %1864 = vmatprep.subr.mxu0 0.0
        %1865 = vmatpush1.xpose.msra.mxu0 %v1860
        %1866 = vmatprep.subr.mxu0 0.0
        %1867 = vmatpush1.xpose.msra.mxu0 0.0
        %1868 = vmatprep.subr.mxu0 0.0
        %1869 = vmatpush1.xpose.msra.mxu0 0.0
        %1870 = vmatprep.subr.mxu0 0.0
        %1871 = vmatpush1.xpose.msra.mxu0 0.0
        %1872 = vmatprep.subr.mxu0 0.0
        %1873 = vmatpush1.xpose.msra.mxu0 0.0
        %1874 = vmatprep.subr.mxu0 0.0
        %1875 = vmatpush1.xpose.msra.mxu0 0.0
        %1876 = vmatprep.subr.mxu0 0.0
        %1877 = vmatpush1.xpose.msra.mxu0 0.0
        %1878 = vmatprep.subr.mxu0 0.0
        %1879 = vmatpush1.xpose.msra.mxu0 0.0
        %1880 = vmatprep.subr.mxu0 0.0
        %1881 = vmatpush1.xpose.msra.mxu0 0.0
        %1882 = vmatprep.subr.mxu0 0.0
        %1883 = vmatpush1.xpose.msra.mxu0 0.0
        %1884 = vmatprep.subr.mxu0 0.0
        %1885 = vmatpush1.xpose.msra.mxu0 0.0
        %1886 = vmatprep.subr.mxu0 0.0
        %1887 = vmatpush1.xpose.msra.mxu0 0.0
        %1888 = vmatprep.subr.mxu0 0.0
        %1889 = vmatpush1.xpose.msra.mxu0 0.0
        %1890 = vmatprep.subr.mxu0 0.0
        %1891 = vmatpush1.xpose.msra.mxu0 0.0
        %1892 = vmatprep.subr.mxu0 0.0
        %1893 = vmatpush1.xpose.msra.mxu0 0.0
        %1894 = vmatprep.subr.mxu0 0.0
        %1895 = vmatpush1.xpose.msra.mxu0 0.0
        %1896 = vmatprep.subr.mxu0 0.0
        %1897 = vmatpush1.xpose.msra.mxu0 0.0
        %1898 = vmatprep.subr.mxu0 0.0
        %1899 = vmatpush1.xpose.msra.mxu0 0.0
        %1900 = vmatprep.subr.mxu0 0.0
        %1901 = vmatpush1.xpose.msra.mxu0 0.0
        %1902 = vmatprep.subr.mxu0 0.0
        %1903 = vmatpush1.xpose.msra.mxu0 0.0
        %1904 = vmatprep.subr.mxu0 0.0
        %1905 = vmatpush1.xpose.msra.mxu0 0.0
        %1906 = vmatprep.subr.mxu0 0.0
        %1907 = vmatpush1.xpose.msra.mxu0 0.0
        %1908 = vmatprep.subr.mxu0 0.0
        %1909 = vmatpush1.xpose.msra.mxu0 0.0
        %1910 = vmatprep.subr.mxu0 0.0
        %1911 = vmatpush1.xpose.msra.mxu0 0.0
        %1912 = vmatprep.subr.mxu0 0.0
        %1913 = vmatpush1.xpose.msra.mxu0 0.0
        %1914 = vmatprep.subr.mxu0 0.0
        %1915 = vmatpush1.xpose.msra.mxu0 0.0
        %1916 = vmatprep.subr.mxu0 0.0
        %1917 = vmatpush1.xpose.msra.mxu0 0.0
        %1918 = vmatprep.subr.mxu0 0.0
        %1919 = vmatpush1.xpose.msra.mxu0 0.0
        %1920 = vmatprep.subr.mxu0 0.0
        %1921 = vmatpush1.xpose.msra.mxu0 0.0
        %1922 = vmatprep.subr.mxu0 0.0
        %1923 = vmatpush1.xpose.msra.mxu0 0.0
        %1924 = vmatprep.subr.mxu0 0.0
        %1925 = vmatpush1.xpose.msra.mxu0 0.0
        %1926 = vmatprep.mubr.f32.mxu0 0.0
        %1927 = vmatmul.mubr.f32.gmra.mrb[0].mxu0 %v1854
        %v1928 = vpop.f32.mrb[0].mxu0
        %v1929 = vadd.f32 0.0, %v1928
        %v1930 = vpop.f32.mrb[0].mxu0
        %1931 = vmatprep.mubr.f32.mxu0 0.0
        %1932 = vmatmul.mubr.f32.gmra.mrb[0].mxu0 %v1856
        %v1933 = vpop.f32.mrb[0].mxu0
        %v1934 = vadd.f32 0.0, %v1933
        %v1935 = vpop.f32.mrb[0].mxu0
        %1936 = vdwg.mxu0
        %1939 = vrot.lane.b32.xlu0 %v594, 124
        %v1940 = vpop.permute.xlu0 %1939
        %1941 = vrot.lane.b32.xlu0 %v599, 124
        %v1942 = vpop.permute.xlu0 %1941
        %v1943 = vsel %vm276, %v594, 0
        %v1945 = vsel %vm276, %v599, 0
        %v1947 = vsel %vm276, %v1940, 0
        %v1949 = vsel %vm276, %v1942, 0
        %1951 = vmatprep.subr.mxu0 0.0
        %1952 = vmatpush1.xpose.msra.mxu0 %v1947
        %1953 = vmatprep.subr.mxu0 0.0
        %1954 = vmatpush1.xpose.msra.mxu0 %v1949
        %1955 = vmatprep.subr.mxu0 0.0
        %1956 = vmatpush1.xpose.msra.mxu0 0.0
        %1957 = vmatprep.subr.mxu0 0.0
        %1958 = vmatpush1.xpose.msra.mxu0 0.0
        %1959 = vmatprep.subr.mxu0 0.0
        %1960 = vmatpush1.xpose.msra.mxu0 0.0
        %1961 = vmatprep.subr.mxu0 0.0
        %1962 = vmatpush1.xpose.msra.mxu0 0.0
        %1963 = vmatprep.subr.mxu0 0.0
        %1964 = vmatpush1.xpose.msra.mxu0 0.0
        %1965 = vmatprep.subr.mxu0 0.0
        %1966 = vmatpush1.xpose.msra.mxu0 0.0
        %1967 = vmatprep.subr.mxu0 0.0
        %1968 = vmatpush1.xpose.msra.mxu0 0.0
        %1969 = vmatprep.subr.mxu0 0.0
        %1970 = vmatpush1.xpose.msra.mxu0 0.0
        %1971 = vmatprep.subr.mxu0 0.0
        %1972 = vmatpush1.xpose.msra.mxu0 0.0
        %1973 = vmatprep.subr.mxu0 0.0
        %1974 = vmatpush1.xpose.msra.mxu0 0.0
        %1975 = vmatprep.subr.mxu0 0.0
        %1976 = vmatpush1.xpose.msra.mxu0 0.0
        %1977 = vmatprep.subr.mxu0 0.0
        %1978 = vmatpush1.xpose.msra.mxu0 0.0
        %1979 = vmatprep.subr.mxu0 0.0
        %1980 = vmatpush1.xpose.msra.mxu0 0.0
        %1981 = vmatprep.subr.mxu0 0.0
        %1982 = vmatpush1.xpose.msra.mxu0 0.0
        %1983 = vmatprep.subr.mxu0 0.0
        %1984 = vmatpush1.xpose.msra.mxu0 0.0
        %1985 = vmatprep.subr.mxu0 0.0
        %1986 = vmatpush1.xpose.msra.mxu0 0.0
        %1987 = vmatprep.subr.mxu0 0.0
        %1988 = vmatpush1.xpose.msra.mxu0 0.0
        %1989 = vmatprep.subr.mxu0 0.0
        %1990 = vmatpush1.xpose.msra.mxu0 0.0
        %1991 = vmatprep.subr.mxu0 0.0
        %1992 = vmatpush1.xpose.msra.mxu0 0.0
        %1993 = vmatprep.subr.mxu0 0.0
        %1994 = vmatpush1.xpose.msra.mxu0 0.0
        %1995 = vmatprep.subr.mxu0 0.0
        %1996 = vmatpush1.xpose.msra.mxu0 0.0
        %1997 = vmatprep.subr.mxu0 0.0
        %1998 = vmatpush1.xpose.msra.mxu0 0.0
        %1999 = vmatprep.subr.mxu0 0.0
        %2000 = vmatpush1.xpose.msra.mxu0 0.0
        %2001 = vmatprep.subr.mxu0 0.0
        %2002 = vmatpush1.xpose.msra.mxu0 0.0
        %2003 = vmatprep.subr.mxu0 0.0
        %2004 = vmatpush1.xpose.msra.mxu0 0.0
        %2005 = vmatprep.subr.mxu0 0.0
        %2006 = vmatpush1.xpose.msra.mxu0 0.0
        %2007 = vmatprep.subr.mxu0 0.0
        %2008 = vmatpush1.xpose.msra.mxu0 0.0
        %2009 = vmatprep.subr.mxu0 0.0
        %2010 = vmatpush1.xpose.msra.mxu0 0.0
        %2011 = vmatprep.subr.mxu0 0.0
        %2012 = vmatpush1.xpose.msra.mxu0 0.0
        %2013 = vmatprep.subr.mxu0 0.0
        %2014 = vmatpush1.xpose.msra.mxu0 0.0
        %2015 = vmatprep.mubr.f32.mxu0 0.0
        %2016 = vmatmul.mubr.f32.gmra.mrb[0].mxu0 %v1943
        %v2017 = vpop.f32.mrb[0].mxu0
        %v2018 = vadd.f32 0.0, %v2017
        %v2019 = vpop.f32.mrb[0].mxu0
        %2020 = vmatprep.mubr.f32.mxu0 0.0
        %2021 = vmatmul.mubr.f32.gmra.mrb[0].mxu0 %v1945
        %v2022 = vpop.f32.mrb[0].mxu0
        %v2023 = vadd.f32 0.0, %v2022
        %v2024 = vpop.f32.mrb[0].mxu0
        %2025 = vdwg.mxu0
        %vm2026 = vcmask 130048
        %v2027 = vsel %vm2026, %v683, -inf
        %2028 = vmax.xlane.f32.xlu0 %v2027
        %v2029 = vpop.xlane.xlu0 %2028
        %v2030 = vsel %vm2026, %v688, -inf
        %2031 = vmax.xlane.f32.xlu0 %v2030
        %v2032 = vpop.xlane.xlu0 %2031
        %v2033 = vsel %vm2026, %v772, -inf
        %2034 = vmax.xlane.f32.xlu0 %v2033
        %v2035 = vpop.xlane.xlu0 %2034
        %v2036 = vsel %vm2026, %v777, -inf
        %2037 = vmax.xlane.f32.xlu0 %v2036
        %v2038 = vpop.xlane.xlu0 %2037
        %v2039 = vsel %vm2026, %v861, -inf
        %2040 = vmax.xlane.f32.xlu0 %v2039
        %v2041 = vpop.xlane.xlu0 %2040
        %v2042 = vsel %vm2026, %v866, -inf
        %2043 = vmax.xlane.f32.xlu0 %v2042
        %v2044 = vpop.xlane.xlu0 %2043
        %v2045 = vsel %vm2026, %v950, -inf
        %2046 = vmax.xlane.f32.xlu0 %v2045
        %v2047 = vpop.xlane.xlu0 %2046
        %v2048 = vsel %vm2026, %v955, -inf
        %2049 = vmax.xlane.f32.xlu0 %v2048
        %v2050 = vpop.xlane.xlu0 %2049
        %v2051 = vsel %vm2026, %v1039, -inf
        %2052 = vmax.xlane.f32.xlu0 %v2051
        %v2053 = vpop.xlane.xlu0 %2052
        %v2054 = vsel %vm2026, %v1044, -inf
        %2055 = vmax.xlane.f32.xlu0 %v2054
        %v2056 = vpop.xlane.xlu0 %2055
        %v2057 = vsel %vm2026, %v1128, -inf
        %2058 = vmax.xlane.f32.xlu0 %v2057
        %v2059 = vpop.xlane.xlu0 %2058
        %v2060 = vsel %vm2026, %v1133, -inf
        %2061 = vmax.xlane.f32.xlu0 %v2060
        %v2062 = vpop.xlane.xlu0 %2061
        %v2063 = vsel %vm2026, %v1217, -inf
        %2064 = vmax.xlane.f32.xlu0 %v2063
        %v2065 = vpop.xlane.xlu0 %2064
        %v2066 = vsel %vm2026, %v1222, -inf
        %2067 = vmax.xlane.f32.xlu0 %v2066
        %v2068 = vpop.xlane.xlu0 %2067
        %v2069 = vsel %vm2026, %v1306, -inf
        %2070 = vmax.xlane.f32.xlu0 %v2069
        %v2071 = vpop.xlane.xlu0 %2070
        %v2072 = vsel %vm2026, %v1311, -inf
        %2073 = vmax.xlane.f32.xlu0 %v2072
        %v2074 = vpop.xlane.xlu0 %2073
        %v2075 = vsel %vm2026, %v1395, -inf
        %2076 = vmax.xlane.f32.xlu0 %v2075
        %v2077 = vpop.xlane.xlu0 %2076
        %v2078 = vsel %vm2026, %v1400, -inf
        %2079 = vmax.xlane.f32.xlu0 %v2078
        %v2080 = vpop.xlane.xlu0 %2079
        %v2081 = vsel %vm2026, %v1484, -inf
        %2082 = vmax.xlane.f32.xlu0 %v2081
        %v2083 = vpop.xlane.xlu0 %2082
        %v2084 = vsel %vm2026, %v1489, -inf
        %2085 = vmax.xlane.f32.xlu0 %v2084
        %v2086 = vpop.xlane.xlu0 %2085
        %v2087 = vsel %vm2026, %v1573, -inf
        %2088 = vmax.xlane.f32.xlu0 %v2087
        %v2089 = vpop.xlane.xlu0 %2088
        %v2090 = vsel %vm2026, %v1578, -inf
        %2091 = vmax.xlane.f32.xlu0 %v2090
        %v2092 = vpop.xlane.xlu0 %2091
        %v2093 = vsel %vm2026, %v1662, -inf
        %2094 = vmax.xlane.f32.xlu0 %v2093
        %v2095 = vpop.xlane.xlu0 %2094
        %v2096 = vsel %vm2026, %v1667, -inf
        %2097 = vmax.xlane.f32.xlu0 %v2096
        %v2098 = vpop.xlane.xlu0 %2097
        %v2099 = vsel %vm2026, %v1751, -inf
        %2100 = vmax.xlane.f32.xlu0 %v2099
        %v2101 = vpop.xlane.xlu0 %2100
        %v2102 = vsel %vm2026, %v1756, -inf
        %2103 = vmax.xlane.f32.xlu0 %v2102
        %v2104 = vpop.xlane.xlu0 %2103
        %v2105 = vsel %vm2026, %v1840, -inf
        %2106 = vmax.xlane.f32.xlu0 %v2105
        %v2107 = vpop.xlane.xlu0 %2106
        %v2108 = vsel %vm2026, %v1845, -inf
        %2109 = vmax.xlane.f32.xlu0 %v2108
        %v2110 = vpop.xlane.xlu0 %2109
        %v2111 = vsel %vm2026, %v1929, -inf
        %2112 = vmax.xlane.f32.xlu0 %v2111
        %v2113 = vpop.xlane.xlu0 %2112
        %v2114 = vsel %vm2026, %v1934, -inf
        %2115 = vmax.xlane.f32.xlu0 %v2114
        %v2116 = vpop.xlane.xlu0 %2115
        %v2117 = vsel %vm2026, %v2018, -inf
        %2118 = vmax.xlane.f32.xlu0 %v2117
        %v2119 = vpop.xlane.xlu0 %2118
        %v2120 = vsel %vm2026, %v2023, -inf
        %2121 = vmax.xlane.f32.xlu0 %v2120
        %v2122 = vpop.xlane.xlu0 %2121
        %v2123 = vcombine.low %v444, %v464
        %v2124 = vcombine.high %v444, %v464
        %v2126 = vunpack.c.l.s4 1983009808
        %v2127 = vunpack.c.0.s8 %v2126
        %v2128 = vlaneseq
        %v2129 = vshrl.u32 %v2128, 7
        %v2130 = vsub.s32 %v2127, %v2129
        %v2131 = vrot.slane %v2123, %v2130
        %v2133 = vunpack.c.l.s4 1983009808
        %v2134 = vunpack.c.0.s8 %v2133
        %v2135 = vlaneseq
        %v2136 = vshrl.u32 %v2135, 7
        %v2137 = vsub.s32 %v2134, %v2136
        %v2138 = vrot.slane %v2124, %v2137
        %v2139 = vcombine.low %v454, %v474
        %v2140 = vcombine.high %v454, %v474
        %v2142 = vunpack.c.l.s4 1983009808
        %v2143 = vunpack.c.0.s8 %v2142
        %v2144 = vlaneseq
        %v2145 = vshrl.u32 %v2144, 7
        %v2146 = vsub.s32 %v2143, %v2145
        %v2147 = vrot.slane %v2139, %v2146
        %v2149 = vunpack.c.l.s4 1983009808
        %v2150 = vunpack.c.0.s8 %v2149
        %v2151 = vlaneseq
        %v2152 = vshrl.u32 %v2151, 7
        %v2153 = vsub.s32 %v2150, %v2152
        %v2154 = vrot.slane %v2140, %v2153
        %v2155 = vcombine.low %v484, %v504
        %v2156 = vcombine.high %v484, %v504
        %v2158 = vunpack.c.l.s4 1983009808
        %v2159 = vunpack.c.0.s8 %v2158
        %v2160 = vlaneseq
        %v2161 = vshrl.u32 %v2160, 7
        %v2162 = vsub.s32 %v2159, %v2161
        %v2163 = vrot.slane %v2155, %v2162
        %v2165 = vunpack.c.l.s4 1983009808
        %v2166 = vunpack.c.0.s8 %v2165
        %v2167 = vlaneseq
        %v2168 = vshrl.u32 %v2167, 7
        %v2169 = vsub.s32 %v2166, %v2168
        %v2170 = vrot.slane %v2156, %v2169
        %v2171 = vcombine.low %v494, %v514
        %v2172 = vcombine.high %v494, %v514
        %v2174 = vunpack.c.l.s4 1983009808
        %v2175 = vunpack.c.0.s8 %v2174
        %v2176 = vlaneseq
        %v2177 = vshrl.u32 %v2176, 7
        %v2178 = vsub.s32 %v2175, %v2177
        %v2179 = vrot.slane %v2171, %v2178
        %v2181 = vunpack.c.l.s4 1983009808
        %v2182 = vunpack.c.0.s8 %v2181
        %v2183 = vlaneseq
        %v2184 = vshrl.u32 %v2183, 7
        %v2185 = vsub.s32 %v2182, %v2184
        %v2186 = vrot.slane %v2172, %v2185
        %v2187 = vcombine.low %v2131, %v2147
        %v2188 = vcombine.high %v2131, %v2147
        %v2190 = vunpack.c.l.s4 1934713408
        %v2191 = vunpack.c.0.s8 %v2190
        %v2192 = vlaneseq
        %v2193 = vshrl.u32 %v2192, 7
        %v2194 = vsub.s32 %v2191, %v2193
        %v2195 = vrot.slane %v2187, %v2194
        %v2197 = vunpack.c.l.s4 1934713408
        %v2198 = vunpack.c.0.s8 %v2197
        %v2199 = vlaneseq
        %v2200 = vshrl.u32 %v2199, 7
        %v2201 = vsub.s32 %v2198, %v2200
        %v2202 = vrot.slane %v2188, %v2201
        %v2203 = vcombine.low %v2138, %v2154
        %v2204 = vcombine.high %v2138, %v2154
        %v2206 = vunpack.c.l.s4 1934713408
        %v2207 = vunpack.c.0.s8 %v2206
        %v2208 = vlaneseq
        %v2209 = vshrl.u32 %v2208, 7
        %v2210 = vsub.s32 %v2207, %v2209
        %v2211 = vrot.slane %v2203, %v2210
        %v2213 = vunpack.c.l.s4 1934713408
        %v2214 = vunpack.c.0.s8 %v2213
        %v2215 = vlaneseq
        %v2216 = vshrl.u32 %v2215, 7
        %v2217 = vsub.s32 %v2214, %v2216
        %v2218 = vrot.slane %v2204, %v2217
        %v2219 = vcombine.low %v2163, %v2179
        %v2220 = vcombine.high %v2163, %v2179
        %v2222 = vunpack.c.l.s4 1934713408
        %v2223 = vunpack.c.0.s8 %v2222
        %v2224 = vlaneseq
        %v2225 = vshrl.u32 %v2224, 7
        %v2226 = vsub.s32 %v2223, %v2225
        %v2227 = vrot.slane %v2219, %v2226
        %v2229 = vunpack.c.l.s4 1934713408
        %v2230 = vunpack.c.0.s8 %v2229
        %v2231 = vlaneseq
        %v2232 = vshrl.u32 %v2231, 7
        %v2233 = vsub.s32 %v2230, %v2232
        %v2234 = vrot.slane %v2220, %v2233
        %v2235 = vcombine.low %v2170, %v2186
        %v2236 = vcombine.high %v2170, %v2186
        %v2238 = vunpack.c.l.s4 1934713408
        %v2239 = vunpack.c.0.s8 %v2238
        %v2240 = vlaneseq
        %v2241 = vshrl.u32 %v2240, 7
        %v2242 = vsub.s32 %v2239, %v2241
        %v2243 = vrot.slane %v2235, %v2242
        %v2245 = vunpack.c.l.s4 1934713408
        %v2246 = vunpack.c.0.s8 %v2245
        %v2247 = vlaneseq
        %v2248 = vshrl.u32 %v2247, 7
        %v2249 = vsub.s32 %v2246, %v2248
        %v2250 = vrot.slane %v2236, %v2249
        %v2251 = vcombine.low %v2195, %v2227
        %v2252 = vcombine.high %v2195, %v2227
        %v2253 = vcombine.low %v2202, %v2234
        %v2254 = vcombine.high %v2202, %v2234
        %v2255 = vcombine.low %v2211, %v2243
        %v2256 = vcombine.high %v2211, %v2243
        %v2257 = vcombine.low %v2218, %v2250
        %v2258 = vcombine.high %v2218, %v2250
        %v2259 = vcombine.low %v524, %v544
        %v2260 = vcombine.high %v524, %v544
        %v2262 = vunpack.c.l.s4 1983009808
        %v2263 = vunpack.c.0.s8 %v2262
        %v2264 = vlaneseq
        %v2265 = vshrl.u32 %v2264, 7
        %v2266 = vsub.s32 %v2263, %v2265
        %v2267 = vrot.slane %v2259, %v2266
        %v2269 = vunpack.c.l.s4 1983009808
        %v2270 = vunpack.c.0.s8 %v2269
        %v2271 = vlaneseq
        %v2272 = vshrl.u32 %v2271, 7
        %v2273 = vsub.s32 %v2270, %v2272
        %v2274 = vrot.slane %v2260, %v2273
        %v2275 = vcombine.low %v534, %v554
        %v2276 = vcombine.high %v534, %v554
        %v2278 = vunpack.c.l.s4 1983009808
        %v2279 = vunpack.c.0.s8 %v2278
        %v2280 = vlaneseq
        %v2281 = vshrl.u32 %v2280, 7
        %v2282 = vsub.s32 %v2279, %v2281
        %v2283 = vrot.slane %v2275, %v2282
        %v2285 = vunpack.c.l.s4 1983009808
        %v2286 = vunpack.c.0.s8 %v2285
        %v2287 = vlaneseq
        %v2288 = vshrl.u32 %v2287, 7
        %v2289 = vsub.s32 %v2286, %v2288
        %v2290 = vrot.slane %v2276, %v2289
        %v2291 = vcombine.low %v564, %v584
        %v2292 = vcombine.high %v564, %v584
        %v2294 = vunpack.c.l.s4 1983009808
        %v2295 = vunpack.c.0.s8 %v2294
        %v2296 = vlaneseq
        %v2297 = vshrl.u32 %v2296, 7
        %v2298 = vsub.s32 %v2295, %v2297
        %v2299 = vrot.slane %v2291, %v2298
        %v2301 = vunpack.c.l.s4 1983009808
        %v2302 = vunpack.c.0.s8 %v2301
        %v2303 = vlaneseq
        %v2304 = vshrl.u32 %v2303, 7
        %v2305 = vsub.s32 %v2302, %v2304
        %v2306 = vrot.slane %v2292, %v2305
        %v2307 = vcombine.low %v574, %v594
        %v2308 = vcombine.high %v574, %v594
        %v2310 = vunpack.c.l.s4 1983009808
        %v2311 = vunpack.c.0.s8 %v2310
        %v2312 = vlaneseq
        %v2313 = vshrl.u32 %v2312, 7
        %v2314 = vsub.s32 %v2311, %v2313
        %v2315 = vrot.slane %v2307, %v2314
        %v2317 = vunpack.c.l.s4 1983009808
        %v2318 = vunpack.c.0.s8 %v2317
        %v2319 = vlaneseq
        %v2320 = vshrl.u32 %v2319, 7
        %v2321 = vsub.s32 %v2318, %v2320
        %v2322 = vrot.slane %v2308, %v2321
        %v2323 = vcombine.low %v2267, %v2283
        %v2324 = vcombine.high %v2267, %v2283
        %v2326 = vunpack.c.l.s4 1934713408
        %v2327 = vunpack.c.0.s8 %v2326
        %v2328 = vlaneseq
        %v2329 = vshrl.u32 %v2328, 7
        %v2330 = vsub.s32 %v2327, %v2329
        %v2331 = vrot.slane %v2323, %v2330
        %v2333 = vunpack.c.l.s4 1934713408
        %v2334 = vunpack.c.0.s8 %v2333
        %v2335 = vlaneseq
        %v2336 = vshrl.u32 %v2335, 7
        %v2337 = vsub.s32 %v2334, %v2336
        %v2338 = vrot.slane %v2324, %v2337
        %v2339 = vcombine.low %v2274, %v2290
        %v2340 = vcombine.high %v2274, %v2290
        %v2342 = vunpack.c.l.s4 1934713408
        %v2343 = vunpack.c.0.s8 %v2342
        %v2344 = vlaneseq
        %v2345 = vshrl.u32 %v2344, 7
        %v2346 = vsub.s32 %v2343, %v2345
        %v2347 = vrot.slane %v2339, %v2346
        %v2349 = vunpack.c.l.s4 1934713408
        %v2350 = vunpack.c.0.s8 %v2349
        %v2351 = vlaneseq
        %v2352 = vshrl.u32 %v2351, 7
        %v2353 = vsub.s32 %v2350, %v2352
        %v2354 = vrot.slane %v2340, %v2353
        %v2355 = vcombine.low %v2299, %v2315
        %v2356 = vcombine.high %v2299, %v2315
        %v2358 = vunpack.c.l.s4 1934713408
        %v2359 = vunpack.c.0.s8 %v2358
        %v2360 = vlaneseq
        %v2361 = vshrl.u32 %v2360, 7
        %v2362 = vsub.s32 %v2359, %v2361
        %v2363 = vrot.slane %v2355, %v2362
        %v2365 = vunpack.c.l.s4 1934713408
        %v2366 = vunpack.c.0.s8 %v2365
        %v2367 = vlaneseq
        %v2368 = vshrl.u32 %v2367, 7
        %v2369 = vsub.s32 %v2366, %v2368
        %v2370 = vrot.slane %v2356, %v2369
        %v2371 = vcombine.low %v2306, %v2322
        %v2372 = vcombine.high %v2306, %v2322
        %v2374 = vunpack.c.l.s4 1934713408
        %v2375 = vunpack.c.0.s8 %v2374
        %v2376 = vlaneseq
        %v2377 = vshrl.u32 %v2376, 7
        %v2378 = vsub.s32 %v2375, %v2377
        %v2379 = vrot.slane %v2371, %v2378
        %v2381 = vunpack.c.l.s4 1934713408
        %v2382 = vunpack.c.0.s8 %v2381
        %v2383 = vlaneseq
        %v2384 = vshrl.u32 %v2383, 7
        %v2385 = vsub.s32 %v2382, %v2384
        %v2386 = vrot.slane %v2372, %v2385
        %v2387 = vcombine.low %v2331, %v2363
        %v2388 = vcombine.high %v2331, %v2363
        %v2389 = vcombine.low %v2338, %v2370
        %v2390 = vcombine.high %v2338, %v2370
        %v2391 = vcombine.low %v2347, %v2379
        %v2392 = vcombine.high %v2347, %v2379
        %v2393 = vcombine.low %v2354, %v2386
        %v2394 = vcombine.high %v2354, %v2386
        %v2395 = vcombine.low %v449, %v469
        %v2396 = vcombine.high %v449, %v469
        %v2398 = vunpack.c.l.s4 1983009808
        %v2399 = vunpack.c.0.s8 %v2398
        %v2400 = vlaneseq
        %v2401 = vshrl.u32 %v2400, 7
        %v2402 = vsub.s32 %v2399, %v2401
        %v2403 = vrot.slane %v2395, %v2402
        %v2405 = vunpack.c.l.s4 1983009808
        %v2406 = vunpack.c.0.s8 %v2405
        %v2407 = vlaneseq
        %v2408 = vshrl.u32 %v2407, 7
        %v2409 = vsub.s32 %v2406, %v2408
        %v2410 = vrot.slane %v2396, %v2409
        %v2411 = vcombine.low %v459, %v479
        %v2412 = vcombine.high %v459, %v479
        %v2414 = vunpack.c.l.s4 1983009808
        %v2415 = vunpack.c.0.s8 %v2414
        %v2416 = vlaneseq
        %v2417 = vshrl.u32 %v2416, 7
        %v2418 = vsub.s32 %v2415, %v2417
        %v2419 = vrot.slane %v2411, %v2418
        %v2421 = vunpack.c.l.s4 1983009808
        %v2422 = vunpack.c.0.s8 %v2421
        %v2423 = vlaneseq
        %v2424 = vshrl.u32 %v2423, 7
        %v2425 = vsub.s32 %v2422, %v2424
        %v2426 = vrot.slane %v2412, %v2425
        %v2427 = vcombine.low %v489, %v509
        %v2428 = vcombine.high %v489, %v509
        %v2430 = vunpack.c.l.s4 1983009808
        %v2431 = vunpack.c.0.s8 %v2430
        %v2432 = vlaneseq
        %v2433 = vshrl.u32 %v2432, 7
        %v2434 = vsub.s32 %v2431, %v2433
        %v2435 = vrot.slane %v2427, %v2434
        %v2437 = vunpack.c.l.s4 1983009808
        %v2438 = vunpack.c.0.s8 %v2437
        %v2439 = vlaneseq
        %v2440 = vshrl.u32 %v2439, 7
        %v2441 = vsub.s32 %v2438, %v2440
        %v2442 = vrot.slane %v2428, %v2441
        %v2443 = vcombine.low %v499, %v519
        %v2444 = vcombine.high %v499, %v519
        %v2446 = vunpack.c.l.s4 1983009808
        %v2447 = vunpack.c.0.s8 %v2446
        %v2448 = vlaneseq
        %v2449 = vshrl.u32 %v2448, 7
        %v2450 = vsub.s32 %v2447, %v2449
        %v2451 = vrot.slane %v2443, %v2450
        %v2453 = vunpack.c.l.s4 1983009808
        %v2454 = vunpack.c.0.s8 %v2453
        %v2455 = vlaneseq
        %v2456 = vshrl.u32 %v2455, 7
        %v2457 = vsub.s32 %v2454, %v2456
        %v2458 = vrot.slane %v2444, %v2457
        %v2459 = vcombine.low %v2403, %v2419
        %v2460 = vcombine.high %v2403, %v2419
        %v2462 = vunpack.c.l.s4 1934713408
        %v2463 = vunpack.c.0.s8 %v2462
        %v2464 = vlaneseq
        %v2465 = vshrl.u32 %v2464, 7
        %v2466 = vsub.s32 %v2463, %v2465
        %v2467 = vrot.slane %v2459, %v2466
        %v2469 = vunpack.c.l.s4 1934713408
        %v2470 = vunpack.c.0.s8 %v2469
        %v2471 = vlaneseq
        %v2472 = vshrl.u32 %v2471, 7
        %v2473 = vsub.s32 %v2470, %v2472
        %v2474 = vrot.slane %v2460, %v2473
        %v2475 = vcombine.low %v2410, %v2426
        %v2476 = vcombine.high %v2410, %v2426
        %v2478 = vunpack.c.l.s4 1934713408
        %v2479 = vunpack.c.0.s8 %v2478
        %v2480 = vlaneseq
        %v2481 = vshrl.u32 %v2480, 7
        %v2482 = vsub.s32 %v2479, %v2481
        %v2483 = vrot.slane %v2475, %v2482
        %v2485 = vunpack.c.l.s4 1934713408
        %v2486 = vunpack.c.0.s8 %v2485
        %v2487 = vlaneseq
        %v2488 = vshrl.u32 %v2487, 7
        %v2489 = vsub.s32 %v2486, %v2488
        %v2490 = vrot.slane %v2476, %v2489
        %v2491 = vcombine.low %v2435, %v2451
        %v2492 = vcombine.high %v2435, %v2451
        %v2494 = vunpack.c.l.s4 1934713408
        %v2495 = vunpack.c.0.s8 %v2494
        %v2496 = vlaneseq
        %v2497 = vshrl.u32 %v2496, 7
        %v2498 = vsub.s32 %v2495, %v2497
        %v2499 = vrot.slane %v2491, %v2498
        %v2501 = vunpack.c.l.s4 1934713408
        %v2502 = vunpack.c.0.s8 %v2501
        %v2503 = vlaneseq
        %v2504 = vshrl.u32 %v2503, 7
        %v2505 = vsub.s32 %v2502, %v2504
        %v2506 = vrot.slane %v2492, %v2505
        %v2507 = vcombine.low %v2442, %v2458
        %v2508 = vcombine.high %v2442, %v2458
        %v2510 = vunpack.c.l.s4 1934713408
        %v2511 = vunpack.c.0.s8 %v2510
        %v2512 = vlaneseq
        %v2513 = vshrl.u32 %v2512, 7
        %v2514 = vsub.s32 %v2511, %v2513
        %v2515 = vrot.slane %v2507, %v2514
        %v2517 = vunpack.c.l.s4 1934713408
        %v2518 = vunpack.c.0.s8 %v2517
        %v2519 = vlaneseq
        %v2520 = vshrl.u32 %v2519, 7
        %v2521 = vsub.s32 %v2518, %v2520
        %v2522 = vrot.slane %v2508, %v2521
        %v2523 = vcombine.low %v2467, %v2499
        %v2524 = vcombine.high %v2467, %v2499
        %v2525 = vcombine.low %v2474, %v2506
        %v2526 = vcombine.high %v2474, %v2506
        %v2527 = vcombine.low %v2483, %v2515
        %v2528 = vcombine.high %v2483, %v2515
        %v2529 = vcombine.low %v2490, %v2522
        %v2530 = vcombine.high %v2490, %v2522
        %v2531 = vcombine.low %v529, %v549
        %v2532 = vcombine.high %v529, %v549
        %v2534 = vunpack.c.l.s4 1983009808
        %v2535 = vunpack.c.0.s8 %v2534
        %v2536 = vlaneseq
        %v2537 = vshrl.u32 %v2536, 7
        %v2538 = vsub.s32 %v2535, %v2537
        %v2539 = vrot.slane %v2531, %v2538
        %v2541 = vunpack.c.l.s4 1983009808
        %v2542 = vunpack.c.0.s8 %v2541
        %v2543 = vlaneseq
        %v2544 = vshrl.u32 %v2543, 7
        %v2545 = vsub.s32 %v2542, %v2544
        %v2546 = vrot.slane %v2532, %v2545
        %v2547 = vcombine.low %v539, %v559
        %v2548 = vcombine.high %v539, %v559
        %v2550 = vunpack.c.l.s4 1983009808
        %v2551 = vunpack.c.0.s8 %v2550
        %v2552 = vlaneseq
        %v2553 = vshrl.u32 %v2552, 7
        %v2554 = vsub.s32 %v2551, %v2553
        %v2555 = vrot.slane %v2547, %v2554
        %v2557 = vunpack.c.l.s4 1983009808
        %v2558 = vunpack.c.0.s8 %v2557
        %v2559 = vlaneseq
        %v2560 = vshrl.u32 %v2559, 7
        %v2561 = vsub.s32 %v2558, %v2560
        %v2562 = vrot.slane %v2548, %v2561
        %v2563 = vcombine.low %v569, %v589
        %v2564 = vcombine.high %v569, %v589
        %v2566 = vunpack.c.l.s4 1983009808
        %v2567 = vunpack.c.0.s8 %v2566
        %v2568 = vlaneseq
        %v2569 = vshrl.u32 %v2568, 7
        %v2570 = vsub.s32 %v2567, %v2569
        %v2571 = vrot.slane %v2563, %v2570
        %v2573 = vunpack.c.l.s4 1983009808
        %v2574 = vunpack.c.0.s8 %v2573
        %v2575 = vlaneseq
        %v2576 = vshrl.u32 %v2575, 7
        %v2577 = vsub.s32 %v2574, %v2576
        %v2578 = vrot.slane %v2564, %v2577
        %v2579 = vcombine.low %v579, %v599
        %v2580 = vcombine.high %v579, %v599
        %v2582 = vunpack.c.l.s4 1983009808
        %v2583 = vunpack.c.0.s8 %v2582
        %v2584 = vlaneseq
        %v2585 = vshrl.u32 %v2584, 7
        %v2586 = vsub.s32 %v2583, %v2585
        %v2587 = vrot.slane %v2579, %v2586
        %v2589 = vunpack.c.l.s4 1983009808
        %v2590 = vunpack.c.0.s8 %v2589
        %v2591 = vlaneseq
        %v2592 = vshrl.u32 %v2591, 7
        %v2593 = vsub.s32 %v2590, %v2592
        %v2594 = vrot.slane %v2580, %v2593
        %v2595 = vcombine.low %v2539, %v2555
        %v2596 = vcombine.high %v2539, %v2555
        %v2598 = vunpack.c.l.s4 1934713408
        %v2599 = vunpack.c.0.s8 %v2598
        %v2600 = vlaneseq
        %v2601 = vshrl.u32 %v2600, 7
        %v2602 = vsub.s32 %v2599, %v2601
        %v2603 = vrot.slane %v2595, %v2602
        %v2605 = vunpack.c.l.s4 1934713408
        %v2606 = vunpack.c.0.s8 %v2605
        %v2607 = vlaneseq
        %v2608 = vshrl.u32 %v2607, 7
        %v2609 = vsub.s32 %v2606, %v2608
        %v2610 = vrot.slane %v2596, %v2609
        %v2611 = vcombine.low %v2546, %v2562
        %v2612 = vcombine.high %v2546, %v2562
        %v2614 = vunpack.c.l.s4 1934713408
        %v2615 = vunpack.c.0.s8 %v2614
        %v2616 = vlaneseq
        %v2617 = vshrl.u32 %v2616, 7
        %v2618 = vsub.s32 %v2615, %v2617
        %v2619 = vrot.slane %v2611, %v2618
        %v2621 = vunpack.c.l.s4 1934713408
        %v2622 = vunpack.c.0.s8 %v2621
        %v2623 = vlaneseq
        %v2624 = vshrl.u32 %v2623, 7
        %v2625 = vsub.s32 %v2622, %v2624
        %v2626 = vrot.slane %v2612, %v2625
        %v2627 = vcombine.low %v2571, %v2587
        %v2628 = vcombine.high %v2571, %v2587
        %v2630 = vunpack.c.l.s4 1934713408
        %v2631 = vunpack.c.0.s8 %v2630
        %v2632 = vlaneseq
        %v2633 = vshrl.u32 %v2632, 7
        %v2634 = vsub.s32 %v2631, %v2633
        %v2635 = vrot.slane %v2627, %v2634
        %v2637 = vunpack.c.l.s4 1934713408
        %v2638 = vunpack.c.0.s8 %v2637
        %v2639 = vlaneseq
        %v2640 = vshrl.u32 %v2639, 7
        %v2641 = vsub.s32 %v2638, %v2640
        %v2642 = vrot.slane %v2628, %v2641
        %v2643 = vcombine.low %v2578, %v2594
        %v2644 = vcombine.high %v2578, %v2594
        %v2646 = vunpack.c.l.s4 1934713408
        %v2647 = vunpack.c.0.s8 %v2646
        %v2648 = vlaneseq
        %v2649 = vshrl.u32 %v2648, 7
        %v2650 = vsub.s32 %v2647, %v2649
        %v2651 = vrot.slane %v2643, %v2650
        %v2653 = vunpack.c.l.s4 1934713408
        %v2654 = vunpack.c.0.s8 %v2653
        %v2655 = vlaneseq
        %v2656 = vshrl.u32 %v2655, 7
        %v2657 = vsub.s32 %v2654, %v2656
        %v2658 = vrot.slane %v2644, %v2657
        %v2659 = vcombine.low %v2603, %v2635
        %v2660 = vcombine.high %v2603, %v2635
        %v2661 = vcombine.low %v2610, %v2642
        %v2662 = vcombine.high %v2610, %v2642
        %v2663 = vcombine.low %v2619, %v2651
        %v2664 = vcombine.high %v2619, %v2651
        %v2665 = vcombine.low %v2626, %v2658
        %v2666 = vcombine.high %v2626, %v2658
        %v2699 = vcombine.low %v605, %v783
        %v2700 = vcombine.high %v605, %v783
        %v2702 = vunpack.c.l.s4 1983009808
        %v2703 = vunpack.c.0.s8 %v2702
        %v2704 = vlaneseq
        %v2705 = vshrl.u32 %v2704, 7
        %v2706 = vsub.s32 %v2703, %v2705
        %v2707 = vrot.slane %v2699, %v2706
        %v2709 = vunpack.c.l.s4 1983009808
        %v2710 = vunpack.c.0.s8 %v2709
        %v2711 = vlaneseq
        %v2712 = vshrl.u32 %v2711, 7
        %v2713 = vsub.s32 %v2710, %v2712
        %v2714 = vrot.slane %v2700, %v2713
        %v2715 = vcombine.low %v694, %v872
        %v2716 = vcombine.high %v694, %v872
        %v2718 = vunpack.c.l.s4 1983009808
        %v2719 = vunpack.c.0.s8 %v2718
        %v2720 = vlaneseq
        %v2721 = vshrl.u32 %v2720, 7
        %v2722 = vsub.s32 %v2719, %v2721
        %v2723 = vrot.slane %v2715, %v2722
        %v2725 = vunpack.c.l.s4 1983009808
        %v2726 = vunpack.c.0.s8 %v2725
        %v2727 = vlaneseq
        %v2728 = vshrl.u32 %v2727, 7
        %v2729 = vsub.s32 %v2726, %v2728
        %v2730 = vrot.slane %v2716, %v2729
        %v2731 = vcombine.low %v961, %v1139
        %v2732 = vcombine.high %v961, %v1139
        %v2734 = vunpack.c.l.s4 1983009808
        %v2735 = vunpack.c.0.s8 %v2734
        %v2736 = vlaneseq
        %v2737 = vshrl.u32 %v2736, 7
        %v2738 = vsub.s32 %v2735, %v2737
        %v2739 = vrot.slane %v2731, %v2738
        %v2741 = vunpack.c.l.s4 1983009808
        %v2742 = vunpack.c.0.s8 %v2741
        %v2743 = vlaneseq
        %v2744 = vshrl.u32 %v2743, 7
        %v2745 = vsub.s32 %v2742, %v2744
        %v2746 = vrot.slane %v2732, %v2745
        %v2747 = vcombine.low %v1050, %v1228
        %v2748 = vcombine.high %v1050, %v1228
        %v2750 = vunpack.c.l.s4 1983009808
        %v2751 = vunpack.c.0.s8 %v2750
        %v2752 = vlaneseq
        %v2753 = vshrl.u32 %v2752, 7
        %v2754 = vsub.s32 %v2751, %v2753
        %v2755 = vrot.slane %v2747, %v2754
        %v2757 = vunpack.c.l.s4 1983009808
        %v2758 = vunpack.c.0.s8 %v2757
        %v2759 = vlaneseq
        %v2760 = vshrl.u32 %v2759, 7
        %v2761 = vsub.s32 %v2758, %v2760
        %v2762 = vrot.slane %v2748, %v2761
        %v2763 = vcombine.low %v2707, %v2723
        %v2764 = vcombine.high %v2707, %v2723
        %v2766 = vunpack.c.l.s4 1934713408
        %v2767 = vunpack.c.0.s8 %v2766
        %v2768 = vlaneseq
        %v2769 = vshrl.u32 %v2768, 7
        %v2770 = vsub.s32 %v2767, %v2769
        %v2771 = vrot.slane %v2763, %v2770
        %v2773 = vunpack.c.l.s4 1934713408
        %v2774 = vunpack.c.0.s8 %v2773
        %v2775 = vlaneseq
        %v2776 = vshrl.u32 %v2775, 7
        %v2777 = vsub.s32 %v2774, %v2776
        %v2778 = vrot.slane %v2764, %v2777
        %v2779 = vcombine.low %v2714, %v2730
        %v2780 = vcombine.high %v2714, %v2730
        %v2782 = vunpack.c.l.s4 1934713408
        %v2783 = vunpack.c.0.s8 %v2782
        %v2784 = vlaneseq
        %v2785 = vshrl.u32 %v2784, 7
        %v2786 = vsub.s32 %v2783, %v2785
        %v2787 = vrot.slane %v2779, %v2786
        %v2789 = vunpack.c.l.s4 1934713408
        %v2790 = vunpack.c.0.s8 %v2789
        %v2791 = vlaneseq
        %v2792 = vshrl.u32 %v2791, 7
        %v2793 = vsub.s32 %v2790, %v2792
        %v2794 = vrot.slane %v2780, %v2793
        %v2795 = vcombine.low %v2739, %v2755
        %v2796 = vcombine.high %v2739, %v2755
        %v2798 = vunpack.c.l.s4 1934713408
        %v2799 = vunpack.c.0.s8 %v2798
        %v2800 = vlaneseq
        %v2801 = vshrl.u32 %v2800, 7
        %v2802 = vsub.s32 %v2799, %v2801
        %v2803 = vrot.slane %v2795, %v2802
        %v2805 = vunpack.c.l.s4 1934713408
        %v2806 = vunpack.c.0.s8 %v2805
        %v2807 = vlaneseq
        %v2808 = vshrl.u32 %v2807, 7
        %v2809 = vsub.s32 %v2806, %v2808
        %v2810 = vrot.slane %v2796, %v2809
        %v2811 = vcombine.low %v2746, %v2762
        %v2812 = vcombine.high %v2746, %v2762
        %v2814 = vunpack.c.l.s4 1934713408
        %v2815 = vunpack.c.0.s8 %v2814
        %v2816 = vlaneseq
        %v2817 = vshrl.u32 %v2816, 7
        %v2818 = vsub.s32 %v2815, %v2817
        %v2819 = vrot.slane %v2811, %v2818
        %v2821 = vunpack.c.l.s4 1934713408
        %v2822 = vunpack.c.0.s8 %v2821
        %v2823 = vlaneseq
        %v2824 = vshrl.u32 %v2823, 7
        %v2825 = vsub.s32 %v2822, %v2824
        %v2826 = vrot.slane %v2812, %v2825
        %v2827 = vcombine.low %v2771, %v2803
        %v2828 = vcombine.high %v2771, %v2803
        %v2829 = vcombine.low %v2778, %v2810
        %v2830 = vcombine.high %v2778, %v2810
        %v2831 = vcombine.low %v2787, %v2819
        %v2832 = vcombine.high %v2787, %v2819
        %v2833 = vcombine.low %v2794, %v2826
        %v2834 = vcombine.high %v2794, %v2826
        %v2835 = vcombine.low %v1317, %v1495
        %v2836 = vcombine.high %v1317, %v1495
        %v2838 = vunpack.c.l.s4 1983009808
        %v2839 = vunpack.c.0.s8 %v2838
        %v2840 = vlaneseq
        %v2841 = vshrl.u32 %v2840, 7
        %v2842 = vsub.s32 %v2839, %v2841
        %v2843 = vrot.slane %v2835, %v2842
        %v2845 = vunpack.c.l.s4 1983009808
        %v2846 = vunpack.c.0.s8 %v2845
        %v2847 = vlaneseq
        %v2848 = vshrl.u32 %v2847, 7
        %v2849 = vsub.s32 %v2846, %v2848
        %v2850 = vrot.slane %v2836, %v2849
        %v2851 = vcombine.low %v1406, %v1584
        %v2852 = vcombine.high %v1406, %v1584
        %v2854 = vunpack.c.l.s4 1983009808
        %v2855 = vunpack.c.0.s8 %v2854
        %v2856 = vlaneseq
        %v2857 = vshrl.u32 %v2856, 7
        %v2858 = vsub.s32 %v2855, %v2857
        %v2859 = vrot.slane %v2851, %v2858
        %v2861 = vunpack.c.l.s4 1983009808
        %v2862 = vunpack.c.0.s8 %v2861
        %v2863 = vlaneseq
        %v2864 = vshrl.u32 %v2863, 7
        %v2865 = vsub.s32 %v2862, %v2864
        %v2866 = vrot.slane %v2852, %v2865
        %v2867 = vcombine.low %v1673, %v1851
        %v2868 = vcombine.high %v1673, %v1851
        %v2870 = vunpack.c.l.s4 1983009808
        %v2871 = vunpack.c.0.s8 %v2870
        %v2872 = vlaneseq
        %v2873 = vshrl.u32 %v2872, 7
        %v2874 = vsub.s32 %v2871, %v2873
        %v2875 = vrot.slane %v2867, %v2874
        %v2877 = vunpack.c.l.s4 1983009808
        %v2878 = vunpack.c.0.s8 %v2877
        %v2879 = vlaneseq
        %v2880 = vshrl.u32 %v2879, 7
        %v2881 = vsub.s32 %v2878, %v2880
        %v2882 = vrot.slane %v2868, %v2881
        %v2883 = vcombine.low %v1762, %v1940
        %v2884 = vcombine.high %v1762, %v1940
        %v2886 = vunpack.c.l.s4 1983009808
        %v2887 = vunpack.c.0.s8 %v2886
        %v2888 = vlaneseq
        %v2889 = vshrl.u32 %v2888, 7
        %v2890 = vsub.s32 %v2887, %v2889
        %v2891 = vrot.slane %v2883, %v2890
        %v2893 = vunpack.c.l.s4 1983009808
        %v2894 = vunpack.c.0.s8 %v2893
        %v2895 = vlaneseq
        %v2896 = vshrl.u32 %v2895, 7
        %v2897 = vsub.s32 %v2894, %v2896
        %v2898 = vrot.slane %v2884, %v2897
        %v2899 = vcombine.low %v2843, %v2859
        %v2900 = vcombine.high %v2843, %v2859
        %v2902 = vunpack.c.l.s4 1934713408
        %v2903 = vunpack.c.0.s8 %v2902
        %v2904 = vlaneseq
        %v2905 = vshrl.u32 %v2904, 7
        %v2906 = vsub.s32 %v2903, %v2905
        %v2907 = vrot.slane %v2899, %v2906
        %v2909 = vunpack.c.l.s4 1934713408
        %v2910 = vunpack.c.0.s8 %v2909
        %v2911 = vlaneseq
        %v2912 = vshrl.u32 %v2911, 7
        %v2913 = vsub.s32 %v2910, %v2912
        %v2914 = vrot.slane %v2900, %v2913
        %v2915 = vcombine.low %v2850, %v2866
        %v2916 = vcombine.high %v2850, %v2866
        %v2918 = vunpack.c.l.s4 1934713408
        %v2919 = vunpack.c.0.s8 %v2918
        %v2920 = vlaneseq
        %v2921 = vshrl.u32 %v2920, 7
        %v2922 = vsub.s32 %v2919, %v2921
        %v2923 = vrot.slane %v2915, %v2922
        %v2925 = vunpack.c.l.s4 1934713408
        %v2926 = vunpack.c.0.s8 %v2925
        %v2927 = vlaneseq
        %v2928 = vshrl.u32 %v2927, 7
        %v2929 = vsub.s32 %v2926, %v2928
        %v2930 = vrot.slane %v2916, %v2929
        %v2931 = vcombine.low %v2875, %v2891
        %v2932 = vcombine.high %v2875, %v2891
        %v2934 = vunpack.c.l.s4 1934713408
        %v2935 = vunpack.c.0.s8 %v2934
        %v2936 = vlaneseq
        %v2937 = vshrl.u32 %v2936, 7
        %v2938 = vsub.s32 %v2935, %v2937
        %v2939 = vrot.slane %v2931, %v2938
        %v2941 = vunpack.c.l.s4 1934713408
        %v2942 = vunpack.c.0.s8 %v2941
        %v2943 = vlaneseq
        %v2944 = vshrl.u32 %v2943, 7
        %v2945 = vsub.s32 %v2942, %v2944
        %v2946 = vrot.slane %v2932, %v2945
        %v2947 = vcombine.low %v2882, %v2898
        %v2948 = vcombine.high %v2882, %v2898
        %v2950 = vunpack.c.l.s4 1934713408
        %v2951 = vunpack.c.0.s8 %v2950
        %v2952 = vlaneseq
        %v2953 = vshrl.u32 %v2952, 7
        %v2954 = vsub.s32 %v2951, %v2953
        %v2955 = vrot.slane %v2947, %v2954
        %v2957 = vunpack.c.l.s4 1934713408
        %v2958 = vunpack.c.0.s8 %v2957
        %v2959 = vlaneseq
        %v2960 = vshrl.u32 %v2959, 7
        %v2961 = vsub.s32 %v2958, %v2960
        %v2962 = vrot.slane %v2948, %v2961
        %v2963 = vcombine.low %v2907, %v2939
        %v2964 = vcombine.high %v2907, %v2939
        %v2965 = vcombine.low %v2914, %v2946
        %v2966 = vcombine.high %v2914, %v2946
        %v2967 = vcombine.low %v2923, %v2955
        %v2968 = vcombine.high %v2923, %v2955
        %v2969 = vcombine.low %v2930, %v2962
        %v2970 = vcombine.high %v2930, %v2962
        %v2971 = vcombine.low %v607, %v785
        %v2972 = vcombine.high %v607, %v785
        %v2974 = vunpack.c.l.s4 1983009808
        %v2975 = vunpack.c.0.s8 %v2974
        %v2976 = vlaneseq
        %v2977 = vshrl.u32 %v2976, 7
        %v2978 = vsub.s32 %v2975, %v2977
        %v2979 = vrot.slane %v2971, %v2978
        %v2981 = vunpack.c.l.s4 1983009808
        %v2982 = vunpack.c.0.s8 %v2981
        %v2983 = vlaneseq
        %v2984 = vshrl.u32 %v2983, 7
        %v2985 = vsub.s32 %v2982, %v2984
        %v2986 = vrot.slane %v2972, %v2985
        %v2987 = vcombine.low %v696, %v874
        %v2988 = vcombine.high %v696, %v874
        %v2990 = vunpack.c.l.s4 1983009808
        %v2991 = vunpack.c.0.s8 %v2990
        %v2992 = vlaneseq
        %v2993 = vshrl.u32 %v2992, 7
        %v2994 = vsub.s32 %v2991, %v2993
        %v2995 = vrot.slane %v2987, %v2994
        %v2997 = vunpack.c.l.s4 1983009808
        %v2998 = vunpack.c.0.s8 %v2997
        %v2999 = vlaneseq
        %v3000 = vshrl.u32 %v2999, 7
        %v3001 = vsub.s32 %v2998, %v3000
        %v3002 = vrot.slane %v2988, %v3001
        %v3003 = vcombine.low %v963, %v1141
        %v3004 = vcombine.high %v963, %v1141
        %v3006 = vunpack.c.l.s4 1983009808
        %v3007 = vunpack.c.0.s8 %v3006
        %v3008 = vlaneseq
        %v3009 = vshrl.u32 %v3008, 7
        %v3010 = vsub.s32 %v3007, %v3009
        %v3011 = vrot.slane %v3003, %v3010
        %v3013 = vunpack.c.l.s4 1983009808
        %v3014 = vunpack.c.0.s8 %v3013
        %v3015 = vlaneseq
        %v3016 = vshrl.u32 %v3015, 7
        %v3017 = vsub.s32 %v3014, %v3016
        %v3018 = vrot.slane %v3004, %v3017
        %v3019 = vcombine.low %v1052, %v1230
        %v3020 = vcombine.high %v1052, %v1230
        %v3022 = vunpack.c.l.s4 1983009808
        %v3023 = vunpack.c.0.s8 %v3022
        %v3024 = vlaneseq
        %v3025 = vshrl.u32 %v3024, 7
        %v3026 = vsub.s32 %v3023, %v3025
        %v3027 = vrot.slane %v3019, %v3026
        %v3029 = vunpack.c.l.s4 1983009808
        %v3030 = vunpack.c.0.s8 %v3029
        %v3031 = vlaneseq
        %v3032 = vshrl.u32 %v3031, 7
        %v3033 = vsub.s32 %v3030, %v3032
        %v3034 = vrot.slane %v3020, %v3033
        %v3035 = vcombine.low %v2979, %v2995
        %v3036 = vcombine.high %v2979, %v2995
        %v3038 = vunpack.c.l.s4 1934713408
        %v3039 = vunpack.c.0.s8 %v3038
        %v3040 = vlaneseq
        %v3041 = vshrl.u32 %v3040, 7
        %v3042 = vsub.s32 %v3039, %v3041
        %v3043 = vrot.slane %v3035, %v3042
        %v3045 = vunpack.c.l.s4 1934713408
        %v3046 = vunpack.c.0.s8 %v3045
        %v3047 = vlaneseq
        %v3048 = vshrl.u32 %v3047, 7
        %v3049 = vsub.s32 %v3046, %v3048
        %v3050 = vrot.slane %v3036, %v3049
        %v3051 = vcombine.low %v2986, %v3002
        %v3052 = vcombine.high %v2986, %v3002
        %v3054 = vunpack.c.l.s4 1934713408
        %v3055 = vunpack.c.0.s8 %v3054
        %v3056 = vlaneseq
        %v3057 = vshrl.u32 %v3056, 7
        %v3058 = vsub.s32 %v3055, %v3057
        %v3059 = vrot.slane %v3051, %v3058
        %v3061 = vunpack.c.l.s4 1934713408
        %v3062 = vunpack.c.0.s8 %v3061
        %v3063 = vlaneseq
        %v3064 = vshrl.u32 %v3063, 7
        %v3065 = vsub.s32 %v3062, %v3064
        %v3066 = vrot.slane %v3052, %v3065
        %v3067 = vcombine.low %v3011, %v3027
        %v3068 = vcombine.high %v3011, %v3027
        %v3070 = vunpack.c.l.s4 1934713408
        %v3071 = vunpack.c.0.s8 %v3070
        %v3072 = vlaneseq
        %v3073 = vshrl.u32 %v3072, 7
        %v3074 = vsub.s32 %v3071, %v3073
        %v3075 = vrot.slane %v3067, %v3074
        %v3077 = vunpack.c.l.s4 1934713408
        %v3078 = vunpack.c.0.s8 %v3077
        %v3079 = vlaneseq
        %v3080 = vshrl.u32 %v3079, 7
        %v3081 = vsub.s32 %v3078, %v3080
        %v3082 = vrot.slane %v3068, %v3081
        %v3083 = vcombine.low %v3018, %v3034
        %v3084 = vcombine.high %v3018, %v3034
        %v3086 = vunpack.c.l.s4 1934713408
        %v3087 = vunpack.c.0.s8 %v3086
        %v3088 = vlaneseq
        %v3089 = vshrl.u32 %v3088, 7
        %v3090 = vsub.s32 %v3087, %v3089
        %v3091 = vrot.slane %v3083, %v3090
        %v3093 = vunpack.c.l.s4 1934713408
        %v3094 = vunpack.c.0.s8 %v3093
        %v3095 = vlaneseq
        %v3096 = vshrl.u32 %v3095, 7
        %v3097 = vsub.s32 %v3094, %v3096
        %v3098 = vrot.slane %v3084, %v3097
        %v3099 = vcombine.low %v3043, %v3075
        %v3100 = vcombine.high %v3043, %v3075
        %v3101 = vcombine.low %v3050, %v3082
        %v3102 = vcombine.high %v3050, %v3082
        %v3103 = vcombine.low %v3059, %v3091
        %v3104 = vcombine.high %v3059, %v3091
        %v3105 = vcombine.low %v3066, %v3098
        %v3106 = vcombine.high %v3066, %v3098
        %v3107 = vcombine.low %v1319, %v1497
        %v3108 = vcombine.high %v1319, %v1497
        %v3110 = vunpack.c.l.s4 1983009808
        %v3111 = vunpack.c.0.s8 %v3110
        %v3112 = vlaneseq
        %v3113 = vshrl.u32 %v3112, 7
        %v3114 = vsub.s32 %v3111, %v3113
        %v3115 = vrot.slane %v3107, %v3114
        %v3117 = vunpack.c.l.s4 1983009808
        %v3118 = vunpack.c.0.s8 %v3117
        %v3119 = vlaneseq
        %v3120 = vshrl.u32 %v3119, 7
        %v3121 = vsub.s32 %v3118, %v3120
        %v3122 = vrot.slane %v3108, %v3121
        %v3123 = vcombine.low %v1408, %v1586
        %v3124 = vcombine.high %v1408, %v1586
        %v3126 = vunpack.c.l.s4 1983009808
        %v3127 = vunpack.c.0.s8 %v3126
        %v3128 = vlaneseq
        %v3129 = vshrl.u32 %v3128, 7
        %v3130 = vsub.s32 %v3127, %v3129
        %v3131 = vrot.slane %v3123, %v3130
        %v3133 = vunpack.c.l.s4 1983009808
        %v3134 = vunpack.c.0.s8 %v3133
        %v3135 = vlaneseq
        %v3136 = vshrl.u32 %v3135, 7
        %v3137 = vsub.s32 %v3134, %v3136
        %v3138 = vrot.slane %v3124, %v3137
        %v3139 = vcombine.low %v1675, %v1853
        %v3140 = vcombine.high %v1675, %v1853
        %v3142 = vunpack.c.l.s4 1983009808
        %v3143 = vunpack.c.0.s8 %v3142
        %v3144 = vlaneseq
        %v3145 = vshrl.u32 %v3144, 7
        %v3146 = vsub.s32 %v3143, %v3145
        %v3147 = vrot.slane %v3139, %v3146
        %v3149 = vunpack.c.l.s4 1983009808
        %v3150 = vunpack.c.0.s8 %v3149
        %v3151 = vlaneseq
        %v3152 = vshrl.u32 %v3151, 7
        %v3153 = vsub.s32 %v3150, %v3152
        %v3154 = vrot.slane %v3140, %v3153
        %v3155 = vcombine.low %v1764, %v1942
        %v3156 = vcombine.high %v1764, %v1942
        %v3158 = vunpack.c.l.s4 1983009808
        %v3159 = vunpack.c.0.s8 %v3158
        %v3160 = vlaneseq
        %v3161 = vshrl.u32 %v3160, 7
        %v3162 = vsub.s32 %v3159, %v3161
        %v3163 = vrot.slane %v3155, %v3162
        %v3165 = vunpack.c.l.s4 1983009808
        %v3166 = vunpack.c.0.s8 %v3165
        %v3167 = vlaneseq
        %v3168 = vshrl.u32 %v3167, 7
        %v3169 = vsub.s32 %v3166, %v3168
        %v3170 = vrot.slane %v3156, %v3169
        %v3171 = vcombine.low %v3115, %v3131
        %v3172 = vcombine.high %v3115, %v3131
        %v3174 = vunpack.c.l.s4 1934713408
        %v3175 = vunpack.c.0.s8 %v3174
        %v3176 = vlaneseq
        %v3177 = vshrl.u32 %v3176, 7
        %v3178 = vsub.s32 %v3175, %v3177
        %v3179 = vrot.slane %v3171, %v3178
        %v3181 = vunpack.c.l.s4 1934713408
        %v3182 = vunpack.c.0.s8 %v3181
        %v3183 = vlaneseq
        %v3184 = vshrl.u32 %v3183, 7
        %v3185 = vsub.s32 %v3182, %v3184
        %v3186 = vrot.slane %v3172, %v3185
        %v3187 = vcombine.low %v3122, %v3138
        %v3188 = vcombine.high %v3122, %v3138
        %v3190 = vunpack.c.l.s4 1934713408
        %v3191 = vunpack.c.0.s8 %v3190
        %v3192 = vlaneseq
        %v3193 = vshrl.u32 %v3192, 7
        %v3194 = vsub.s32 %v3191, %v3193
        %v3195 = vrot.slane %v3187, %v3194
        %v3197 = vunpack.c.l.s4 1934713408
        %v3198 = vunpack.c.0.s8 %v3197
        %v3199 = vlaneseq
        %v3200 = vshrl.u32 %v3199, 7
        %v3201 = vsub.s32 %v3198, %v3200
        %v3202 = vrot.slane %v3188, %v3201
        %v3203 = vcombine.low %v3147, %v3163
        %v3204 = vcombine.high %v3147, %v3163
        %v3206 = vunpack.c.l.s4 1934713408
        %v3207 = vunpack.c.0.s8 %v3206
        %v3208 = vlaneseq
        %v3209 = vshrl.u32 %v3208, 7
        %v3210 = vsub.s32 %v3207, %v3209
        %v3211 = vrot.slane %v3203, %v3210
        %v3213 = vunpack.c.l.s4 1934713408
        %v3214 = vunpack.c.0.s8 %v3213
        %v3215 = vlaneseq
        %v3216 = vshrl.u32 %v3215, 7
        %v3217 = vsub.s32 %v3214, %v3216
        %v3218 = vrot.slane %v3204, %v3217
        %v3219 = vcombine.low %v3154, %v3170
        %v3220 = vcombine.high %v3154, %v3170
        %v3222 = vunpack.c.l.s4 1934713408
        %v3223 = vunpack.c.0.s8 %v3222
        %v3224 = vlaneseq
        %v3225 = vshrl.u32 %v3224, 7
        %v3226 = vsub.s32 %v3223, %v3225
        %v3227 = vrot.slane %v3219, %v3226
        %v3229 = vunpack.c.l.s4 1934713408
        %v3230 = vunpack.c.0.s8 %v3229
        %v3231 = vlaneseq
        %v3232 = vshrl.u32 %v3231, 7
        %v3233 = vsub.s32 %v3230, %v3232
        %v3234 = vrot.slane %v3220, %v3233
        %v3235 = vcombine.low %v3179, %v3211
        %v3236 = vcombine.high %v3179, %v3211
        %v3237 = vcombine.low %v3186, %v3218
        %v3238 = vcombine.high %v3186, %v3218
        %v3239 = vcombine.low %v3195, %v3227
        %v3240 = vcombine.high %v3195, %v3227
        %v3241 = vcombine.low %v3202, %v3234
        %v3242 = vcombine.high %v3202, %v3234
        %3243 = vrot.lane.b32.xlu0 %v444, 120
        %v3244 = vpop.permute.xlu0 %3243
        %3245 = vrot.lane.b32.xlu0 %v449, 120
        %v3246 = vpop.permute.xlu0 %3245
        %3247 = vrot.lane.b32.xlu0 %v454, 120
        %v3248 = vpop.permute.xlu0 %3247
        %3249 = vrot.lane.b32.xlu0 %v459, 120
        %v3250 = vpop.permute.xlu0 %3249
        %3251 = vrot.lane.b32.xlu0 %v464, 120
        %v3252 = vpop.permute.xlu0 %3251
        %3253 = vrot.lane.b32.xlu0 %v469, 120
        %v3254 = vpop.permute.xlu0 %3253
        %3255 = vrot.lane.b32.xlu0 %v474, 120
        %v3256 = vpop.permute.xlu0 %3255
        %3257 = vrot.lane.b32.xlu0 %v479, 120
        %v3258 = vpop.permute.xlu0 %3257
        %3259 = vrot.lane.b32.xlu0 %v484, 120
        %v3260 = vpop.permute.xlu0 %3259
        %3261 = vrot.lane.b32.xlu0 %v489, 120
        %v3262 = vpop.permute.xlu0 %3261
        %3263 = vrot.lane.b32.xlu0 %v494, 120
        %v3264 = vpop.permute.xlu0 %3263
        %3265 = vrot.lane.b32.xlu0 %v499, 120
        %v3266 = vpop.permute.xlu0 %3265
        %3267 = vrot.lane.b32.xlu0 %v504, 120
        %v3268 = vpop.permute.xlu0 %3267
        %3269 = vrot.lane.b32.xlu0 %v509, 120
        %v3270 = vpop.permute.xlu0 %3269
        %3271 = vrot.lane.b32.xlu0 %v514, 120
        %v3272 = vpop.permute.xlu0 %3271
        %3273 = vrot.lane.b32.xlu0 %v519, 120
        %v3274 = vpop.permute.xlu0 %3273
        %3275 = vrot.lane.b32.xlu0 %v524, 120
        %v3276 = vpop.permute.xlu0 %3275
        %3277 = vrot.lane.b32.xlu0 %v529, 120
        %v3278 = vpop.permute.xlu0 %3277
        %3279 = vrot.lane.b32.xlu0 %v534, 120
        %v3280 = vpop.permute.xlu0 %3279
        %3281 = vrot.lane.b32.xlu0 %v539, 120
        %v3282 = vpop.permute.xlu0 %3281
        %3283 = vrot.lane.b32.xlu0 %v544, 120
        %v3284 = vpop.permute.xlu0 %3283
        %3285 = vrot.lane.b32.xlu0 %v549, 120
        %v3286 = vpop.permute.xlu0 %3285
        %3287 = vrot.lane.b32.xlu0 %v554, 120
        %v3288 = vpop.permute.xlu0 %3287
        %3289 = vrot.lane.b32.xlu0 %v559, 120
        %v3290 = vpop.permute.xlu0 %3289
        %3291 = vrot.lane.b32.xlu0 %v564, 120
        %v3292 = vpop.permute.xlu0 %3291
        %3293 = vrot.lane.b32.xlu0 %v569, 120
        %v3294 = vpop.permute.xlu0 %3293
        %3295 = vrot.lane.b32.xlu0 %v574, 120
        %v3296 = vpop.permute.xlu0 %3295
        %3297 = vrot.lane.b32.xlu0 %v579, 120
        %v3298 = vpop.permute.xlu0 %3297
        %3299 = vrot.lane.b32.xlu0 %v584, 120
        %v3300 = vpop.permute.xlu0 %3299
        %3301 = vrot.lane.b32.xlu0 %v589, 120
        %v3302 = vpop.permute.xlu0 %3301
        %3303 = vrot.lane.b32.xlu0 %v594, 120
        %v3304 = vpop.permute.xlu0 %3303
        %3305 = vrot.lane.b32.xlu0 %v599, 120
        %v3306 = vpop.permute.xlu0 %3305
        %v3339 = vcombine.low %v3244, %v3252
        %v3340 = vcombine.high %v3244, %v3252
        %v3342 = vunpack.c.l.s4 1983009808
        %v3343 = vunpack.c.0.s8 %v3342
        %v3344 = vlaneseq
        %v3345 = vshrl.u32 %v3344, 7
        %v3346 = vsub.s32 %v3343, %v3345
        %v3347 = vrot.slane %v3339, %v3346
        %v3349 = vunpack.c.l.s4 1983009808
        %v3350 = vunpack.c.0.s8 %v3349
        %v3351 = vlaneseq
        %v3352 = vshrl.u32 %v3351, 7
        %v3353 = vsub.s32 %v3350, %v3352
        %v3354 = vrot.slane %v3340, %v3353
        %v3355 = vcombine.low %v3248, %v3256
        %v3356 = vcombine.high %v3248, %v3256
        %v3358 = vunpack.c.l.s4 1983009808
        %v3359 = vunpack.c.0.s8 %v3358
        %v3360 = vlaneseq
        %v3361 = vshrl.u32 %v3360, 7
        %v3362 = vsub.s32 %v3359, %v3361
        %v3363 = vrot.slane %v3355, %v3362
        %v3365 = vunpack.c.l.s4 1983009808
        %v3366 = vunpack.c.0.s8 %v3365
        %v3367 = vlaneseq
        %v3368 = vshrl.u32 %v3367, 7
        %v3369 = vsub.s32 %v3366, %v3368
        %v3370 = vrot.slane %v3356, %v3369
        %v3371 = vcombine.low %v3260, %v3268
        %v3372 = vcombine.high %v3260, %v3268
        %v3374 = vunpack.c.l.s4 1983009808
        %v3375 = vunpack.c.0.s8 %v3374
        %v3376 = vlaneseq
        %v3377 = vshrl.u32 %v3376, 7
        %v3378 = vsub.s32 %v3375, %v3377
        %v3379 = vrot.slane %v3371, %v3378
        %v3381 = vunpack.c.l.s4 1983009808
        %v3382 = vunpack.c.0.s8 %v3381
        %v3383 = vlaneseq
        %v3384 = vshrl.u32 %v3383, 7
        %v3385 = vsub.s32 %v3382, %v3384
        %v3386 = vrot.slane %v3372, %v3385
        %v3387 = vcombine.low %v3264, %v3272
        %v3388 = vcombine.high %v3264, %v3272
        %v3390 = vunpack.c.l.s4 1983009808
        %v3391 = vunpack.c.0.s8 %v3390
        %v3392 = vlaneseq
        %v3393 = vshrl.u32 %v3392, 7
        %v3394 = vsub.s32 %v3391, %v3393
        %v3395 = vrot.slane %v3387, %v3394
        %v3397 = vunpack.c.l.s4 1983009808
        %v3398 = vunpack.c.0.s8 %v3397
        %v3399 = vlaneseq
        %v3400 = vshrl.u32 %v3399, 7
        %v3401 = vsub.s32 %v3398, %v3400
        %v3402 = vrot.slane %v3388, %v3401
        %v3403 = vcombine.low %v3347, %v3363
        %v3404 = vcombine.high %v3347, %v3363
        %v3406 = vunpack.c.l.s4 1934713408
        %v3407 = vunpack.c.0.s8 %v3406
        %v3408 = vlaneseq
        %v3409 = vshrl.u32 %v3408, 7
        %v3410 = vsub.s32 %v3407, %v3409
        %v3411 = vrot.slane %v3403, %v3410
        %v3413 = vunpack.c.l.s4 1934713408
        %v3414 = vunpack.c.0.s8 %v3413
        %v3415 = vlaneseq
        %v3416 = vshrl.u32 %v3415, 7
        %v3417 = vsub.s32 %v3414, %v3416
        %v3418 = vrot.slane %v3404, %v3417
        %v3419 = vcombine.low %v3354, %v3370
        %v3420 = vcombine.high %v3354, %v3370
        %v3422 = vunpack.c.l.s4 1934713408
        %v3423 = vunpack.c.0.s8 %v3422
        %v3424 = vlaneseq
        %v3425 = vshrl.u32 %v3424, 7
        %v3426 = vsub.s32 %v3423, %v3425
        %v3427 = vrot.slane %v3419, %v3426
        %v3429 = vunpack.c.l.s4 1934713408
        %v3430 = vunpack.c.0.s8 %v3429
        %v3431 = vlaneseq
        %v3432 = vshrl.u32 %v3431, 7
        %v3433 = vsub.s32 %v3430, %v3432
        %v3434 = vrot.slane %v3420, %v3433
        %v3435 = vcombine.low %v3379, %v3395
        %v3436 = vcombine.high %v3379, %v3395
        %v3438 = vunpack.c.l.s4 1934713408
        %v3439 = vunpack.c.0.s8 %v3438
        %v3440 = vlaneseq
        %v3441 = vshrl.u32 %v3440, 7
        %v3442 = vsub.s32 %v3439, %v3441
        %v3443 = vrot.slane %v3435, %v3442
        %v3445 = vunpack.c.l.s4 1934713408
        %v3446 = vunpack.c.0.s8 %v3445
        %v3447 = vlaneseq
        %v3448 = vshrl.u32 %v3447, 7
        %v3449 = vsub.s32 %v3446, %v3448
        %v3450 = vrot.slane %v3436, %v3449
        %v3451 = vcombine.low %v3386, %v3402
        %v3452 = vcombine.high %v3386, %v3402
        %v3454 = vunpack.c.l.s4 1934713408
        %v3455 = vunpack.c.0.s8 %v3454
        %v3456 = vlaneseq
        %v3457 = vshrl.u32 %v3456, 7
        %v3458 = vsub.s32 %v3455, %v3457
        %v3459 = vrot.slane %v3451, %v3458
        %v3461 = vunpack.c.l.s4 1934713408
        %v3462 = vunpack.c.0.s8 %v3461
        %v3463 = vlaneseq
        %v3464 = vshrl.u32 %v3463, 7
        %v3465 = vsub.s32 %v3462, %v3464
        %v3466 = vrot.slane %v3452, %v3465
        %v3467 = vcombine.low %v3411, %v3443
        %v3468 = vcombine.high %v3411, %v3443
        %v3469 = vcombine.low %v3418, %v3450
        %v3470 = vcombine.high %v3418, %v3450
        %v3471 = vcombine.low %v3427, %v3459
        %v3472 = vcombine.high %v3427, %v3459
        %v3473 = vcombine.low %v3434, %v3466
        %v3474 = vcombine.high %v3434, %v3466
        %v3475 = vcombine.low %v3276, %v3284
        %v3476 = vcombine.high %v3276, %v3284
        %v3478 = vunpack.c.l.s4 1983009808
        %v3479 = vunpack.c.0.s8 %v3478
        %v3480 = vlaneseq
        %v3481 = vshrl.u32 %v3480, 7
        %v3482 = vsub.s32 %v3479, %v3481
        %v3483 = vrot.slane %v3475, %v3482
        %v3485 = vunpack.c.l.s4 1983009808
        %v3486 = vunpack.c.0.s8 %v3485
        %v3487 = vlaneseq
        %v3488 = vshrl.u32 %v3487, 7
        %v3489 = vsub.s32 %v3486, %v3488
        %v3490 = vrot.slane %v3476, %v3489
        %v3491 = vcombine.low %v3280, %v3288
        %v3492 = vcombine.high %v3280, %v3288
        %v3494 = vunpack.c.l.s4 1983009808
        %v3495 = vunpack.c.0.s8 %v3494
        %v3496 = vlaneseq
        %v3497 = vshrl.u32 %v3496, 7
        %v3498 = vsub.s32 %v3495, %v3497
        %v3499 = vrot.slane %v3491, %v3498
        %v3501 = vunpack.c.l.s4 1983009808
        %v3502 = vunpack.c.0.s8 %v3501
        %v3503 = vlaneseq
        %v3504 = vshrl.u32 %v3503, 7
        %v3505 = vsub.s32 %v3502, %v3504
        %v3506 = vrot.slane %v3492, %v3505
        %v3507 = vcombine.low %v3292, %v3300
        %v3508 = vcombine.high %v3292, %v3300
        %v3510 = vunpack.c.l.s4 1983009808
        %v3511 = vunpack.c.0.s8 %v3510
        %v3512 = vlaneseq
        %v3513 = vshrl.u32 %v3512, 7
        %v3514 = vsub.s32 %v3511, %v3513
        %v3515 = vrot.slane %v3507, %v3514
        %v3517 = vunpack.c.l.s4 1983009808
        %v3518 = vunpack.c.0.s8 %v3517
        %v3519 = vlaneseq
        %v3520 = vshrl.u32 %v3519, 7
        %v3521 = vsub.s32 %v3518, %v3520
        %v3522 = vrot.slane %v3508, %v3521
        %v3523 = vcombine.low %v3296, %v3304
        %v3524 = vcombine.high %v3296, %v3304
        %v3526 = vunpack.c.l.s4 1983009808
        %v3527 = vunpack.c.0.s8 %v3526
        %v3528 = vlaneseq
        %v3529 = vshrl.u32 %v3528, 7
        %v3530 = vsub.s32 %v3527, %v3529
        %v3531 = vrot.slane %v3523, %v3530
        %v3533 = vunpack.c.l.s4 1983009808
        %v3534 = vunpack.c.0.s8 %v3533
        %v3535 = vlaneseq
        %v3536 = vshrl.u32 %v3535, 7
        %v3537 = vsub.s32 %v3534, %v3536
        %v3538 = vrot.slane %v3524, %v3537
        %v3539 = vcombine.low %v3483, %v3499
        %v3540 = vcombine.high %v3483, %v3499
        %v3542 = vunpack.c.l.s4 1934713408
        %v3543 = vunpack.c.0.s8 %v3542
        %v3544 = vlaneseq
        %v3545 = vshrl.u32 %v3544, 7
        %v3546 = vsub.s32 %v3543, %v3545
        %v3547 = vrot.slane %v3539, %v3546
        %v3549 = vunpack.c.l.s4 1934713408
        %v3550 = vunpack.c.0.s8 %v3549
        %v3551 = vlaneseq
        %v3552 = vshrl.u32 %v3551, 7
        %v3553 = vsub.s32 %v3550, %v3552
        %v3554 = vrot.slane %v3540, %v3553
        %v3555 = vcombine.low %v3490, %v3506
        %v3556 = vcombine.high %v3490, %v3506
        %v3558 = vunpack.c.l.s4 1934713408
        %v3559 = vunpack.c.0.s8 %v3558
        %v3560 = vlaneseq
        %v3561 = vshrl.u32 %v3560, 7
        %v3562 = vsub.s32 %v3559, %v3561
        %v3563 = vrot.slane %v3555, %v3562
        %v3565 = vunpack.c.l.s4 1934713408
        %v3566 = vunpack.c.0.s8 %v3565
        %v3567 = vlaneseq
        %v3568 = vshrl.u32 %v3567, 7
        %v3569 = vsub.s32 %v3566, %v3568
        %v3570 = vrot.slane %v3556, %v3569
        %v3571 = vcombine.low %v3515, %v3531
        %v3572 = vcombine.high %v3515, %v3531
        %v3574 = vunpack.c.l.s4 1934713408
        %v3575 = vunpack.c.0.s8 %v3574
        %v3576 = vlaneseq
        %v3577 = vshrl.u32 %v3576, 7
        %v3578 = vsub.s32 %v3575, %v3577
        %v3579 = vrot.slane %v3571, %v3578
        %v3581 = vunpack.c.l.s4 1934713408
        %v3582 = vunpack.c.0.s8 %v3581
        %v3583 = vlaneseq
        %v3584 = vshrl.u32 %v3583, 7
        %v3585 = vsub.s32 %v3582, %v3584
        %v3586 = vrot.slane %v3572, %v3585
        %v3587 = vcombine.low %v3522, %v3538
        %v3588 = vcombine.high %v3522, %v3538
        %v3590 = vunpack.c.l.s4 1934713408
        %v3591 = vunpack.c.0.s8 %v3590
        %v3592 = vlaneseq
        %v3593 = vshrl.u32 %v3592, 7
        %v3594 = vsub.s32 %v3591, %v3593
        %v3595 = vrot.slane %v3587, %v3594
        %v3597 = vunpack.c.l.s4 1934713408
        %v3598 = vunpack.c.0.s8 %v3597
        %v3599 = vlaneseq
        %v3600 = vshrl.u32 %v3599, 7
        %v3601 = vsub.s32 %v3598, %v3600
        %v3602 = vrot.slane %v3588, %v3601
        %v3603 = vcombine.low %v3547, %v3579
        %v3604 = vcombine.high %v3547, %v3579
        %v3605 = vcombine.low %v3554, %v3586
        %v3606 = vcombine.high %v3554, %v3586
        %v3607 = vcombine.low %v3563, %v3595
        %v3608 = vcombine.high %v3563, %v3595
        %v3609 = vcombine.low %v3570, %v3602
        %v3610 = vcombine.high %v3570, %v3602
        %v3611 = vcombine.low %v3246, %v3254
        %v3612 = vcombine.high %v3246, %v3254
        %v3614 = vunpack.c.l.s4 1983009808
        %v3615 = vunpack.c.0.s8 %v3614
        %v3616 = vlaneseq
        %v3617 = vshrl.u32 %v3616, 7
        %v3618 = vsub.s32 %v3615, %v3617
        %v3619 = vrot.slane %v3611, %v3618
        %v3621 = vunpack.c.l.s4 1983009808
        %v3622 = vunpack.c.0.s8 %v3621
        %v3623 = vlaneseq
        %v3624 = vshrl.u32 %v3623, 7
        %v3625 = vsub.s32 %v3622, %v3624
        %v3626 = vrot.slane %v3612, %v3625
        %v3627 = vcombine.low %v3250, %v3258
        %v3628 = vcombine.high %v3250, %v3258
        %v3630 = vunpack.c.l.s4 1983009808
        %v3631 = vunpack.c.0.s8 %v3630
        %v3632 = vlaneseq
        %v3633 = vshrl.u32 %v3632, 7
        %v3634 = vsub.s32 %v3631, %v3633
        %v3635 = vrot.slane %v3627, %v3634
        %v3637 = vunpack.c.l.s4 1983009808
        %v3638 = vunpack.c.0.s8 %v3637
        %v3639 = vlaneseq
        %v3640 = vshrl.u32 %v3639, 7
        %v3641 = vsub.s32 %v3638, %v3640
        %v3642 = vrot.slane %v3628, %v3641
        %v3643 = vcombine.low %v3262, %v3270
        %v3644 = vcombine.high %v3262, %v3270
        %v3646 = vunpack.c.l.s4 1983009808
        %v3647 = vunpack.c.0.s8 %v3646
        %v3648 = vlaneseq
        %v3649 = vshrl.u32 %v3648, 7
        %v3650 = vsub.s32 %v3647, %v3649
        %v3651 = vrot.slane %v3643, %v3650
        %v3653 = vunpack.c.l.s4 1983009808
        %v3654 = vunpack.c.0.s8 %v3653
        %v3655 = vlaneseq
        %v3656 = vshrl.u32 %v3655, 7
        %v3657 = vsub.s32 %v3654, %v3656
        %v3658 = vrot.slane %v3644, %v3657
        %v3659 = vcombine.low %v3266, %v3274
        %v3660 = vcombine.high %v3266, %v3274
        %v3662 = vunpack.c.l.s4 1983009808
        %v3663 = vunpack.c.0.s8 %v3662
        %v3664 = vlaneseq
        %v3665 = vshrl.u32 %v3664, 7
        %v3666 = vsub.s32 %v3663, %v3665
        %v3667 = vrot.slane %v3659, %v3666
        %v3669 = vunpack.c.l.s4 1983009808
        %v3670 = vunpack.c.0.s8 %v3669
        %v3671 = vlaneseq
        %v3672 = vshrl.u32 %v3671, 7
        %v3673 = vsub.s32 %v3670, %v3672
        %v3674 = vrot.slane %v3660, %v3673
        %v3675 = vcombine.low %v3619, %v3635
        %v3676 = vcombine.high %v3619, %v3635
        %v3678 = vunpack.c.l.s4 1934713408
        %v3679 = vunpack.c.0.s8 %v3678
        %v3680 = vlaneseq
        %v3681 = vshrl.u32 %v3680, 7
        %v3682 = vsub.s32 %v3679, %v3681
        %v3683 = vrot.slane %v3675, %v3682
        %v3685 = vunpack.c.l.s4 1934713408
        %v3686 = vunpack.c.0.s8 %v3685
        %v3687 = vlaneseq
        %v3688 = vshrl.u32 %v3687, 7
        %v3689 = vsub.s32 %v3686, %v3688
        %v3690 = vrot.slane %v3676, %v3689
        %v3691 = vcombine.low %v3626, %v3642
        %v3692 = vcombine.high %v3626, %v3642
        %v3694 = vunpack.c.l.s4 1934713408
        %v3695 = vunpack.c.0.s8 %v3694
        %v3696 = vlaneseq
        %v3697 = vshrl.u32 %v3696, 7
        %v3698 = vsub.s32 %v3695, %v3697
        %v3699 = vrot.slane %v3691, %v3698
        %v3701 = vunpack.c.l.s4 1934713408
        %v3702 = vunpack.c.0.s8 %v3701
        %v3703 = vlaneseq
        %v3704 = vshrl.u32 %v3703, 7
        %v3705 = vsub.s32 %v3702, %v3704
        %v3706 = vrot.slane %v3692, %v3705
        %v3707 = vcombine.low %v3651, %v3667
        %v3708 = vcombine.high %v3651, %v3667
        %v3710 = vunpack.c.l.s4 1934713408
        %v3711 = vunpack.c.0.s8 %v3710
        %v3712 = vlaneseq
        %v3713 = vshrl.u32 %v3712, 7
        %v3714 = vsub.s32 %v3711, %v3713
        %v3715 = vrot.slane %v3707, %v3714
        %v3717 = vunpack.c.l.s4 1934713408
        %v3718 = vunpack.c.0.s8 %v3717
        %v3719 = vlaneseq
        %v3720 = vshrl.u32 %v3719, 7
        %v3721 = vsub.s32 %v3718, %v3720
        %v3722 = vrot.slane %v3708, %v3721
        %v3723 = vcombine.low %v3658, %v3674
        %v3724 = vcombine.high %v3658, %v3674
        %v3726 = vunpack.c.l.s4 1934713408
        %v3727 = vunpack.c.0.s8 %v3726
        %v3728 = vlaneseq
        %v3729 = vshrl.u32 %v3728, 7
        %v3730 = vsub.s32 %v3727, %v3729
        %v3731 = vrot.slane %v3723, %v3730
        %v3733 = vunpack.c.l.s4 1934713408
        %v3734 = vunpack.c.0.s8 %v3733
        %v3735 = vlaneseq
        %v3736 = vshrl.u32 %v3735, 7
        %v3737 = vsub.s32 %v3734, %v3736
        %v3738 = vrot.slane %v3724, %v3737
        %v3739 = vcombine.low %v3683, %v3715
        %v3740 = vcombine.high %v3683, %v3715
        %v3741 = vcombine.low %v3690, %v3722
        %v3742 = vcombine.high %v3690, %v3722
        %v3743 = vcombine.low %v3699, %v3731
        %v3744 = vcombine.high %v3699, %v3731
        %v3745 = vcombine.low %v3706, %v3738
        %v3746 = vcombine.high %v3706, %v3738
        %v3747 = vcombine.low %v3278, %v3286
        %v3748 = vcombine.high %v3278, %v3286
        %v3750 = vunpack.c.l.s4 1983009808
        %v3751 = vunpack.c.0.s8 %v3750
        %v3752 = vlaneseq
        %v3753 = vshrl.u32 %v3752, 7
        %v3754 = vsub.s32 %v3751, %v3753
        %v3755 = vrot.slane %v3747, %v3754
        %v3757 = vunpack.c.l.s4 1983009808
        %v3758 = vunpack.c.0.s8 %v3757
        %v3759 = vlaneseq
        %v3760 = vshrl.u32 %v3759, 7
        %v3761 = vsub.s32 %v3758, %v3760
        %v3762 = vrot.slane %v3748, %v3761
        %v3763 = vcombine.low %v3282, %v3290
        %v3764 = vcombine.high %v3282, %v3290
        %v3766 = vunpack.c.l.s4 1983009808
        %v3767 = vunpack.c.0.s8 %v3766
        %v3768 = vlaneseq
        %v3769 = vshrl.u32 %v3768, 7
        %v3770 = vsub.s32 %v3767, %v3769
        %v3771 = vrot.slane %v3763, %v3770
        %v3773 = vunpack.c.l.s4 1983009808
        %v3774 = vunpack.c.0.s8 %v3773
        %v3775 = vlaneseq
        %v3776 = vshrl.u32 %v3775, 7
        %v3777 = vsub.s32 %v3774, %v3776
        %v3778 = vrot.slane %v3764, %v3777
        %v3779 = vcombine.low %v3294, %v3302
        %v3780 = vcombine.high %v3294, %v3302
        %v3782 = vunpack.c.l.s4 1983009808
        %v3783 = vunpack.c.0.s8 %v3782
        %v3784 = vlaneseq
        %v3785 = vshrl.u32 %v3784, 7
        %v3786 = vsub.s32 %v3783, %v3785
        %v3787 = vrot.slane %v3779, %v3786
        %v3789 = vunpack.c.l.s4 1983009808
        %v3790 = vunpack.c.0.s8 %v3789
        %v3791 = vlaneseq
        %v3792 = vshrl.u32 %v3791, 7
        %v3793 = vsub.s32 %v3790, %v3792
        %v3794 = vrot.slane %v3780, %v3793
        %v3795 = vcombine.low %v3298, %v3306
        %v3796 = vcombine.high %v3298, %v3306
        %v3798 = vunpack.c.l.s4 1983009808
        %v3799 = vunpack.c.0.s8 %v3798
        %v3800 = vlaneseq
        %v3801 = vshrl.u32 %v3800, 7
        %v3802 = vsub.s32 %v3799, %v3801
        %v3803 = vrot.slane %v3795, %v3802
        %v3805 = vunpack.c.l.s4 1983009808
        %v3806 = vunpack.c.0.s8 %v3805
        %v3807 = vlaneseq
        %v3808 = vshrl.u32 %v3807, 7
        %v3809 = vsub.s32 %v3806, %v3808
        %v3810 = vrot.slane %v3796, %v3809
        %v3811 = vcombine.low %v3755, %v3771
        %v3812 = vcombine.high %v3755, %v3771
        %v3814 = vunpack.c.l.s4 1934713408
        %v3815 = vunpack.c.0.s8 %v3814
        %v3816 = vlaneseq
        %v3817 = vshrl.u32 %v3816, 7
        %v3818 = vsub.s32 %v3815, %v3817
        %v3819 = vrot.slane %v3811, %v3818
        %v3821 = vunpack.c.l.s4 1934713408
        %v3822 = vunpack.c.0.s8 %v3821
        %v3823 = vlaneseq
        %v3824 = vshrl.u32 %v3823, 7
        %v3825 = vsub.s32 %v3822, %v3824
        %v3826 = vrot.slane %v3812, %v3825
        %v3827 = vcombine.low %v3762, %v3778
        %v3828 = vcombine.high %v3762, %v3778
        %v3830 = vunpack.c.l.s4 1934713408
        %v3831 = vunpack.c.0.s8 %v3830
        %v3832 = vlaneseq
        %v3833 = vshrl.u32 %v3832, 7
        %v3834 = vsub.s32 %v3831, %v3833
        %v3835 = vrot.slane %v3827, %v3834
        %v3837 = vunpack.c.l.s4 1934713408
        %v3838 = vunpack.c.0.s8 %v3837
        %v3839 = vlaneseq
        %v3840 = vshrl.u32 %v3839, 7
        %v3841 = vsub.s32 %v3838, %v3840
        %v3842 = vrot.slane %v3828, %v3841
        %v3843 = vcombine.low %v3787, %v3803
        %v3844 = vcombine.high %v3787, %v3803
        %v3846 = vunpack.c.l.s4 1934713408
        %v3847 = vunpack.c.0.s8 %v3846
        %v3848 = vlaneseq
        %v3849 = vshrl.u32 %v3848, 7
        %v3850 = vsub.s32 %v3847, %v3849
        %v3851 = vrot.slane %v3843, %v3850
        %v3853 = vunpack.c.l.s4 1934713408
        %v3854 = vunpack.c.0.s8 %v3853
        %v3855 = vlaneseq
        %v3856 = vshrl.u32 %v3855, 7
        %v3857 = vsub.s32 %v3854, %v3856
        %v3858 = vrot.slane %v3844, %v3857
        %v3859 = vcombine.low %v3794, %v3810
        %v3860 = vcombine.high %v3794, %v3810
        %v3862 = vunpack.c.l.s4 1934713408
        %v3863 = vunpack.c.0.s8 %v3862
        %v3864 = vlaneseq
        %v3865 = vshrl.u32 %v3864, 7
        %v3866 = vsub.s32 %v3863, %v3865
        %v3867 = vrot.slane %v3859, %v3866
        %v3869 = vunpack.c.l.s4 1934713408
        %v3870 = vunpack.c.0.s8 %v3869
        %v3871 = vlaneseq
        %v3872 = vshrl.u32 %v3871, 7
        %v3873 = vsub.s32 %v3870, %v3872
        %v3874 = vrot.slane %v3860, %v3873
        %v3875 = vcombine.low %v3819, %v3851
        %v3876 = vcombine.high %v3819, %v3851
        %v3877 = vcombine.low %v3826, %v3858
        %v3878 = vcombine.high %v3826, %v3858
        %v3879 = vcombine.low %v3835, %v3867
        %v3880 = vcombine.high %v3835, %v3867
        %v3881 = vcombine.low %v3842, %v3874
        %v3882 = vcombine.high %v3842, %v3874
        %v3883 = vlaneseq
        %v3884 = vshrl.u32 %v3883, 7
        %v3885 = vadd.s32 %v3884, 8
        %v3886 = vlaneseq
        %v3887 = vand.u32 %v3886, 127
        %vm3888 = vcmp.eq.s32.totalorder %v3884, %v3887
        %vm3889 = vcmp.eq.s32.totalorder %v3885, %v3887
        %v3890 = vsel %vm3888, -1e+30, 0.0
        %v3891 = vsel %vm3889, -1e+30, 0.0
        %v3893 = vsel %vm276, %v2251, 0
        %v3896 = vsel %vm276, %v2387, 0
        %v3899 = vsel %vm276, %v2827, 0
        %v3902 = vsel %vm276, %v2963, 0
        %3904 = vmatprep.subr.mxu0 0.0
        %3905 = vmatpush1.xpose.msra.mxu0 %v3899
        %3906 = vmatprep.subr.mxu0 0.0
        %3907 = vmatpush1.xpose.msra.mxu0 %v3902
        %3908 = vmatprep.subr.mxu0 0.0
        %3909 = vmatpush1.xpose.msra.mxu0 0.0
        %3910 = vmatprep.subr.mxu0 0.0
        %3911 = vmatpush1.xpose.msra.mxu0 0.0
        %3912 = vmatprep.subr.mxu0 0.0
        %3913 = vmatpush1.xpose.msra.mxu0 0.0
        %3914 = vmatprep.subr.mxu0 0.0
        %3915 = vmatpush1.xpose.msra.mxu0 0.0
        %3916 = vmatprep.subr.mxu0 0.0
        %3917 = vmatpush1.xpose.msra.mxu0 0.0
        %3918 = vmatprep.subr.mxu0 0.0
        %3919 = vmatpush1.xpose.msra.mxu0 0.0
        %3920 = vmatprep.subr.mxu0 0.0
        %3921 = vmatpush1.xpose.msra.mxu0 0.0
        %3922 = vmatprep.subr.mxu0 0.0
        %3923 = vmatpush1.xpose.msra.mxu0 0.0
        %3924 = vmatprep.subr.mxu0 0.0
        %3925 = vmatpush1.xpose.msra.mxu0 0.0
        %3926 = vmatprep.subr.mxu0 0.0
        %3927 = vmatpush1.xpose.msra.mxu0 0.0
        %3928 = vmatprep.subr.mxu0 0.0
        %3929 = vmatpush1.xpose.msra.mxu0 0.0
        %3930 = vmatprep.subr.mxu0 0.0
        %3931 = vmatpush1.xpose.msra.mxu0 0.0
        %3932 = vmatprep.subr.mxu0 0.0
        %3933 = vmatpush1.xpose.msra.mxu0 0.0
        %3934 = vmatprep.subr.mxu0 0.0
        %3935 = vmatpush1.xpose.msra.mxu0 0.0
        %3936 = vmatprep.subr.mxu0 0.0
        %3937 = vmatpush1.xpose.msra.mxu0 0.0
        %3938 = vmatprep.subr.mxu0 0.0
        %3939 = vmatpush1.xpose.msra.mxu0 0.0
        %3940 = vmatprep.subr.mxu0 0.0
        %3941 = vmatpush1.xpose.msra.mxu0 0.0
        %3942 = vmatprep.subr.mxu0 0.0
        %3943 = vmatpush1.xpose.msra.mxu0 0.0
        %3944 = vmatprep.subr.mxu0 0.0
        %3945 = vmatpush1.xpose.msra.mxu0 0.0
        %3946 = vmatprep.subr.mxu0 0.0
        %3947 = vmatpush1.xpose.msra.mxu0 0.0
        %3948 = vmatprep.subr.mxu0 0.0
        %3949 = vmatpush1.xpose.msra.mxu0 0.0
        %3950 = vmatprep.subr.mxu0 0.0
        %3951 = vmatpush1.xpose.msra.mxu0 0.0
        %3952 = vmatprep.subr.mxu0 0.0
        %3953 = vmatpush1.xpose.msra.mxu0 0.0
        %3954 = vmatprep.subr.mxu0 0.0
        %3955 = vmatpush1.xpose.msra.mxu0 0.0
        %3956 = vmatprep.subr.mxu0 0.0
        %3957 = vmatpush1.xpose.msra.mxu0 0.0
        %3958 = vmatprep.subr.mxu0 0.0
        %3959 = vmatpush1.xpose.msra.mxu0 0.0
        %3960 = vmatprep.subr.mxu0 0.0
        %3961 = vmatpush1.xpose.msra.mxu0 0.0
        %3962 = vmatprep.subr.mxu0 0.0
        %3963 = vmatpush1.xpose.msra.mxu0 0.0
        %3964 = vmatprep.subr.mxu0 0.0
        %3965 = vmatpush1.xpose.msra.mxu0 0.0
        %3966 = vmatprep.subr.mxu0 0.0
        %3967 = vmatpush1.xpose.msra.mxu0 0.0
        %3968 = vmatprep.mubr.f32.mxu0 0.0
        %3969 = vmatmul.mubr.f32.gmra.mrb[0].mxu0 %v3893
        %v3970 = vpop.f32.mrb[0].mxu0
        %v3971 = vadd.f32 %v3890, %v3970
        %v3972 = vpop.f32.mrb[0].mxu0
        %3973 = vmatprep.mubr.f32.mxu0 0.0
        %3974 = vmatmul.mubr.f32.gmra.mrb[0].mxu0 %v3896
        %v3975 = vpop.f32.mrb[0].mxu0
        %v3976 = vadd.f32 %v3891, %v3975
        %v3977 = vpop.f32.mrb[0].mxu0
        %3978 = vdwg.mxu0
        %v3980 = vsel %vm276, %v2252, 0
        %v3983 = vsel %vm276, %v2388, 0
        %v3986 = vsel %vm276, %v2828, 0
        %v3989 = vsel %vm276, %v2964, 0
        %3991 = vmatprep.subr.mxu0 0.0
        %3992 = vmatpush1.xpose.msra.mxu0 %v3986
        %3993 = vmatprep.subr.mxu0 0.0
        %3994 = vmatpush1.xpose.msra.mxu0 %v3989
        %3995 = vmatprep.subr.mxu0 0.0
        %3996 = vmatpush1.xpose.msra.mxu0 0.0
        %3997 = vmatprep.subr.mxu0 0.0
        %3998 = vmatpush1.xpose.msra.mxu0 0.0
        %3999 = vmatprep.subr.mxu0 0.0
        %4000 = vmatpush1.xpose.msra.mxu0 0.0
        %4001 = vmatprep.subr.mxu0 0.0
        %4002 = vmatpush1.xpose.msra.mxu0 0.0
        %4003 = vmatprep.subr.mxu0 0.0
        %4004 = vmatpush1.xpose.msra.mxu0 0.0
        %4005 = vmatprep.subr.mxu0 0.0
        %4006 = vmatpush1.xpose.msra.mxu0 0.0
        %4007 = vmatprep.subr.mxu0 0.0
        %4008 = vmatpush1.xpose.msra.mxu0 0.0
        %4009 = vmatprep.subr.mxu0 0.0
        %4010 = vmatpush1.xpose.msra.mxu0 0.0
        %4011 = vmatprep.subr.mxu0 0.0
        %4012 = vmatpush1.xpose.msra.mxu0 0.0
        %4013 = vmatprep.subr.mxu0 0.0
        %4014 = vmatpush1.xpose.msra.mxu0 0.0
        %4015 = vmatprep.subr.mxu0 0.0
        %4016 = vmatpush1.xpose.msra.mxu0 0.0
        %4017 = vmatprep.subr.mxu0 0.0
        %4018 = vmatpush1.xpose.msra.mxu0 0.0
        %4019 = vmatprep.subr.mxu0 0.0
        %4020 = vmatpush1.xpose.msra.mxu0 0.0
        %4021 = vmatprep.subr.mxu0 0.0
        %4022 = vmatpush1.xpose.msra.mxu0 0.0
        %4023 = vmatprep.subr.mxu0 0.0
        %4024 = vmatpush1.xpose.msra.mxu0 0.0
        %4025 = vmatprep.subr.mxu0 0.0
        %4026 = vmatpush1.xpose.msra.mxu0 0.0
        %4027 = vmatprep.subr.mxu0 0.0
        %4028 = vmatpush1.xpose.msra.mxu0 0.0
        %4029 = vmatprep.subr.mxu0 0.0
        %4030 = vmatpush1.xpose.msra.mxu0 0.0
        %4031 = vmatprep.subr.mxu0 0.0
        %4032 = vmatpush1.xpose.msra.mxu0 0.0
        %4033 = vmatprep.subr.mxu0 0.0
        %4034 = vmatpush1.xpose.msra.mxu0 0.0
        %4035 = vmatprep.subr.mxu0 0.0
        %4036 = vmatpush1.xpose.msra.mxu0 0.0
        %4037 = vmatprep.subr.mxu0 0.0
        %4038 = vmatpush1.xpose.msra.mxu0 0.0
        %4039 = vmatprep.subr.mxu0 0.0
        %4040 = vmatpush1.xpose.msra.mxu0 0.0
        %4041 = vmatprep.subr.mxu0 0.0
        %4042 = vmatpush1.xpose.msra.mxu0 0.0
        %4043 = vmatprep.subr.mxu0 0.0
        %4044 = vmatpush1.xpose.msra.mxu0 0.0
        %4045 = vmatprep.subr.mxu0 0.0
        %4046 = vmatpush1.xpose.msra.mxu0 0.0
        %4047 = vmatprep.subr.mxu0 0.0
        %4048 = vmatpush1.xpose.msra.mxu0 0.0
        %4049 = vmatprep.subr.mxu0 0.0
        %4050 = vmatpush1.xpose.msra.mxu0 0.0
        %4051 = vmatprep.subr.mxu0 0.0
        %4052 = vmatpush1.xpose.msra.mxu0 0.0
        %4053 = vmatprep.subr.mxu0 0.0
        %4054 = vmatpush1.xpose.msra.mxu0 0.0
        %4055 = vmatprep.mubr.f32.mxu0 0.0
        %4056 = vmatmul.mubr.f32.gmra.mrb[0].mxu0 %v3980
        %v4057 = vpop.f32.mrb[0].mxu0
        %v4058 = vadd.f32 %v3890, %v4057
        %v4059 = vpop.f32.mrb[0].mxu0
        %4060 = vmatprep.mubr.f32.mxu0 0.0
        %4061 = vmatmul.mubr.f32.gmra.mrb[0].mxu0 %v3983
        %v4062 = vpop.f32.mrb[0].mxu0
        %v4063 = vadd.f32 %v3891, %v4062
        %v4064 = vpop.f32.mrb[0].mxu0
        %4065 = vdwg.mxu0
        %v4067 = vsel %vm276, %v2253, 0
        %v4070 = vsel %vm276, %v2389, 0
        %v4073 = vsel %vm276, %v2829, 0
        %v4076 = vsel %vm276, %v2965, 0
        %4078 = vmatprep.subr.mxu0 0.0
        %4079 = vmatpush1.xpose.msra.mxu0 %v4073
        %4080 = vmatprep.subr.mxu0 0.0
        %4081 = vmatpush1.xpose.msra.mxu0 %v4076
        %4082 = vmatprep.subr.mxu0 0.0
        %4083 = vmatpush1.xpose.msra.mxu0 0.0
        %4084 = vmatprep.subr.mxu0 0.0
        %4085 = vmatpush1.xpose.msra.mxu0 0.0
        %4086 = vmatprep.subr.mxu0 0.0
        %4087 = vmatpush1.xpose.msra.mxu0 0.0
        %4088 = vmatprep.subr.mxu0 0.0
        %4089 = vmatpush1.xpose.msra.mxu0 0.0
        %4090 = vmatprep.subr.mxu0 0.0
        %4091 = vmatpush1.xpose.msra.mxu0 0.0
        %4092 = vmatprep.subr.mxu0 0.0
        %4093 = vmatpush1.xpose.msra.mxu0 0.0
        %4094 = vmatprep.subr.mxu0 0.0
        %4095 = vmatpush1.xpose.msra.mxu0 0.0
        %4096 = vmatprep.subr.mxu0 0.0
        %4097 = vmatpush1.xpose.msra.mxu0 0.0
        %4098 = vmatprep.subr.mxu0 0.0
        %4099 = vmatpush1.xpose.msra.mxu0 0.0
        %4100 = vmatprep.subr.mxu0 0.0
        %4101 = vmatpush1.xpose.msra.mxu0 0.0
        %4102 = vmatprep.subr.mxu0 0.0
        %4103 = vmatpush1.xpose.msra.mxu0 0.0
        %4104 = vmatprep.subr.mxu0 0.0
        %4105 = vmatpush1.xpose.msra.mxu0 0.0
        %4106 = vmatprep.subr.mxu0 0.0
        %4107 = vmatpush1.xpose.msra.mxu0 0.0
        %4108 = vmatprep.subr.mxu0 0.0
        %4109 = vmatpush1.xpose.msra.mxu0 0.0
        %4110 = vmatprep.subr.mxu0 0.0
        %4111 = vmatpush1.xpose.msra.mxu0 0.0
        %4112 = vmatprep.subr.mxu0 0.0
        %4113 = vmatpush1.xpose.msra.mxu0 0.0
        %4114 = vmatprep.subr.mxu0 0.0
        %4115 = vmatpush1.xpose.msra.mxu0 0.0
        %4116 = vmatprep.subr.mxu0 0.0
        %4117 = vmatpush1.xpose.msra.mxu0 0.0
        %4118 = vmatprep.subr.mxu0 0.0
        %4119 = vmatpush1.xpose.msra.mxu0 0.0
        %4120 = vmatprep.subr.mxu0 0.0
        %4121 = vmatpush1.xpose.msra.mxu0 0.0
        %4122 = vmatprep.subr.mxu0 0.0
        %4123 = vmatpush1.xpose.msra.mxu0 0.0
        %4124 = vmatprep.subr.mxu0 0.0
        %4125 = vmatpush1.xpose.msra.mxu0 0.0
        %4126 = vmatprep.subr.mxu0 0.0
        %4127 = vmatpush1.xpose.msra.mxu0 0.0
        %4128 = vmatprep.subr.mxu0 0.0
        %4129 = vmatpush1.xpose.msra.mxu0 0.0
        %4130 = vmatprep.subr.mxu0 0.0
        %4131 = vmatpush1.xpose.msra.mxu0 0.0
        %4132 = vmatprep.subr.mxu0 0.0
        %4133 = vmatpush1.xpose.msra.mxu0 0.0
        %4134 = vmatprep.subr.mxu0 0.0
        %4135 = vmatpush1.xpose.msra.mxu0 0.0
        %4136 = vmatprep.subr.mxu0 0.0
        %4137 = vmatpush1.xpose.msra.mxu0 0.0
        %4138 = vmatprep.subr.mxu0 0.0
        %4139 = vmatpush1.xpose.msra.mxu0 0.0
        %4140 = vmatprep.subr.mxu0 0.0
        %4141 = vmatpush1.xpose.msra.mxu0 0.0
        %4142 = vmatprep.mubr.f32.mxu0 0.0
        %4143 = vmatmul.mubr.f32.gmra.mrb[0].mxu0 %v4067
        %v4144 = vpop.f32.mrb[0].mxu0
        %v4145 = vadd.f32 %v3890, %v4144
        %v4146 = vpop.f32.mrb[0].mxu0
        %4147 = vmatprep.mubr.f32.mxu0 0.0
        %4148 = vmatmul.mubr.f32.gmra.mrb[0].mxu0 %v4070
        %v4149 = vpop.f32.mrb[0].mxu0
        %v4150 = vadd.f32 %v3891, %v4149
        %v4151 = vpop.f32.mrb[0].mxu0
        %4152 = vdwg.mxu0
        %v4154 = vsel %vm276, %v2254, 0
        %v4157 = vsel %vm276, %v2390, 0
        %v4160 = vsel %vm276, %v2830, 0
        %v4163 = vsel %vm276, %v2966, 0
        %4165 = vmatprep.subr.mxu0 0.0
        %4166 = vmatpush1.xpose.msra.mxu0 %v4160
        %4167 = vmatprep.subr.mxu0 0.0
        %4168 = vmatpush1.xpose.msra.mxu0 %v4163
        %4169 = vmatprep.subr.mxu0 0.0
        %4170 = vmatpush1.xpose.msra.mxu0 0.0
        %4171 = vmatprep.subr.mxu0 0.0
        %4172 = vmatpush1.xpose.msra.mxu0 0.0
        %4173 = vmatprep.subr.mxu0 0.0
        %4174 = vmatpush1.xpose.msra.mxu0 0.0
        %4175 = vmatprep.subr.mxu0 0.0
        %4176 = vmatpush1.xpose.msra.mxu0 0.0
        %4177 = vmatprep.subr.mxu0 0.0
        %4178 = vmatpush1.xpose.msra.mxu0 0.0
        %4179 = vmatprep.subr.mxu0 0.0
        %4180 = vmatpush1.xpose.msra.mxu0 0.0
        %4181 = vmatprep.subr.mxu0 0.0
        %4182 = vmatpush1.xpose.msra.mxu0 0.0
        %4183 = vmatprep.subr.mxu0 0.0
        %4184 = vmatpush1.xpose.msra.mxu0 0.0
        %4185 = vmatprep.subr.mxu0 0.0
        %4186 = vmatpush1.xpose.msra.mxu0 0.0
        %4187 = vmatprep.subr.mxu0 0.0
        %4188 = vmatpush1.xpose.msra.mxu0 0.0
        %4189 = vmatprep.subr.mxu0 0.0
        %4190 = vmatpush1.xpose.msra.mxu0 0.0
        %4191 = vmatprep.subr.mxu0 0.0
        %4192 = vmatpush1.xpose.msra.mxu0 0.0
        %4193 = vmatprep.subr.mxu0 0.0
        %4194 = vmatpush1.xpose.msra.mxu0 0.0
        %4195 = vmatprep.subr.mxu0 0.0
        %4196 = vmatpush1.xpose.msra.mxu0 0.0
        %4197 = vmatprep.subr.mxu0 0.0
        %4198 = vmatpush1.xpose.msra.mxu0 0.0
        %4199 = vmatprep.subr.mxu0 0.0
        %4200 = vmatpush1.xpose.msra.mxu0 0.0
        %4201 = vmatprep.subr.mxu0 0.0
        %4202 = vmatpush1.xpose.msra.mxu0 0.0
        %4203 = vmatprep.subr.mxu0 0.0
        %4204 = vmatpush1.xpose.msra.mxu0 0.0
        %4205 = vmatprep.subr.mxu0 0.0
        %4206 = vmatpush1.xpose.msra.mxu0 0.0
        %4207 = vmatprep.subr.mxu0 0.0
        %4208 = vmatpush1.xpose.msra.mxu0 0.0
        %4209 = vmatprep.subr.mxu0 0.0
        %4210 = vmatpush1.xpose.msra.mxu0 0.0
        %4211 = vmatprep.subr.mxu0 0.0
        %4212 = vmatpush1.xpose.msra.mxu0 0.0
        %4213 = vmatprep.subr.mxu0 0.0
        %4214 = vmatpush1.xpose.msra.mxu0 0.0
        %4215 = vmatprep.subr.mxu0 0.0
        %4216 = vmatpush1.xpose.msra.mxu0 0.0
        %4217 = vmatprep.subr.mxu0 0.0
        %4218 = vmatpush1.xpose.msra.mxu0 0.0
        %4219 = vmatprep.subr.mxu0 0.0
        %4220 = vmatpush1.xpose.msra.mxu0 0.0
        %4221 = vmatprep.subr.mxu0 0.0
        %4222 = vmatpush1.xpose.msra.mxu0 0.0
        %4223 = vmatprep.subr.mxu0 0.0
        %4224 = vmatpush1.xpose.msra.mxu0 0.0
        %4225 = vmatprep.subr.mxu0 0.0
        %4226 = vmatpush1.xpose.msra.mxu0 0.0
        %4227 = vmatprep.subr.mxu0 0.0
        %4228 = vmatpush1.xpose.msra.mxu0 0.0
        %4229 = vmatprep.mubr.f32.mxu0 0.0
        %4230 = vmatmul.mubr.f32.gmra.mrb[0].mxu0 %v4154
        %v4231 = vpop.f32.mrb[0].mxu0
        %v4232 = vadd.f32 %v3890, %v4231
        %v4233 = vpop.f32.mrb[0].mxu0
        %4234 = vmatprep.mubr.f32.mxu0 0.0
        %4235 = vmatmul.mubr.f32.gmra.mrb[0].mxu0 %v4157
        %v4236 = vpop.f32.mrb[0].mxu0
        %v4237 = vadd.f32 %v3891, %v4236
        %v4238 = vpop.f32.mrb[0].mxu0
        %4239 = vdwg.mxu0
        %v4241 = vsel %vm276, %v2255, 0
        %v4244 = vsel %vm276, %v2391, 0
        %v4247 = vsel %vm276, %v2831, 0
        %v4250 = vsel %vm276, %v2967, 0
        %4252 = vmatprep.subr.mxu0 0.0
        %4253 = vmatpush1.xpose.msra.mxu0 %v4247
        %4254 = vmatprep.subr.mxu0 0.0
        %4255 = vmatpush1.xpose.msra.mxu0 %v4250
        %4256 = vmatprep.subr.mxu0 0.0
        %4257 = vmatpush1.xpose.msra.mxu0 0.0
        %4258 = vmatprep.subr.mxu0 0.0
        %4259 = vmatpush1.xpose.msra.mxu0 0.0
        %4260 = vmatprep.subr.mxu0 0.0
        %4261 = vmatpush1.xpose.msra.mxu0 0.0
        %4262 = vmatprep.subr.mxu0 0.0
        %4263 = vmatpush1.xpose.msra.mxu0 0.0
        %4264 = vmatprep.subr.mxu0 0.0
        %4265 = vmatpush1.xpose.msra.mxu0 0.0
        %4266 = vmatprep.subr.mxu0 0.0
        %4267 = vmatpush1.xpose.msra.mxu0 0.0
        %4268 = vmatprep.subr.mxu0 0.0
        %4269 = vmatpush1.xpose.msra.mxu0 0.0
        %4270 = vmatprep.subr.mxu0 0.0
        %4271 = vmatpush1.xpose.msra.mxu0 0.0
        %4272 = vmatprep.subr.mxu0 0.0
        %4273 = vmatpush1.xpose.msra.mxu0 0.0
        %4274 = vmatprep.subr.mxu0 0.0
        %4275 = vmatpush1.xpose.msra.mxu0 0.0
        %4276 = vmatprep.subr.mxu0 0.0
        %4277 = vmatpush1.xpose.msra.mxu0 0.0
        %4278 = vmatprep.subr.mxu0 0.0
        %4279 = vmatpush1.xpose.msra.mxu0 0.0
        %4280 = vmatprep.subr.mxu0 0.0
        %4281 = vmatpush1.xpose.msra.mxu0 0.0
        %4282 = vmatprep.subr.mxu0 0.0
        %4283 = vmatpush1.xpose.msra.mxu0 0.0
        %4284 = vmatprep.subr.mxu0 0.0
        %4285 = vmatpush1.xpose.msra.mxu0 0.0
        %4286 = vmatprep.subr.mxu0 0.0
        %4287 = vmatpush1.xpose.msra.mxu0 0.0
        %4288 = vmatprep.subr.mxu0 0.0
        %4289 = vmatpush1.xpose.msra.mxu0 0.0
        %4290 = vmatprep.subr.mxu0 0.0
        %4291 = vmatpush1.xpose.msra.mxu0 0.0
        %4292 = vmatprep.subr.mxu0 0.0
        %4293 = vmatpush1.xpose.msra.mxu0 0.0
        %4294 = vmatprep.subr.mxu0 0.0
        %4295 = vmatpush1.xpose.msra.mxu0 0.0
        %4296 = vmatprep.subr.mxu0 0.0
        %4297 = vmatpush1.xpose.msra.mxu0 0.0
        %4298 = vmatprep.subr.mxu0 0.0
        %4299 = vmatpush1.xpose.msra.mxu0 0.0
        %4300 = vmatprep.subr.mxu0 0.0
        %4301 = vmatpush1.xpose.msra.mxu0 0.0
        %4302 = vmatprep.subr.mxu0 0.0
        %4303 = vmatpush1.xpose.msra.mxu0 0.0
        %4304 = vmatprep.subr.mxu0 0.0
        %4305 = vmatpush1.xpose.msra.mxu0 0.0
        %4306 = vmatprep.subr.mxu0 0.0
        %4307 = vmatpush1.xpose.msra.mxu0 0.0
        %4308 = vmatprep.subr.mxu0 0.0
        %4309 = vmatpush1.xpose.msra.mxu0 0.0
        %4310 = vmatprep.subr.mxu0 0.0
        %4311 = vmatpush1.xpose.msra.mxu0 0.0
        %4312 = vmatprep.subr.mxu0 0.0
        %4313 = vmatpush1.xpose.msra.mxu0 0.0
        %4314 = vmatprep.subr.mxu0 0.0
        %4315 = vmatpush1.xpose.msra.mxu0 0.0
        %4316 = vmatprep.mubr.f32.mxu0 0.0
        %4317 = vmatmul.mubr.f32.gmra.mrb[0].mxu0 %v4241
        %v4318 = vpop.f32.mrb[0].mxu0
        %v4319 = vadd.f32 %v3890, %v4318
        %v4320 = vpop.f32.mrb[0].mxu0
        %4321 = vmatprep.mubr.f32.mxu0 0.0
        %4322 = vmatmul.mubr.f32.gmra.mrb[0].mxu0 %v4244
        %v4323 = vpop.f32.mrb[0].mxu0
        %v4324 = vadd.f32 %v3891, %v4323
        %v4325 = vpop.f32.mrb[0].mxu0
        %4326 = vdwg.mxu0
        %v4328 = vsel %vm276, %v2256, 0
        %v4331 = vsel %vm276, %v2392, 0
        %v4334 = vsel %vm276, %v2832, 0
        %v4337 = vsel %vm276, %v2968, 0
        %4339 = vmatprep.subr.mxu0 0.0
        %4340 = vmatpush1.xpose.msra.mxu0 %v4334
        %4341 = vmatprep.subr.mxu0 0.0
        %4342 = vmatpush1.xpose.msra.mxu0 %v4337
        %4343 = vmatprep.subr.mxu0 0.0
        %4344 = vmatpush1.xpose.msra.mxu0 0.0
        %4345 = vmatprep.subr.mxu0 0.0
        %4346 = vmatpush1.xpose.msra.mxu0 0.0
        %4347 = vmatprep.subr.mxu0 0.0
        %4348 = vmatpush1.xpose.msra.mxu0 0.0
        %4349 = vmatprep.subr.mxu0 0.0
        %4350 = vmatpush1.xpose.msra.mxu0 0.0
        %4351 = vmatprep.subr.mxu0 0.0
        %4352 = vmatpush1.xpose.msra.mxu0 0.0
        %4353 = vmatprep.subr.mxu0 0.0
        %4354 = vmatpush1.xpose.msra.mxu0 0.0
        %4355 = vmatprep.subr.mxu0 0.0
        %4356 = vmatpush1.xpose.msra.mxu0 0.0
        %4357 = vmatprep.subr.mxu0 0.0
        %4358 = vmatpush1.xpose.msra.mxu0 0.0
        %4359 = vmatprep.subr.mxu0 0.0
        %4360 = vmatpush1.xpose.msra.mxu0 0.0
        %4361 = vmatprep.subr.mxu0 0.0
        %4362 = vmatpush1.xpose.msra.mxu0 0.0
        %4363 = vmatprep.subr.mxu0 0.0
        %4364 = vmatpush1.xpose.msra.mxu0 0.0
        %4365 = vmatprep.subr.mxu0 0.0
        %4366 = vmatpush1.xpose.msra.mxu0 0.0
        %4367 = vmatprep.subr.mxu0 0.0
        %4368 = vmatpush1.xpose.msra.mxu0 0.0
        %4369 = vmatprep.subr.mxu0 0.0
        %4370 = vmatpush1.xpose.msra.mxu0 0.0
        %4371 = vmatprep.subr.mxu0 0.0
        %4372 = vmatpush1.xpose.msra.mxu0 0.0
        %4373 = vmatprep.subr.mxu0 0.0
        %4374 = vmatpush1.xpose.msra.mxu0 0.0
        %4375 = vmatprep.subr.mxu0 0.0
        %4376 = vmatpush1.xpose.msra.mxu0 0.0
        %4377 = vmatprep.subr.mxu0 0.0
        %4378 = vmatpush1.xpose.msra.mxu0 0.0
        %4379 = vmatprep.subr.mxu0 0.0
        %4380 = vmatpush1.xpose.msra.mxu0 0.0
        %4381 = vmatprep.subr.mxu0 0.0
        %4382 = vmatpush1.xpose.msra.mxu0 0.0
        %4383 = vmatprep.subr.mxu0 0.0
        %4384 = vmatpush1.xpose.msra.mxu0 0.0
        %4385 = vmatprep.subr.mxu0 0.0
        %4386 = vmatpush1.xpose.msra.mxu0 0.0
        %4387 = vmatprep.subr.mxu0 0.0
        %4388 = vmatpush1.xpose.msra.mxu0 0.0
        %4389 = vmatprep.subr.mxu0 0.0
        %4390 = vmatpush1.xpose.msra.mxu0 0.0
        %4391 = vmatprep.subr.mxu0 0.0
        %4392 = vmatpush1.xpose.msra.mxu0 0.0
        %4393 = vmatprep.subr.mxu0 0.0
        %4394 = vmatpush1.xpose.msra.mxu0 0.0
        %4395 = vmatprep.subr.mxu0 0.0
        %4396 = vmatpush1.xpose.msra.mxu0 0.0
        %4397 = vmatprep.subr.mxu0 0.0
        %4398 = vmatpush1.xpose.msra.mxu0 0.0
        %4399 = vmatprep.subr.mxu0 0.0
        %4400 = vmatpush1.xpose.msra.mxu0 0.0
        %4401 = vmatprep.subr.mxu0 0.0
        %4402 = vmatpush1.xpose.msra.mxu0 0.0
        %4403 = vmatprep.mubr.f32.mxu0 0.0
        %4404 = vmatmul.mubr.f32.gmra.mrb[0].mxu0 %v4328
        %v4405 = vpop.f32.mrb[0].mxu0
        %v4406 = vadd.f32 %v3890, %v4405
        %v4407 = vpop.f32.mrb[0].mxu0
        %4408 = vmatprep.mubr.f32.mxu0 0.0
        %4409 = vmatmul.mubr.f32.gmra.mrb[0].mxu0 %v4331
        %v4410 = vpop.f32.mrb[0].mxu0
        %v4411 = vadd.f32 %v3891, %v4410
        %v4412 = vpop.f32.mrb[0].mxu0
        %4413 = vdwg.mxu0
        %v4415 = vsel %vm276, %v2257, 0
        %v4418 = vsel %vm276, %v2393, 0
        %v4421 = vsel %vm276, %v2833, 0
        %v4424 = vsel %vm276, %v2969, 0
        %4426 = vmatprep.subr.mxu0 0.0
        %4427 = vmatpush1.xpose.msra.mxu0 %v4421
        %4428 = vmatprep.subr.mxu0 0.0
        %4429 = vmatpush1.xpose.msra.mxu0 %v4424
        %4430 = vmatprep.subr.mxu0 0.0
        %4431 = vmatpush1.xpose.msra.mxu0 0.0
        %4432 = vmatprep.subr.mxu0 0.0
        %4433 = vmatpush1.xpose.msra.mxu0 0.0
        %4434 = vmatprep.subr.mxu0 0.0
        %4435 = vmatpush1.xpose.msra.mxu0 0.0
        %4436 = vmatprep.subr.mxu0 0.0
        %4437 = vmatpush1.xpose.msra.mxu0 0.0
        %4438 = vmatprep.subr.mxu0 0.0
        %4439 = vmatpush1.xpose.msra.mxu0 0.0
        %4440 = vmatprep.subr.mxu0 0.0
        %4441 = vmatpush1.xpose.msra.mxu0 0.0
        %4442 = vmatprep.subr.mxu0 0.0
        %4443 = vmatpush1.xpose.msra.mxu0 0.0
        %4444 = vmatprep.subr.mxu0 0.0
        %4445 = vmatpush1.xpose.msra.mxu0 0.0
        %4446 = vmatprep.subr.mxu0 0.0
        %4447 = vmatpush1.xpose.msra.mxu0 0.0
        %4448 = vmatprep.subr.mxu0 0.0
        %4449 = vmatpush1.xpose.msra.mxu0 0.0
        %4450 = vmatprep.subr.mxu0 0.0
        %4451 = vmatpush1.xpose.msra.mxu0 0.0
        %4452 = vmatprep.subr.mxu0 0.0
        %4453 = vmatpush1.xpose.msra.mxu0 0.0
        %4454 = vmatprep.subr.mxu0 0.0
        %4455 = vmatpush1.xpose.msra.mxu0 0.0
        %4456 = vmatprep.subr.mxu0 0.0
        %4457 = vmatpush1.xpose.msra.mxu0 0.0
        %4458 = vmatprep.subr.mxu0 0.0
        %4459 = vmatpush1.xpose.msra.mxu0 0.0
        %4460 = vmatprep.subr.mxu0 0.0
        %4461 = vmatpush1.xpose.msra.mxu0 0.0
        %4462 = vmatprep.subr.mxu0 0.0
        %4463 = vmatpush1.xpose.msra.mxu0 0.0
        %4464 = vmatprep.subr.mxu0 0.0
        %4465 = vmatpush1.xpose.msra.mxu0 0.0
        %4466 = vmatprep.subr.mxu0 0.0
        %4467 = vmatpush1.xpose.msra.mxu0 0.0
        %4468 = vmatprep.subr.mxu0 0.0
        %4469 = vmatpush1.xpose.msra.mxu0 0.0
        %4470 = vmatprep.subr.mxu0 0.0
        %4471 = vmatpush1.xpose.msra.mxu0 0.0
        %4472 = vmatprep.subr.mxu0 0.0
        %4473 = vmatpush1.xpose.msra.mxu0 0.0
        %4474 = vmatprep.subr.mxu0 0.0
        %4475 = vmatpush1.xpose.msra.mxu0 0.0
        %4476 = vmatprep.subr.mxu0 0.0
        %4477 = vmatpush1.xpose.msra.mxu0 0.0
        %4478 = vmatprep.subr.mxu0 0.0
        %4479 = vmatpush1.xpose.msra.mxu0 0.0
        %4480 = vmatprep.subr.mxu0 0.0
        %4481 = vmatpush1.xpose.msra.mxu0 0.0
        %4482 = vmatprep.subr.mxu0 0.0
        %4483 = vmatpush1.xpose.msra.mxu0 0.0
        %4484 = vmatprep.subr.mxu0 0.0
        %4485 = vmatpush1.xpose.msra.mxu0 0.0
        %4486 = vmatprep.subr.mxu0 0.0
        %4487 = vmatpush1.xpose.msra.mxu0 0.0
        %4488 = vmatprep.subr.mxu0 0.0
        %4489 = vmatpush1.xpose.msra.mxu0 0.0
        %4490 = vmatprep.mubr.f32.mxu0 0.0
        %4491 = vmatmul.mubr.f32.gmra.mrb[0].mxu0 %v4415
        %v4492 = vpop.f32.mrb[0].mxu0
        %v4493 = vadd.f32 %v3890, %v4492
        %v4494 = vpop.f32.mrb[0].mxu0
        %4495 = vmatprep.mubr.f32.mxu0 0.0
        %4496 = vmatmul.mubr.f32.gmra.mrb[0].mxu0 %v4418
        %v4497 = vpop.f32.mrb[0].mxu0
        %v4498 = vadd.f32 %v3891, %v4497
        %v4499 = vpop.f32.mrb[0].mxu0
        %4500 = vdwg.mxu0
        %v4502 = vsel %vm276, %v2258, 0
        %v4505 = vsel %vm276, %v2394, 0
        %v4508 = vsel %vm276, %v2834, 0
        %v4511 = vsel %vm276, %v2970, 0
        %4513 = vmatprep.subr.mxu0 0.0
        %4514 = vmatpush1.xpose.msra.mxu0 %v4508
        %4515 = vmatprep.subr.mxu0 0.0
        %4516 = vmatpush1.xpose.msra.mxu0 %v4511
        %4517 = vmatprep.subr.mxu0 0.0
        %4518 = vmatpush1.xpose.msra.mxu0 0.0
        %4519 = vmatprep.subr.mxu0 0.0
        %4520 = vmatpush1.xpose.msra.mxu0 0.0
        %4521 = vmatprep.subr.mxu0 0.0
        %4522 = vmatpush1.xpose.msra.mxu0 0.0
        %4523 = vmatprep.subr.mxu0 0.0
        %4524 = vmatpush1.xpose.msra.mxu0 0.0
        %4525 = vmatprep.subr.mxu0 0.0
        %4526 = vmatpush1.xpose.msra.mxu0 0.0
        %4527 = vmatprep.subr.mxu0 0.0
        %4528 = vmatpush1.xpose.msra.mxu0 0.0
        %4529 = vmatprep.subr.mxu0 0.0
        %4530 = vmatpush1.xpose.msra.mxu0 0.0
        %4531 = vmatprep.subr.mxu0 0.0
        %4532 = vmatpush1.xpose.msra.mxu0 0.0
        %4533 = vmatprep.subr.mxu0 0.0
        %4534 = vmatpush1.xpose.msra.mxu0 0.0
        %4535 = vmatprep.subr.mxu0 0.0
        %4536 = vmatpush1.xpose.msra.mxu0 0.0
        %4537 = vmatprep.subr.mxu0 0.0
        %4538 = vmatpush1.xpose.msra.mxu0 0.0
        %4539 = vmatprep.subr.mxu0 0.0
        %4540 = vmatpush1.xpose.msra.mxu0 0.0
        %4541 = vmatprep.subr.mxu0 0.0
        %4542 = vmatpush1.xpose.msra.mxu0 0.0
        %4543 = vmatprep.subr.mxu0 0.0
        %4544 = vmatpush1.xpose.msra.mxu0 0.0
        %4545 = vmatprep.subr.mxu0 0.0
        %4546 = vmatpush1.xpose.msra.mxu0 0.0
        %4547 = vmatprep.subr.mxu0 0.0
        %4548 = vmatpush1.xpose.msra.mxu0 0.0
        %4549 = vmatprep.subr.mxu0 0.0
        %4550 = vmatpush1.xpose.msra.mxu0 0.0
        %4551 = vmatprep.subr.mxu0 0.0
        %4552 = vmatpush1.xpose.msra.mxu0 0.0
        %4553 = vmatprep.subr.mxu0 0.0
        %4554 = vmatpush1.xpose.msra.mxu0 0.0
        %4555 = vmatprep.subr.mxu0 0.0
        %4556 = vmatpush1.xpose.msra.mxu0 0.0
        %4557 = vmatprep.subr.mxu0 0.0
        %4558 = vmatpush1.xpose.msra.mxu0 0.0
        %4559 = vmatprep.subr.mxu0 0.0
        %4560 = vmatpush1.xpose.msra.mxu0 0.0
        %4561 = vmatprep.subr.mxu0 0.0
        %4562 = vmatpush1.xpose.msra.mxu0 0.0
        %4563 = vmatprep.subr.mxu0 0.0
        %4564 = vmatpush1.xpose.msra.mxu0 0.0
        %4565 = vmatprep.subr.mxu0 0.0
        %4566 = vmatpush1.xpose.msra.mxu0 0.0
        %4567 = vmatprep.subr.mxu0 0.0
        %4568 = vmatpush1.xpose.msra.mxu0 0.0
        %4569 = vmatprep.subr.mxu0 0.0
        %4570 = vmatpush1.xpose.msra.mxu0 0.0
        %4571 = vmatprep.subr.mxu0 0.0
        %4572 = vmatpush1.xpose.msra.mxu0 0.0
        %4573 = vmatprep.subr.mxu0 0.0
        %4574 = vmatpush1.xpose.msra.mxu0 0.0
        %4575 = vmatprep.subr.mxu0 0.0
        %4576 = vmatpush1.xpose.msra.mxu0 0.0
        %4577 = vmatprep.mubr.f32.mxu0 0.0
        %4578 = vmatmul.mubr.f32.gmra.mrb[0].mxu0 %v4502
        %v4579 = vpop.f32.mrb[0].mxu0
        %v4580 = vadd.f32 %v3890, %v4579
        %v4581 = vpop.f32.mrb[0].mxu0
        %4582 = vmatprep.mubr.f32.mxu0 0.0
        %4583 = vmatmul.mubr.f32.gmra.mrb[0].mxu0 %v4505
        %v4584 = vpop.f32.mrb[0].mxu0
        %v4585 = vadd.f32 %v3891, %v4584
        %v4586 = vpop.f32.mrb[0].mxu0
        %4587 = vdwg.mxu0
        %v4589 = vsel %vm276, %v2523, 0
        %v4592 = vsel %vm276, %v2659, 0
        %v4595 = vsel %vm276, %v3099, 0
        %v4598 = vsel %vm276, %v3235, 0
        %4600 = vmatprep.subr.mxu0 0.0
        %4601 = vmatpush1.xpose.msra.mxu0 %v4595
        %4602 = vmatprep.subr.mxu0 0.0
        %4603 = vmatpush1.xpose.msra.mxu0 %v4598
        %4604 = vmatprep.subr.mxu0 0.0
        %4605 = vmatpush1.xpose.msra.mxu0 0.0
        %4606 = vmatprep.subr.mxu0 0.0
        %4607 = vmatpush1.xpose.msra.mxu0 0.0
        %4608 = vmatprep.subr.mxu0 0.0
        %4609 = vmatpush1.xpose.msra.mxu0 0.0
        %4610 = vmatprep.subr.mxu0 0.0
        %4611 = vmatpush1.xpose.msra.mxu0 0.0
        %4612 = vmatprep.subr.mxu0 0.0
        %4613 = vmatpush1.xpose.msra.mxu0 0.0
        %4614 = vmatprep.subr.mxu0 0.0
        %4615 = vmatpush1.xpose.msra.mxu0 0.0
        %4616 = vmatprep.subr.mxu0 0.0
        %4617 = vmatpush1.xpose.msra.mxu0 0.0
        %4618 = vmatprep.subr.mxu0 0.0
        %4619 = vmatpush1.xpose.msra.mxu0 0.0
        %4620 = vmatprep.subr.mxu0 0.0
        %4621 = vmatpush1.xpose.msra.mxu0 0.0
        %4622 = vmatprep.subr.mxu0 0.0
        %4623 = vmatpush1.xpose.msra.mxu0 0.0
        %4624 = vmatprep.subr.mxu0 0.0
        %4625 = vmatpush1.xpose.msra.mxu0 0.0
        %4626 = vmatprep.subr.mxu0 0.0
        %4627 = vmatpush1.xpose.msra.mxu0 0.0
        %4628 = vmatprep.subr.mxu0 0.0
        %4629 = vmatpush1.xpose.msra.mxu0 0.0
        %4630 = vmatprep.subr.mxu0 0.0
        %4631 = vmatpush1.xpose.msra.mxu0 0.0
        %4632 = vmatprep.subr.mxu0 0.0
        %4633 = vmatpush1.xpose.msra.mxu0 0.0
        %4634 = vmatprep.subr.mxu0 0.0
        %4635 = vmatpush1.xpose.msra.mxu0 0.0
        %4636 = vmatprep.subr.mxu0 0.0
        %4637 = vmatpush1.xpose.msra.mxu0 0.0
        %4638 = vmatprep.subr.mxu0 0.0
        %4639 = vmatpush1.xpose.msra.mxu0 0.0
        %4640 = vmatprep.subr.mxu0 0.0
        %4641 = vmatpush1.xpose.msra.mxu0 0.0
        %4642 = vmatprep.subr.mxu0 0.0
        %4643 = vmatpush1.xpose.msra.mxu0 0.0
        %4644 = vmatprep.subr.mxu0 0.0
        %4645 = vmatpush1.xpose.msra.mxu0 0.0
        %4646 = vmatprep.subr.mxu0 0.0
        %4647 = vmatpush1.xpose.msra.mxu0 0.0
        %4648 = vmatprep.subr.mxu0 0.0
        %4649 = vmatpush1.xpose.msra.mxu0 0.0
        %4650 = vmatprep.subr.mxu0 0.0
        %4651 = vmatpush1.xpose.msra.mxu0 0.0
        %4652 = vmatprep.subr.mxu0 0.0
        %4653 = vmatpush1.xpose.msra.mxu0 0.0
        %4654 = vmatprep.subr.mxu0 0.0
        %4655 = vmatpush1.xpose.msra.mxu0 0.0
        %4656 = vmatprep.subr.mxu0 0.0
        %4657 = vmatpush1.xpose.msra.mxu0 0.0
        %4658 = vmatprep.subr.mxu0 0.0
        %4659 = vmatpush1.xpose.msra.mxu0 0.0
        %4660 = vmatprep.subr.mxu0 0.0
        %4661 = vmatpush1.xpose.msra.mxu0 0.0
        %4662 = vmatprep.subr.mxu0 0.0
        %4663 = vmatpush1.xpose.msra.mxu0 0.0
        %4664 = vmatprep.mubr.f32.mxu0 0.0
        %4665 = vmatmul.mubr.f32.gmra.mrb[0].mxu0 %v4589
        %v4666 = vpop.f32.mrb[0].mxu0
        %v4667 = vadd.f32 %v3890, %v4666
        %v4668 = vpop.f32.mrb[0].mxu0
        %4669 = vmatprep.mubr.f32.mxu0 0.0
        %4670 = vmatmul.mubr.f32.gmra.mrb[0].mxu0 %v4592
        %v4671 = vpop.f32.mrb[0].mxu0
        %v4672 = vadd.f32 %v3891, %v4671
        %v4673 = vpop.f32.mrb[0].mxu0
        %4674 = vdwg.mxu0
        %v4676 = vsel %vm276, %v2524, 0
        %v4679 = vsel %vm276, %v2660, 0
        %v4682 = vsel %vm276, %v3100, 0
        %v4685 = vsel %vm276, %v3236, 0
        %4687 = vmatprep.subr.mxu0 0.0
        %4688 = vmatpush1.xpose.msra.mxu0 %v4682
        %4689 = vmatprep.subr.mxu0 0.0
        %4690 = vmatpush1.xpose.msra.mxu0 %v4685
        %4691 = vmatprep.subr.mxu0 0.0
        %4692 = vmatpush1.xpose.msra.mxu0 0.0
        %4693 = vmatprep.subr.mxu0 0.0
        %4694 = vmatpush1.xpose.msra.mxu0 0.0
        %4695 = vmatprep.subr.mxu0 0.0
        %4696 = vmatpush1.xpose.msra.mxu0 0.0
        %4697 = vmatprep.subr.mxu0 0.0
        %4698 = vmatpush1.xpose.msra.mxu0 0.0
        %4699 = vmatprep.subr.mxu0 0.0
        %4700 = vmatpush1.xpose.msra.mxu0 0.0
        %4701 = vmatprep.subr.mxu0 0.0
        %4702 = vmatpush1.xpose.msra.mxu0 0.0
        %4703 = vmatprep.subr.mxu0 0.0
        %4704 = vmatpush1.xpose.msra.mxu0 0.0
        %4705 = vmatprep.subr.mxu0 0.0
        %4706 = vmatpush1.xpose.msra.mxu0 0.0
        %4707 = vmatprep.subr.mxu0 0.0
        %4708 = vmatpush1.xpose.msra.mxu0 0.0
        %4709 = vmatprep.subr.mxu0 0.0
        %4710 = vmatpush1.xpose.msra.mxu0 0.0
        %4711 = vmatprep.subr.mxu0 0.0
        %4712 = vmatpush1.xpose.msra.mxu0 0.0
        %4713 = vmatprep.subr.mxu0 0.0
        %4714 = vmatpush1.xpose.msra.mxu0 0.0
        %4715 = vmatprep.subr.mxu0 0.0
        %4716 = vmatpush1.xpose.msra.mxu0 0.0
        %4717 = vmatprep.subr.mxu0 0.0
        %4718 = vmatpush1.xpose.msra.mxu0 0.0
        %4719 = vmatprep.subr.mxu0 0.0
        %4720 = vmatpush1.xpose.msra.mxu0 0.0
        %4721 = vmatprep.subr.mxu0 0.0
        %4722 = vmatpush1.xpose.msra.mxu0 0.0
        %4723 = vmatprep.subr.mxu0 0.0
        %4724 = vmatpush1.xpose.msra.mxu0 0.0
        %4725 = vmatprep.subr.mxu0 0.0
        %4726 = vmatpush1.xpose.msra.mxu0 0.0
        %4727 = vmatprep.subr.mxu0 0.0
        %4728 = vmatpush1.xpose.msra.mxu0 0.0
        %4729 = vmatprep.subr.mxu0 0.0
        %4730 = vmatpush1.xpose.msra.mxu0 0.0
        %4731 = vmatprep.subr.mxu0 0.0
        %4732 = vmatpush1.xpose.msra.mxu0 0.0
        %4733 = vmatprep.subr.mxu0 0.0
        %4734 = vmatpush1.xpose.msra.mxu0 0.0
        %4735 = vmatprep.subr.mxu0 0.0
        %4736 = vmatpush1.xpose.msra.mxu0 0.0
        %4737 = vmatprep.subr.mxu0 0.0
        %4738 = vmatpush1.xpose.msra.mxu0 0.0
        %4739 = vmatprep.subr.mxu0 0.0
        %4740 = vmatpush1.xpose.msra.mxu0 0.0
        %4741 = vmatprep.subr.mxu0 0.0
        %4742 = vmatpush1.xpose.msra.mxu0 0.0
        %4743 = vmatprep.subr.mxu0 0.0
        %4744 = vmatpush1.xpose.msra.mxu0 0.0
        %4745 = vmatprep.subr.mxu0 0.0
        %4746 = vmatpush1.xpose.msra.mxu0 0.0
        %4747 = vmatprep.subr.mxu0 0.0
        %4748 = vmatpush1.xpose.msra.mxu0 0.0
        %4749 = vmatprep.subr.mxu0 0.0
        %4750 = vmatpush1.xpose.msra.mxu0 0.0
        %4751 = vmatprep.mubr.f32.mxu0 0.0
        %4752 = vmatmul.mubr.f32.gmra.mrb[0].mxu0 %v4676
        %v4753 = vpop.f32.mrb[0].mxu0
        %v4754 = vadd.f32 %v3890, %v4753
        %v4755 = vpop.f32.mrb[0].mxu0
        %4756 = vmatprep.mubr.f32.mxu0 0.0
        %4757 = vmatmul.mubr.f32.gmra.mrb[0].mxu0 %v4679
        %v4758 = vpop.f32.mrb[0].mxu0
        %v4759 = vadd.f32 %v3891, %v4758
        %v4760 = vpop.f32.mrb[0].mxu0
        %4761 = vdwg.mxu0
        %v4763 = vsel %vm276, %v2525, 0
        %v4766 = vsel %vm276, %v2661, 0
        %v4769 = vsel %vm276, %v3101, 0
        %v4772 = vsel %vm276, %v3237, 0
        %4774 = vmatprep.subr.mxu0 0.0
        %4775 = vmatpush1.xpose.msra.mxu0 %v4769
        %4776 = vmatprep.subr.mxu0 0.0
        %4777 = vmatpush1.xpose.msra.mxu0 %v4772
        %4778 = vmatprep.subr.mxu0 0.0
        %4779 = vmatpush1.xpose.msra.mxu0 0.0
        %4780 = vmatprep.subr.mxu0 0.0
        %4781 = vmatpush1.xpose.msra.mxu0 0.0
        %4782 = vmatprep.subr.mxu0 0.0
        %4783 = vmatpush1.xpose.msra.mxu0 0.0
        %4784 = vmatprep.subr.mxu0 0.0
        %4785 = vmatpush1.xpose.msra.mxu0 0.0
        %4786 = vmatprep.subr.mxu0 0.0
        %4787 = vmatpush1.xpose.msra.mxu0 0.0
        %4788 = vmatprep.subr.mxu0 0.0
        %4789 = vmatpush1.xpose.msra.mxu0 0.0
        %4790 = vmatprep.subr.mxu0 0.0
        %4791 = vmatpush1.xpose.msra.mxu0 0.0
        %4792 = vmatprep.subr.mxu0 0.0
        %4793 = vmatpush1.xpose.msra.mxu0 0.0
        %4794 = vmatprep.subr.mxu0 0.0
        %4795 = vmatpush1.xpose.msra.mxu0 0.0
        %4796 = vmatprep.subr.mxu0 0.0
        %4797 = vmatpush1.xpose.msra.mxu0 0.0
        %4798 = vmatprep.subr.mxu0 0.0
        %4799 = vmatpush1.xpose.msra.mxu0 0.0
        %4800 = vmatprep.subr.mxu0 0.0
        %4801 = vmatpush1.xpose.msra.mxu0 0.0
        %4802 = vmatprep.subr.mxu0 0.0
        %4803 = vmatpush1.xpose.msra.mxu0 0.0
        %4804 = vmatprep.subr.mxu0 0.0
        %4805 = vmatpush1.xpose.msra.mxu0 0.0
        %4806 = vmatprep.subr.mxu0 0.0
        %4807 = vmatpush1.xpose.msra.mxu0 0.0
        %4808 = vmatprep.subr.mxu0 0.0
        %4809 = vmatpush1.xpose.msra.mxu0 0.0
        %4810 = vmatprep.subr.mxu0 0.0
        %4811 = vmatpush1.xpose.msra.mxu0 0.0
        %4812 = vmatprep.subr.mxu0 0.0
        %4813 = vmatpush1.xpose.msra.mxu0 0.0
        %4814 = vmatprep.subr.mxu0 0.0
        %4815 = vmatpush1.xpose.msra.mxu0 0.0
        %4816 = vmatprep.subr.mxu0 0.0
        %4817 = vmatpush1.xpose.msra.mxu0 0.0
        %4818 = vmatprep.subr.mxu0 0.0
        %4819 = vmatpush1.xpose.msra.mxu0 0.0
        %4820 = vmatprep.subr.mxu0 0.0
        %4821 = vmatpush1.xpose.msra.mxu0 0.0
        %4822 = vmatprep.subr.mxu0 0.0
        %4823 = vmatpush1.xpose.msra.mxu0 0.0
        %4824 = vmatprep.subr.mxu0 0.0
        %4825 = vmatpush1.xpose.msra.mxu0 0.0
        %4826 = vmatprep.subr.mxu0 0.0
        %4827 = vmatpush1.xpose.msra.mxu0 0.0
        %4828 = vmatprep.subr.mxu0 0.0
        %4829 = vmatpush1.xpose.msra.mxu0 0.0
        %4830 = vmatprep.subr.mxu0 0.0
        %4831 = vmatpush1.xpose.msra.mxu0 0.0
        %4832 = vmatprep.subr.mxu0 0.0
        %4833 = vmatpush1.xpose.msra.mxu0 0.0
        %4834 = vmatprep.subr.mxu0 0.0
        %4835 = vmatpush1.xpose.msra.mxu0 0.0
        %4836 = vmatprep.subr.mxu0 0.0
        %4837 = vmatpush1.xpose.msra.mxu0 0.0
        %4838 = vmatprep.mubr.f32.mxu0 0.0
        %4839 = vmatmul.mubr.f32.gmra.mrb[0].mxu0 %v4763
        %v4840 = vpop.f32.mrb[0].mxu0
        %v4841 = vadd.f32 %v3890, %v4840
        %v4842 = vpop.f32.mrb[0].mxu0
        %4843 = vmatprep.mubr.f32.mxu0 0.0
        %4844 = vmatmul.mubr.f32.gmra.mrb[0].mxu0 %v4766
        %v4845 = vpop.f32.mrb[0].mxu0
        %v4846 = vadd.f32 %v3891, %v4845
        %v4847 = vpop.f32.mrb[0].mxu0
        %4848 = vdwg.mxu0
        %v4850 = vsel %vm276, %v2526, 0
        %v4853 = vsel %vm276, %v2662, 0
        %v4856 = vsel %vm276, %v3102, 0
        %v4859 = vsel %vm276, %v3238, 0
        %4861 = vmatprep.subr.mxu0 0.0
        %4862 = vmatpush1.xpose.msra.mxu0 %v4856
        %4863 = vmatprep.subr.mxu0 0.0
        %4864 = vmatpush1.xpose.msra.mxu0 %v4859
        %4865 = vmatprep.subr.mxu0 0.0
        %4866 = vmatpush1.xpose.msra.mxu0 0.0
        %4867 = vmatprep.subr.mxu0 0.0
        %4868 = vmatpush1.xpose.msra.mxu0 0.0
        %4869 = vmatprep.subr.mxu0 0.0
        %4870 = vmatpush1.xpose.msra.mxu0 0.0
        %4871 = vmatprep.subr.mxu0 0.0
        %4872 = vmatpush1.xpose.msra.mxu0 0.0
        %4873 = vmatprep.subr.mxu0 0.0
        %4874 = vmatpush1.xpose.msra.mxu0 0.0
        %4875 = vmatprep.subr.mxu0 0.0
        %4876 = vmatpush1.xpose.msra.mxu0 0.0
        %4877 = vmatprep.subr.mxu0 0.0
        %4878 = vmatpush1.xpose.msra.mxu0 0.0
        %4879 = vmatprep.subr.mxu0 0.0
        %4880 = vmatpush1.xpose.msra.mxu0 0.0
        %4881 = vmatprep.subr.mxu0 0.0
        %4882 = vmatpush1.xpose.msra.mxu0 0.0
        %4883 = vmatprep.subr.mxu0 0.0
        %4884 = vmatpush1.xpose.msra.mxu0 0.0
        %4885 = vmatprep.subr.mxu0 0.0
        %4886 = vmatpush1.xpose.msra.mxu0 0.0
        %4887 = vmatprep.subr.mxu0 0.0
        %4888 = vmatpush1.xpose.msra.mxu0 0.0
        %4889 = vmatprep.subr.mxu0 0.0
        %4890 = vmatpush1.xpose.msra.mxu0 0.0
        %4891 = vmatprep.subr.mxu0 0.0
        %4892 = vmatpush1.xpose.msra.mxu0 0.0
        %4893 = vmatprep.subr.mxu0 0.0
        %4894 = vmatpush1.xpose.msra.mxu0 0.0
        %4895 = vmatprep.subr.mxu0 0.0
        %4896 = vmatpush1.xpose.msra.mxu0 0.0
        %4897 = vmatprep.subr.mxu0 0.0
        %4898 = vmatpush1.xpose.msra.mxu0 0.0
        %4899 = vmatprep.subr.mxu0 0.0
        %4900 = vmatpush1.xpose.msra.mxu0 0.0
        %4901 = vmatprep.subr.mxu0 0.0
        %4902 = vmatpush1.xpose.msra.mxu0 0.0
        %4903 = vmatprep.subr.mxu0 0.0
        %4904 = vmatpush1.xpose.msra.mxu0 0.0
        %4905 = vmatprep.subr.mxu0 0.0
        %4906 = vmatpush1.xpose.msra.mxu0 0.0
        %4907 = vmatprep.subr.mxu0 0.0
        %4908 = vmatpush1.xpose.msra.mxu0 0.0
        %4909 = vmatprep.subr.mxu0 0.0
        %4910 = vmatpush1.xpose.msra.mxu0 0.0
        %4911 = vmatprep.subr.mxu0 0.0
        %4912 = vmatpush1.xpose.msra.mxu0 0.0
        %4913 = vmatprep.subr.mxu0 0.0
        %4914 = vmatpush1.xpose.msra.mxu0 0.0
        %4915 = vmatprep.subr.mxu0 0.0
        %4916 = vmatpush1.xpose.msra.mxu0 0.0
        %4917 = vmatprep.subr.mxu0 0.0
        %4918 = vmatpush1.xpose.msra.mxu0 0.0
        %4919 = vmatprep.subr.mxu0 0.0
        %4920 = vmatpush1.xpose.msra.mxu0 0.0
        %4921 = vmatprep.subr.mxu0 0.0
        %4922 = vmatpush1.xpose.msra.mxu0 0.0
        %4923 = vmatprep.subr.mxu0 0.0
        %4924 = vmatpush1.xpose.msra.mxu0 0.0
        %4925 = vmatprep.mubr.f32.mxu0 0.0
        %4926 = vmatmul.mubr.f32.gmra.mrb[0].mxu0 %v4850
        %v4927 = vpop.f32.mrb[0].mxu0
        %v4928 = vadd.f32 %v3890, %v4927
        %v4929 = vpop.f32.mrb[0].mxu0
        %4930 = vmatprep.mubr.f32.mxu0 0.0
        %4931 = vmatmul.mubr.f32.gmra.mrb[0].mxu0 %v4853
        %v4932 = vpop.f32.mrb[0].mxu0
        %v4933 = vadd.f32 %v3891, %v4932
        %v4934 = vpop.f32.mrb[0].mxu0
        %4935 = vdwg.mxu0
        %v4937 = vsel %vm276, %v2527, 0
        %v4940 = vsel %vm276, %v2663, 0
        %v4943 = vsel %vm276, %v3103, 0
        %v4946 = vsel %vm276, %v3239, 0
        %4948 = vmatprep.subr.mxu0 0.0
        %4949 = vmatpush1.xpose.msra.mxu0 %v4943
        %4950 = vmatprep.subr.mxu0 0.0
        %4951 = vmatpush1.xpose.msra.mxu0 %v4946
        %4952 = vmatprep.subr.mxu0 0.0
        %4953 = vmatpush1.xpose.msra.mxu0 0.0
        %4954 = vmatprep.subr.mxu0 0.0
        %4955 = vmatpush1.xpose.msra.mxu0 0.0
        %4956 = vmatprep.subr.mxu0 0.0
        %4957 = vmatpush1.xpose.msra.mxu0 0.0
        %4958 = vmatprep.subr.mxu0 0.0
        %4959 = vmatpush1.xpose.msra.mxu0 0.0
        %4960 = vmatprep.subr.mxu0 0.0
        %4961 = vmatpush1.xpose.msra.mxu0 0.0
        %4962 = vmatprep.subr.mxu0 0.0
        %4963 = vmatpush1.xpose.msra.mxu0 0.0
        %4964 = vmatprep.subr.mxu0 0.0
        %4965 = vmatpush1.xpose.msra.mxu0 0.0
        %4966 = vmatprep.subr.mxu0 0.0
        %4967 = vmatpush1.xpose.msra.mxu0 0.0
        %4968 = vmatprep.subr.mxu0 0.0
        %4969 = vmatpush1.xpose.msra.mxu0 0.0
        %4970 = vmatprep.subr.mxu0 0.0
        %4971 = vmatpush1.xpose.msra.mxu0 0.0
        %4972 = vmatprep.subr.mxu0 0.0
        %4973 = vmatpush1.xpose.msra.mxu0 0.0
        %4974 = vmatprep.subr.mxu0 0.0
        %4975 = vmatpush1.xpose.msra.mxu0 0.0
        %4976 = vmatprep.subr.mxu0 0.0
        %4977 = vmatpush1.xpose.msra.mxu0 0.0
        %4978 = vmatprep.subr.mxu0 0.0
        %4979 = vmatpush1.xpose.msra.mxu0 0.0
        %4980 = vmatprep.subr.mxu0 0.0
        %4981 = vmatpush1.xpose.msra.mxu0 0.0
        %4982 = vmatprep.subr.mxu0 0.0
        %4983 = vmatpush1.xpose.msra.mxu0 0.0
        %4984 = vmatprep.subr.mxu0 0.0
        %4985 = vmatpush1.xpose.msra.mxu0 0.0
        %4986 = vmatprep.subr.mxu0 0.0
        %4987 = vmatpush1.xpose.msra.mxu0 0.0
        %4988 = vmatprep.subr.mxu0 0.0
        %4989 = vmatpush1.xpose.msra.mxu0 0.0
        %4990 = vmatprep.subr.mxu0 0.0
        %4991 = vmatpush1.xpose.msra.mxu0 0.0
        %4992 = vmatprep.subr.mxu0 0.0
        %4993 = vmatpush1.xpose.msra.mxu0 0.0
        %4994 = vmatprep.subr.mxu0 0.0
        %4995 = vmatpush1.xpose.msra.mxu0 0.0
        %4996 = vmatprep.subr.mxu0 0.0
        %4997 = vmatpush1.xpose.msra.mxu0 0.0
        %4998 = vmatprep.subr.mxu0 0.0
        %4999 = vmatpush1.xpose.msra.mxu0 0.0
        %5000 = vmatprep.subr.mxu0 0.0
        %5001 = vmatpush1.xpose.msra.mxu0 0.0
        %5002 = vmatprep.subr.mxu0 0.0
        %5003 = vmatpush1.xpose.msra.mxu0 0.0
        %5004 = vmatprep.subr.mxu0 0.0
        %5005 = vmatpush1.xpose.msra.mxu0 0.0
        %5006 = vmatprep.subr.mxu0 0.0
        %5007 = vmatpush1.xpose.msra.mxu0 0.0
        %5008 = vmatprep.subr.mxu0 0.0
        %5009 = vmatpush1.xpose.msra.mxu0 0.0
        %5010 = vmatprep.subr.mxu0 0.0
        %5011 = vmatpush1.xpose.msra.mxu0 0.0
        %5012 = vmatprep.mubr.f32.mxu0 0.0
        %5013 = vmatmul.mubr.f32.gmra.mrb[0].mxu0 %v4937
        %v5014 = vpop.f32.mrb[0].mxu0
        %v5015 = vadd.f32 %v3890, %v5014
        %v5016 = vpop.f32.mrb[0].mxu0
        %5017 = vmatprep.mubr.f32.mxu0 0.0
        %5018 = vmatmul.mubr.f32.gmra.mrb[0].mxu0 %v4940
        %v5019 = vpop.f32.mrb[0].mxu0
        %v5020 = vadd.f32 %v3891, %v5019
        %v5021 = vpop.f32.mrb[0].mxu0
        %5022 = vdwg.mxu0
        %v5024 = vsel %vm276, %v2528, 0
        %v5027 = vsel %vm276, %v2664, 0
        %v5030 = vsel %vm276, %v3104, 0
        %v5033 = vsel %vm276, %v3240, 0
        %5035 = vmatprep.subr.mxu0 0.0
        %5036 = vmatpush1.xpose.msra.mxu0 %v5030
        %5037 = vmatprep.subr.mxu0 0.0
        %5038 = vmatpush1.xpose.msra.mxu0 %v5033
        %5039 = vmatprep.subr.mxu0 0.0
        %5040 = vmatpush1.xpose.msra.mxu0 0.0
        %5041 = vmatprep.subr.mxu0 0.0
        %5042 = vmatpush1.xpose.msra.mxu0 0.0
        %5043 = vmatprep.subr.mxu0 0.0
        %5044 = vmatpush1.xpose.msra.mxu0 0.0
        %5045 = vmatprep.subr.mxu0 0.0
        %5046 = vmatpush1.xpose.msra.mxu0 0.0
        %5047 = vmatprep.subr.mxu0 0.0
        %5048 = vmatpush1.xpose.msra.mxu0 0.0
        %5049 = vmatprep.subr.mxu0 0.0
        %5050 = vmatpush1.xpose.msra.mxu0 0.0
        %5051 = vmatprep.subr.mxu0 0.0
        %5052 = vmatpush1.xpose.msra.mxu0 0.0
        %5053 = vmatprep.subr.mxu0 0.0
        %5054 = vmatpush1.xpose.msra.mxu0 0.0
        %5055 = vmatprep.subr.mxu0 0.0
        %5056 = vmatpush1.xpose.msra.mxu0 0.0
        %5057 = vmatprep.subr.mxu0 0.0
        %5058 = vmatpush1.xpose.msra.mxu0 0.0
        %5059 = vmatprep.subr.mxu0 0.0
        %5060 = vmatpush1.xpose.msra.mxu0 0.0
        %5061 = vmatprep.subr.mxu0 0.0
        %5062 = vmatpush1.xpose.msra.mxu0 0.0
        %5063 = vmatprep.subr.mxu0 0.0
        %5064 = vmatpush1.xpose.msra.mxu0 0.0
        %5065 = vmatprep.subr.mxu0 0.0
        %5066 = vmatpush1.xpose.msra.mxu0 0.0
        %5067 = vmatprep.subr.mxu0 0.0
        %5068 = vmatpush1.xpose.msra.mxu0 0.0
        %5069 = vmatprep.subr.mxu0 0.0
        %5070 = vmatpush1.xpose.msra.mxu0 0.0
        %5071 = vmatprep.subr.mxu0 0.0
        %5072 = vmatpush1.xpose.msra.mxu0 0.0
        %5073 = vmatprep.subr.mxu0 0.0
        %5074 = vmatpush1.xpose.msra.mxu0 0.0
        %5075 = vmatprep.subr.mxu0 0.0
        %5076 = vmatpush1.xpose.msra.mxu0 0.0
        %5077 = vmatprep.subr.mxu0 0.0
        %5078 = vmatpush1.xpose.msra.mxu0 0.0
        %5079 = vmatprep.subr.mxu0 0.0
        %5080 = vmatpush1.xpose.msra.mxu0 0.0
        %5081 = vmatprep.subr.mxu0 0.0
        %5082 = vmatpush1.xpose.msra.mxu0 0.0
        %5083 = vmatprep.subr.mxu0 0.0
        %5084 = vmatpush1.xpose.msra.mxu0 0.0
        %5085 = vmatprep.subr.mxu0 0.0
        %5086 = vmatpush1.xpose.msra.mxu0 0.0
        %5087 = vmatprep.subr.mxu0 0.0
        %5088 = vmatpush1.xpose.msra.mxu0 0.0
        %5089 = vmatprep.subr.mxu0 0.0
        %5090 = vmatpush1.xpose.msra.mxu0 0.0
        %5091 = vmatprep.subr.mxu0 0.0
        %5092 = vmatpush1.xpose.msra.mxu0 0.0
        %5093 = vmatprep.subr.mxu0 0.0
        %5094 = vmatpush1.xpose.msra.mxu0 0.0
        %5095 = vmatprep.subr.mxu0 0.0
        %5096 = vmatpush1.xpose.msra.mxu0 0.0
        %5097 = vmatprep.subr.mxu0 0.0
        %5098 = vmatpush1.xpose.msra.mxu0 0.0
        %5099 = vmatprep.mubr.f32.mxu0 0.0
        %5100 = vmatmul.mubr.f32.gmra.mrb[0].mxu0 %v5024
        %v5101 = vpop.f32.mrb[0].mxu0
        %v5102 = vadd.f32 %v3890, %v5101
        %v5103 = vpop.f32.mrb[0].mxu0
        %5104 = vmatprep.mubr.f32.mxu0 0.0
        %5105 = vmatmul.mubr.f32.gmra.mrb[0].mxu0 %v5027
        %v5106 = vpop.f32.mrb[0].mxu0
        %v5107 = vadd.f32 %v3891, %v5106
        %v5108 = vpop.f32.mrb[0].mxu0
        %5109 = vdwg.mxu0
        %v5111 = vsel %vm276, %v2529, 0
        %v5114 = vsel %vm276, %v2665, 0
        %v5117 = vsel %vm276, %v3105, 0
        %v5120 = vsel %vm276, %v3241, 0
        %5122 = vmatprep.subr.mxu0 0.0
        %5123 = vmatpush1.xpose.msra.mxu0 %v5117
        %5124 = vmatprep.subr.mxu0 0.0
        %5125 = vmatpush1.xpose.msra.mxu0 %v5120
        %5126 = vmatprep.subr.mxu0 0.0
        %5127 = vmatpush1.xpose.msra.mxu0 0.0
        %5128 = vmatprep.subr.mxu0 0.0
        %5129 = vmatpush1.xpose.msra.mxu0 0.0
        %5130 = vmatprep.subr.mxu0 0.0
        %5131 = vmatpush1.xpose.msra.mxu0 0.0
        %5132 = vmatprep.subr.mxu0 0.0
        %5133 = vmatpush1.xpose.msra.mxu0 0.0
        %5134 = vmatprep.subr.mxu0 0.0
        %5135 = vmatpush1.xpose.msra.mxu0 0.0
        %5136 = vmatprep.subr.mxu0 0.0
        %5137 = vmatpush1.xpose.msra.mxu0 0.0
        %5138 = vmatprep.subr.mxu0 0.0
        %5139 = vmatpush1.xpose.msra.mxu0 0.0
        %5140 = vmatprep.subr.mxu0 0.0
        %5141 = vmatpush1.xpose.msra.mxu0 0.0
        %5142 = vmatprep.subr.mxu0 0.0
        %5143 = vmatpush1.xpose.msra.mxu0 0.0
        %5144 = vmatprep.subr.mxu0 0.0
        %5145 = vmatpush1.xpose.msra.mxu0 0.0
        %5146 = vmatprep.subr.mxu0 0.0
        %5147 = vmatpush1.xpose.msra.mxu0 0.0
        %5148 = vmatprep.subr.mxu0 0.0
        %5149 = vmatpush1.xpose.msra.mxu0 0.0
        %5150 = vmatprep.subr.mxu0 0.0
        %5151 = vmatpush1.xpose.msra.mxu0 0.0
        %5152 = vmatprep.subr.mxu0 0.0
        %5153 = vmatpush1.xpose.msra.mxu0 0.0
        %5154 = vmatprep.subr.mxu0 0.0
        %5155 = vmatpush1.xpose.msra.mxu0 0.0
        %5156 = vmatprep.subr.mxu0 0.0
        %5157 = vmatpush1.xpose.msra.mxu0 0.0
        %5158 = vmatprep.subr.mxu0 0.0
        %5159 = vmatpush1.xpose.msra.mxu0 0.0
        %5160 = vmatprep.subr.mxu0 0.0
        %5161 = vmatpush1.xpose.msra.mxu0 0.0
        %5162 = vmatprep.subr.mxu0 0.0
        %5163 = vmatpush1.xpose.msra.mxu0 0.0
        %5164 = vmatprep.subr.mxu0 0.0
        %5165 = vmatpush1.xpose.msra.mxu0 0.0
        %5166 = vmatprep.subr.mxu0 0.0
        %5167 = vmatpush1.xpose.msra.mxu0 0.0
        %5168 = vmatprep.subr.mxu0 0.0
        %5169 = vmatpush1.xpose.msra.mxu0 0.0
        %5170 = vmatprep.subr.mxu0 0.0
        %5171 = vmatpush1.xpose.msra.mxu0 0.0
        %5172 = vmatprep.subr.mxu0 0.0
        %5173 = vmatpush1.xpose.msra.mxu0 0.0
        %5174 = vmatprep.subr.mxu0 0.0
        %5175 = vmatpush1.xpose.msra.mxu0 0.0
        %5176 = vmatprep.subr.mxu0 0.0
        %5177 = vmatpush1.xpose.msra.mxu0 0.0
        %5178 = vmatprep.subr.mxu0 0.0
        %5179 = vmatpush1.xpose.msra.mxu0 0.0
        %5180 = vmatprep.subr.mxu0 0.0
        %5181 = vmatpush1.xpose.msra.mxu0 0.0
        %5182 = vmatprep.subr.mxu0 0.0
        %5183 = vmatpush1.xpose.msra.mxu0 0.0
        %5184 = vmatprep.subr.mxu0 0.0
        %5185 = vmatpush1.xpose.msra.mxu0 0.0
        %5186 = vmatprep.mubr.f32.mxu0 0.0
        %5187 = vmatmul.mubr.f32.gmra.mrb[0].mxu0 %v5111
        %v5188 = vpop.f32.mrb[0].mxu0
        %v5189 = vadd.f32 %v3890, %v5188
        %v5190 = vpop.f32.mrb[0].mxu0
        %5191 = vmatprep.mubr.f32.mxu0 0.0
        %5192 = vmatmul.mubr.f32.gmra.mrb[0].mxu0 %v5114
        %v5193 = vpop.f32.mrb[0].mxu0
        %v5194 = vadd.f32 %v3891, %v5193
        %v5195 = vpop.f32.mrb[0].mxu0
        %5196 = vdwg.mxu0
        %v5198 = vsel %vm276, %v2530, 0
        %v5201 = vsel %vm276, %v2666, 0
        %v5204 = vsel %vm276, %v3106, 0
        %v5207 = vsel %vm276, %v3242, 0
        %5209 = vmatprep.subr.mxu0 0.0
        %5210 = vmatpush1.xpose.msra.mxu0 %v5204
        %5211 = vmatprep.subr.mxu0 0.0
        %5212 = vmatpush1.xpose.msra.mxu0 %v5207
        %5213 = vmatprep.subr.mxu0 0.0
        %5214 = vmatpush1.xpose.msra.mxu0 0.0
        %5215 = vmatprep.subr.mxu0 0.0
        %5216 = vmatpush1.xpose.msra.mxu0 0.0
        %5217 = vmatprep.subr.mxu0 0.0
        %5218 = vmatpush1.xpose.msra.mxu0 0.0
        %5219 = vmatprep.subr.mxu0 0.0
        %5220 = vmatpush1.xpose.msra.mxu0 0.0
        %5221 = vmatprep.subr.mxu0 0.0
        %5222 = vmatpush1.xpose.msra.mxu0 0.0
        %5223 = vmatprep.subr.mxu0 0.0
        %5224 = vmatpush1.xpose.msra.mxu0 0.0
        %5225 = vmatprep.subr.mxu0 0.0
        %5226 = vmatpush1.xpose.msra.mxu0 0.0
        %5227 = vmatprep.subr.mxu0 0.0
        %5228 = vmatpush1.xpose.msra.mxu0 0.0
        %5229 = vmatprep.subr.mxu0 0.0
        %5230 = vmatpush1.xpose.msra.mxu0 0.0
        %5231 = vmatprep.subr.mxu0 0.0
        %5232 = vmatpush1.xpose.msra.mxu0 0.0
        %5233 = vmatprep.subr.mxu0 0.0
        %5234 = vmatpush1.xpose.msra.mxu0 0.0
        %5235 = vmatprep.subr.mxu0 0.0
        %5236 = vmatpush1.xpose.msra.mxu0 0.0
        %5237 = vmatprep.subr.mxu0 0.0
        %5238 = vmatpush1.xpose.msra.mxu0 0.0
        %5239 = vmatprep.subr.mxu0 0.0
        %5240 = vmatpush1.xpose.msra.mxu0 0.0
        %5241 = vmatprep.subr.mxu0 0.0
        %5242 = vmatpush1.xpose.msra.mxu0 0.0
        %5243 = vmatprep.subr.mxu0 0.0
        %5244 = vmatpush1.xpose.msra.mxu0 0.0
        %5245 = vmatprep.subr.mxu0 0.0
        %5246 = vmatpush1.xpose.msra.mxu0 0.0
        %5247 = vmatprep.subr.mxu0 0.0
        %5248 = vmatpush1.xpose.msra.mxu0 0.0
        %5249 = vmatprep.subr.mxu0 0.0
        %5250 = vmatpush1.xpose.msra.mxu0 0.0
        %5251 = vmatprep.subr.mxu0 0.0
        %5252 = vmatpush1.xpose.msra.mxu0 0.0
        %5253 = vmatprep.subr.mxu0 0.0
        %5254 = vmatpush1.xpose.msra.mxu0 0.0
        %5255 = vmatprep.subr.mxu0 0.0
        %5256 = vmatpush1.xpose.msra.mxu0 0.0
        %5257 = vmatprep.subr.mxu0 0.0
        %5258 = vmatpush1.xpose.msra.mxu0 0.0
        %5259 = vmatprep.subr.mxu0 0.0
        %5260 = vmatpush1.xpose.msra.mxu0 0.0
        %5261 = vmatprep.subr.mxu0 0.0
        %5262 = vmatpush1.xpose.msra.mxu0 0.0
        %5263 = vmatprep.subr.mxu0 0.0
        %5264 = vmatpush1.xpose.msra.mxu0 0.0
        %5265 = vmatprep.subr.mxu0 0.0
        %5266 = vmatpush1.xpose.msra.mxu0 0.0
        %5267 = vmatprep.subr.mxu0 0.0
        %5268 = vmatpush1.xpose.msra.mxu0 0.0
        %5269 = vmatprep.subr.mxu0 0.0
        %5270 = vmatpush1.xpose.msra.mxu0 0.0
        %5271 = vmatprep.subr.mxu0 0.0
        %5272 = vmatpush1.xpose.msra.mxu0 0.0
        %5273 = vmatprep.mubr.f32.mxu0 0.0
        %5274 = vmatmul.mubr.f32.gmra.mrb[0].mxu0 %v5198
        %v5275 = vpop.f32.mrb[0].mxu0
        %v5276 = vadd.f32 %v3890, %v5275
        %v5277 = vpop.f32.mrb[0].mxu0
        %5278 = vmatprep.mubr.f32.mxu0 0.0
        %5279 = vmatmul.mubr.f32.gmra.mrb[0].mxu0 %v5201
        %v5280 = vpop.f32.mrb[0].mxu0
        %v5281 = vadd.f32 %v3891, %v5280
        %v5282 = vpop.f32.mrb[0].mxu0
        %5283 = vdwg.mxu0
        %v5284 = vsel %vm2026, %v3971, -inf
        %5285 = vmax.xlane.f32.xlu0 %v5284
        %v5286 = vpop.xlane.xlu0 %5285
        %v5287 = vsel %vm2026, %v3976, -inf
        %5288 = vmax.xlane.f32.xlu0 %v5287
        %v5289 = vpop.xlane.xlu0 %5288
        %v5290 = vsel %vm2026, %v4058, -inf
        %5291 = vmax.xlane.f32.xlu0 %v5290
        %v5292 = vpop.xlane.xlu0 %5291
        %v5293 = vsel %vm2026, %v4063, -inf
        %5294 = vmax.xlane.f32.xlu0 %v5293
        %v5295 = vpop.xlane.xlu0 %5294
        %v5296 = vsel %vm2026, %v4145, -inf
        %5297 = vmax.xlane.f32.xlu0 %v5296
        %v5298 = vpop.xlane.xlu0 %5297
        %v5299 = vsel %vm2026, %v4150, -inf
        %5300 = vmax.xlane.f32.xlu0 %v5299
        %v5301 = vpop.xlane.xlu0 %5300
        %v5302 = vsel %vm2026, %v4232, -inf
        %5303 = vmax.xlane.f32.xlu0 %v5302
        %v5304 = vpop.xlane.xlu0 %5303
        %v5305 = vsel %vm2026, %v4237, -inf
        %5306 = vmax.xlane.f32.xlu0 %v5305
        %v5307 = vpop.xlane.xlu0 %5306
        %v5308 = vsel %vm2026, %v4319, -inf
        %5309 = vmax.xlane.f32.xlu0 %v5308
        %v5310 = vpop.xlane.xlu0 %5309
        %v5311 = vsel %vm2026, %v4324, -inf
        %5312 = vmax.xlane.f32.xlu0 %v5311
        %v5313 = vpop.xlane.xlu0 %5312
        %v5314 = vsel %vm2026, %v4406, -inf
        %5315 = vmax.xlane.f32.xlu0 %v5314
        %v5316 = vpop.xlane.xlu0 %5315
        %v5317 = vsel %vm2026, %v4411, -inf
        %5318 = vmax.xlane.f32.xlu0 %v5317
        %v5319 = vpop.xlane.xlu0 %5318
        %v5320 = vsel %vm2026, %v4493, -inf
        %5321 = vmax.xlane.f32.xlu0 %v5320
        %v5322 = vpop.xlane.xlu0 %5321
        %v5323 = vsel %vm2026, %v4498, -inf
        %5324 = vmax.xlane.f32.xlu0 %v5323
        %v5325 = vpop.xlane.xlu0 %5324
        %v5326 = vsel %vm2026, %v4580, -inf
        %5327 = vmax.xlane.f32.xlu0 %v5326
        %v5328 = vpop.xlane.xlu0 %5327
        %v5329 = vsel %vm2026, %v4585, -inf
        %5330 = vmax.xlane.f32.xlu0 %v5329
        %v5331 = vpop.xlane.xlu0 %5330
        %v5332 = vsel %vm2026, %v4667, -inf
        %5333 = vmax.xlane.f32.xlu0 %v5332
        %v5334 = vpop.xlane.xlu0 %5333
        %v5335 = vsel %vm2026, %v4672, -inf
        %5336 = vmax.xlane.f32.xlu0 %v5335
        %v5337 = vpop.xlane.xlu0 %5336
        %v5338 = vsel %vm2026, %v4754, -inf
        %5339 = vmax.xlane.f32.xlu0 %v5338
        %v5340 = vpop.xlane.xlu0 %5339
        %v5341 = vsel %vm2026, %v4759, -inf
        %5342 = vmax.xlane.f32.xlu0 %v5341
        %v5343 = vpop.xlane.xlu0 %5342
        %v5344 = vsel %vm2026, %v4841, -inf
        %5345 = vmax.xlane.f32.xlu0 %v5344
        %v5346 = vpop.xlane.xlu0 %5345
        %v5347 = vsel %vm2026, %v4846, -inf
        %5348 = vmax.xlane.f32.xlu0 %v5347
        %v5349 = vpop.xlane.xlu0 %5348
        %v5350 = vsel %vm2026, %v4928, -inf
        %5351 = vmax.xlane.f32.xlu0 %v5350
        %v5352 = vpop.xlane.xlu0 %5351
        %v5353 = vsel %vm2026, %v4933, -inf
        %5354 = vmax.xlane.f32.xlu0 %v5353
        %v5355 = vpop.xlane.xlu0 %5354
        %v5356 = vsel %vm2026, %v5015, -inf
        %5357 = vmax.xlane.f32.xlu0 %v5356
        %v5358 = vpop.xlane.xlu0 %5357
        %v5359 = vsel %vm2026, %v5020, -inf
        %5360 = vmax.xlane.f32.xlu0 %v5359
        %v5361 = vpop.xlane.xlu0 %5360
        %v5362 = vsel %vm2026, %v5102, -inf
        %5363 = vmax.xlane.f32.xlu0 %v5362
        %v5364 = vpop.xlane.xlu0 %5363
        %v5365 = vsel %vm2026, %v5107, -inf
        %5366 = vmax.xlane.f32.xlu0 %v5365
        %v5367 = vpop.xlane.xlu0 %5366
        %v5368 = vsel %vm2026, %v5189, -inf
        %5369 = vmax.xlane.f32.xlu0 %v5368
        %v5370 = vpop.xlane.xlu0 %5369
        %v5371 = vsel %vm2026, %v5194, -inf
        %5372 = vmax.xlane.f32.xlu0 %v5371
        %v5373 = vpop.xlane.xlu0 %5372
        %v5374 = vsel %vm2026, %v5276, -inf
        %5375 = vmax.xlane.f32.xlu0 %v5374
        %v5376 = vpop.xlane.xlu0 %5375
        %v5377 = vsel %vm2026, %v5281, -inf
        %5378 = vmax.xlane.f32.xlu0 %v5377
        %v5379 = vpop.xlane.xlu0 %5378
        %v5380 = vcombine.low %v5286, %v5298
        %v5381 = vcombine.high %v5286, %v5298
        %v5383 = vunpack.c.l.s4 1983009808
        %v5384 = vunpack.c.0.s8 %v5383
        %v5385 = vlaneseq
        %v5386 = vshrl.u32 %v5385, 7
        %v5387 = vsub.s32 %v5384, %v5386
        %v5388 = vrot.slane %v5380, %v5387
        %v5390 = vunpack.c.l.s4 1983009808
        %v5391 = vunpack.c.0.s8 %v5390
        %v5392 = vlaneseq
        %v5393 = vshrl.u32 %v5392, 7
        %v5394 = vsub.s32 %v5391, %v5393
        %v5395 = vrot.slane %v5381, %v5394
        %v5396 = vcombine.low %v5292, %v5304
        %v5397 = vcombine.high %v5292, %v5304
        %v5399 = vunpack.c.l.s4 1983009808
        %v5400 = vunpack.c.0.s8 %v5399
        %v5401 = vlaneseq
        %v5402 = vshrl.u32 %v5401, 7
        %v5403 = vsub.s32 %v5400, %v5402
        %v5404 = vrot.slane %v5396, %v5403
        %v5406 = vunpack.c.l.s4 1983009808
        %v5407 = vunpack.c.0.s8 %v5406
        %v5408 = vlaneseq
        %v5409 = vshrl.u32 %v5408, 7
        %v5410 = vsub.s32 %v5407, %v5409
        %v5411 = vrot.slane %v5397, %v5410
        %v5412 = vcombine.low %v5310, %v5322
        %v5413 = vcombine.high %v5310, %v5322
        %v5415 = vunpack.c.l.s4 1983009808
        %v5416 = vunpack.c.0.s8 %v5415
        %v5417 = vlaneseq
        %v5418 = vshrl.u32 %v5417, 7
        %v5419 = vsub.s32 %v5416, %v5418
        %v5420 = vrot.slane %v5412, %v5419
        %v5422 = vunpack.c.l.s4 1983009808
        %v5423 = vunpack.c.0.s8 %v5422
        %v5424 = vlaneseq
        %v5425 = vshrl.u32 %v5424, 7
        %v5426 = vsub.s32 %v5423, %v5425
        %v5427 = vrot.slane %v5413, %v5426
        %v5428 = vcombine.low %v5316, %v5328
        %v5429 = vcombine.high %v5316, %v5328
        %v5431 = vunpack.c.l.s4 1983009808
        %v5432 = vunpack.c.0.s8 %v5431
        %v5433 = vlaneseq
        %v5434 = vshrl.u32 %v5433, 7
        %v5435 = vsub.s32 %v5432, %v5434
        %v5436 = vrot.slane %v5428, %v5435
        %v5438 = vunpack.c.l.s4 1983009808
        %v5439 = vunpack.c.0.s8 %v5438
        %v5440 = vlaneseq
        %v5441 = vshrl.u32 %v5440, 7
        %v5442 = vsub.s32 %v5439, %v5441
        %v5443 = vrot.slane %v5429, %v5442
        %v5444 = vcombine.low %v5388, %v5404
        %v5445 = vcombine.high %v5388, %v5404
        %v5447 = vunpack.c.l.s4 1934713408
        %v5448 = vunpack.c.0.s8 %v5447
        %v5449 = vlaneseq
        %v5450 = vshrl.u32 %v5449, 7
        %v5451 = vsub.s32 %v5448, %v5450
        %v5452 = vrot.slane %v5444, %v5451
        %v5454 = vunpack.c.l.s4 1934713408
        %v5455 = vunpack.c.0.s8 %v5454
        %v5456 = vlaneseq
        %v5457 = vshrl.u32 %v5456, 7
        %v5458 = vsub.s32 %v5455, %v5457
        %v5459 = vrot.slane %v5445, %v5458
        %v5460 = vcombine.low %v5395, %v5411
        %v5461 = vcombine.high %v5395, %v5411
        %v5463 = vunpack.c.l.s4 1934713408
        %v5464 = vunpack.c.0.s8 %v5463
        %v5465 = vlaneseq
        %v5466 = vshrl.u32 %v5465, 7
        %v5467 = vsub.s32 %v5464, %v5466
        %v5468 = vrot.slane %v5460, %v5467
        %v5470 = vunpack.c.l.s4 1934713408
        %v5471 = vunpack.c.0.s8 %v5470
        %v5472 = vlaneseq
        %v5473 = vshrl.u32 %v5472, 7
        %v5474 = vsub.s32 %v5471, %v5473
        %v5475 = vrot.slane %v5461, %v5474
        %v5476 = vcombine.low %v5420, %v5436
        %v5477 = vcombine.high %v5420, %v5436
        %v5479 = vunpack.c.l.s4 1934713408
        %v5480 = vunpack.c.0.s8 %v5479
        %v5481 = vlaneseq
        %v5482 = vshrl.u32 %v5481, 7
        %v5483 = vsub.s32 %v5480, %v5482
        %v5484 = vrot.slane %v5476, %v5483
        %v5486 = vunpack.c.l.s4 1934713408
        %v5487 = vunpack.c.0.s8 %v5486
        %v5488 = vlaneseq
        %v5489 = vshrl.u32 %v5488, 7
        %v5490 = vsub.s32 %v5487, %v5489
        %v5491 = vrot.slane %v5477, %v5490
        %v5492 = vcombine.low %v5427, %v5443
        %v5493 = vcombine.high %v5427, %v5443
        %v5495 = vunpack.c.l.s4 1934713408
        %v5496 = vunpack.c.0.s8 %v5495
        %v5497 = vlaneseq
        %v5498 = vshrl.u32 %v5497, 7
        %v5499 = vsub.s32 %v5496, %v5498
        %v5500 = vrot.slane %v5492, %v5499
        %v5502 = vunpack.c.l.s4 1934713408
        %v5503 = vunpack.c.0.s8 %v5502
        %v5504 = vlaneseq
        %v5505 = vshrl.u32 %v5504, 7
        %v5506 = vsub.s32 %v5503, %v5505
        %v5507 = vrot.slane %v5493, %v5506
        %v5508 = vcombine.low %v5452, %v5484
        %v5509 = vcombine.high %v5452, %v5484
        %v5510 = vcombine.low %v5459, %v5491
        %v5511 = vcombine.high %v5459, %v5491
        %v5512 = vcombine.low %v5468, %v5500
        %v5513 = vcombine.high %v5468, %v5500
        %v5514 = vcombine.low %v5475, %v5507
        %v5515 = vcombine.high %v5475, %v5507
        %v5516 = vcombine.low %v5334, %v5346
        %v5517 = vcombine.high %v5334, %v5346
        %v5519 = vunpack.c.l.s4 1983009808
        %v5520 = vunpack.c.0.s8 %v5519
        %v5521 = vlaneseq
        %v5522 = vshrl.u32 %v5521, 7
        %v5523 = vsub.s32 %v5520, %v5522
        %v5524 = vrot.slane %v5516, %v5523
        %v5526 = vunpack.c.l.s4 1983009808
        %v5527 = vunpack.c.0.s8 %v5526
        %v5528 = vlaneseq
        %v5529 = vshrl.u32 %v5528, 7
        %v5530 = vsub.s32 %v5527, %v5529
        %v5531 = vrot.slane %v5517, %v5530
        %v5532 = vcombine.low %v5340, %v5352
        %v5533 = vcombine.high %v5340, %v5352
        %v5535 = vunpack.c.l.s4 1983009808
        %v5536 = vunpack.c.0.s8 %v5535
        %v5537 = vlaneseq
        %v5538 = vshrl.u32 %v5537, 7
        %v5539 = vsub.s32 %v5536, %v5538
        %v5540 = vrot.slane %v5532, %v5539
        %v5542 = vunpack.c.l.s4 1983009808
        %v5543 = vunpack.c.0.s8 %v5542
        %v5544 = vlaneseq
        %v5545 = vshrl.u32 %v5544, 7
        %v5546 = vsub.s32 %v5543, %v5545
        %v5547 = vrot.slane %v5533, %v5546
        %v5548 = vcombine.low %v5358, %v5370
        %v5549 = vcombine.high %v5358, %v5370
        %v5551 = vunpack.c.l.s4 1983009808
        %v5552 = vunpack.c.0.s8 %v5551
        %v5553 = vlaneseq
        %v5554 = vshrl.u32 %v5553, 7
        %v5555 = vsub.s32 %v5552, %v5554
        %v5556 = vrot.slane %v5548, %v5555
        %v5558 = vunpack.c.l.s4 1983009808
        %v5559 = vunpack.c.0.s8 %v5558
        %v5560 = vlaneseq
        %v5561 = vshrl.u32 %v5560, 7
        %v5562 = vsub.s32 %v5559, %v5561
        %v5563 = vrot.slane %v5549, %v5562
        %v5564 = vcombine.low %v5364, %v5376
        %v5565 = vcombine.high %v5364, %v5376
        %v5567 = vunpack.c.l.s4 1983009808
        %v5568 = vunpack.c.0.s8 %v5567
        %v5569 = vlaneseq
        %v5570 = vshrl.u32 %v5569, 7
        %v5571 = vsub.s32 %v5568, %v5570
        %v5572 = vrot.slane %v5564, %v5571
        %v5574 = vunpack.c.l.s4 1983009808
        %v5575 = vunpack.c.0.s8 %v5574
        %v5576 = vlaneseq
        %v5577 = vshrl.u32 %v5576, 7
        %v5578 = vsub.s32 %v5575, %v5577
        %v5579 = vrot.slane %v5565, %v5578
        %v5580 = vcombine.low %v5524, %v5540
        %v5581 = vcombine.high %v5524, %v5540
        %v5583 = vunpack.c.l.s4 1934713408
        %v5584 = vunpack.c.0.s8 %v5583
        %v5585 = vlaneseq
        %v5586 = vshrl.u32 %v5585, 7
        %v5587 = vsub.s32 %v5584, %v5586
        %v5588 = vrot.slane %v5580, %v5587
        %v5590 = vunpack.c.l.s4 1934713408
        %v5591 = vunpack.c.0.s8 %v5590
        %v5592 = vlaneseq
        %v5593 = vshrl.u32 %v5592, 7
        %v5594 = vsub.s32 %v5591, %v5593
        %v5595 = vrot.slane %v5581, %v5594
        %v5596 = vcombine.low %v5531, %v5547
        %v5597 = vcombine.high %v5531, %v5547
        %v5599 = vunpack.c.l.s4 1934713408
        %v5600 = vunpack.c.0.s8 %v5599
        %v5601 = vlaneseq
        %v5602 = vshrl.u32 %v5601, 7
        %v5603 = vsub.s32 %v5600, %v5602
        %v5604 = vrot.slane %v5596, %v5603
        %v5606 = vunpack.c.l.s4 1934713408
        %v5607 = vunpack.c.0.s8 %v5606
        %v5608 = vlaneseq
        %v5609 = vshrl.u32 %v5608, 7
        %v5610 = vsub.s32 %v5607, %v5609
        %v5611 = vrot.slane %v5597, %v5610
        %v5612 = vcombine.low %v5556, %v5572
        %v5613 = vcombine.high %v5556, %v5572
        %v5615 = vunpack.c.l.s4 1934713408
        %v5616 = vunpack.c.0.s8 %v5615
        %v5617 = vlaneseq
        %v5618 = vshrl.u32 %v5617, 7
        %v5619 = vsub.s32 %v5616, %v5618
        %v5620 = vrot.slane %v5612, %v5619
        %v5622 = vunpack.c.l.s4 1934713408
        %v5623 = vunpack.c.0.s8 %v5622
        %v5624 = vlaneseq
        %v5625 = vshrl.u32 %v5624, 7
        %v5626 = vsub.s32 %v5623, %v5625
        %v5627 = vrot.slane %v5613, %v5626
        %v5628 = vcombine.low %v5563, %v5579
        %v5629 = vcombine.high %v5563, %v5579
        %v5631 = vunpack.c.l.s4 1934713408
        %v5632 = vunpack.c.0.s8 %v5631
        %v5633 = vlaneseq
        %v5634 = vshrl.u32 %v5633, 7
        %v5635 = vsub.s32 %v5632, %v5634
        %v5636 = vrot.slane %v5628, %v5635
        %v5638 = vunpack.c.l.s4 1934713408
        %v5639 = vunpack.c.0.s8 %v5638
        %v5640 = vlaneseq
        %v5641 = vshrl.u32 %v5640, 7
        %v5642 = vsub.s32 %v5639, %v5641
        %v5643 = vrot.slane %v5629, %v5642
        %v5644 = vcombine.low %v5588, %v5620
        %v5645 = vcombine.high %v5588, %v5620
        %v5646 = vcombine.low %v5595, %v5627
        %v5647 = vcombine.high %v5595, %v5627
        %v5648 = vcombine.low %v5604, %v5636
        %v5649 = vcombine.high %v5604, %v5636
        %v5650 = vcombine.low %v5611, %v5643
        %v5651 = vcombine.high %v5611, %v5643
        %v5652 = vcombine.low %v5289, %v5301
        %v5653 = vcombine.high %v5289, %v5301
        %v5655 = vunpack.c.l.s4 1983009808
        %v5656 = vunpack.c.0.s8 %v5655
        %v5657 = vlaneseq
        %v5658 = vshrl.u32 %v5657, 7
        %v5659 = vsub.s32 %v5656, %v5658
        %v5660 = vrot.slane %v5652, %v5659
        %v5662 = vunpack.c.l.s4 1983009808
        %v5663 = vunpack.c.0.s8 %v5662
        %v5664 = vlaneseq
        %v5665 = vshrl.u32 %v5664, 7
        %v5666 = vsub.s32 %v5663, %v5665
        %v5667 = vrot.slane %v5653, %v5666
        %v5668 = vcombine.low %v5295, %v5307
        %v5669 = vcombine.high %v5295, %v5307
        %v5671 = vunpack.c.l.s4 1983009808
        %v5672 = vunpack.c.0.s8 %v5671
        %v5673 = vlaneseq
        %v5674 = vshrl.u32 %v5673, 7
        %v5675 = vsub.s32 %v5672, %v5674
        %v5676 = vrot.slane %v5668, %v5675
        %v5678 = vunpack.c.l.s4 1983009808
        %v5679 = vunpack.c.0.s8 %v5678
        %v5680 = vlaneseq
        %v5681 = vshrl.u32 %v5680, 7
        %v5682 = vsub.s32 %v5679, %v5681
        %v5683 = vrot.slane %v5669, %v5682
        %v5684 = vcombine.low %v5313, %v5325
        %v5685 = vcombine.high %v5313, %v5325
        %v5687 = vunpack.c.l.s4 1983009808
        %v5688 = vunpack.c.0.s8 %v5687
        %v5689 = vlaneseq
        %v5690 = vshrl.u32 %v5689, 7
        %v5691 = vsub.s32 %v5688, %v5690
        %v5692 = vrot.slane %v5684, %v5691
        %v5694 = vunpack.c.l.s4 1983009808
        %v5695 = vunpack.c.0.s8 %v5694
        %v5696 = vlaneseq
        %v5697 = vshrl.u32 %v5696, 7
        %v5698 = vsub.s32 %v5695, %v5697
        %v5699 = vrot.slane %v5685, %v5698
        %v5700 = vcombine.low %v5319, %v5331
        %v5701 = vcombine.high %v5319, %v5331
        %v5703 = vunpack.c.l.s4 1983009808
        %v5704 = vunpack.c.0.s8 %v5703
        %v5705 = vlaneseq
        %v5706 = vshrl.u32 %v5705, 7
        %v5707 = vsub.s32 %v5704, %v5706
        %v5708 = vrot.slane %v5700, %v5707
        %v5710 = vunpack.c.l.s4 1983009808
        %v5711 = vunpack.c.0.s8 %v5710
        %v5712 = vlaneseq
        %v5713 = vshrl.u32 %v5712, 7
        %v5714 = vsub.s32 %v5711, %v5713
        %v5715 = vrot.slane %v5701, %v5714
        %v5716 = vcombine.low %v5660, %v5676
        %v5717 = vcombine.high %v5660, %v5676
        %v5719 = vunpack.c.l.s4 1934713408
        %v5720 = vunpack.c.0.s8 %v5719
        %v5721 = vlaneseq
        %v5722 = vshrl.u32 %v5721, 7
        %v5723 = vsub.s32 %v5720, %v5722
        %v5724 = vrot.slane %v5716, %v5723
        %v5726 = vunpack.c.l.s4 1934713408
        %v5727 = vunpack.c.0.s8 %v5726
        %v5728 = vlaneseq
        %v5729 = vshrl.u32 %v5728, 7
        %v5730 = vsub.s32 %v5727, %v5729
        %v5731 = vrot.slane %v5717, %v5730
        %v5732 = vcombine.low %v5667, %v5683
        %v5733 = vcombine.high %v5667, %v5683
        %v5735 = vunpack.c.l.s4 1934713408
        %v5736 = vunpack.c.0.s8 %v5735
        %v5737 = vlaneseq
        %v5738 = vshrl.u32 %v5737, 7
        %v5739 = vsub.s32 %v5736, %v5738
        %v5740 = vrot.slane %v5732, %v5739
        %v5742 = vunpack.c.l.s4 1934713408
        %v5743 = vunpack.c.0.s8 %v5742
        %v5744 = vlaneseq
        %v5745 = vshrl.u32 %v5744, 7
        %v5746 = vsub.s32 %v5743, %v5745
        %v5747 = vrot.slane %v5733, %v5746
        %v5748 = vcombine.low %v5692, %v5708
        %v5749 = vcombine.high %v5692, %v5708
        %v5751 = vunpack.c.l.s4 1934713408
        %v5752 = vunpack.c.0.s8 %v5751
        %v5753 = vlaneseq
        %v5754 = vshrl.u32 %v5753, 7
        %v5755 = vsub.s32 %v5752, %v5754
        %v5756 = vrot.slane %v5748, %v5755
        %v5758 = vunpack.c.l.s4 1934713408
        %v5759 = vunpack.c.0.s8 %v5758
        %v5760 = vlaneseq
        %v5761 = vshrl.u32 %v5760, 7
        %v5762 = vsub.s32 %v5759, %v5761
        %v5763 = vrot.slane %v5749, %v5762
        %v5764 = vcombine.low %v5699, %v5715
        %v5765 = vcombine.high %v5699, %v5715
        %v5767 = vunpack.c.l.s4 1934713408
        %v5768 = vunpack.c.0.s8 %v5767
        %v5769 = vlaneseq
        %v5770 = vshrl.u32 %v5769, 7
        %v5771 = vsub.s32 %v5768, %v5770
        %v5772 = vrot.slane %v5764, %v5771
        %v5774 = vunpack.c.l.s4 1934713408
        %v5775 = vunpack.c.0.s8 %v5774
        %v5776 = vlaneseq
        %v5777 = vshrl.u32 %v5776, 7
        %v5778 = vsub.s32 %v5775, %v5777
        %v5779 = vrot.slane %v5765, %v5778
        %v5780 = vcombine.low %v5724, %v5756
        %v5781 = vcombine.high %v5724, %v5756
        %v5782 = vcombine.low %v5731, %v5763
        %v5783 = vcombine.high %v5731, %v5763
        %v5784 = vcombine.low %v5740, %v5772
        %v5785 = vcombine.high %v5740, %v5772
        %v5786 = vcombine.low %v5747, %v5779
        %v5787 = vcombine.high %v5747, %v5779
        %v5788 = vcombine.low %v5337, %v5349
        %v5789 = vcombine.high %v5337, %v5349
        %v5791 = vunpack.c.l.s4 1983009808
        %v5792 = vunpack.c.0.s8 %v5791
        %v5793 = vlaneseq
        %v5794 = vshrl.u32 %v5793, 7
        %v5795 = vsub.s32 %v5792, %v5794
        %v5796 = vrot.slane %v5788, %v5795
        %v5798 = vunpack.c.l.s4 1983009808
        %v5799 = vunpack.c.0.s8 %v5798
        %v5800 = vlaneseq
        %v5801 = vshrl.u32 %v5800, 7
        %v5802 = vsub.s32 %v5799, %v5801
        %v5803 = vrot.slane %v5789, %v5802
        %v5804 = vcombine.low %v5343, %v5355
        %v5805 = vcombine.high %v5343, %v5355
        %v5807 = vunpack.c.l.s4 1983009808
        %v5808 = vunpack.c.0.s8 %v5807
        %v5809 = vlaneseq
        %v5810 = vshrl.u32 %v5809, 7
        %v5811 = vsub.s32 %v5808, %v5810
        %v5812 = vrot.slane %v5804, %v5811
        %v5814 = vunpack.c.l.s4 1983009808
        %v5815 = vunpack.c.0.s8 %v5814
        %v5816 = vlaneseq
        %v5817 = vshrl.u32 %v5816, 7
        %v5818 = vsub.s32 %v5815, %v5817
        %v5819 = vrot.slane %v5805, %v5818
        %v5820 = vcombine.low %v5361, %v5373
        %v5821 = vcombine.high %v5361, %v5373
        %v5823 = vunpack.c.l.s4 1983009808
        %v5824 = vunpack.c.0.s8 %v5823
        %v5825 = vlaneseq
        %v5826 = vshrl.u32 %v5825, 7
        %v5827 = vsub.s32 %v5824, %v5826
        %v5828 = vrot.slane %v5820, %v5827
        %v5830 = vunpack.c.l.s4 1983009808
        %v5831 = vunpack.c.0.s8 %v5830
        %v5832 = vlaneseq
        %v5833 = vshrl.u32 %v5832, 7
        %v5834 = vsub.s32 %v5831, %v5833
        %v5835 = vrot.slane %v5821, %v5834
        %v5836 = vcombine.low %v5367, %v5379
        %v5837 = vcombine.high %v5367, %v5379
        %v5839 = vunpack.c.l.s4 1983009808
        %v5840 = vunpack.c.0.s8 %v5839
        %v5841 = vlaneseq
        %v5842 = vshrl.u32 %v5841, 7
        %v5843 = vsub.s32 %v5840, %v5842
        %v5844 = vrot.slane %v5836, %v5843
        %v5846 = vunpack.c.l.s4 1983009808
        %v5847 = vunpack.c.0.s8 %v5846
        %v5848 = vlaneseq
        %v5849 = vshrl.u32 %v5848, 7
        %v5850 = vsub.s32 %v5847, %v5849
        %v5851 = vrot.slane %v5837, %v5850
        %v5852 = vcombine.low %v5796, %v5812
        %v5853 = vcombine.high %v5796, %v5812
        %v5855 = vunpack.c.l.s4 1934713408
        %v5856 = vunpack.c.0.s8 %v5855
        %v5857 = vlaneseq
        %v5858 = vshrl.u32 %v5857, 7
        %v5859 = vsub.s32 %v5856, %v5858
        %v5860 = vrot.slane %v5852, %v5859
        %v5862 = vunpack.c.l.s4 1934713408
        %v5863 = vunpack.c.0.s8 %v5862
        %v5864 = vlaneseq
        %v5865 = vshrl.u32 %v5864, 7
        %v5866 = vsub.s32 %v5863, %v5865
        %v5867 = vrot.slane %v5853, %v5866
        %v5868 = vcombine.low %v5803, %v5819
        %v5869 = vcombine.high %v5803, %v5819
        %v5871 = vunpack.c.l.s4 1934713408
        %v5872 = vunpack.c.0.s8 %v5871
        %v5873 = vlaneseq
        %v5874 = vshrl.u32 %v5873, 7
        %v5875 = vsub.s32 %v5872, %v5874
        %v5876 = vrot.slane %v5868, %v5875
        %v5878 = vunpack.c.l.s4 1934713408
        %v5879 = vunpack.c.0.s8 %v5878
        %v5880 = vlaneseq
        %v5881 = vshrl.u32 %v5880, 7
        %v5882 = vsub.s32 %v5879, %v5881
        %v5883 = vrot.slane %v5869, %v5882
        %v5884 = vcombine.low %v5828, %v5844
        %v5885 = vcombine.high %v5828, %v5844
        %v5887 = vunpack.c.l.s4 1934713408
        %v5888 = vunpack.c.0.s8 %v5887
        %v5889 = vlaneseq
        %v5890 = vshrl.u32 %v5889, 7
        %v5891 = vsub.s32 %v5888, %v5890
        %v5892 = vrot.slane %v5884, %v5891
        %v5894 = vunpack.c.l.s4 1934713408
        %v5895 = vunpack.c.0.s8 %v5894
        %v5896 = vlaneseq
        %v5897 = vshrl.u32 %v5896, 7
        %v5898 = vsub.s32 %v5895, %v5897
        %v5899 = vrot.slane %v5885, %v5898
        %v5900 = vcombine.low %v5835, %v5851
        %v5901 = vcombine.high %v5835, %v5851
        %v5903 = vunpack.c.l.s4 1934713408
        %v5904 = vunpack.c.0.s8 %v5903
        %v5905 = vlaneseq
        %v5906 = vshrl.u32 %v5905, 7
        %v5907 = vsub.s32 %v5904, %v5906
        %v5908 = vrot.slane %v5900, %v5907
        %v5910 = vunpack.c.l.s4 1934713408
        %v5911 = vunpack.c.0.s8 %v5910
        %v5912 = vlaneseq
        %v5913 = vshrl.u32 %v5912, 7
        %v5914 = vsub.s32 %v5911, %v5913
        %v5915 = vrot.slane %v5901, %v5914
        %v5916 = vcombine.low %v5860, %v5892
        %v5917 = vcombine.high %v5860, %v5892
        %v5918 = vcombine.low %v5867, %v5899
        %v5919 = vcombine.high %v5867, %v5899
        %v5920 = vcombine.low %v5876, %v5908
        %v5921 = vcombine.high %v5876, %v5908
        %v5922 = vcombine.low %v5883, %v5915
        %v5923 = vcombine.high %v5883, %v5915
        %v5924 = vmax.f32 %v2029, %v5508
        %v5925 = vmax.f32 %v2032, %v5644
        %v5926 = vmax.f32 %v2035, %v5509
        %v5927 = vmax.f32 %v2038, %v5645
        %v5928 = vmax.f32 %v2041, %v5510
        %v5929 = vmax.f32 %v2044, %v5646
        %v5930 = vmax.f32 %v2047, %v5511
        %v5931 = vmax.f32 %v2050, %v5647
        %v5932 = vmax.f32 %v2053, %v5512
        %v5933 = vmax.f32 %v2056, %v5648
        %v5934 = vmax.f32 %v2059, %v5513
        %v5935 = vmax.f32 %v2062, %v5649
        %v5936 = vmax.f32 %v2065, %v5514
        %v5937 = vmax.f32 %v2068, %v5650
        %v5938 = vmax.f32 %v2071, %v5515
        %v5939 = vmax.f32 %v2074, %v5651
        %v5940 = vmax.f32 %v2077, %v5780
        %v5941 = vmax.f32 %v2080, %v5916
        %v5942 = vmax.f32 %v2083, %v5781
        %v5943 = vmax.f32 %v2086, %v5917
        %v5944 = vmax.f32 %v2089, %v5782
        %v5945 = vmax.f32 %v2092, %v5918
        %v5946 = vmax.f32 %v2095, %v5783
        %v5947 = vmax.f32 %v2098, %v5919
        %v5948 = vmax.f32 %v2101, %v5784
        %v5949 = vmax.f32 %v2104, %v5920
        %v5950 = vmax.f32 %v2107, %v5785
        %v5951 = vmax.f32 %v2110, %v5921
        %v5952 = vmax.f32 %v2113, %v5786
        %v5953 = vmax.f32 %v2116, %v5922
        %v5954 = vmax.f32 %v2119, %v5787
        %v5955 = vmax.f32 %v2122, %v5923
        %v5956 = vcombine.low %v5924, %v5928
        %v5957 = vcombine.high %v5924, %v5928
        %v5959 = vunpack.c.l.s4 1983009808
        %v5960 = vunpack.c.0.s8 %v5959
        %v5961 = vlaneseq
        %v5962 = vshrl.u32 %v5961, 7
        %v5963 = vsub.s32 %v5960, %v5962
        %v5964 = vrot.slane %v5956, %v5963
        %v5966 = vunpack.c.l.s4 1983009808
        %v5967 = vunpack.c.0.s8 %v5966
        %v5968 = vlaneseq
        %v5969 = vshrl.u32 %v5968, 7
        %v5970 = vsub.s32 %v5967, %v5969
        %v5971 = vrot.slane %v5957, %v5970
        %v5972 = vcombine.low %v5926, %v5930
        %v5973 = vcombine.high %v5926, %v5930
        %v5975 = vunpack.c.l.s4 1983009808
        %v5976 = vunpack.c.0.s8 %v5975
        %v5977 = vlaneseq
        %v5978 = vshrl.u32 %v5977, 7
        %v5979 = vsub.s32 %v5976, %v5978
        %v5980 = vrot.slane %v5972, %v5979
        %v5982 = vunpack.c.l.s4 1983009808
        %v5983 = vunpack.c.0.s8 %v5982
        %v5984 = vlaneseq
        %v5985 = vshrl.u32 %v5984, 7
        %v5986 = vsub.s32 %v5983, %v5985
        %v5987 = vrot.slane %v5973, %v5986
        %v5988 = vcombine.low %v5932, %v5936
        %v5989 = vcombine.high %v5932, %v5936
        %v5991 = vunpack.c.l.s4 1983009808
        %v5992 = vunpack.c.0.s8 %v5991
        %v5993 = vlaneseq
        %v5994 = vshrl.u32 %v5993, 7
        %v5995 = vsub.s32 %v5992, %v5994
        %v5996 = vrot.slane %v5988, %v5995
        %v5998 = vunpack.c.l.s4 1983009808
        %v5999 = vunpack.c.0.s8 %v5998
        %v6000 = vlaneseq
        %v6001 = vshrl.u32 %v6000, 7
        %v6002 = vsub.s32 %v5999, %v6001
        %v6003 = vrot.slane %v5989, %v6002
        %v6004 = vcombine.low %v5934, %v5938
        %v6005 = vcombine.high %v5934, %v5938
        %v6007 = vunpack.c.l.s4 1983009808
        %v6008 = vunpack.c.0.s8 %v6007
        %v6009 = vlaneseq
        %v6010 = vshrl.u32 %v6009, 7
        %v6011 = vsub.s32 %v6008, %v6010
        %v6012 = vrot.slane %v6004, %v6011
        %v6014 = vunpack.c.l.s4 1983009808
        %v6015 = vunpack.c.0.s8 %v6014
        %v6016 = vlaneseq
        %v6017 = vshrl.u32 %v6016, 7
        %v6018 = vsub.s32 %v6015, %v6017
        %v6019 = vrot.slane %v6005, %v6018
        %v6020 = vcombine.low %v5964, %v5980
        %v6021 = vcombine.high %v5964, %v5980
        %v6023 = vunpack.c.l.s4 1934713408
        %v6024 = vunpack.c.0.s8 %v6023
        %v6025 = vlaneseq
        %v6026 = vshrl.u32 %v6025, 7
        %v6027 = vsub.s32 %v6024, %v6026
        %v6028 = vrot.slane %v6020, %v6027
        %v6030 = vunpack.c.l.s4 1934713408
        %v6031 = vunpack.c.0.s8 %v6030
        %v6032 = vlaneseq
        %v6033 = vshrl.u32 %v6032, 7
        %v6034 = vsub.s32 %v6031, %v6033
        %v6035 = vrot.slane %v6021, %v6034
        %v6036 = vcombine.low %v5971, %v5987
        %v6037 = vcombine.high %v5971, %v5987
        %v6039 = vunpack.c.l.s4 1934713408
        %v6040 = vunpack.c.0.s8 %v6039
        %v6041 = vlaneseq
        %v6042 = vshrl.u32 %v6041, 7
        %v6043 = vsub.s32 %v6040, %v6042
        %v6044 = vrot.slane %v6036, %v6043
        %v6046 = vunpack.c.l.s4 1934713408
        %v6047 = vunpack.c.0.s8 %v6046
        %v6048 = vlaneseq
        %v6049 = vshrl.u32 %v6048, 7
        %v6050 = vsub.s32 %v6047, %v6049
        %v6051 = vrot.slane %v6037, %v6050
        %v6052 = vcombine.low %v5996, %v6012
        %v6053 = vcombine.high %v5996, %v6012
        %v6055 = vunpack.c.l.s4 1934713408
        %v6056 = vunpack.c.0.s8 %v6055
        %v6057 = vlaneseq
        %v6058 = vshrl.u32 %v6057, 7
        %v6059 = vsub.s32 %v6056, %v6058
        %v6060 = vrot.slane %v6052, %v6059
        %v6062 = vunpack.c.l.s4 1934713408
        %v6063 = vunpack.c.0.s8 %v6062
        %v6064 = vlaneseq
        %v6065 = vshrl.u32 %v6064, 7
        %v6066 = vsub.s32 %v6063, %v6065
        %v6067 = vrot.slane %v6053, %v6066
        %v6068 = vcombine.low %v6003, %v6019
        %v6069 = vcombine.high %v6003, %v6019
        %v6071 = vunpack.c.l.s4 1934713408
        %v6072 = vunpack.c.0.s8 %v6071
        %v6073 = vlaneseq
        %v6074 = vshrl.u32 %v6073, 7
        %v6075 = vsub.s32 %v6072, %v6074
        %v6076 = vrot.slane %v6068, %v6075
        %v6078 = vunpack.c.l.s4 1934713408
        %v6079 = vunpack.c.0.s8 %v6078
        %v6080 = vlaneseq
        %v6081 = vshrl.u32 %v6080, 7
        %v6082 = vsub.s32 %v6079, %v6081
        %v6083 = vrot.slane %v6069, %v6082
        %v6084 = vcombine.low %v6028, %v6060
        %v6085 = vcombine.high %v6028, %v6060
        %v6086 = vcombine.low %v6035, %v6067
        %v6087 = vcombine.high %v6035, %v6067
        %v6088 = vcombine.low %v6044, %v6076
        %v6089 = vcombine.high %v6044, %v6076
        %v6090 = vcombine.low %v6051, %v6083
        %v6091 = vcombine.high %v6051, %v6083
        %v6092 = vcombine.low %v5940, %v5944
        %v6093 = vcombine.high %v5940, %v5944
        %v6095 = vunpack.c.l.s4 1983009808
        %v6096 = vunpack.c.0.s8 %v6095
        %v6097 = vlaneseq
        %v6098 = vshrl.u32 %v6097, 7
        %v6099 = vsub.s32 %v6096, %v6098
        %v6100 = vrot.slane %v6092, %v6099
        %v6102 = vunpack.c.l.s4 1983009808
        %v6103 = vunpack.c.0.s8 %v6102
        %v6104 = vlaneseq
        %v6105 = vshrl.u32 %v6104, 7
        %v6106 = vsub.s32 %v6103, %v6105
        %v6107 = vrot.slane %v6093, %v6106
        %v6108 = vcombine.low %v5942, %v5946
        %v6109 = vcombine.high %v5942, %v5946
        %v6111 = vunpack.c.l.s4 1983009808
        %v6112 = vunpack.c.0.s8 %v6111
        %v6113 = vlaneseq
        %v6114 = vshrl.u32 %v6113, 7
        %v6115 = vsub.s32 %v6112, %v6114
        %v6116 = vrot.slane %v6108, %v6115
        %v6118 = vunpack.c.l.s4 1983009808
        %v6119 = vunpack.c.0.s8 %v6118
        %v6120 = vlaneseq
        %v6121 = vshrl.u32 %v6120, 7
        %v6122 = vsub.s32 %v6119, %v6121
        %v6123 = vrot.slane %v6109, %v6122
        %v6124 = vcombine.low %v5948, %v5952
        %v6125 = vcombine.high %v5948, %v5952
        %v6127 = vunpack.c.l.s4 1983009808
        %v6128 = vunpack.c.0.s8 %v6127
        %v6129 = vlaneseq
        %v6130 = vshrl.u32 %v6129, 7
        %v6131 = vsub.s32 %v6128, %v6130
        %v6132 = vrot.slane %v6124, %v6131
        %v6134 = vunpack.c.l.s4 1983009808
        %v6135 = vunpack.c.0.s8 %v6134
        %v6136 = vlaneseq
        %v6137 = vshrl.u32 %v6136, 7
        %v6138 = vsub.s32 %v6135, %v6137
        %v6139 = vrot.slane %v6125, %v6138
        %v6140 = vcombine.low %v5950, %v5954
        %v6141 = vcombine.high %v5950, %v5954
        %v6143 = vunpack.c.l.s4 1983009808
        %v6144 = vunpack.c.0.s8 %v6143
        %v6145 = vlaneseq
        %v6146 = vshrl.u32 %v6145, 7
        %v6147 = vsub.s32 %v6144, %v6146
        %v6148 = vrot.slane %v6140, %v6147
        %v6150 = vunpack.c.l.s4 1983009808
        %v6151 = vunpack.c.0.s8 %v6150
        %v6152 = vlaneseq
        %v6153 = vshrl.u32 %v6152, 7
        %v6154 = vsub.s32 %v6151, %v6153
        %v6155 = vrot.slane %v6141, %v6154
        %v6156 = vcombine.low %v6100, %v6116
        %v6157 = vcombine.high %v6100, %v6116
        %v6159 = vunpack.c.l.s4 1934713408
        %v6160 = vunpack.c.0.s8 %v6159
        %v6161 = vlaneseq
        %v6162 = vshrl.u32 %v6161, 7
        %v6163 = vsub.s32 %v6160, %v6162
        %v6164 = vrot.slane %v6156, %v6163
        %v6166 = vunpack.c.l.s4 1934713408
        %v6167 = vunpack.c.0.s8 %v6166
        %v6168 = vlaneseq
        %v6169 = vshrl.u32 %v6168, 7
        %v6170 = vsub.s32 %v6167, %v6169
        %v6171 = vrot.slane %v6157, %v6170
        %v6172 = vcombine.low %v6107, %v6123
        %v6173 = vcombine.high %v6107, %v6123
        %v6175 = vunpack.c.l.s4 1934713408
        %v6176 = vunpack.c.0.s8 %v6175
        %v6177 = vlaneseq
        %v6178 = vshrl.u32 %v6177, 7
        %v6179 = vsub.s32 %v6176, %v6178
        %v6180 = vrot.slane %v6172, %v6179
        %v6182 = vunpack.c.l.s4 1934713408
        %v6183 = vunpack.c.0.s8 %v6182
        %v6184 = vlaneseq
        %v6185 = vshrl.u32 %v6184, 7
        %v6186 = vsub.s32 %v6183, %v6185
        %v6187 = vrot.slane %v6173, %v6186
        %v6188 = vcombine.low %v6132, %v6148
        %v6189 = vcombine.high %v6132, %v6148
        %v6191 = vunpack.c.l.s4 1934713408
        %v6192 = vunpack.c.0.s8 %v6191
        %v6193 = vlaneseq
        %v6194 = vshrl.u32 %v6193, 7
        %v6195 = vsub.s32 %v6192, %v6194
        %v6196 = vrot.slane %v6188, %v6195
        %v6198 = vunpack.c.l.s4 1934713408
        %v6199 = vunpack.c.0.s8 %v6198
        %v6200 = vlaneseq
        %v6201 = vshrl.u32 %v6200, 7
        %v6202 = vsub.s32 %v6199, %v6201
        %v6203 = vrot.slane %v6189, %v6202
        %v6204 = vcombine.low %v6139, %v6155
        %v6205 = vcombine.high %v6139, %v6155
        %v6207 = vunpack.c.l.s4 1934713408
        %v6208 = vunpack.c.0.s8 %v6207
        %v6209 = vlaneseq
        %v6210 = vshrl.u32 %v6209, 7
        %v6211 = vsub.s32 %v6208, %v6210
        %v6212 = vrot.slane %v6204, %v6211
        %v6214 = vunpack.c.l.s4 1934713408
        %v6215 = vunpack.c.0.s8 %v6214
        %v6216 = vlaneseq
        %v6217 = vshrl.u32 %v6216, 7
        %v6218 = vsub.s32 %v6215, %v6217
        %v6219 = vrot.slane %v6205, %v6218
        %v6220 = vcombine.low %v6164, %v6196
        %v6221 = vcombine.high %v6164, %v6196
        %v6222 = vcombine.low %v6171, %v6203
        %v6223 = vcombine.high %v6171, %v6203
        %v6224 = vcombine.low %v6180, %v6212
        %v6225 = vcombine.high %v6180, %v6212
        %v6226 = vcombine.low %v6187, %v6219
        %v6227 = vcombine.high %v6187, %v6219
        %v6228 = vcombine.low %v5925, %v5929
        %v6229 = vcombine.high %v5925, %v5929
        %v6231 = vunpack.c.l.s4 1983009808
        %v6232 = vunpack.c.0.s8 %v6231
        %v6233 = vlaneseq
        %v6234 = vshrl.u32 %v6233, 7
        %v6235 = vsub.s32 %v6232, %v6234
        %v6236 = vrot.slane %v6228, %v6235
        %v6238 = vunpack.c.l.s4 1983009808
        %v6239 = vunpack.c.0.s8 %v6238
        %v6240 = vlaneseq
        %v6241 = vshrl.u32 %v6240, 7
        %v6242 = vsub.s32 %v6239, %v6241
        %v6243 = vrot.slane %v6229, %v6242
        %v6244 = vcombine.low %v5927, %v5931
        %v6245 = vcombine.high %v5927, %v5931
        %v6247 = vunpack.c.l.s4 1983009808
        %v6248 = vunpack.c.0.s8 %v6247
        %v6249 = vlaneseq
        %v6250 = vshrl.u32 %v6249, 7
        %v6251 = vsub.s32 %v6248, %v6250
        %v6252 = vrot.slane %v6244, %v6251
        %v6254 = vunpack.c.l.s4 1983009808
        %v6255 = vunpack.c.0.s8 %v6254
        %v6256 = vlaneseq
        %v6257 = vshrl.u32 %v6256, 7
        %v6258 = vsub.s32 %v6255, %v6257
        %v6259 = vrot.slane %v6245, %v6258
        %v6260 = vcombine.low %v5933, %v5937
        %v6261 = vcombine.high %v5933, %v5937
        %v6263 = vunpack.c.l.s4 1983009808
        %v6264 = vunpack.c.0.s8 %v6263
        %v6265 = vlaneseq
        %v6266 = vshrl.u32 %v6265, 7
        %v6267 = vsub.s32 %v6264, %v6266
        %v6268 = vrot.slane %v6260, %v6267
        %v6270 = vunpack.c.l.s4 1983009808
        %v6271 = vunpack.c.0.s8 %v6270
        %v6272 = vlaneseq
        %v6273 = vshrl.u32 %v6272, 7
        %v6274 = vsub.s32 %v6271, %v6273
        %v6275 = vrot.slane %v6261, %v6274
        %v6276 = vcombine.low %v5935, %v5939
        %v6277 = vcombine.high %v5935, %v5939
        %v6279 = vunpack.c.l.s4 1983009808
        %v6280 = vunpack.c.0.s8 %v6279
        %v6281 = vlaneseq
        %v6282 = vshrl.u32 %v6281, 7
        %v6283 = vsub.s32 %v6280, %v6282
        %v6284 = vrot.slane %v6276, %v6283
        %v6286 = vunpack.c.l.s4 1983009808
        %v6287 = vunpack.c.0.s8 %v6286
        %v6288 = vlaneseq
        %v6289 = vshrl.u32 %v6288, 7
        %v6290 = vsub.s32 %v6287, %v6289
        %v6291 = vrot.slane %v6277, %v6290
        %v6292 = vcombine.low %v6236, %v6252
        %v6293 = vcombine.high %v6236, %v6252
        %v6295 = vunpack.c.l.s4 1934713408
        %v6296 = vunpack.c.0.s8 %v6295
        %v6297 = vlaneseq
        %v6298 = vshrl.u32 %v6297, 7
        %v6299 = vsub.s32 %v6296, %v6298
        %v6300 = vrot.slane %v6292, %v6299
        %v6302 = vunpack.c.l.s4 1934713408
        %v6303 = vunpack.c.0.s8 %v6302
        %v6304 = vlaneseq
        %v6305 = vshrl.u32 %v6304, 7
        %v6306 = vsub.s32 %v6303, %v6305
        %v6307 = vrot.slane %v6293, %v6306
        %v6308 = vcombine.low %v6243, %v6259
        %v6309 = vcombine.high %v6243, %v6259
        %v6311 = vunpack.c.l.s4 1934713408
        %v6312 = vunpack.c.0.s8 %v6311
        %v6313 = vlaneseq
        %v6314 = vshrl.u32 %v6313, 7
        %v6315 = vsub.s32 %v6312, %v6314
        %v6316 = vrot.slane %v6308, %v6315
        %v6318 = vunpack.c.l.s4 1934713408
        %v6319 = vunpack.c.0.s8 %v6318
        %v6320 = vlaneseq
        %v6321 = vshrl.u32 %v6320, 7
        %v6322 = vsub.s32 %v6319, %v6321
        %v6323 = vrot.slane %v6309, %v6322
        %v6324 = vcombine.low %v6268, %v6284
        %v6325 = vcombine.high %v6268, %v6284
        %v6327 = vunpack.c.l.s4 1934713408
        %v6328 = vunpack.c.0.s8 %v6327
        %v6329 = vlaneseq
        %v6330 = vshrl.u32 %v6329, 7
        %v6331 = vsub.s32 %v6328, %v6330
        %v6332 = vrot.slane %v6324, %v6331
        %v6334 = vunpack.c.l.s4 1934713408
        %v6335 = vunpack.c.0.s8 %v6334
        %v6336 = vlaneseq
        %v6337 = vshrl.u32 %v6336, 7
        %v6338 = vsub.s32 %v6335, %v6337
        %v6339 = vrot.slane %v6325, %v6338
        %v6340 = vcombine.low %v6275, %v6291
        %v6341 = vcombine.high %v6275, %v6291
        %v6343 = vunpack.c.l.s4 1934713408
        %v6344 = vunpack.c.0.s8 %v6343
        %v6345 = vlaneseq
        %v6346 = vshrl.u32 %v6345, 7
        %v6347 = vsub.s32 %v6344, %v6346
        %v6348 = vrot.slane %v6340, %v6347
        %v6350 = vunpack.c.l.s4 1934713408
        %v6351 = vunpack.c.0.s8 %v6350
        %v6352 = vlaneseq
        %v6353 = vshrl.u32 %v6352, 7
        %v6354 = vsub.s32 %v6351, %v6353
        %v6355 = vrot.slane %v6341, %v6354
        %v6356 = vcombine.low %v6300, %v6332
        %v6357 = vcombine.high %v6300, %v6332
        %v6358 = vcombine.low %v6307, %v6339
        %v6359 = vcombine.high %v6307, %v6339
        %v6360 = vcombine.low %v6316, %v6348
        %v6361 = vcombine.high %v6316, %v6348
        %v6362 = vcombine.low %v6323, %v6355
        %v6363 = vcombine.high %v6323, %v6355
        %v6364 = vcombine.low %v5941, %v5945
        %v6365 = vcombine.high %v5941, %v5945
        %v6367 = vunpack.c.l.s4 1983009808
        %v6368 = vunpack.c.0.s8 %v6367
        %v6369 = vlaneseq
        %v6370 = vshrl.u32 %v6369, 7
        %v6371 = vsub.s32 %v6368, %v6370
        %v6372 = vrot.slane %v6364, %v6371
        %v6374 = vunpack.c.l.s4 1983009808
        %v6375 = vunpack.c.0.s8 %v6374
        %v6376 = vlaneseq
        %v6377 = vshrl.u32 %v6376, 7
        %v6378 = vsub.s32 %v6375, %v6377
        %v6379 = vrot.slane %v6365, %v6378
        %v6380 = vcombine.low %v5943, %v5947
        %v6381 = vcombine.high %v5943, %v5947
        %v6383 = vunpack.c.l.s4 1983009808
        %v6384 = vunpack.c.0.s8 %v6383
        %v6385 = vlaneseq
        %v6386 = vshrl.u32 %v6385, 7
        %v6387 = vsub.s32 %v6384, %v6386
        %v6388 = vrot.slane %v6380, %v6387
        %v6390 = vunpack.c.l.s4 1983009808
        %v6391 = vunpack.c.0.s8 %v6390
        %v6392 = vlaneseq
        %v6393 = vshrl.u32 %v6392, 7
        %v6394 = vsub.s32 %v6391, %v6393
        %v6395 = vrot.slane %v6381, %v6394
        %v6396 = vcombine.low %v5949, %v5953
        %v6397 = vcombine.high %v5949, %v5953
        %v6399 = vunpack.c.l.s4 1983009808
        %v6400 = vunpack.c.0.s8 %v6399
        %v6401 = vlaneseq
        %v6402 = vshrl.u32 %v6401, 7
        %v6403 = vsub.s32 %v6400, %v6402
        %v6404 = vrot.slane %v6396, %v6403
        %v6406 = vunpack.c.l.s4 1983009808
        %v6407 = vunpack.c.0.s8 %v6406
        %v6408 = vlaneseq
        %v6409 = vshrl.u32 %v6408, 7
        %v6410 = vsub.s32 %v6407, %v6409
        %v6411 = vrot.slane %v6397, %v6410
        %v6412 = vcombine.low %v5951, %v5955
        %v6413 = vcombine.high %v5951, %v5955
        %v6415 = vunpack.c.l.s4 1983009808
        %v6416 = vunpack.c.0.s8 %v6415
        %v6417 = vlaneseq
        %v6418 = vshrl.u32 %v6417, 7
        %v6419 = vsub.s32 %v6416, %v6418
        %v6420 = vrot.slane %v6412, %v6419
        %v6422 = vunpack.c.l.s4 1983009808
        %v6423 = vunpack.c.0.s8 %v6422
        %v6424 = vlaneseq
        %v6425 = vshrl.u32 %v6424, 7
        %v6426 = vsub.s32 %v6423, %v6425
        %v6427 = vrot.slane %v6413, %v6426
        %v6428 = vcombine.low %v6372, %v6388
        %v6429 = vcombine.high %v6372, %v6388
        %v6431 = vunpack.c.l.s4 1934713408
        %v6432 = vunpack.c.0.s8 %v6431
        %v6433 = vlaneseq
        %v6434 = vshrl.u32 %v6433, 7
        %v6435 = vsub.s32 %v6432, %v6434
        %v6436 = vrot.slane %v6428, %v6435
        %v6438 = vunpack.c.l.s4 1934713408
        %v6439 = vunpack.c.0.s8 %v6438
        %v6440 = vlaneseq
        %v6441 = vshrl.u32 %v6440, 7
        %v6442 = vsub.s32 %v6439, %v6441
        %v6443 = vrot.slane %v6429, %v6442
        %v6444 = vcombine.low %v6379, %v6395
        %v6445 = vcombine.high %v6379, %v6395
        %v6447 = vunpack.c.l.s4 1934713408
        %v6448 = vunpack.c.0.s8 %v6447
        %v6449 = vlaneseq
        %v6450 = vshrl.u32 %v6449, 7
        %v6451 = vsub.s32 %v6448, %v6450
        %v6452 = vrot.slane %v6444, %v6451
        %v6454 = vunpack.c.l.s4 1934713408
        %v6455 = vunpack.c.0.s8 %v6454
        %v6456 = vlaneseq
        %v6457 = vshrl.u32 %v6456, 7
        %v6458 = vsub.s32 %v6455, %v6457
        %v6459 = vrot.slane %v6445, %v6458
        %v6460 = vcombine.low %v6404, %v6420
        %v6461 = vcombine.high %v6404, %v6420
        %v6463 = vunpack.c.l.s4 1934713408
        %v6464 = vunpack.c.0.s8 %v6463
        %v6465 = vlaneseq
        %v6466 = vshrl.u32 %v6465, 7
        %v6467 = vsub.s32 %v6464, %v6466
        %v6468 = vrot.slane %v6460, %v6467
        %v6470 = vunpack.c.l.s4 1934713408
        %v6471 = vunpack.c.0.s8 %v6470
        %v6472 = vlaneseq
        %v6473 = vshrl.u32 %v6472, 7
        %v6474 = vsub.s32 %v6471, %v6473
        %v6475 = vrot.slane %v6461, %v6474
        %v6476 = vcombine.low %v6411, %v6427
        %v6477 = vcombine.high %v6411, %v6427
        %v6479 = vunpack.c.l.s4 1934713408
        %v6480 = vunpack.c.0.s8 %v6479
        %v6481 = vlaneseq
        %v6482 = vshrl.u32 %v6481, 7
        %v6483 = vsub.s32 %v6480, %v6482
        %v6484 = vrot.slane %v6476, %v6483
        %v6486 = vunpack.c.l.s4 1934713408
        %v6487 = vunpack.c.0.s8 %v6486
        %v6488 = vlaneseq
        %v6489 = vshrl.u32 %v6488, 7
        %v6490 = vsub.s32 %v6487, %v6489
        %v6491 = vrot.slane %v6477, %v6490
        %v6492 = vcombine.low %v6436, %v6468
        %v6493 = vcombine.high %v6436, %v6468
        %v6494 = vcombine.low %v6443, %v6475
        %v6495 = vcombine.high %v6443, %v6475
        %v6496 = vcombine.low %v6452, %v6484
        %v6497 = vcombine.high %v6452, %v6484
        %v6498 = vcombine.low %v6459, %v6491
        %v6499 = vcombine.high %v6459, %v6491
        %6501 = vset.pattern.permute.xlu0 0
        %6502 = vperm.xlu0 %6501, %v5924
        %v6503 = vpop.permute.xlu0 %6502
        %6506 = vset.pattern.permute.xlu0 0
        %6507 = vperm.xlu0 %6506, %v5925
        %v6508 = vpop.permute.xlu0 %6507
        %6511 = vset.pattern.permute.xlu0 0
        %6512 = vperm.xlu0 %6511, %v5926
        %v6513 = vpop.permute.xlu0 %6512
        %6516 = vset.pattern.permute.xlu0 0
        %6517 = vperm.xlu0 %6516, %v5927
        %v6518 = vpop.permute.xlu0 %6517
        %6521 = vset.pattern.permute.xlu0 0
        %6522 = vperm.xlu0 %6521, %v5928
        %v6523 = vpop.permute.xlu0 %6522
        %6526 = vset.pattern.permute.xlu0 0
        %6527 = vperm.xlu0 %6526, %v5929
        %v6528 = vpop.permute.xlu0 %6527
        %6531 = vset.pattern.permute.xlu0 0
        %6532 = vperm.xlu0 %6531, %v5930
        %v6533 = vpop.permute.xlu0 %6532
        %6536 = vset.pattern.permute.xlu0 0
        %6537 = vperm.xlu0 %6536, %v5931
        %v6538 = vpop.permute.xlu0 %6537
        %6541 = vset.pattern.permute.xlu0 0
        %6542 = vperm.xlu0 %6541, %v5932
        %v6543 = vpop.permute.xlu0 %6542
        %6546 = vset.pattern.permute.xlu0 0
        %6547 = vperm.xlu0 %6546, %v5933
        %v6548 = vpop.permute.xlu0 %6547
        %6551 = vset.pattern.permute.xlu0 0
        %6552 = vperm.xlu0 %6551, %v5934
        %v6553 = vpop.permute.xlu0 %6552
        %6556 = vset.pattern.permute.xlu0 0
        %6557 = vperm.xlu0 %6556, %v5935
        %v6558 = vpop.permute.xlu0 %6557
        %6561 = vset.pattern.permute.xlu0 0
        %6562 = vperm.xlu0 %6561, %v5936
        %v6563 = vpop.permute.xlu0 %6562
        %6566 = vset.pattern.permute.xlu0 0
        %6567 = vperm.xlu0 %6566, %v5937
        %v6568 = vpop.permute.xlu0 %6567
        %6571 = vset.pattern.permute.xlu0 0
        %6572 = vperm.xlu0 %6571, %v5938
        %v6573 = vpop.permute.xlu0 %6572
        %6576 = vset.pattern.permute.xlu0 0
        %6577 = vperm.xlu0 %6576, %v5939
        %v6578 = vpop.permute.xlu0 %6577
        %6581 = vset.pattern.permute.xlu0 0
        %6582 = vperm.xlu0 %6581, %v5940
        %v6583 = vpop.permute.xlu0 %6582
        %6586 = vset.pattern.permute.xlu0 0
        %6587 = vperm.xlu0 %6586, %v5941
        %v6588 = vpop.permute.xlu0 %6587
        %6591 = vset.pattern.permute.xlu0 0
        %6592 = vperm.xlu0 %6591, %v5942
        %v6593 = vpop.permute.xlu0 %6592
        %6596 = vset.pattern.permute.xlu0 0
        %6597 = vperm.xlu0 %6596, %v5943
        %v6598 = vpop.permute.xlu0 %6597
        %6601 = vset.pattern.permute.xlu0 0
        %6602 = vperm.xlu0 %6601, %v5944
        %v6603 = vpop.permute.xlu0 %6602
        %6606 = vset.pattern.permute.xlu0 0
        %6607 = vperm.xlu0 %6606, %v5945
        %v6608 = vpop.permute.xlu0 %6607
        %6611 = vset.pattern.permute.xlu0 0
        %6612 = vperm.xlu0 %6611, %v5946
        %v6613 = vpop.permute.xlu0 %6612
        %6616 = vset.pattern.permute.xlu0 0
        %6617 = vperm.xlu0 %6616, %v5947
        %v6618 = vpop.permute.xlu0 %6617
        %6621 = vset.pattern.permute.xlu0 0
        %6622 = vperm.xlu0 %6621, %v5948
        %v6623 = vpop.permute.xlu0 %6622
        %6626 = vset.pattern.permute.xlu0 0
        %6627 = vperm.xlu0 %6626, %v5949
        %v6628 = vpop.permute.xlu0 %6627
        %6631 = vset.pattern.permute.xlu0 0
        %6632 = vperm.xlu0 %6631, %v5950
        %v6633 = vpop.permute.xlu0 %6632
        %6636 = vset.pattern.permute.xlu0 0
        %6637 = vperm.xlu0 %6636, %v5951
        %v6638 = vpop.permute.xlu0 %6637
        %6641 = vset.pattern.permute.xlu0 0
        %6642 = vperm.xlu0 %6641, %v5952
        %v6643 = vpop.permute.xlu0 %6642
        %6646 = vset.pattern.permute.xlu0 0
        %6647 = vperm.xlu0 %6646, %v5953
        %v6648 = vpop.permute.xlu0 %6647
        %6651 = vset.pattern.permute.xlu0 0
        %6652 = vperm.xlu0 %6651, %v5954
        %v6653 = vpop.permute.xlu0 %6652
        %6656 = vset.pattern.permute.xlu0 0
        %6657 = vperm.xlu0 %6656, %v5955
        %v6658 = vpop.permute.xlu0 %6657
        %v6660 = vsub.f32 %v683, %v6503
        %v6661 = vsub.f32 %v688, %v6508
        %v6662 = vsub.f32 %v772, %v6513
        %v6663 = vsub.f32 %v777, %v6518
        %v6664 = vsub.f32 %v861, %v6523
        %v6665 = vsub.f32 %v866, %v6528
        %v6666 = vsub.f32 %v950, %v6533
        %v6667 = vsub.f32 %v955, %v6538
        %v6668 = vsub.f32 %v1039, %v6543
        %v6669 = vsub.f32 %v1044, %v6548
        %v6670 = vsub.f32 %v1128, %v6553
        %v6671 = vsub.f32 %v1133, %v6558
        %v6672 = vsub.f32 %v1217, %v6563
        %v6673 = vsub.f32 %v1222, %v6568
        %v6674 = vsub.f32 %v1306, %v6573
        %v6675 = vsub.f32 %v1311, %v6578
        %v6676 = vsub.f32 %v1395, %v6583
        %v6677 = vsub.f32 %v1400, %v6588
        %v6678 = vsub.f32 %v1484, %v6593
        %v6679 = vsub.f32 %v1489, %v6598
        %v6680 = vsub.f32 %v1573, %v6603
        %v6681 = vsub.f32 %v1578, %v6608
        %v6682 = vsub.f32 %v1662, %v6613
        %v6683 = vsub.f32 %v1667, %v6618
        %v6684 = vsub.f32 %v1751, %v6623
        %v6685 = vsub.f32 %v1756, %v6628
        %v6686 = vsub.f32 %v1840, %v6633
        %v6687 = vsub.f32 %v1845, %v6638
        %v6688 = vsub.f32 %v1929, %v6643
        %v6689 = vsub.f32 %v1934, %v6648
        %v6690 = vsub.f32 %v2018, %v6653
        %v6691 = vsub.f32 %v2023, %v6658
        %v6692 = vmul.f32 %v6660, 1.442695
        %v6693 = vpow.pop %v6692
        %v6694 = vmul.f32 %v6661, 1.442695
        %v6695 = vpow.pop %v6694
        %v6696 = vmul.f32 %v6662, 1.442695
        %v6697 = vpow.pop %v6696
        %v6698 = vmul.f32 %v6663, 1.442695
        %v6699 = vpow.pop %v6698
        %v6700 = vmul.f32 %v6664, 1.442695
        %v6701 = vpow.pop %v6700
        %v6702 = vmul.f32 %v6665, 1.442695
        %v6703 = vpow.pop %v6702
        %v6704 = vmul.f32 %v6666, 1.442695
        %v6705 = vpow.pop %v6704
        %v6706 = vmul.f32 %v6667, 1.442695
        %v6707 = vpow.pop %v6706
        %v6708 = vmul.f32 %v6668, 1.442695
        %v6709 = vpow.pop %v6708
        %v6710 = vmul.f32 %v6669, 1.442695
        %v6711 = vpow.pop %v6710
        %v6712 = vmul.f32 %v6670, 1.442695
        %v6713 = vpow.pop %v6712
        %v6714 = vmul.f32 %v6671, 1.442695
        %v6715 = vpow.pop %v6714
        %v6716 = vmul.f32 %v6672, 1.442695
        %v6717 = vpow.pop %v6716
        %v6718 = vmul.f32 %v6673, 1.442695
        %v6719 = vpow.pop %v6718
        %v6720 = vmul.f32 %v6674, 1.442695
        %v6721 = vpow.pop %v6720
        %v6722 = vmul.f32 %v6675, 1.442695
        %v6723 = vpow.pop %v6722
        %v6724 = vmul.f32 %v6676, 1.442695
        %v6725 = vpow.pop %v6724
        %v6726 = vmul.f32 %v6677, 1.442695
        %v6727 = vpow.pop %v6726
        %v6728 = vmul.f32 %v6678, 1.442695
        %v6729 = vpow.pop %v6728
        %v6730 = vmul.f32 %v6679, 1.442695
        %v6731 = vpow.pop %v6730
        %v6732 = vmul.f32 %v6680, 1.442695
        %v6733 = vpow.pop %v6732
        %v6734 = vmul.f32 %v6681, 1.442695
        %v6735 = vpow.pop %v6734
        %v6736 = vmul.f32 %v6682, 1.442695
        %v6737 = vpow.pop %v6736
        %v6738 = vmul.f32 %v6683, 1.442695
        %v6739 = vpow.pop %v6738
        %v6740 = vmul.f32 %v6684, 1.442695
        %v6741 = vpow.pop %v6740
        %v6742 = vmul.f32 %v6685, 1.442695
        %v6743 = vpow.pop %v6742
        %v6744 = vmul.f32 %v6686, 1.442695
        %v6745 = vpow.pop %v6744
        %v6746 = vmul.f32 %v6687, 1.442695
        %v6747 = vpow.pop %v6746
        %v6748 = vmul.f32 %v6688, 1.442695
        %v6749 = vpow.pop %v6748
        %v6750 = vmul.f32 %v6689, 1.442695
        %v6751 = vpow.pop %v6750
        %v6752 = vmul.f32 %v6690, 1.442695
        %v6753 = vpow.pop %v6752
        %v6754 = vmul.f32 %v6691, 1.442695
        %v6755 = vpow.pop %v6754
        %6757 = vset.pattern.permute.xlu0 0
        %6758 = vperm.xlu0 %6757, %v6084
        %v6759 = vpop.permute.xlu0 %6758
        %6762 = vset.pattern.permute.xlu0 0
        %6763 = vperm.xlu0 %6762, %v6220
        %v6764 = vpop.permute.xlu0 %6763
        %6767 = vset.pattern.permute.xlu0 0
        %6768 = vperm.xlu0 %6767, %v6085
        %v6769 = vpop.permute.xlu0 %6768
        %6772 = vset.pattern.permute.xlu0 0
        %6773 = vperm.xlu0 %6772, %v6221
        %v6774 = vpop.permute.xlu0 %6773
        %6777 = vset.pattern.permute.xlu0 0
        %6778 = vperm.xlu0 %6777, %v6086
        %v6779 = vpop.permute.xlu0 %6778
        %6782 = vset.pattern.permute.xlu0 0
        %6783 = vperm.xlu0 %6782, %v6222
        %v6784 = vpop.permute.xlu0 %6783
        %6787 = vset.pattern.permute.xlu0 0
        %6788 = vperm.xlu0 %6787, %v6087
        %v6789 = vpop.permute.xlu0 %6788
        %6792 = vset.pattern.permute.xlu0 0
        %6793 = vperm.xlu0 %6792, %v6223
        %v6794 = vpop.permute.xlu0 %6793
        %6797 = vset.pattern.permute.xlu0 0
        %6798 = vperm.xlu0 %6797, %v6088
        %v6799 = vpop.permute.xlu0 %6798
        %6802 = vset.pattern.permute.xlu0 0
        %6803 = vperm.xlu0 %6802, %v6224
        %v6804 = vpop.permute.xlu0 %6803
        %6807 = vset.pattern.permute.xlu0 0
        %6808 = vperm.xlu0 %6807, %v6089
        %v6809 = vpop.permute.xlu0 %6808
        %6812 = vset.pattern.permute.xlu0 0
        %6813 = vperm.xlu0 %6812, %v6225
        %v6814 = vpop.permute.xlu0 %6813
        %6817 = vset.pattern.permute.xlu0 0
        %6818 = vperm.xlu0 %6817, %v6090
        %v6819 = vpop.permute.xlu0 %6818
        %6822 = vset.pattern.permute.xlu0 0
        %6823 = vperm.xlu0 %6822, %v6226
        %v6824 = vpop.permute.xlu0 %6823
        %6827 = vset.pattern.permute.xlu0 0
        %6828 = vperm.xlu0 %6827, %v6091
        %v6829 = vpop.permute.xlu0 %6828
        %6832 = vset.pattern.permute.xlu0 0
        %6833 = vperm.xlu0 %6832, %v6227
        %v6834 = vpop.permute.xlu0 %6833
        %6837 = vset.pattern.permute.xlu0 0
        %6838 = vperm.xlu0 %6837, %v6356
        %v6839 = vpop.permute.xlu0 %6838
        %6842 = vset.pattern.permute.xlu0 0
        %6843 = vperm.xlu0 %6842, %v6492
        %v6844 = vpop.permute.xlu0 %6843
        %6847 = vset.pattern.permute.xlu0 0
        %6848 = vperm.xlu0 %6847, %v6357
        %v6849 = vpop.permute.xlu0 %6848
        %6852 = vset.pattern.permute.xlu0 0
        %6853 = vperm.xlu0 %6852, %v6493
        %v6854 = vpop.permute.xlu0 %6853
        %6857 = vset.pattern.permute.xlu0 0
        %6858 = vperm.xlu0 %6857, %v6358
        %v6859 = vpop.permute.xlu0 %6858
        %6862 = vset.pattern.permute.xlu0 0
        %6863 = vperm.xlu0 %6862, %v6494
        %v6864 = vpop.permute.xlu0 %6863
        %6867 = vset.pattern.permute.xlu0 0
        %6868 = vperm.xlu0 %6867, %v6359
        %v6869 = vpop.permute.xlu0 %6868
        %6872 = vset.pattern.permute.xlu0 0
        %6873 = vperm.xlu0 %6872, %v6495
        %v6874 = vpop.permute.xlu0 %6873
        %6877 = vset.pattern.permute.xlu0 0
        %6878 = vperm.xlu0 %6877, %v6360
        %v6879 = vpop.permute.xlu0 %6878
        %6882 = vset.pattern.permute.xlu0 0
        %6883 = vperm.xlu0 %6882, %v6496
        %v6884 = vpop.permute.xlu0 %6883
        %6887 = vset.pattern.permute.xlu0 0
        %6888 = vperm.xlu0 %6887, %v6361
        %v6889 = vpop.permute.xlu0 %6888
        %6892 = vset.pattern.permute.xlu0 0
        %6893 = vperm.xlu0 %6892, %v6497
        %v6894 = vpop.permute.xlu0 %6893
        %6897 = vset.pattern.permute.xlu0 0
        %6898 = vperm.xlu0 %6897, %v6362
        %v6899 = vpop.permute.xlu0 %6898
        %6902 = vset.pattern.permute.xlu0 0
        %6903 = vperm.xlu0 %6902, %v6498
        %v6904 = vpop.permute.xlu0 %6903
        %6907 = vset.pattern.permute.xlu0 0
        %6908 = vperm.xlu0 %6907, %v6363
        %v6909 = vpop.permute.xlu0 %6908
        %6912 = vset.pattern.permute.xlu0 0
        %6913 = vperm.xlu0 %6912, %v6499
        %v6914 = vpop.permute.xlu0 %6913
        %v6916 = vsub.f32 %v3971, %v6759
        %v6917 = vsub.f32 %v3976, %v6764
        %v6918 = vsub.f32 %v4058, %v6769
        %v6919 = vsub.f32 %v4063, %v6774
        %v6920 = vsub.f32 %v4145, %v6779
        %v6921 = vsub.f32 %v4150, %v6784
        %v6922 = vsub.f32 %v4232, %v6789
        %v6923 = vsub.f32 %v4237, %v6794
        %v6924 = vsub.f32 %v4319, %v6799
        %v6925 = vsub.f32 %v4324, %v6804
        %v6926 = vsub.f32 %v4406, %v6809
        %v6927 = vsub.f32 %v4411, %v6814
        %v6928 = vsub.f32 %v4493, %v6819
        %v6929 = vsub.f32 %v4498, %v6824
        %v6930 = vsub.f32 %v4580, %v6829
        %v6931 = vsub.f32 %v4585, %v6834
        %v6932 = vsub.f32 %v4667, %v6839
        %v6933 = vsub.f32 %v4672, %v6844
        %v6934 = vsub.f32 %v4754, %v6849
        %v6935 = vsub.f32 %v4759, %v6854
        %v6936 = vsub.f32 %v4841, %v6859
        %v6937 = vsub.f32 %v4846, %v6864
        %v6938 = vsub.f32 %v4928, %v6869
        %v6939 = vsub.f32 %v4933, %v6874
        %v6940 = vsub.f32 %v5015, %v6879
        %v6941 = vsub.f32 %v5020, %v6884
        %v6942 = vsub.f32 %v5102, %v6889
        %v6943 = vsub.f32 %v5107, %v6894
        %v6944 = vsub.f32 %v5189, %v6899
        %v6945 = vsub.f32 %v5194, %v6904
        %v6946 = vsub.f32 %v5276, %v6909
        %v6947 = vsub.f32 %v5281, %v6914
        %v6948 = vmul.f32 %v6916, 1.442695
        %v6949 = vpow.pop %v6948
        %v6950 = vmul.f32 %v6917, 1.442695
        %v6951 = vpow.pop %v6950
        %v6952 = vmul.f32 %v6918, 1.442695
        %v6953 = vpow.pop %v6952
        %v6954 = vmul.f32 %v6919, 1.442695
        %v6955 = vpow.pop %v6954
        %v6956 = vmul.f32 %v6920, 1.442695
        %v6957 = vpow.pop %v6956
        %v6958 = vmul.f32 %v6921, 1.442695
        %v6959 = vpow.pop %v6958
        %v6960 = vmul.f32 %v6922, 1.442695
        %v6961 = vpow.pop %v6960
        %v6962 = vmul.f32 %v6923, 1.442695
        %v6963 = vpow.pop %v6962
        %v6964 = vmul.f32 %v6924, 1.442695
        %v6965 = vpow.pop %v6964
        %v6966 = vmul.f32 %v6925, 1.442695
        %v6967 = vpow.pop %v6966
        %v6968 = vmul.f32 %v6926, 1.442695
        %v6969 = vpow.pop %v6968
        %v6970 = vmul.f32 %v6927, 1.442695
        %v6971 = vpow.pop %v6970
        %v6972 = vmul.f32 %v6928, 1.442695
        %v6973 = vpow.pop %v6972
        %v6974 = vmul.f32 %v6929, 1.442695
        %v6975 = vpow.pop %v6974
        %v6976 = vmul.f32 %v6930, 1.442695
        %v6977 = vpow.pop %v6976
        %v6978 = vmul.f32 %v6931, 1.442695
        %v6979 = vpow.pop %v6978
        %v6980 = vmul.f32 %v6932, 1.442695
        %v6981 = vpow.pop %v6980
        %v6982 = vmul.f32 %v6933, 1.442695
        %v6983 = vpow.pop %v6982
        %v6984 = vmul.f32 %v6934, 1.442695
        %v6985 = vpow.pop %v6984
        %v6986 = vmul.f32 %v6935, 1.442695
        %v6987 = vpow.pop %v6986
        %v6988 = vmul.f32 %v6936, 1.442695
        %v6989 = vpow.pop %v6988
        %v6990 = vmul.f32 %v6937, 1.442695
        %v6991 = vpow.pop %v6990
        %v6992 = vmul.f32 %v6938, 1.442695
        %v6993 = vpow.pop %v6992
        %v6994 = vmul.f32 %v6939, 1.442695
        %v6995 = vpow.pop %v6994
        %v6996 = vmul.f32 %v6940, 1.442695
        %v6997 = vpow.pop %v6996
        %v6998 = vmul.f32 %v6941, 1.442695
        %v6999 = vpow.pop %v6998
        %v7000 = vmul.f32 %v6942, 1.442695
        %v7001 = vpow.pop %v7000
        %v7002 = vmul.f32 %v6943, 1.442695
        %v7003 = vpow.pop %v7002
        %v7004 = vmul.f32 %v6944, 1.442695
        %v7005 = vpow.pop %v7004
        %v7006 = vmul.f32 %v6945, 1.442695
        %v7007 = vpow.pop %v7006
        %v7008 = vmul.f32 %v6946, 1.442695
        %v7009 = vpow.pop %v7008
        %v7010 = vmul.f32 %v6947, 1.442695
        %v7011 = vpow.pop %v7010
        %v7012 = vsel %vm2026, %v6693, 0.0
        %7013 = vadd.xlane.f32.xlu0 %v7012
        %v7014 = vpop.xlane.xlu0 %7013
        %v7015 = vsel %vm2026, %v6695, 0.0
        %7016 = vadd.xlane.f32.xlu0 %v7015
        %v7017 = vpop.xlane.xlu0 %7016
        %v7018 = vsel %vm2026, %v6697, 0.0
        %7019 = vadd.xlane.f32.xlu0 %v7018
        %v7020 = vpop.xlane.xlu0 %7019
        %v7021 = vsel %vm2026, %v6699, 0.0
        %7022 = vadd.xlane.f32.xlu0 %v7021
        %v7023 = vpop.xlane.xlu0 %7022
        %v7024 = vsel %vm2026, %v6701, 0.0
        %7025 = vadd.xlane.f32.xlu0 %v7024
        %v7026 = vpop.xlane.xlu0 %7025
        %v7027 = vsel %vm2026, %v6703, 0.0
        %7028 = vadd.xlane.f32.xlu0 %v7027
        %v7029 = vpop.xlane.xlu0 %7028
        %v7030 = vsel %vm2026, %v6705, 0.0
        %7031 = vadd.xlane.f32.xlu0 %v7030
        %v7032 = vpop.xlane.xlu0 %7031
        %v7033 = vsel %vm2026, %v6707, 0.0
        %7034 = vadd.xlane.f32.xlu0 %v7033
        %v7035 = vpop.xlane.xlu0 %7034
        %v7036 = vsel %vm2026, %v6709, 0.0
        %7037 = vadd.xlane.f32.xlu0 %v7036
        %v7038 = vpop.xlane.xlu0 %7037
        %v7039 = vsel %vm2026, %v6711, 0.0
        %7040 = vadd.xlane.f32.xlu0 %v7039
        %v7041 = vpop.xlane.xlu0 %7040
        %v7042 = vsel %vm2026, %v6713, 0.0
        %7043 = vadd.xlane.f32.xlu0 %v7042
        %v7044 = vpop.xlane.xlu0 %7043
        %v7045 = vsel %vm2026, %v6715, 0.0
        %7046 = vadd.xlane.f32.xlu0 %v7045
        %v7047 = vpop.xlane.xlu0 %7046
        %v7048 = vsel %vm2026, %v6717, 0.0
        %7049 = vadd.xlane.f32.xlu0 %v7048
        %v7050 = vpop.xlane.xlu0 %7049
        %v7051 = vsel %vm2026, %v6719, 0.0
        %7052 = vadd.xlane.f32.xlu0 %v7051
        %v7053 = vpop.xlane.xlu0 %7052
        %v7054 = vsel %vm2026, %v6721, 0.0
        %7055 = vadd.xlane.f32.xlu0 %v7054
        %v7056 = vpop.xlane.xlu0 %7055
        %v7057 = vsel %vm2026, %v6723, 0.0
        %7058 = vadd.xlane.f32.xlu0 %v7057
        %v7059 = vpop.xlane.xlu0 %7058
        %v7060 = vsel %vm2026, %v6725, 0.0
        %7061 = vadd.xlane.f32.xlu0 %v7060
        %v7062 = vpop.xlane.xlu0 %7061
        %v7063 = vsel %vm2026, %v6727, 0.0
        %7064 = vadd.xlane.f32.xlu0 %v7063
        %v7065 = vpop.xlane.xlu0 %7064
        %v7066 = vsel %vm2026, %v6729, 0.0
        %7067 = vadd.xlane.f32.xlu0 %v7066
        %v7068 = vpop.xlane.xlu0 %7067
        %v7069 = vsel %vm2026, %v6731, 0.0
        %7070 = vadd.xlane.f32.xlu0 %v7069
        %v7071 = vpop.xlane.xlu0 %7070
        %v7072 = vsel %vm2026, %v6733, 0.0
        %7073 = vadd.xlane.f32.xlu0 %v7072
        %v7074 = vpop.xlane.xlu0 %7073
        %v7075 = vsel %vm2026, %v6735, 0.0
        %7076 = vadd.xlane.f32.xlu0 %v7075
        %v7077 = vpop.xlane.xlu0 %7076
        %v7078 = vsel %vm2026, %v6737, 0.0
        %7079 = vadd.xlane.f32.xlu0 %v7078
        %v7080 = vpop.xlane.xlu0 %7079
        %v7081 = vsel %vm2026, %v6739, 0.0
        %7082 = vadd.xlane.f32.xlu0 %v7081
        %v7083 = vpop.xlane.xlu0 %7082
        %v7084 = vsel %vm2026, %v6741, 0.0
        %7085 = vadd.xlane.f32.xlu0 %v7084
        %v7086 = vpop.xlane.xlu0 %7085
        %v7087 = vsel %vm2026, %v6743, 0.0
        %7088 = vadd.xlane.f32.xlu0 %v7087
        %v7089 = vpop.xlane.xlu0 %7088
        %v7090 = vsel %vm2026, %v6745, 0.0
        %7091 = vadd.xlane.f32.xlu0 %v7090
        %v7092 = vpop.xlane.xlu0 %7091
        %v7093 = vsel %vm2026, %v6747, 0.0
        %7094 = vadd.xlane.f32.xlu0 %v7093
        %v7095 = vpop.xlane.xlu0 %7094
        %v7096 = vsel %vm2026, %v6749, 0.0
        %7097 = vadd.xlane.f32.xlu0 %v7096
        %v7098 = vpop.xlane.xlu0 %7097
        %v7099 = vsel %vm2026, %v6751, 0.0
        %7100 = vadd.xlane.f32.xlu0 %v7099
        %v7101 = vpop.xlane.xlu0 %7100
        %v7102 = vsel %vm2026, %v6753, 0.0
        %7103 = vadd.xlane.f32.xlu0 %v7102
        %v7104 = vpop.xlane.xlu0 %7103
        %v7105 = vsel %vm2026, %v6755, 0.0
        %7106 = vadd.xlane.f32.xlu0 %v7105
        %v7107 = vpop.xlane.xlu0 %7106
        %v7108 = vsel %vm2026, %v6949, 0.0
        %7109 = vadd.xlane.f32.xlu0 %v7108
        %v7110 = vpop.xlane.xlu0 %7109
        %v7111 = vsel %vm2026, %v6951, 0.0
        %7112 = vadd.xlane.f32.xlu0 %v7111
        %v7113 = vpop.xlane.xlu0 %7112
        %v7114 = vsel %vm2026, %v6953, 0.0
        %7115 = vadd.xlane.f32.xlu0 %v7114
        %v7116 = vpop.xlane.xlu0 %7115
        %v7117 = vsel %vm2026, %v6955, 0.0
        %7118 = vadd.xlane.f32.xlu0 %v7117
        %v7119 = vpop.xlane.xlu0 %7118
        %v7120 = vsel %vm2026, %v6957, 0.0
        %7121 = vadd.xlane.f32.xlu0 %v7120
        %v7122 = vpop.xlane.xlu0 %7121
        %v7123 = vsel %vm2026, %v6959, 0.0
        %7124 = vadd.xlane.f32.xlu0 %v7123
        %v7125 = vpop.xlane.xlu0 %7124
        %v7126 = vsel %vm2026, %v6961, 0.0
        %7127 = vadd.xlane.f32.xlu0 %v7126
        %v7128 = vpop.xlane.xlu0 %7127
        %v7129 = vsel %vm2026, %v6963, 0.0
        %7130 = vadd.xlane.f32.xlu0 %v7129
        %v7131 = vpop.xlane.xlu0 %7130
        %v7132 = vsel %vm2026, %v6965, 0.0
        %7133 = vadd.xlane.f32.xlu0 %v7132
        %v7134 = vpop.xlane.xlu0 %7133
        %v7135 = vsel %vm2026, %v6967, 0.0
        %7136 = vadd.xlane.f32.xlu0 %v7135
        %v7137 = vpop.xlane.xlu0 %7136
        %v7138 = vsel %vm2026, %v6969, 0.0
        %7139 = vadd.xlane.f32.xlu0 %v7138
        %v7140 = vpop.xlane.xlu0 %7139
        %v7141 = vsel %vm2026, %v6971, 0.0
        %7142 = vadd.xlane.f32.xlu0 %v7141
        %v7143 = vpop.xlane.xlu0 %7142
        %v7144 = vsel %vm2026, %v6973, 0.0
        %7145 = vadd.xlane.f32.xlu0 %v7144
        %v7146 = vpop.xlane.xlu0 %7145
        %v7147 = vsel %vm2026, %v6975, 0.0
        %7148 = vadd.xlane.f32.xlu0 %v7147
        %v7149 = vpop.xlane.xlu0 %7148
        %v7150 = vsel %vm2026, %v6977, 0.0
        %7151 = vadd.xlane.f32.xlu0 %v7150
        %v7152 = vpop.xlane.xlu0 %7151
        %v7153 = vsel %vm2026, %v6979, 0.0
        %7154 = vadd.xlane.f32.xlu0 %v7153
        %v7155 = vpop.xlane.xlu0 %7154
        %v7156 = vsel %vm2026, %v6981, 0.0
        %7157 = vadd.xlane.f32.xlu0 %v7156
        %v7158 = vpop.xlane.xlu0 %7157
        %v7159 = vsel %vm2026, %v6983, 0.0
        %7160 = vadd.xlane.f32.xlu0 %v7159
        %v7161 = vpop.xlane.xlu0 %7160
        %v7162 = vsel %vm2026, %v6985, 0.0
        %7163 = vadd.xlane.f32.xlu0 %v7162
        %v7164 = vpop.xlane.xlu0 %7163
        %v7165 = vsel %vm2026, %v6987, 0.0
        %7166 = vadd.xlane.f32.xlu0 %v7165
        %v7167 = vpop.xlane.xlu0 %7166
        %v7168 = vsel %vm2026, %v6989, 0.0
        %7169 = vadd.xlane.f32.xlu0 %v7168
        %v7170 = vpop.xlane.xlu0 %7169
        %v7171 = vsel %vm2026, %v6991, 0.0
        %7172 = vadd.xlane.f32.xlu0 %v7171
        %v7173 = vpop.xlane.xlu0 %7172
        %v7174 = vsel %vm2026, %v6993, 0.0
        %7175 = vadd.xlane.f32.xlu0 %v7174
        %v7176 = vpop.xlane.xlu0 %7175
        %v7177 = vsel %vm2026, %v6995, 0.0
        %7178 = vadd.xlane.f32.xlu0 %v7177
        %v7179 = vpop.xlane.xlu0 %7178
        %v7180 = vsel %vm2026, %v6997, 0.0
        %7181 = vadd.xlane.f32.xlu0 %v7180
        %v7182 = vpop.xlane.xlu0 %7181
        %v7183 = vsel %vm2026, %v6999, 0.0
        %7184 = vadd.xlane.f32.xlu0 %v7183
        %v7185 = vpop.xlane.xlu0 %7184
        %v7186 = vsel %vm2026, %v7001, 0.0
        %7187 = vadd.xlane.f32.xlu0 %v7186
        %v7188 = vpop.xlane.xlu0 %7187
        %v7189 = vsel %vm2026, %v7003, 0.0
        %7190 = vadd.xlane.f32.xlu0 %v7189
        %v7191 = vpop.xlane.xlu0 %7190
        %v7192 = vsel %vm2026, %v7005, 0.0
        %7193 = vadd.xlane.f32.xlu0 %v7192
        %v7194 = vpop.xlane.xlu0 %7193
        %v7195 = vsel %vm2026, %v7007, 0.0
        %7196 = vadd.xlane.f32.xlu0 %v7195
        %v7197 = vpop.xlane.xlu0 %7196
        %v7198 = vsel %vm2026, %v7009, 0.0
        %7199 = vadd.xlane.f32.xlu0 %v7198
        %v7200 = vpop.xlane.xlu0 %7199
        %v7201 = vsel %vm2026, %v7011, 0.0
        %7202 = vadd.xlane.f32.xlu0 %v7201
        %v7203 = vpop.xlane.xlu0 %7202
        %v7204 = vcombine.low %v7110, %v7122
        %v7205 = vcombine.high %v7110, %v7122
        %v7207 = vunpack.c.l.s4 1983009808
        %v7208 = vunpack.c.0.s8 %v7207
        %v7209 = vlaneseq
        %v7210 = vshrl.u32 %v7209, 7
        %v7211 = vsub.s32 %v7208, %v7210
        %v7212 = vrot.slane %v7204, %v7211
        %v7214 = vunpack.c.l.s4 1983009808
        %v7215 = vunpack.c.0.s8 %v7214
        %v7216 = vlaneseq
        %v7217 = vshrl.u32 %v7216, 7
        %v7218 = vsub.s32 %v7215, %v7217
        %v7219 = vrot.slane %v7205, %v7218
        %v7220 = vcombine.low %v7116, %v7128
        %v7221 = vcombine.high %v7116, %v7128
        %v7223 = vunpack.c.l.s4 1983009808
        %v7224 = vunpack.c.0.s8 %v7223
        %v7225 = vlaneseq
        %v7226 = vshrl.u32 %v7225, 7
        %v7227 = vsub.s32 %v7224, %v7226
        %v7228 = vrot.slane %v7220, %v7227
        %v7230 = vunpack.c.l.s4 1983009808
        %v7231 = vunpack.c.0.s8 %v7230
        %v7232 = vlaneseq
        %v7233 = vshrl.u32 %v7232, 7
        %v7234 = vsub.s32 %v7231, %v7233
        %v7235 = vrot.slane %v7221, %v7234
        %v7236 = vcombine.low %v7134, %v7146
        %v7237 = vcombine.high %v7134, %v7146
        %v7239 = vunpack.c.l.s4 1983009808
        %v7240 = vunpack.c.0.s8 %v7239
        %v7241 = vlaneseq
        %v7242 = vshrl.u32 %v7241, 7
        %v7243 = vsub.s32 %v7240, %v7242
        %v7244 = vrot.slane %v7236, %v7243
        %v7246 = vunpack.c.l.s4 1983009808
        %v7247 = vunpack.c.0.s8 %v7246
        %v7248 = vlaneseq
        %v7249 = vshrl.u32 %v7248, 7
        %v7250 = vsub.s32 %v7247, %v7249
        %v7251 = vrot.slane %v7237, %v7250
        %v7252 = vcombine.low %v7140, %v7152
        %v7253 = vcombine.high %v7140, %v7152
        %v7255 = vunpack.c.l.s4 1983009808
        %v7256 = vunpack.c.0.s8 %v7255
        %v7257 = vlaneseq
        %v7258 = vshrl.u32 %v7257, 7
        %v7259 = vsub.s32 %v7256, %v7258
        %v7260 = vrot.slane %v7252, %v7259
        %v7262 = vunpack.c.l.s4 1983009808
        %v7263 = vunpack.c.0.s8 %v7262
        %v7264 = vlaneseq
        %v7265 = vshrl.u32 %v7264, 7
        %v7266 = vsub.s32 %v7263, %v7265
        %v7267 = vrot.slane %v7253, %v7266
        %v7268 = vcombine.low %v7212, %v7228
        %v7269 = vcombine.high %v7212, %v7228
        %v7271 = vunpack.c.l.s4 1934713408
        %v7272 = vunpack.c.0.s8 %v7271
        %v7273 = vlaneseq
        %v7274 = vshrl.u32 %v7273, 7
        %v7275 = vsub.s32 %v7272, %v7274
        %v7276 = vrot.slane %v7268, %v7275
        %v7278 = vunpack.c.l.s4 1934713408
        %v7279 = vunpack.c.0.s8 %v7278
        %v7280 = vlaneseq
        %v7281 = vshrl.u32 %v7280, 7
        %v7282 = vsub.s32 %v7279, %v7281
        %v7283 = vrot.slane %v7269, %v7282
        %v7284 = vcombine.low %v7219, %v7235
        %v7285 = vcombine.high %v7219, %v7235
        %v7287 = vunpack.c.l.s4 1934713408
        %v7288 = vunpack.c.0.s8 %v7287
        %v7289 = vlaneseq
        %v7290 = vshrl.u32 %v7289, 7
        %v7291 = vsub.s32 %v7288, %v7290
        %v7292 = vrot.slane %v7284, %v7291
        %v7294 = vunpack.c.l.s4 1934713408
        %v7295 = vunpack.c.0.s8 %v7294
        %v7296 = vlaneseq
        %v7297 = vshrl.u32 %v7296, 7
        %v7298 = vsub.s32 %v7295, %v7297
        %v7299 = vrot.slane %v7285, %v7298
        %v7300 = vcombine.low %v7244, %v7260
        %v7301 = vcombine.high %v7244, %v7260
        %v7303 = vunpack.c.l.s4 1934713408
        %v7304 = vunpack.c.0.s8 %v7303
        %v7305 = vlaneseq
        %v7306 = vshrl.u32 %v7305, 7
        %v7307 = vsub.s32 %v7304, %v7306
        %v7308 = vrot.slane %v7300, %v7307
        %v7310 = vunpack.c.l.s4 1934713408
        %v7311 = vunpack.c.0.s8 %v7310
        %v7312 = vlaneseq
        %v7313 = vshrl.u32 %v7312, 7
        %v7314 = vsub.s32 %v7311, %v7313
        %v7315 = vrot.slane %v7301, %v7314
        %v7316 = vcombine.low %v7251, %v7267
        %v7317 = vcombine.high %v7251, %v7267
        %v7319 = vunpack.c.l.s4 1934713408
        %v7320 = vunpack.c.0.s8 %v7319
        %v7321 = vlaneseq
        %v7322 = vshrl.u32 %v7321, 7
        %v7323 = vsub.s32 %v7320, %v7322
        %v7324 = vrot.slane %v7316, %v7323
        %v7326 = vunpack.c.l.s4 1934713408
        %v7327 = vunpack.c.0.s8 %v7326
        %v7328 = vlaneseq
        %v7329 = vshrl.u32 %v7328, 7
        %v7330 = vsub.s32 %v7327, %v7329
        %v7331 = vrot.slane %v7317, %v7330
        %v7332 = vcombine.low %v7276, %v7308
        %v7333 = vcombine.high %v7276, %v7308
        %v7334 = vcombine.low %v7283, %v7315
        %v7335 = vcombine.high %v7283, %v7315
        %v7336 = vcombine.low %v7292, %v7324
        %v7337 = vcombine.high %v7292, %v7324
        %v7338 = vcombine.low %v7299, %v7331
        %v7339 = vcombine.high %v7299, %v7331
        %v7340 = vcombine.low %v7158, %v7170
        %v7341 = vcombine.high %v7158, %v7170
        %v7343 = vunpack.c.l.s4 1983009808
        %v7344 = vunpack.c.0.s8 %v7343
        %v7345 = vlaneseq
        %v7346 = vshrl.u32 %v7345, 7
        %v7347 = vsub.s32 %v7344, %v7346
        %v7348 = vrot.slane %v7340, %v7347
        %v7350 = vunpack.c.l.s4 1983009808
        %v7351 = vunpack.c.0.s8 %v7350
        %v7352 = vlaneseq
        %v7353 = vshrl.u32 %v7352, 7
        %v7354 = vsub.s32 %v7351, %v7353
        %v7355 = vrot.slane %v7341, %v7354
        %v7356 = vcombine.low %v7164, %v7176
        %v7357 = vcombine.high %v7164, %v7176
        %v7359 = vunpack.c.l.s4 1983009808
        %v7360 = vunpack.c.0.s8 %v7359
        %v7361 = vlaneseq
        %v7362 = vshrl.u32 %v7361, 7
        %v7363 = vsub.s32 %v7360, %v7362
        %v7364 = vrot.slane %v7356, %v7363
        %v7366 = vunpack.c.l.s4 1983009808
        %v7367 = vunpack.c.0.s8 %v7366
        %v7368 = vlaneseq
        %v7369 = vshrl.u32 %v7368, 7
        %v7370 = vsub.s32 %v7367, %v7369
        %v7371 = vrot.slane %v7357, %v7370
        %v7372 = vcombine.low %v7182, %v7194
        %v7373 = vcombine.high %v7182, %v7194
        %v7375 = vunpack.c.l.s4 1983009808
        %v7376 = vunpack.c.0.s8 %v7375
        %v7377 = vlaneseq
        %v7378 = vshrl.u32 %v7377, 7
        %v7379 = vsub.s32 %v7376, %v7378
        %v7380 = vrot.slane %v7372, %v7379
        %v7382 = vunpack.c.l.s4 1983009808
        %v7383 = vunpack.c.0.s8 %v7382
        %v7384 = vlaneseq
        %v7385 = vshrl.u32 %v7384, 7
        %v7386 = vsub.s32 %v7383, %v7385
        %v7387 = vrot.slane %v7373, %v7386
        %v7388 = vcombine.low %v7188, %v7200
        %v7389 = vcombine.high %v7188, %v7200
        %v7391 = vunpack.c.l.s4 1983009808
        %v7392 = vunpack.c.0.s8 %v7391
        %v7393 = vlaneseq
        %v7394 = vshrl.u32 %v7393, 7
        %v7395 = vsub.s32 %v7392, %v7394
        %v7396 = vrot.slane %v7388, %v7395
        %v7398 = vunpack.c.l.s4 1983009808
        %v7399 = vunpack.c.0.s8 %v7398
        %v7400 = vlaneseq
        %v7401 = vshrl.u32 %v7400, 7
        %v7402 = vsub.s32 %v7399, %v7401
        %v7403 = vrot.slane %v7389, %v7402
        %v7404 = vcombine.low %v7348, %v7364
        %v7405 = vcombine.high %v7348, %v7364
        %v7407 = vunpack.c.l.s4 1934713408
        %v7408 = vunpack.c.0.s8 %v7407
        %v7409 = vlaneseq
        %v7410 = vshrl.u32 %v7409, 7
        %v7411 = vsub.s32 %v7408, %v7410
        %v7412 = vrot.slane %v7404, %v7411
        %v7414 = vunpack.c.l.s4 1934713408
        %v7415 = vunpack.c.0.s8 %v7414
        %v7416 = vlaneseq
        %v7417 = vshrl.u32 %v7416, 7
        %v7418 = vsub.s32 %v7415, %v7417
        %v7419 = vrot.slane %v7405, %v7418
        %v7420 = vcombine.low %v7355, %v7371
        %v7421 = vcombine.high %v7355, %v7371
        %v7423 = vunpack.c.l.s4 1934713408
        %v7424 = vunpack.c.0.s8 %v7423
        %v7425 = vlaneseq
        %v7426 = vshrl.u32 %v7425, 7
        %v7427 = vsub.s32 %v7424, %v7426
        %v7428 = vrot.slane %v7420, %v7427
        %v7430 = vunpack.c.l.s4 1934713408
        %v7431 = vunpack.c.0.s8 %v7430
        %v7432 = vlaneseq
        %v7433 = vshrl.u32 %v7432, 7
        %v7434 = vsub.s32 %v7431, %v7433
        %v7435 = vrot.slane %v7421, %v7434
        %v7436 = vcombine.low %v7380, %v7396
        %v7437 = vcombine.high %v7380, %v7396
        %v7439 = vunpack.c.l.s4 1934713408
        %v7440 = vunpack.c.0.s8 %v7439
        %v7441 = vlaneseq
        %v7442 = vshrl.u32 %v7441, 7
        %v7443 = vsub.s32 %v7440, %v7442
        %v7444 = vrot.slane %v7436, %v7443
        %v7446 = vunpack.c.l.s4 1934713408
        %v7447 = vunpack.c.0.s8 %v7446
        %v7448 = vlaneseq
        %v7449 = vshrl.u32 %v7448, 7
        %v7450 = vsub.s32 %v7447, %v7449
        %v7451 = vrot.slane %v7437, %v7450
        %v7452 = vcombine.low %v7387, %v7403
        %v7453 = vcombine.high %v7387, %v7403
        %v7455 = vunpack.c.l.s4 1934713408
        %v7456 = vunpack.c.0.s8 %v7455
        %v7457 = vlaneseq
        %v7458 = vshrl.u32 %v7457, 7
        %v7459 = vsub.s32 %v7456, %v7458
        %v7460 = vrot.slane %v7452, %v7459
        %v7462 = vunpack.c.l.s4 1934713408
        %v7463 = vunpack.c.0.s8 %v7462
        %v7464 = vlaneseq
        %v7465 = vshrl.u32 %v7464, 7
        %v7466 = vsub.s32 %v7463, %v7465
        %v7467 = vrot.slane %v7453, %v7466
        %v7468 = vcombine.low %v7412, %v7444
        %v7469 = vcombine.high %v7412, %v7444
        %v7470 = vcombine.low %v7419, %v7451
        %v7471 = vcombine.high %v7419, %v7451
        %v7472 = vcombine.low %v7428, %v7460
        %v7473 = vcombine.high %v7428, %v7460
        %v7474 = vcombine.low %v7435, %v7467
        %v7475 = vcombine.high %v7435, %v7467
        %v7476 = vcombine.low %v7113, %v7125
        %v7477 = vcombine.high %v7113, %v7125
        %v7479 = vunpack.c.l.s4 1983009808
        %v7480 = vunpack.c.0.s8 %v7479
        %v7481 = vlaneseq
        %v7482 = vshrl.u32 %v7481, 7
        %v7483 = vsub.s32 %v7480, %v7482
        %v7484 = vrot.slane %v7476, %v7483
        %v7486 = vunpack.c.l.s4 1983009808
        %v7487 = vunpack.c.0.s8 %v7486
        %v7488 = vlaneseq
        %v7489 = vshrl.u32 %v7488, 7
        %v7490 = vsub.s32 %v7487, %v7489
        %v7491 = vrot.slane %v7477, %v7490
        %v7492 = vcombine.low %v7119, %v7131
        %v7493 = vcombine.high %v7119, %v7131
        %v7495 = vunpack.c.l.s4 1983009808
        %v7496 = vunpack.c.0.s8 %v7495
        %v7497 = vlaneseq
        %v7498 = vshrl.u32 %v7497, 7
        %v7499 = vsub.s32 %v7496, %v7498
        %v7500 = vrot.slane %v7492, %v7499
        %v7502 = vunpack.c.l.s4 1983009808
        %v7503 = vunpack.c.0.s8 %v7502
        %v7504 = vlaneseq
        %v7505 = vshrl.u32 %v7504, 7
        %v7506 = vsub.s32 %v7503, %v7505
        %v7507 = vrot.slane %v7493, %v7506
        %v7508 = vcombine.low %v7137, %v7149
        %v7509 = vcombine.high %v7137, %v7149
        %v7511 = vunpack.c.l.s4 1983009808
        %v7512 = vunpack.c.0.s8 %v7511
        %v7513 = vlaneseq
        %v7514 = vshrl.u32 %v7513, 7
        %v7515 = vsub.s32 %v7512, %v7514
        %v7516 = vrot.slane %v7508, %v7515
        %v7518 = vunpack.c.l.s4 1983009808
        %v7519 = vunpack.c.0.s8 %v7518
        %v7520 = vlaneseq
        %v7521 = vshrl.u32 %v7520, 7
        %v7522 = vsub.s32 %v7519, %v7521
        %v7523 = vrot.slane %v7509, %v7522
        %v7524 = vcombine.low %v7143, %v7155
        %v7525 = vcombine.high %v7143, %v7155
        %v7527 = vunpack.c.l.s4 1983009808
        %v7528 = vunpack.c.0.s8 %v7527
        %v7529 = vlaneseq
        %v7530 = vshrl.u32 %v7529, 7
        %v7531 = vsub.s32 %v7528, %v7530
        %v7532 = vrot.slane %v7524, %v7531
        %v7534 = vunpack.c.l.s4 1983009808
        %v7535 = vunpack.c.0.s8 %v7534
        %v7536 = vlaneseq
        %v7537 = vshrl.u32 %v7536, 7
        %v7538 = vsub.s32 %v7535, %v7537
        %v7539 = vrot.slane %v7525, %v7538
        %v7540 = vcombine.low %v7484, %v7500
        %v7541 = vcombine.high %v7484, %v7500
        %v7543 = vunpack.c.l.s4 1934713408
        %v7544 = vunpack.c.0.s8 %v7543
        %v7545 = vlaneseq
        %v7546 = vshrl.u32 %v7545, 7
        %v7547 = vsub.s32 %v7544, %v7546
        %v7548 = vrot.slane %v7540, %v7547
        %v7550 = vunpack.c.l.s4 1934713408
        %v7551 = vunpack.c.0.s8 %v7550
        %v7552 = vlaneseq
        %v7553 = vshrl.u32 %v7552, 7
        %v7554 = vsub.s32 %v7551, %v7553
        %v7555 = vrot.slane %v7541, %v7554
        %v7556 = vcombine.low %v7491, %v7507
        %v7557 = vcombine.high %v7491, %v7507
        %v7559 = vunpack.c.l.s4 1934713408
        %v7560 = vunpack.c.0.s8 %v7559
        %v7561 = vlaneseq
        %v7562 = vshrl.u32 %v7561, 7
        %v7563 = vsub.s32 %v7560, %v7562
        %v7564 = vrot.slane %v7556, %v7563
        %v7566 = vunpack.c.l.s4 1934713408
        %v7567 = vunpack.c.0.s8 %v7566
        %v7568 = vlaneseq
        %v7569 = vshrl.u32 %v7568, 7
        %v7570 = vsub.s32 %v7567, %v7569
        %v7571 = vrot.slane %v7557, %v7570
        %v7572 = vcombine.low %v7516, %v7532
        %v7573 = vcombine.high %v7516, %v7532
        %v7575 = vunpack.c.l.s4 1934713408
        %v7576 = vunpack.c.0.s8 %v7575
        %v7577 = vlaneseq
        %v7578 = vshrl.u32 %v7577, 7
        %v7579 = vsub.s32 %v7576, %v7578
        %v7580 = vrot.slane %v7572, %v7579
        %v7582 = vunpack.c.l.s4 1934713408
        %v7583 = vunpack.c.0.s8 %v7582
        %v7584 = vlaneseq
        %v7585 = vshrl.u32 %v7584, 7
        %v7586 = vsub.s32 %v7583, %v7585
        %v7587 = vrot.slane %v7573, %v7586
        %v7588 = vcombine.low %v7523, %v7539
        %v7589 = vcombine.high %v7523, %v7539
        %v7591 = vunpack.c.l.s4 1934713408
        %v7592 = vunpack.c.0.s8 %v7591
        %v7593 = vlaneseq
        %v7594 = vshrl.u32 %v7593, 7
        %v7595 = vsub.s32 %v7592, %v7594
        %v7596 = vrot.slane %v7588, %v7595
        %v7598 = vunpack.c.l.s4 1934713408
        %v7599 = vunpack.c.0.s8 %v7598
        %v7600 = vlaneseq
        %v7601 = vshrl.u32 %v7600, 7
        %v7602 = vsub.s32 %v7599, %v7601
        %v7603 = vrot.slane %v7589, %v7602
        %v7604 = vcombine.low %v7548, %v7580
        %v7605 = vcombine.high %v7548, %v7580
        %v7606 = vcombine.low %v7555, %v7587
        %v7607 = vcombine.high %v7555, %v7587
        %v7608 = vcombine.low %v7564, %v7596
        %v7609 = vcombine.high %v7564, %v7596
        %v7610 = vcombine.low %v7571, %v7603
        %v7611 = vcombine.high %v7571, %v7603
        %v7612 = vcombine.low %v7161, %v7173
        %v7613 = vcombine.high %v7161, %v7173
        %v7615 = vunpack.c.l.s4 1983009808
        %v7616 = vunpack.c.0.s8 %v7615
        %v7617 = vlaneseq
        %v7618 = vshrl.u32 %v7617, 7
        %v7619 = vsub.s32 %v7616, %v7618
        %v7620 = vrot.slane %v7612, %v7619
        %v7622 = vunpack.c.l.s4 1983009808
        %v7623 = vunpack.c.0.s8 %v7622
        %v7624 = vlaneseq
        %v7625 = vshrl.u32 %v7624, 7
        %v7626 = vsub.s32 %v7623, %v7625
        %v7627 = vrot.slane %v7613, %v7626
        %v7628 = vcombine.low %v7167, %v7179
        %v7629 = vcombine.high %v7167, %v7179
        %v7631 = vunpack.c.l.s4 1983009808
        %v7632 = vunpack.c.0.s8 %v7631
        %v7633 = vlaneseq
        %v7634 = vshrl.u32 %v7633, 7
        %v7635 = vsub.s32 %v7632, %v7634
        %v7636 = vrot.slane %v7628, %v7635
        %v7638 = vunpack.c.l.s4 1983009808
        %v7639 = vunpack.c.0.s8 %v7638
        %v7640 = vlaneseq
        %v7641 = vshrl.u32 %v7640, 7
        %v7642 = vsub.s32 %v7639, %v7641
        %v7643 = vrot.slane %v7629, %v7642
        %v7644 = vcombine.low %v7185, %v7197
        %v7645 = vcombine.high %v7185, %v7197
        %v7647 = vunpack.c.l.s4 1983009808
        %v7648 = vunpack.c.0.s8 %v7647
        %v7649 = vlaneseq
        %v7650 = vshrl.u32 %v7649, 7
        %v7651 = vsub.s32 %v7648, %v7650
        %v7652 = vrot.slane %v7644, %v7651
        %v7654 = vunpack.c.l.s4 1983009808
        %v7655 = vunpack.c.0.s8 %v7654
        %v7656 = vlaneseq
        %v7657 = vshrl.u32 %v7656, 7
        %v7658 = vsub.s32 %v7655, %v7657
        %v7659 = vrot.slane %v7645, %v7658
        %v7660 = vcombine.low %v7191, %v7203
        %v7661 = vcombine.high %v7191, %v7203
        %v7663 = vunpack.c.l.s4 1983009808
        %v7664 = vunpack.c.0.s8 %v7663
        %v7665 = vlaneseq
        %v7666 = vshrl.u32 %v7665, 7
        %v7667 = vsub.s32 %v7664, %v7666
        %v7668 = vrot.slane %v7660, %v7667
        %v7670 = vunpack.c.l.s4 1983009808
        %v7671 = vunpack.c.0.s8 %v7670
        %v7672 = vlaneseq
        %v7673 = vshrl.u32 %v7672, 7
        %v7674 = vsub.s32 %v7671, %v7673
        %v7675 = vrot.slane %v7661, %v7674
        %v7676 = vcombine.low %v7620, %v7636
        %v7677 = vcombine.high %v7620, %v7636
        %v7679 = vunpack.c.l.s4 1934713408
        %v7680 = vunpack.c.0.s8 %v7679
        %v7681 = vlaneseq
        %v7682 = vshrl.u32 %v7681, 7
        %v7683 = vsub.s32 %v7680, %v7682
        %v7684 = vrot.slane %v7676, %v7683
        %v7686 = vunpack.c.l.s4 1934713408
        %v7687 = vunpack.c.0.s8 %v7686
        %v7688 = vlaneseq
        %v7689 = vshrl.u32 %v7688, 7
        %v7690 = vsub.s32 %v7687, %v7689
        %v7691 = vrot.slane %v7677, %v7690
        %v7692 = vcombine.low %v7627, %v7643
        %v7693 = vcombine.high %v7627, %v7643
        %v7695 = vunpack.c.l.s4 1934713408
        %v7696 = vunpack.c.0.s8 %v7695
        %v7697 = vlaneseq
        %v7698 = vshrl.u32 %v7697, 7
        %v7699 = vsub.s32 %v7696, %v7698
        %v7700 = vrot.slane %v7692, %v7699
        %v7702 = vunpack.c.l.s4 1934713408
        %v7703 = vunpack.c.0.s8 %v7702
        %v7704 = vlaneseq
        %v7705 = vshrl.u32 %v7704, 7
        %v7706 = vsub.s32 %v7703, %v7705
        %v7707 = vrot.slane %v7693, %v7706
        %v7708 = vcombine.low %v7652, %v7668
        %v7709 = vcombine.high %v7652, %v7668
        %v7711 = vunpack.c.l.s4 1934713408
        %v7712 = vunpack.c.0.s8 %v7711
        %v7713 = vlaneseq
        %v7714 = vshrl.u32 %v7713, 7
        %v7715 = vsub.s32 %v7712, %v7714
        %v7716 = vrot.slane %v7708, %v7715
        %v7718 = vunpack.c.l.s4 1934713408
        %v7719 = vunpack.c.0.s8 %v7718
        %v7720 = vlaneseq
        %v7721 = vshrl.u32 %v7720, 7
        %v7722 = vsub.s32 %v7719, %v7721
        %v7723 = vrot.slane %v7709, %v7722
        %v7724 = vcombine.low %v7659, %v7675
        %v7725 = vcombine.high %v7659, %v7675
        %v7727 = vunpack.c.l.s4 1934713408
        %v7728 = vunpack.c.0.s8 %v7727
        %v7729 = vlaneseq
        %v7730 = vshrl.u32 %v7729, 7
        %v7731 = vsub.s32 %v7728, %v7730
        %v7732 = vrot.slane %v7724, %v7731
        %v7734 = vunpack.c.l.s4 1934713408
        %v7735 = vunpack.c.0.s8 %v7734
        %v7736 = vlaneseq
        %v7737 = vshrl.u32 %v7736, 7
        %v7738 = vsub.s32 %v7735, %v7737
        %v7739 = vrot.slane %v7725, %v7738
        %v7740 = vcombine.low %v7684, %v7716
        %v7741 = vcombine.high %v7684, %v7716
        %v7742 = vcombine.low %v7691, %v7723
        %v7743 = vcombine.high %v7691, %v7723
        %v7744 = vcombine.low %v7700, %v7732
        %v7745 = vcombine.high %v7700, %v7732
        %v7746 = vcombine.low %v7707, %v7739
        %v7747 = vcombine.high %v7707, %v7739
        %v7748 = vadd.f32 %v7014, %v7332
        %v7749 = vadd.f32 %v7017, %v7468
        %v7750 = vadd.f32 %v7020, %v7333
        %v7751 = vadd.f32 %v7023, %v7469
        %v7752 = vadd.f32 %v7026, %v7334
        %v7753 = vadd.f32 %v7029, %v7470
        %v7754 = vadd.f32 %v7032, %v7335
        %v7755 = vadd.f32 %v7035, %v7471
        %v7756 = vadd.f32 %v7038, %v7336
        %v7757 = vadd.f32 %v7041, %v7472
        %v7758 = vadd.f32 %v7044, %v7337
        %v7759 = vadd.f32 %v7047, %v7473
        %v7760 = vadd.f32 %v7050, %v7338
        %v7761 = vadd.f32 %v7053, %v7474
        %v7762 = vadd.f32 %v7056, %v7339
        %v7763 = vadd.f32 %v7059, %v7475
        %v7764 = vadd.f32 %v7062, %v7604
        %v7765 = vadd.f32 %v7065, %v7740
        %v7766 = vadd.f32 %v7068, %v7605
        %v7767 = vadd.f32 %v7071, %v7741
        %v7768 = vadd.f32 %v7074, %v7606
        %v7769 = vadd.f32 %v7077, %v7742
        %v7770 = vadd.f32 %v7080, %v7607
        %v7771 = vadd.f32 %v7083, %v7743
        %v7772 = vadd.f32 %v7086, %v7608
        %v7773 = vadd.f32 %v7089, %v7744
        %v7774 = vadd.f32 %v7092, %v7609
        %v7775 = vadd.f32 %v7095, %v7745
        %v7776 = vadd.f32 %v7098, %v7610
        %v7777 = vadd.f32 %v7101, %v7746
        %v7778 = vadd.f32 %v7104, %v7611
        %v7779 = vadd.f32 %v7107, %v7747
        %v7781 = vsel %vm2026, %v6949, 0
        %v7784 = vsel %vm2026, %v6951, 0
        %7786 = vmatprep.subr.mxu0 0.0
        %7787 = vmatpush1.msra.mxu0 %v3467
        %7788 = vmatprep.subr.mxu0 0.0
        %7789 = vmatpush1.msra.mxu0 %v3603
        %7790 = vmatprep.subr.mxu0 0.0
        %7791 = vmatpush1.msra.mxu0 0.0
        %7792 = vmatprep.subr.mxu0 0.0
        %7793 = vmatpush1.msra.mxu0 0.0
        %7794 = vmatprep.subr.mxu0 0.0
        %7795 = vmatpush1.msra.mxu0 0.0
        %7796 = vmatprep.subr.mxu0 0.0
        %7797 = vmatpush1.msra.mxu0 0.0
        %7798 = vmatprep.subr.mxu0 0.0
        %7799 = vmatpush1.msra.mxu0 0.0
        %7800 = vmatprep.subr.mxu0 0.0
        %7801 = vmatpush1.msra.mxu0 0.0
        %7802 = vmatprep.subr.mxu0 0.0
        %7803 = vmatpush1.msra.mxu0 0.0
        %7804 = vmatprep.subr.mxu0 0.0
        %7805 = vmatpush1.msra.mxu0 0.0
        %7806 = vmatprep.subr.mxu0 0.0
        %7807 = vmatpush1.msra.mxu0 0.0
        %7808 = vmatprep.subr.mxu0 0.0
        %7809 = vmatpush1.msra.mxu0 0.0
        %7810 = vmatprep.subr.mxu0 0.0
        %7811 = vmatpush1.msra.mxu0 0.0
        %7812 = vmatprep.subr.mxu0 0.0
        %7813 = vmatpush1.msra.mxu0 0.0
        %7814 = vmatprep.subr.mxu0 0.0
        %7815 = vmatpush1.msra.mxu0 0.0
        %7816 = vmatprep.subr.mxu0 0.0
        %7817 = vmatpush1.msra.mxu0 0.0
        %7818 = vmatprep.subr.mxu0 0.0
        %7819 = vmatpush1.msra.mxu0 0.0
        %7820 = vmatprep.subr.mxu0 0.0
        %7821 = vmatpush1.msra.mxu0 0.0
        %7822 = vmatprep.subr.mxu0 0.0
        %7823 = vmatpush1.msra.mxu0 0.0
        %7824 = vmatprep.subr.mxu0 0.0
        %7825 = vmatpush1.msra.mxu0 0.0
        %7826 = vmatprep.subr.mxu0 0.0
        %7827 = vmatpush1.msra.mxu0 0.0
        %7828 = vmatprep.subr.mxu0 0.0
        %7829 = vmatpush1.msra.mxu0 0.0
        %7830 = vmatprep.subr.mxu0 0.0
        %7831 = vmatpush1.msra.mxu0 0.0
        %7832 = vmatprep.subr.mxu0 0.0
        %7833 = vmatpush1.msra.mxu0 0.0
        %7834 = vmatprep.subr.mxu0 0.0
        %7835 = vmatpush1.msra.mxu0 0.0
        %7836 = vmatprep.subr.mxu0 0.0
        %7837 = vmatpush1.msra.mxu0 0.0
        %7838 = vmatprep.subr.mxu0 0.0
        %7839 = vmatpush1.msra.mxu0 0.0
        %7840 = vmatprep.subr.mxu0 0.0
        %7841 = vmatpush1.msra.mxu0 0.0
        %7842 = vmatprep.subr.mxu0 0.0
        %7843 = vmatpush1.msra.mxu0 0.0
        %7844 = vmatprep.subr.mxu0 0.0
        %7845 = vmatpush1.msra.mxu0 0.0
        %7846 = vmatprep.subr.mxu0 0.0
        %7847 = vmatpush1.msra.mxu0 0.0
        %7848 = vmatprep.subr.mxu0 0.0
        %7849 = vmatpush1.msra.mxu0 0.0
        %7850 = vmatprep.mubr.f32.mxu0 0.0
        %7851 = vmatmul.mubr.f32.gmra.mrb[0].mxu0 %v7781
        %v7852 = vpop.f32.mrb[0].mxu0
        %v7853 = vadd.f32 0.0, %v7852
        %v7854 = vpop.f32.mrb[0].mxu0
        %7855 = vmatprep.mubr.f32.mxu0 0.0
        %7856 = vmatmul.mubr.f32.gmra.mrb[0].mxu0 %v7784
        %v7857 = vpop.f32.mrb[0].mxu0
        %v7858 = vadd.f32 0.0, %v7857
        %v7859 = vpop.f32.mrb[0].mxu0
        %7860 = vdwg.mxu0
        %v7862 = vsel %vm2026, %v6953, 0
        %v7865 = vsel %vm2026, %v6955, 0
        %7867 = vmatprep.subr.mxu0 0.0
        %7868 = vmatpush1.msra.mxu0 %v3468
        %7869 = vmatprep.subr.mxu0 0.0
        %7870 = vmatpush1.msra.mxu0 %v3604
        %7871 = vmatprep.subr.mxu0 0.0
        %7872 = vmatpush1.msra.mxu0 0.0
        %7873 = vmatprep.subr.mxu0 0.0
        %7874 = vmatpush1.msra.mxu0 0.0
        %7875 = vmatprep.subr.mxu0 0.0
        %7876 = vmatpush1.msra.mxu0 0.0
        %7877 = vmatprep.subr.mxu0 0.0
        %7878 = vmatpush1.msra.mxu0 0.0
        %7879 = vmatprep.subr.mxu0 0.0
        %7880 = vmatpush1.msra.mxu0 0.0
        %7881 = vmatprep.subr.mxu0 0.0
        %7882 = vmatpush1.msra.mxu0 0.0
        %7883 = vmatprep.subr.mxu0 0.0
        %7884 = vmatpush1.msra.mxu0 0.0
        %7885 = vmatprep.subr.mxu0 0.0
        %7886 = vmatpush1.msra.mxu0 0.0
        %7887 = vmatprep.subr.mxu0 0.0
        %7888 = vmatpush1.msra.mxu0 0.0
        %7889 = vmatprep.subr.mxu0 0.0
        %7890 = vmatpush1.msra.mxu0 0.0
        %7891 = vmatprep.subr.mxu0 0.0
        %7892 = vmatpush1.msra.mxu0 0.0
        %7893 = vmatprep.subr.mxu0 0.0
        %7894 = vmatpush1.msra.mxu0 0.0
        %7895 = vmatprep.subr.mxu0 0.0
        %7896 = vmatpush1.msra.mxu0 0.0
        %7897 = vmatprep.subr.mxu0 0.0
        %7898 = vmatpush1.msra.mxu0 0.0
        %7899 = vmatprep.subr.mxu0 0.0
        %7900 = vmatpush1.msra.mxu0 0.0
        %7901 = vmatprep.subr.mxu0 0.0
        %7902 = vmatpush1.msra.mxu0 0.0
        %7903 = vmatprep.subr.mxu0 0.0
        %7904 = vmatpush1.msra.mxu0 0.0
        %7905 = vmatprep.subr.mxu0 0.0
        %7906 = vmatpush1.msra.mxu0 0.0
        %7907 = vmatprep.subr.mxu0 0.0
        %7908 = vmatpush1.msra.mxu0 0.0
        %7909 = vmatprep.subr.mxu0 0.0
        %7910 = vmatpush1.msra.mxu0 0.0
        %7911 = vmatprep.subr.mxu0 0.0
        %7912 = vmatpush1.msra.mxu0 0.0
        %7913 = vmatprep.subr.mxu0 0.0
        %7914 = vmatpush1.msra.mxu0 0.0
        %7915 = vmatprep.subr.mxu0 0.0
        %7916 = vmatpush1.msra.mxu0 0.0
        %7917 = vmatprep.subr.mxu0 0.0
        %7918 = vmatpush1.msra.mxu0 0.0
        %7919 = vmatprep.subr.mxu0 0.0
        %7920 = vmatpush1.msra.mxu0 0.0
        %7921 = vmatprep.subr.mxu0 0.0
        %7922 = vmatpush1.msra.mxu0 0.0
        %7923 = vmatprep.subr.mxu0 0.0
        %7924 = vmatpush1.msra.mxu0 0.0
        %7925 = vmatprep.subr.mxu0 0.0
        %7926 = vmatpush1.msra.mxu0 0.0
        %7927 = vmatprep.subr.mxu0 0.0
        %7928 = vmatpush1.msra.mxu0 0.0
        %7929 = vmatprep.subr.mxu0 0.0
        %7930 = vmatpush1.msra.mxu0 0.0
        %7931 = vmatprep.mubr.f32.mxu0 0.0
        %7932 = vmatmul.mubr.f32.gmra.mrb[0].mxu0 %v7862
        %v7933 = vpop.f32.mrb[0].mxu0
        %v7934 = vadd.f32 0.0, %v7933
        %v7935 = vpop.f32.mrb[0].mxu0
        %7936 = vmatprep.mubr.f32.mxu0 0.0
        %7937 = vmatmul.mubr.f32.gmra.mrb[0].mxu0 %v7865
        %v7938 = vpop.f32.mrb[0].mxu0
        %v7939 = vadd.f32 0.0, %v7938
        %v7940 = vpop.f32.mrb[0].mxu0
        %7941 = vdwg.mxu0
        %v7943 = vsel %vm2026, %v6957, 0
        %v7946 = vsel %vm2026, %v6959, 0
        %7948 = vmatprep.subr.mxu0 0.0
        %7949 = vmatpush1.msra.mxu0 %v3469
        %7950 = vmatprep.subr.mxu0 0.0
        %7951 = vmatpush1.msra.mxu0 %v3605
        %7952 = vmatprep.subr.mxu0 0.0
        %7953 = vmatpush1.msra.mxu0 0.0
        %7954 = vmatprep.subr.mxu0 0.0
        %7955 = vmatpush1.msra.mxu0 0.0
        %7956 = vmatprep.subr.mxu0 0.0
        %7957 = vmatpush1.msra.mxu0 0.0
        %7958 = vmatprep.subr.mxu0 0.0
        %7959 = vmatpush1.msra.mxu0 0.0
        %7960 = vmatprep.subr.mxu0 0.0
        %7961 = vmatpush1.msra.mxu0 0.0
        %7962 = vmatprep.subr.mxu0 0.0
        %7963 = vmatpush1.msra.mxu0 0.0
        %7964 = vmatprep.subr.mxu0 0.0
        %7965 = vmatpush1.msra.mxu0 0.0
        %7966 = vmatprep.subr.mxu0 0.0
        %7967 = vmatpush1.msra.mxu0 0.0
        %7968 = vmatprep.subr.mxu0 0.0
        %7969 = vmatpush1.msra.mxu0 0.0
        %7970 = vmatprep.subr.mxu0 0.0
        %7971 = vmatpush1.msra.mxu0 0.0
        %7972 = vmatprep.subr.mxu0 0.0
        %7973 = vmatpush1.msra.mxu0 0.0
        %7974 = vmatprep.subr.mxu0 0.0
        %7975 = vmatpush1.msra.mxu0 0.0
        %7976 = vmatprep.subr.mxu0 0.0
        %7977 = vmatpush1.msra.mxu0 0.0
        %7978 = vmatprep.subr.mxu0 0.0
        %7979 = vmatpush1.msra.mxu0 0.0
        %7980 = vmatprep.subr.mxu0 0.0
        %7981 = vmatpush1.msra.mxu0 0.0
        %7982 = vmatprep.subr.mxu0 0.0
        %7983 = vmatpush1.msra.mxu0 0.0
        %7984 = vmatprep.subr.mxu0 0.0
        %7985 = vmatpush1.msra.mxu0 0.0
        %7986 = vmatprep.subr.mxu0 0.0
        %7987 = vmatpush1.msra.mxu0 0.0
        %7988 = vmatprep.subr.mxu0 0.0
        %7989 = vmatpush1.msra.mxu0 0.0
        %7990 = vmatprep.subr.mxu0 0.0
        %7991 = vmatpush1.msra.mxu0 0.0
        %7992 = vmatprep.subr.mxu0 0.0
        %7993 = vmatpush1.msra.mxu0 0.0
        %7994 = vmatprep.subr.mxu0 0.0
        %7995 = vmatpush1.msra.mxu0 0.0
        %7996 = vmatprep.subr.mxu0 0.0
        %7997 = vmatpush1.msra.mxu0 0.0
        %7998 = vmatprep.subr.mxu0 0.0
        %7999 = vmatpush1.msra.mxu0 0.0
        %8000 = vmatprep.subr.mxu0 0.0
        %8001 = vmatpush1.msra.mxu0 0.0
        %8002 = vmatprep.subr.mxu0 0.0
        %8003 = vmatpush1.msra.mxu0 0.0
        %8004 = vmatprep.subr.mxu0 0.0
        %8005 = vmatpush1.msra.mxu0 0.0
        %8006 = vmatprep.subr.mxu0 0.0
        %8007 = vmatpush1.msra.mxu0 0.0
        %8008 = vmatprep.subr.mxu0 0.0
        %8009 = vmatpush1.msra.mxu0 0.0
        %8010 = vmatprep.subr.mxu0 0.0
        %8011 = vmatpush1.msra.mxu0 0.0
        %8012 = vmatprep.mubr.f32.mxu0 0.0
        %8013 = vmatmul.mubr.f32.gmra.mrb[0].mxu0 %v7943
        %v8014 = vpop.f32.mrb[0].mxu0
        %v8015 = vadd.f32 0.0, %v8014
        %v8016 = vpop.f32.mrb[0].mxu0
        %8017 = vmatprep.mubr.f32.mxu0 0.0
        %8018 = vmatmul.mubr.f32.gmra.mrb[0].mxu0 %v7946
        %v8019 = vpop.f32.mrb[0].mxu0
        %v8020 = vadd.f32 0.0, %v8019
        %v8021 = vpop.f32.mrb[0].mxu0
        %8022 = vdwg.mxu0
        %v8024 = vsel %vm2026, %v6961, 0
        %v8027 = vsel %vm2026, %v6963, 0
        %8029 = vmatprep.subr.mxu0 0.0
        %8030 = vmatpush1.msra.mxu0 %v3470
        %8031 = vmatprep.subr.mxu0 0.0
        %8032 = vmatpush1.msra.mxu0 %v3606
        %8033 = vmatprep.subr.mxu0 0.0
        %8034 = vmatpush1.msra.mxu0 0.0
        %8035 = vmatprep.subr.mxu0 0.0
        %8036 = vmatpush1.msra.mxu0 0.0
        %8037 = vmatprep.subr.mxu0 0.0
        %8038 = vmatpush1.msra.mxu0 0.0
        %8039 = vmatprep.subr.mxu0 0.0
        %8040 = vmatpush1.msra.mxu0 0.0
        %8041 = vmatprep.subr.mxu0 0.0
        %8042 = vmatpush1.msra.mxu0 0.0
        %8043 = vmatprep.subr.mxu0 0.0
        %8044 = vmatpush1.msra.mxu0 0.0
        %8045 = vmatprep.subr.mxu0 0.0
        %8046 = vmatpush1.msra.mxu0 0.0
        %8047 = vmatprep.subr.mxu0 0.0
        %8048 = vmatpush1.msra.mxu0 0.0
        %8049 = vmatprep.subr.mxu0 0.0
        %8050 = vmatpush1.msra.mxu0 0.0
        %8051 = vmatprep.subr.mxu0 0.0
        %8052 = vmatpush1.msra.mxu0 0.0
        %8053 = vmatprep.subr.mxu0 0.0
        %8054 = vmatpush1.msra.mxu0 0.0
        %8055 = vmatprep.subr.mxu0 0.0
        %8056 = vmatpush1.msra.mxu0 0.0
        %8057 = vmatprep.subr.mxu0 0.0
        %8058 = vmatpush1.msra.mxu0 0.0
        %8059 = vmatprep.subr.mxu0 0.0
        %8060 = vmatpush1.msra.mxu0 0.0
        %8061 = vmatprep.subr.mxu0 0.0
        %8062 = vmatpush1.msra.mxu0 0.0
        %8063 = vmatprep.subr.mxu0 0.0
        %8064 = vmatpush1.msra.mxu0 0.0
        %8065 = vmatprep.subr.mxu0 0.0
        %8066 = vmatpush1.msra.mxu0 0.0
        %8067 = vmatprep.subr.mxu0 0.0
        %8068 = vmatpush1.msra.mxu0 0.0
        %8069 = vmatprep.subr.mxu0 0.0
        %8070 = vmatpush1.msra.mxu0 0.0
        %8071 = vmatprep.subr.mxu0 0.0
        %8072 = vmatpush1.msra.mxu0 0.0
        %8073 = vmatprep.subr.mxu0 0.0
        %8074 = vmatpush1.msra.mxu0 0.0
        %8075 = vmatprep.subr.mxu0 0.0
        %8076 = vmatpush1.msra.mxu0 0.0
        %8077 = vmatprep.subr.mxu0 0.0
        %8078 = vmatpush1.msra.mxu0 0.0
        %8079 = vmatprep.subr.mxu0 0.0
        %8080 = vmatpush1.msra.mxu0 0.0
        %8081 = vmatprep.subr.mxu0 0.0
        %8082 = vmatpush1.msra.mxu0 0.0
        %8083 = vmatprep.subr.mxu0 0.0
        %8084 = vmatpush1.msra.mxu0 0.0
        %8085 = vmatprep.subr.mxu0 0.0
        %8086 = vmatpush1.msra.mxu0 0.0
        %8087 = vmatprep.subr.mxu0 0.0
        %8088 = vmatpush1.msra.mxu0 0.0
        %8089 = vmatprep.subr.mxu0 0.0
        %8090 = vmatpush1.msra.mxu0 0.0
        %8091 = vmatprep.subr.mxu0 0.0
        %8092 = vmatpush1.msra.mxu0 0.0
        %8093 = vmatprep.mubr.f32.mxu0 0.0
        %8094 = vmatmul.mubr.f32.gmra.mrb[0].mxu0 %v8024
        %v8095 = vpop.f32.mrb[0].mxu0
        %v8096 = vadd.f32 0.0, %v8095
        %v8097 = vpop.f32.mrb[0].mxu0
        %8098 = vmatprep.mubr.f32.mxu0 0.0
        %8099 = vmatmul.mubr.f32.gmra.mrb[0].mxu0 %v8027
        %v8100 = vpop.f32.mrb[0].mxu0
        %v8101 = vadd.f32 0.0, %v8100
        %v8102 = vpop.f32.mrb[0].mxu0
        %8103 = vdwg.mxu0
        %v8105 = vsel %vm2026, %v6965, 0
        %v8108 = vsel %vm2026, %v6967, 0
        %8110 = vmatprep.subr.mxu0 0.0
        %8111 = vmatpush1.msra.mxu0 %v3471
        %8112 = vmatprep.subr.mxu0 0.0
        %8113 = vmatpush1.msra.mxu0 %v3607
        %8114 = vmatprep.subr.mxu0 0.0
        %8115 = vmatpush1.msra.mxu0 0.0
        %8116 = vmatprep.subr.mxu0 0.0
        %8117 = vmatpush1.msra.mxu0 0.0
        %8118 = vmatprep.subr.mxu0 0.0
        %8119 = vmatpush1.msra.mxu0 0.0
        %8120 = vmatprep.subr.mxu0 0.0
        %8121 = vmatpush1.msra.mxu0 0.0
        %8122 = vmatprep.subr.mxu0 0.0
        %8123 = vmatpush1.msra.mxu0 0.0
        %8124 = vmatprep.subr.mxu0 0.0
        %8125 = vmatpush1.msra.mxu0 0.0
        %8126 = vmatprep.subr.mxu0 0.0
        %8127 = vmatpush1.msra.mxu0 0.0
        %8128 = vmatprep.subr.mxu0 0.0
        %8129 = vmatpush1.msra.mxu0 0.0
        %8130 = vmatprep.subr.mxu0 0.0
        %8131 = vmatpush1.msra.mxu0 0.0
        %8132 = vmatprep.subr.mxu0 0.0
        %8133 = vmatpush1.msra.mxu0 0.0
        %8134 = vmatprep.subr.mxu0 0.0
        %8135 = vmatpush1.msra.mxu0 0.0
        %8136 = vmatprep.subr.mxu0 0.0
        %8137 = vmatpush1.msra.mxu0 0.0
        %8138 = vmatprep.subr.mxu0 0.0
        %8139 = vmatpush1.msra.mxu0 0.0
        %8140 = vmatprep.subr.mxu0 0.0
        %8141 = vmatpush1.msra.mxu0 0.0
        %8142 = vmatprep.subr.mxu0 0.0
        %8143 = vmatpush1.msra.mxu0 0.0
        %8144 = vmatprep.subr.mxu0 0.0
        %8145 = vmatpush1.msra.mxu0 0.0
        %8146 = vmatprep.subr.mxu0 0.0
        %8147 = vmatpush1.msra.mxu0 0.0
        %8148 = vmatprep.subr.mxu0 0.0
        %8149 = vmatpush1.msra.mxu0 0.0
        %8150 = vmatprep.subr.mxu0 0.0
        %8151 = vmatpush1.msra.mxu0 0.0
        %8152 = vmatprep.subr.mxu0 0.0
        %8153 = vmatpush1.msra.mxu0 0.0
        %8154 = vmatprep.subr.mxu0 0.0
        %8155 = vmatpush1.msra.mxu0 0.0
        %8156 = vmatprep.subr.mxu0 0.0
        %8157 = vmatpush1.msra.mxu0 0.0
        %8158 = vmatprep.subr.mxu0 0.0
        %8159 = vmatpush1.msra.mxu0 0.0
        %8160 = vmatprep.subr.mxu0 0.0
        %8161 = vmatpush1.msra.mxu0 0.0
        %8162 = vmatprep.subr.mxu0 0.0
        %8163 = vmatpush1.msra.mxu0 0.0
        %8164 = vmatprep.subr.mxu0 0.0
        %8165 = vmatpush1.msra.mxu0 0.0
        %8166 = vmatprep.subr.mxu0 0.0
        %8167 = vmatpush1.msra.mxu0 0.0
        %8168 = vmatprep.subr.mxu0 0.0
        %8169 = vmatpush1.msra.mxu0 0.0
        %8170 = vmatprep.subr.mxu0 0.0
        %8171 = vmatpush1.msra.mxu0 0.0
        %8172 = vmatprep.subr.mxu0 0.0
        %8173 = vmatpush1.msra.mxu0 0.0
        %8174 = vmatprep.mubr.f32.mxu0 0.0
        %8175 = vmatmul.mubr.f32.gmra.mrb[0].mxu0 %v8105
        %v8176 = vpop.f32.mrb[0].mxu0
        %v8177 = vadd.f32 0.0, %v8176
        %v8178 = vpop.f32.mrb[0].mxu0
        %8179 = vmatprep.mubr.f32.mxu0 0.0
        %8180 = vmatmul.mubr.f32.gmra.mrb[0].mxu0 %v8108
        %v8181 = vpop.f32.mrb[0].mxu0
        %v8182 = vadd.f32 0.0, %v8181
        %v8183 = vpop.f32.mrb[0].mxu0
        %8184 = vdwg.mxu0
        %v8186 = vsel %vm2026, %v6969, 0
        %v8189 = vsel %vm2026, %v6971, 0
        %8191 = vmatprep.subr.mxu0 0.0
        %8192 = vmatpush1.msra.mxu0 %v3472
        %8193 = vmatprep.subr.mxu0 0.0
        %8194 = vmatpush1.msra.mxu0 %v3608
        %8195 = vmatprep.subr.mxu0 0.0
        %8196 = vmatpush1.msra.mxu0 0.0
        %8197 = vmatprep.subr.mxu0 0.0
        %8198 = vmatpush1.msra.mxu0 0.0
        %8199 = vmatprep.subr.mxu0 0.0
        %8200 = vmatpush1.msra.mxu0 0.0
        %8201 = vmatprep.subr.mxu0 0.0
        %8202 = vmatpush1.msra.mxu0 0.0
        %8203 = vmatprep.subr.mxu0 0.0
        %8204 = vmatpush1.msra.mxu0 0.0
        %8205 = vmatprep.subr.mxu0 0.0
        %8206 = vmatpush1.msra.mxu0 0.0
        %8207 = vmatprep.subr.mxu0 0.0
        %8208 = vmatpush1.msra.mxu0 0.0
        %8209 = vmatprep.subr.mxu0 0.0
        %8210 = vmatpush1.msra.mxu0 0.0
        %8211 = vmatprep.subr.mxu0 0.0
        %8212 = vmatpush1.msra.mxu0 0.0
        %8213 = vmatprep.subr.mxu0 0.0
        %8214 = vmatpush1.msra.mxu0 0.0
        %8215 = vmatprep.subr.mxu0 0.0
        %8216 = vmatpush1.msra.mxu0 0.0
        %8217 = vmatprep.subr.mxu0 0.0
        %8218 = vmatpush1.msra.mxu0 0.0
        %8219 = vmatprep.subr.mxu0 0.0
        %8220 = vmatpush1.msra.mxu0 0.0
        %8221 = vmatprep.subr.mxu0 0.0
        %8222 = vmatpush1.msra.mxu0 0.0
        %8223 = vmatprep.subr.mxu0 0.0
        %8224 = vmatpush1.msra.mxu0 0.0
        %8225 = vmatprep.subr.mxu0 0.0
        %8226 = vmatpush1.msra.mxu0 0.0
        %8227 = vmatprep.subr.mxu0 0.0
        %8228 = vmatpush1.msra.mxu0 0.0
        %8229 = vmatprep.subr.mxu0 0.0
        %8230 = vmatpush1.msra.mxu0 0.0
        %8231 = vmatprep.subr.mxu0 0.0
        %8232 = vmatpush1.msra.mxu0 0.0
        %8233 = vmatprep.subr.mxu0 0.0
        %8234 = vmatpush1.msra.mxu0 0.0
        %8235 = vmatprep.subr.mxu0 0.0
        %8236 = vmatpush1.msra.mxu0 0.0
        %8237 = vmatprep.subr.mxu0 0.0
        %8238 = vmatpush1.msra.mxu0 0.0
        %8239 = vmatprep.subr.mxu0 0.0
        %8240 = vmatpush1.msra.mxu0 0.0
        %8241 = vmatprep.subr.mxu0 0.0
        %8242 = vmatpush1.msra.mxu0 0.0
        %8243 = vmatprep.subr.mxu0 0.0
        %8244 = vmatpush1.msra.mxu0 0.0
        %8245 = vmatprep.subr.mxu0 0.0
        %8246 = vmatpush1.msra.mxu0 0.0
        %8247 = vmatprep.subr.mxu0 0.0
        %8248 = vmatpush1.msra.mxu0 0.0
        %8249 = vmatprep.subr.mxu0 0.0
        %8250 = vmatpush1.msra.mxu0 0.0
        %8251 = vmatprep.subr.mxu0 0.0
        %8252 = vmatpush1.msra.mxu0 0.0
        %8253 = vmatprep.subr.mxu0 0.0
        %8254 = vmatpush1.msra.mxu0 0.0
        %8255 = vmatprep.mubr.f32.mxu0 0.0
        %8256 = vmatmul.mubr.f32.gmra.mrb[0].mxu0 %v8186
        %v8257 = vpop.f32.mrb[0].mxu0
        %v8258 = vadd.f32 0.0, %v8257
        %v8259 = vpop.f32.mrb[0].mxu0
        %8260 = vmatprep.mubr.f32.mxu0 0.0
        %8261 = vmatmul.mubr.f32.gmra.mrb[0].mxu0 %v8189
        %v8262 = vpop.f32.mrb[0].mxu0
        %v8263 = vadd.f32 0.0, %v8262
        %v8264 = vpop.f32.mrb[0].mxu0
        %8265 = vdwg.mxu0
        %v8267 = vsel %vm2026, %v6973, 0
        %v8270 = vsel %vm2026, %v6975, 0
        %8272 = vmatprep.subr.mxu0 0.0
        %8273 = vmatpush1.msra.mxu0 %v3473
        %8274 = vmatprep.subr.mxu0 0.0
        %8275 = vmatpush1.msra.mxu0 %v3609
        %8276 = vmatprep.subr.mxu0 0.0
        %8277 = vmatpush1.msra.mxu0 0.0
        %8278 = vmatprep.subr.mxu0 0.0
        %8279 = vmatpush1.msra.mxu0 0.0
        %8280 = vmatprep.subr.mxu0 0.0
        %8281 = vmatpush1.msra.mxu0 0.0
        %8282 = vmatprep.subr.mxu0 0.0
        %8283 = vmatpush1.msra.mxu0 0.0
        %8284 = vmatprep.subr.mxu0 0.0
        %8285 = vmatpush1.msra.mxu0 0.0
        %8286 = vmatprep.subr.mxu0 0.0
        %8287 = vmatpush1.msra.mxu0 0.0
        %8288 = vmatprep.subr.mxu0 0.0
        %8289 = vmatpush1.msra.mxu0 0.0
        %8290 = vmatprep.subr.mxu0 0.0
        %8291 = vmatpush1.msra.mxu0 0.0
        %8292 = vmatprep.subr.mxu0 0.0
        %8293 = vmatpush1.msra.mxu0 0.0
        %8294 = vmatprep.subr.mxu0 0.0
        %8295 = vmatpush1.msra.mxu0 0.0
        %8296 = vmatprep.subr.mxu0 0.0
        %8297 = vmatpush1.msra.mxu0 0.0
        %8298 = vmatprep.subr.mxu0 0.0
        %8299 = vmatpush1.msra.mxu0 0.0
        %8300 = vmatprep.subr.mxu0 0.0
        %8301 = vmatpush1.msra.mxu0 0.0
        %8302 = vmatprep.subr.mxu0 0.0
        %8303 = vmatpush1.msra.mxu0 0.0
        %8304 = vmatprep.subr.mxu0 0.0
        %8305 = vmatpush1.msra.mxu0 0.0
        %8306 = vmatprep.subr.mxu0 0.0
        %8307 = vmatpush1.msra.mxu0 0.0
        %8308 = vmatprep.subr.mxu0 0.0
        %8309 = vmatpush1.msra.mxu0 0.0
        %8310 = vmatprep.subr.mxu0 0.0
        %8311 = vmatpush1.msra.mxu0 0.0
        %8312 = vmatprep.subr.mxu0 0.0
        %8313 = vmatpush1.msra.mxu0 0.0
        %8314 = vmatprep.subr.mxu0 0.0
        %8315 = vmatpush1.msra.mxu0 0.0
        %8316 = vmatprep.subr.mxu0 0.0
        %8317 = vmatpush1.msra.mxu0 0.0
        %8318 = vmatprep.subr.mxu0 0.0
        %8319 = vmatpush1.msra.mxu0 0.0
        %8320 = vmatprep.subr.mxu0 0.0
        %8321 = vmatpush1.msra.mxu0 0.0
        %8322 = vmatprep.subr.mxu0 0.0
        %8323 = vmatpush1.msra.mxu0 0.0
        %8324 = vmatprep.subr.mxu0 0.0
        %8325 = vmatpush1.msra.mxu0 0.0
        %8326 = vmatprep.subr.mxu0 0.0
        %8327 = vmatpush1.msra.mxu0 0.0
        %8328 = vmatprep.subr.mxu0 0.0
        %8329 = vmatpush1.msra.mxu0 0.0
        %8330 = vmatprep.subr.mxu0 0.0
        %8331 = vmatpush1.msra.mxu0 0.0
        %8332 = vmatprep.subr.mxu0 0.0
        %8333 = vmatpush1.msra.mxu0 0.0
        %8334 = vmatprep.subr.mxu0 0.0
        %8335 = vmatpush1.msra.mxu0 0.0
        %8336 = vmatprep.mubr.f32.mxu0 0.0
        %8337 = vmatmul.mubr.f32.gmra.mrb[0].mxu0 %v8267
        %v8338 = vpop.f32.mrb[0].mxu0
        %v8339 = vadd.f32 0.0, %v8338
        %v8340 = vpop.f32.mrb[0].mxu0
        %8341 = vmatprep.mubr.f32.mxu0 0.0
        %8342 = vmatmul.mubr.f32.gmra.mrb[0].mxu0 %v8270
        %v8343 = vpop.f32.mrb[0].mxu0
        %v8344 = vadd.f32 0.0, %v8343
        %v8345 = vpop.f32.mrb[0].mxu0
        %8346 = vdwg.mxu0
        %v8348 = vsel %vm2026, %v6977, 0
        %v8351 = vsel %vm2026, %v6979, 0
        %8353 = vmatprep.subr.mxu0 0.0
        %8354 = vmatpush1.msra.mxu0 %v3474
        %8355 = vmatprep.subr.mxu0 0.0
        %8356 = vmatpush1.msra.mxu0 %v3610
        %8357 = vmatprep.subr.mxu0 0.0
        %8358 = vmatpush1.msra.mxu0 0.0
        %8359 = vmatprep.subr.mxu0 0.0
        %8360 = vmatpush1.msra.mxu0 0.0
        %8361 = vmatprep.subr.mxu0 0.0
        %8362 = vmatpush1.msra.mxu0 0.0
        %8363 = vmatprep.subr.mxu0 0.0
        %8364 = vmatpush1.msra.mxu0 0.0
        %8365 = vmatprep.subr.mxu0 0.0
        %8366 = vmatpush1.msra.mxu0 0.0
        %8367 = vmatprep.subr.mxu0 0.0
        %8368 = vmatpush1.msra.mxu0 0.0
        %8369 = vmatprep.subr.mxu0 0.0
        %8370 = vmatpush1.msra.mxu0 0.0
        %8371 = vmatprep.subr.mxu0 0.0
        %8372 = vmatpush1.msra.mxu0 0.0
        %8373 = vmatprep.subr.mxu0 0.0
        %8374 = vmatpush1.msra.mxu0 0.0
        %8375 = vmatprep.subr.mxu0 0.0
        %8376 = vmatpush1.msra.mxu0 0.0
        %8377 = vmatprep.subr.mxu0 0.0
        %8378 = vmatpush1.msra.mxu0 0.0
        %8379 = vmatprep.subr.mxu0 0.0
        %8380 = vmatpush1.msra.mxu0 0.0
        %8381 = vmatprep.subr.mxu0 0.0
        %8382 = vmatpush1.msra.mxu0 0.0
        %8383 = vmatprep.subr.mxu0 0.0
        %8384 = vmatpush1.msra.mxu0 0.0
        %8385 = vmatprep.subr.mxu0 0.0
        %8386 = vmatpush1.msra.mxu0 0.0
        %8387 = vmatprep.subr.mxu0 0.0
        %8388 = vmatpush1.msra.mxu0 0.0
        %8389 = vmatprep.subr.mxu0 0.0
        %8390 = vmatpush1.msra.mxu0 0.0
        %8391 = vmatprep.subr.mxu0 0.0
        %8392 = vmatpush1.msra.mxu0 0.0
        %8393 = vmatprep.subr.mxu0 0.0
        %8394 = vmatpush1.msra.mxu0 0.0
        %8395 = vmatprep.subr.mxu0 0.0
        %8396 = vmatpush1.msra.mxu0 0.0
        %8397 = vmatprep.subr.mxu0 0.0
        %8398 = vmatpush1.msra.mxu0 0.0
        %8399 = vmatprep.subr.mxu0 0.0
        %8400 = vmatpush1.msra.mxu0 0.0
        %8401 = vmatprep.subr.mxu0 0.0
        %8402 = vmatpush1.msra.mxu0 0.0
        %8403 = vmatprep.subr.mxu0 0.0
        %8404 = vmatpush1.msra.mxu0 0.0
        %8405 = vmatprep.subr.mxu0 0.0
        %8406 = vmatpush1.msra.mxu0 0.0
        %8407 = vmatprep.subr.mxu0 0.0
        %8408 = vmatpush1.msra.mxu0 0.0
        %8409 = vmatprep.subr.mxu0 0.0
        %8410 = vmatpush1.msra.mxu0 0.0
        %8411 = vmatprep.subr.mxu0 0.0
        %8412 = vmatpush1.msra.mxu0 0.0
        %8413 = vmatprep.subr.mxu0 0.0
        %8414 = vmatpush1.msra.mxu0 0.0
        %8415 = vmatprep.subr.mxu0 0.0
        %8416 = vmatpush1.msra.mxu0 0.0
        %8417 = vmatprep.mubr.f32.mxu0 0.0
        %8418 = vmatmul.mubr.f32.gmra.mrb[0].mxu0 %v8348
        %v8419 = vpop.f32.mrb[0].mxu0
        %v8420 = vadd.f32 0.0, %v8419
        %v8421 = vpop.f32.mrb[0].mxu0
        %8422 = vmatprep.mubr.f32.mxu0 0.0
        %8423 = vmatmul.mubr.f32.gmra.mrb[0].mxu0 %v8351
        %v8424 = vpop.f32.mrb[0].mxu0
        %v8425 = vadd.f32 0.0, %v8424
        %v8426 = vpop.f32.mrb[0].mxu0
        %8427 = vdwg.mxu0
        %v8429 = vsel %vm2026, %v6981, 0
        %v8432 = vsel %vm2026, %v6983, 0
        %8434 = vmatprep.subr.mxu0 0.0
        %8435 = vmatpush1.msra.mxu0 %v3739
        %8436 = vmatprep.subr.mxu0 0.0
        %8437 = vmatpush1.msra.mxu0 %v3875
        %8438 = vmatprep.subr.mxu0 0.0
        %8439 = vmatpush1.msra.mxu0 0.0
        %8440 = vmatprep.subr.mxu0 0.0
        %8441 = vmatpush1.msra.mxu0 0.0
        %8442 = vmatprep.subr.mxu0 0.0
        %8443 = vmatpush1.msra.mxu0 0.0
        %8444 = vmatprep.subr.mxu0 0.0
        %8445 = vmatpush1.msra.mxu0 0.0
        %8446 = vmatprep.subr.mxu0 0.0
        %8447 = vmatpush1.msra.mxu0 0.0
        %8448 = vmatprep.subr.mxu0 0.0
        %8449 = vmatpush1.msra.mxu0 0.0
        %8450 = vmatprep.subr.mxu0 0.0
        %8451 = vmatpush1.msra.mxu0 0.0
        %8452 = vmatprep.subr.mxu0 0.0
        %8453 = vmatpush1.msra.mxu0 0.0
        %8454 = vmatprep.subr.mxu0 0.0
        %8455 = vmatpush1.msra.mxu0 0.0
        %8456 = vmatprep.subr.mxu0 0.0
        %8457 = vmatpush1.msra.mxu0 0.0
        %8458 = vmatprep.subr.mxu0 0.0
        %8459 = vmatpush1.msra.mxu0 0.0
        %8460 = vmatprep.subr.mxu0 0.0
        %8461 = vmatpush1.msra.mxu0 0.0
        %8462 = vmatprep.subr.mxu0 0.0
        %8463 = vmatpush1.msra.mxu0 0.0
        %8464 = vmatprep.subr.mxu0 0.0
        %8465 = vmatpush1.msra.mxu0 0.0
        %8466 = vmatprep.subr.mxu0 0.0
        %8467 = vmatpush1.msra.mxu0 0.0
        %8468 = vmatprep.subr.mxu0 0.0
        %8469 = vmatpush1.msra.mxu0 0.0
        %8470 = vmatprep.subr.mxu0 0.0
        %8471 = vmatpush1.msra.mxu0 0.0
        %8472 = vmatprep.subr.mxu0 0.0
        %8473 = vmatpush1.msra.mxu0 0.0
        %8474 = vmatprep.subr.mxu0 0.0
        %8475 = vmatpush1.msra.mxu0 0.0
        %8476 = vmatprep.subr.mxu0 0.0
        %8477 = vmatpush1.msra.mxu0 0.0
        %8478 = vmatprep.subr.mxu0 0.0
        %8479 = vmatpush1.msra.mxu0 0.0
        %8480 = vmatprep.subr.mxu0 0.0
        %8481 = vmatpush1.msra.mxu0 0.0
        %8482 = vmatprep.subr.mxu0 0.0
        %8483 = vmatpush1.msra.mxu0 0.0
        %8484 = vmatprep.subr.mxu0 0.0
        %8485 = vmatpush1.msra.mxu0 0.0
        %8486 = vmatprep.subr.mxu0 0.0
        %8487 = vmatpush1.msra.mxu0 0.0
        %8488 = vmatprep.subr.mxu0 0.0
        %8489 = vmatpush1.msra.mxu0 0.0
        %8490 = vmatprep.subr.mxu0 0.0
        %8491 = vmatpush1.msra.mxu0 0.0
        %8492 = vmatprep.subr.mxu0 0.0
        %8493 = vmatpush1.msra.mxu0 0.0
        %8494 = vmatprep.subr.mxu0 0.0
        %8495 = vmatpush1.msra.mxu0 0.0
        %8496 = vmatprep.subr.mxu0 0.0
        %8497 = vmatpush1.msra.mxu0 0.0
        %8498 = vmatprep.mubr.f32.mxu0 0.0
        %8499 = vmatmul.mubr.f32.gmra.mrb[0].mxu0 %v8429
        %v8500 = vpop.f32.mrb[0].mxu0
        %v8501 = vadd.f32 0.0, %v8500
        %v8502 = vpop.f32.mrb[0].mxu0
        %8503 = vmatprep.mubr.f32.mxu0 0.0
        %8504 = vmatmul.mubr.f32.gmra.mrb[0].mxu0 %v8432
        %v8505 = vpop.f32.mrb[0].mxu0
        %v8506 = vadd.f32 0.0, %v8505
        %v8507 = vpop.f32.mrb[0].mxu0
        %8508 = vdwg.mxu0
        %v8510 = vsel %vm2026, %v6985, 0
        %v8513 = vsel %vm2026, %v6987, 0
        %8515 = vmatprep.subr.mxu0 0.0
        %8516 = vmatpush1.msra.mxu0 %v3740
        %8517 = vmatprep.subr.mxu0 0.0
        %8518 = vmatpush1.msra.mxu0 %v3876
        %8519 = vmatprep.subr.mxu0 0.0
        %8520 = vmatpush1.msra.mxu0 0.0
        %8521 = vmatprep.subr.mxu0 0.0
        %8522 = vmatpush1.msra.mxu0 0.0
        %8523 = vmatprep.subr.mxu0 0.0
        %8524 = vmatpush1.msra.mxu0 0.0
        %8525 = vmatprep.subr.mxu0 0.0
        %8526 = vmatpush1.msra.mxu0 0.0
        %8527 = vmatprep.subr.mxu0 0.0
        %8528 = vmatpush1.msra.mxu0 0.0
        %8529 = vmatprep.subr.mxu0 0.0
        %8530 = vmatpush1.msra.mxu0 0.0
        %8531 = vmatprep.subr.mxu0 0.0
        %8532 = vmatpush1.msra.mxu0 0.0
        %8533 = vmatprep.subr.mxu0 0.0
        %8534 = vmatpush1.msra.mxu0 0.0
        %8535 = vmatprep.subr.mxu0 0.0
        %8536 = vmatpush1.msra.mxu0 0.0
        %8537 = vmatprep.subr.mxu0 0.0
        %8538 = vmatpush1.msra.mxu0 0.0
        %8539 = vmatprep.subr.mxu0 0.0
        %8540 = vmatpush1.msra.mxu0 0.0
        %8541 = vmatprep.subr.mxu0 0.0
        %8542 = vmatpush1.msra.mxu0 0.0
        %8543 = vmatprep.subr.mxu0 0.0
        %8544 = vmatpush1.msra.mxu0 0.0
        %8545 = vmatprep.subr.mxu0 0.0
        %8546 = vmatpush1.msra.mxu0 0.0
        %8547 = vmatprep.subr.mxu0 0.0
        %8548 = vmatpush1.msra.mxu0 0.0
        %8549 = vmatprep.subr.mxu0 0.0
        %8550 = vmatpush1.msra.mxu0 0.0
        %8551 = vmatprep.subr.mxu0 0.0
        %8552 = vmatpush1.msra.mxu0 0.0
        %8553 = vmatprep.subr.mxu0 0.0
        %8554 = vmatpush1.msra.mxu0 0.0
        %8555 = vmatprep.subr.mxu0 0.0
        %8556 = vmatpush1.msra.mxu0 0.0
        %8557 = vmatprep.subr.mxu0 0.0
        %8558 = vmatpush1.msra.mxu0 0.0
        %8559 = vmatprep.subr.mxu0 0.0
        %8560 = vmatpush1.msra.mxu0 0.0
        %8561 = vmatprep.subr.mxu0 0.0
        %8562 = vmatpush1.msra.mxu0 0.0
        %8563 = vmatprep.subr.mxu0 0.0
        %8564 = vmatpush1.msra.mxu0 0.0
        %8565 = vmatprep.subr.mxu0 0.0
        %8566 = vmatpush1.msra.mxu0 0.0
        %8567 = vmatprep.subr.mxu0 0.0
        %8568 = vmatpush1.msra.mxu0 0.0
        %8569 = vmatprep.subr.mxu0 0.0
        %8570 = vmatpush1.msra.mxu0 0.0
        %8571 = vmatprep.subr.mxu0 0.0
        %8572 = vmatpush1.msra.mxu0 0.0
        %8573 = vmatprep.subr.mxu0 0.0
        %8574 = vmatpush1.msra.mxu0 0.0
        %8575 = vmatprep.subr.mxu0 0.0
        %8576 = vmatpush1.msra.mxu0 0.0
        %8577 = vmatprep.subr.mxu0 0.0
        %8578 = vmatpush1.msra.mxu0 0.0
        %8579 = vmatprep.mubr.f32.mxu0 0.0
        %8580 = vmatmul.mubr.f32.gmra.mrb[0].mxu0 %v8510
        %v8581 = vpop.f32.mrb[0].mxu0
        %v8582 = vadd.f32 0.0, %v8581
        %v8583 = vpop.f32.mrb[0].mxu0
        %8584 = vmatprep.mubr.f32.mxu0 0.0
        %8585 = vmatmul.mubr.f32.gmra.mrb[0].mxu0 %v8513
        %v8586 = vpop.f32.mrb[0].mxu0
        %v8587 = vadd.f32 0.0, %v8586
        %v8588 = vpop.f32.mrb[0].mxu0
        %8589 = vdwg.mxu0
        %v8591 = vsel %vm2026, %v6989, 0
        %v8594 = vsel %vm2026, %v6991, 0
        %8596 = vmatprep.subr.mxu0 0.0
        %8597 = vmatpush1.msra.mxu0 %v3741
        %8598 = vmatprep.subr.mxu0 0.0
        %8599 = vmatpush1.msra.mxu0 %v3877
        %8600 = vmatprep.subr.mxu0 0.0
        %8601 = vmatpush1.msra.mxu0 0.0
        %8602 = vmatprep.subr.mxu0 0.0
        %8603 = vmatpush1.msra.mxu0 0.0
        %8604 = vmatprep.subr.mxu0 0.0
        %8605 = vmatpush1.msra.mxu0 0.0
        %8606 = vmatprep.subr.mxu0 0.0
        %8607 = vmatpush1.msra.mxu0 0.0
        %8608 = vmatprep.subr.mxu0 0.0
        %8609 = vmatpush1.msra.mxu0 0.0
        %8610 = vmatprep.subr.mxu0 0.0
        %8611 = vmatpush1.msra.mxu0 0.0
        %8612 = vmatprep.subr.mxu0 0.0
        %8613 = vmatpush1.msra.mxu0 0.0
        %8614 = vmatprep.subr.mxu0 0.0
        %8615 = vmatpush1.msra.mxu0 0.0
        %8616 = vmatprep.subr.mxu0 0.0
        %8617 = vmatpush1.msra.mxu0 0.0
        %8618 = vmatprep.subr.mxu0 0.0
        %8619 = vmatpush1.msra.mxu0 0.0
        %8620 = vmatprep.subr.mxu0 0.0
        %8621 = vmatpush1.msra.mxu0 0.0
        %8622 = vmatprep.subr.mxu0 0.0
        %8623 = vmatpush1.msra.mxu0 0.0
        %8624 = vmatprep.subr.mxu0 0.0
        %8625 = vmatpush1.msra.mxu0 0.0
        %8626 = vmatprep.subr.mxu0 0.0
        %8627 = vmatpush1.msra.mxu0 0.0
        %8628 = vmatprep.subr.mxu0 0.0
        %8629 = vmatpush1.msra.mxu0 0.0
        %8630 = vmatprep.subr.mxu0 0.0
        %8631 = vmatpush1.msra.mxu0 0.0
        %8632 = vmatprep.subr.mxu0 0.0
        %8633 = vmatpush1.msra.mxu0 0.0
        %8634 = vmatprep.subr.mxu0 0.0
        %8635 = vmatpush1.msra.mxu0 0.0
        %8636 = vmatprep.subr.mxu0 0.0
        %8637 = vmatpush1.msra.mxu0 0.0
        %8638 = vmatprep.subr.mxu0 0.0
        %8639 = vmatpush1.msra.mxu0 0.0
        %8640 = vmatprep.subr.mxu0 0.0
        %8641 = vmatpush1.msra.mxu0 0.0
        %8642 = vmatprep.subr.mxu0 0.0
        %8643 = vmatpush1.msra.mxu0 0.0
        %8644 = vmatprep.subr.mxu0 0.0
        %8645 = vmatpush1.msra.mxu0 0.0
        %8646 = vmatprep.subr.mxu0 0.0
        %8647 = vmatpush1.msra.mxu0 0.0
        %8648 = vmatprep.subr.mxu0 0.0
        %8649 = vmatpush1.msra.mxu0 0.0
        %8650 = vmatprep.subr.mxu0 0.0
        %8651 = vmatpush1.msra.mxu0 0.0
        %8652 = vmatprep.subr.mxu0 0.0
        %8653 = vmatpush1.msra.mxu0 0.0
        %8654 = vmatprep.subr.mxu0 0.0
        %8655 = vmatpush1.msra.mxu0 0.0
        %8656 = vmatprep.subr.mxu0 0.0
        %8657 = vmatpush1.msra.mxu0 0.0
        %8658 = vmatprep.subr.mxu0 0.0
        %8659 = vmatpush1.msra.mxu0 0.0
        %8660 = vmatprep.mubr.f32.mxu0 0.0
        %8661 = vmatmul.mubr.f32.gmra.mrb[0].mxu0 %v8591
        %v8662 = vpop.f32.mrb[0].mxu0
        %v8663 = vadd.f32 0.0, %v8662
        %v8664 = vpop.f32.mrb[0].mxu0
        %8665 = vmatprep.mubr.f32.mxu0 0.0
        %8666 = vmatmul.mubr.f32.gmra.mrb[0].mxu0 %v8594
        %v8667 = vpop.f32.mrb[0].mxu0
        %v8668 = vadd.f32 0.0, %v8667
        %v8669 = vpop.f32.mrb[0].mxu0
        %8670 = vdwg.mxu0
        %v8672 = vsel %vm2026, %v6993, 0
        %v8675 = vsel %vm2026, %v6995, 0
        %8677 = vmatprep.subr.mxu0 0.0
        %8678 = vmatpush1.msra.mxu0 %v3742
        %8679 = vmatprep.subr.mxu0 0.0
        %8680 = vmatpush1.msra.mxu0 %v3878
        %8681 = vmatprep.subr.mxu0 0.0
        %8682 = vmatpush1.msra.mxu0 0.0
        %8683 = vmatprep.subr.mxu0 0.0
        %8684 = vmatpush1.msra.mxu0 0.0
        %8685 = vmatprep.subr.mxu0 0.0
        %8686 = vmatpush1.msra.mxu0 0.0
        %8687 = vmatprep.subr.mxu0 0.0
        %8688 = vmatpush1.msra.mxu0 0.0
        %8689 = vmatprep.subr.mxu0 0.0
        %8690 = vmatpush1.msra.mxu0 0.0
        %8691 = vmatprep.subr.mxu0 0.0
        %8692 = vmatpush1.msra.mxu0 0.0
        %8693 = vmatprep.subr.mxu0 0.0
        %8694 = vmatpush1.msra.mxu0 0.0
        %8695 = vmatprep.subr.mxu0 0.0
        %8696 = vmatpush1.msra.mxu0 0.0
        %8697 = vmatprep.subr.mxu0 0.0
        %8698 = vmatpush1.msra.mxu0 0.0
        %8699 = vmatprep.subr.mxu0 0.0
        %8700 = vmatpush1.msra.mxu0 0.0
        %8701 = vmatprep.subr.mxu0 0.0
        %8702 = vmatpush1.msra.mxu0 0.0
        %8703 = vmatprep.subr.mxu0 0.0
        %8704 = vmatpush1.msra.mxu0 0.0
        %8705 = vmatprep.subr.mxu0 0.0
        %8706 = vmatpush1.msra.mxu0 0.0
        %8707 = vmatprep.subr.mxu0 0.0
        %8708 = vmatpush1.msra.mxu0 0.0
        %8709 = vmatprep.subr.mxu0 0.0
        %8710 = vmatpush1.msra.mxu0 0.0
        %8711 = vmatprep.subr.mxu0 0.0
        %8712 = vmatpush1.msra.mxu0 0.0
        %8713 = vmatprep.subr.mxu0 0.0
        %8714 = vmatpush1.msra.mxu0 0.0
        %8715 = vmatprep.subr.mxu0 0.0
        %8716 = vmatpush1.msra.mxu0 0.0
        %8717 = vmatprep.subr.mxu0 0.0
        %8718 = vmatpush1.msra.mxu0 0.0
        %8719 = vmatprep.subr.mxu0 0.0
        %8720 = vmatpush1.msra.mxu0 0.0
        %8721 = vmatprep.subr.mxu0 0.0
        %8722 = vmatpush1.msra.mxu0 0.0
        %8723 = vmatprep.subr.mxu0 0.0
        %8724 = vmatpush1.msra.mxu0 0.0
        %8725 = vmatprep.subr.mxu0 0.0
        %8726 = vmatpush1.msra.mxu0 0.0
        %8727 = vmatprep.subr.mxu0 0.0
        %8728 = vmatpush1.msra.mxu0 0.0
        %8729 = vmatprep.subr.mxu0 0.0
        %8730 = vmatpush1.msra.mxu0 0.0
        %8731 = vmatprep.subr.mxu0 0.0
        %8732 = vmatpush1.msra.mxu0 0.0
        %8733 = vmatprep.subr.mxu0 0.0
        %8734 = vmatpush1.msra.mxu0 0.0
        %8735 = vmatprep.subr.mxu0 0.0
        %8736 = vmatpush1.msra.mxu0 0.0
        %8737 = vmatprep.subr.mxu0 0.0
        %8738 = vmatpush1.msra.mxu0 0.0
        %8739 = vmatprep.subr.mxu0 0.0
        %8740 = vmatpush1.msra.mxu0 0.0
        %8741 = vmatprep.mubr.f32.mxu0 0.0
        %8742 = vmatmul.mubr.f32.gmra.mrb[0].mxu0 %v8672
        %v8743 = vpop.f32.mrb[0].mxu0
        %v8744 = vadd.f32 0.0, %v8743
        %v8745 = vpop.f32.mrb[0].mxu0
        %8746 = vmatprep.mubr.f32.mxu0 0.0
        %8747 = vmatmul.mubr.f32.gmra.mrb[0].mxu0 %v8675
        %v8748 = vpop.f32.mrb[0].mxu0
        %v8749 = vadd.f32 0.0, %v8748
        %v8750 = vpop.f32.mrb[0].mxu0
        %8751 = vdwg.mxu0
        %v8753 = vsel %vm2026, %v6997, 0
        %v8756 = vsel %vm2026, %v6999, 0
        %8758 = vmatprep.subr.mxu0 0.0
        %8759 = vmatpush1.msra.mxu0 %v3743
        %8760 = vmatprep.subr.mxu0 0.0
        %8761 = vmatpush1.msra.mxu0 %v3879
        %8762 = vmatprep.subr.mxu0 0.0
        %8763 = vmatpush1.msra.mxu0 0.0
        %8764 = vmatprep.subr.mxu0 0.0
        %8765 = vmatpush1.msra.mxu0 0.0
        %8766 = vmatprep.subr.mxu0 0.0
        %8767 = vmatpush1.msra.mxu0 0.0
        %8768 = vmatprep.subr.mxu0 0.0
        %8769 = vmatpush1.msra.mxu0 0.0
        %8770 = vmatprep.subr.mxu0 0.0
        %8771 = vmatpush1.msra.mxu0 0.0
        %8772 = vmatprep.subr.mxu0 0.0
        %8773 = vmatpush1.msra.mxu0 0.0
        %8774 = vmatprep.subr.mxu0 0.0
        %8775 = vmatpush1.msra.mxu0 0.0
        %8776 = vmatprep.subr.mxu0 0.0
        %8777 = vmatpush1.msra.mxu0 0.0
        %8778 = vmatprep.subr.mxu0 0.0
        %8779 = vmatpush1.msra.mxu0 0.0
        %8780 = vmatprep.subr.mxu0 0.0
        %8781 = vmatpush1.msra.mxu0 0.0
        %8782 = vmatprep.subr.mxu0 0.0
        %8783 = vmatpush1.msra.mxu0 0.0
        %8784 = vmatprep.subr.mxu0 0.0
        %8785 = vmatpush1.msra.mxu0 0.0
        %8786 = vmatprep.subr.mxu0 0.0
        %8787 = vmatpush1.msra.mxu0 0.0
        %8788 = vmatprep.subr.mxu0 0.0
        %8789 = vmatpush1.msra.mxu0 0.0
        %8790 = vmatprep.subr.mxu0 0.0
        %8791 = vmatpush1.msra.mxu0 0.0
        %8792 = vmatprep.subr.mxu0 0.0
        %8793 = vmatpush1.msra.mxu0 0.0
        %8794 = vmatprep.subr.mxu0 0.0
        %8795 = vmatpush1.msra.mxu0 0.0
        %8796 = vmatprep.subr.mxu0 0.0
        %8797 = vmatpush1.msra.mxu0 0.0
        %8798 = vmatprep.subr.mxu0 0.0
        %8799 = vmatpush1.msra.mxu0 0.0
        %8800 = vmatprep.subr.mxu0 0.0
        %8801 = vmatpush1.msra.mxu0 0.0
        %8802 = vmatprep.subr.mxu0 0.0
        %8803 = vmatpush1.msra.mxu0 0.0
        %8804 = vmatprep.subr.mxu0 0.0
        %8805 = vmatpush1.msra.mxu0 0.0
        %8806 = vmatprep.subr.mxu0 0.0
        %8807 = vmatpush1.msra.mxu0 0.0
        %8808 = vmatprep.subr.mxu0 0.0
        %8809 = vmatpush1.msra.mxu0 0.0
        %8810 = vmatprep.subr.mxu0 0.0
        %8811 = vmatpush1.msra.mxu0 0.0
        %8812 = vmatprep.subr.mxu0 0.0
        %8813 = vmatpush1.msra.mxu0 0.0
        %8814 = vmatprep.subr.mxu0 0.0
        %8815 = vmatpush1.msra.mxu0 0.0
        %8816 = vmatprep.subr.mxu0 0.0
        %8817 = vmatpush1.msra.mxu0 0.0
        %8818 = vmatprep.subr.mxu0 0.0
        %8819 = vmatpush1.msra.mxu0 0.0
        %8820 = vmatprep.subr.mxu0 0.0
        %8821 = vmatpush1.msra.mxu0 0.0
        %8822 = vmatprep.mubr.f32.mxu0 0.0
        %8823 = vmatmul.mubr.f32.gmra.mrb[0].mxu0 %v8753
        %v8824 = vpop.f32.mrb[0].mxu0
        %v8825 = vadd.f32 0.0, %v8824
        %v8826 = vpop.f32.mrb[0].mxu0
        %8827 = vmatprep.mubr.f32.mxu0 0.0
        %8828 = vmatmul.mubr.f32.gmra.mrb[0].mxu0 %v8756
        %v8829 = vpop.f32.mrb[0].mxu0
        %v8830 = vadd.f32 0.0, %v8829
        %v8831 = vpop.f32.mrb[0].mxu0
        %8832 = vdwg.mxu0
        %v8834 = vsel %vm2026, %v7001, 0
        %v8837 = vsel %vm2026, %v7003, 0
        %8839 = vmatprep.subr.mxu0 0.0
        %8840 = vmatpush1.msra.mxu0 %v3744
        %8841 = vmatprep.subr.mxu0 0.0
        %8842 = vmatpush1.msra.mxu0 %v3880
        %8843 = vmatprep.subr.mxu0 0.0
        %8844 = vmatpush1.msra.mxu0 0.0
        %8845 = vmatprep.subr.mxu0 0.0
        %8846 = vmatpush1.msra.mxu0 0.0
        %8847 = vmatprep.subr.mxu0 0.0
        %8848 = vmatpush1.msra.mxu0 0.0
        %8849 = vmatprep.subr.mxu0 0.0
        %8850 = vmatpush1.msra.mxu0 0.0
        %8851 = vmatprep.subr.mxu0 0.0
        %8852 = vmatpush1.msra.mxu0 0.0
        %8853 = vmatprep.subr.mxu0 0.0
        %8854 = vmatpush1.msra.mxu0 0.0
        %8855 = vmatprep.subr.mxu0 0.0
        %8856 = vmatpush1.msra.mxu0 0.0
        %8857 = vmatprep.subr.mxu0 0.0
        %8858 = vmatpush1.msra.mxu0 0.0
        %8859 = vmatprep.subr.mxu0 0.0
        %8860 = vmatpush1.msra.mxu0 0.0
        %8861 = vmatprep.subr.mxu0 0.0
        %8862 = vmatpush1.msra.mxu0 0.0
        %8863 = vmatprep.subr.mxu0 0.0
        %8864 = vmatpush1.msra.mxu0 0.0
        %8865 = vmatprep.subr.mxu0 0.0
        %8866 = vmatpush1.msra.mxu0 0.0
        %8867 = vmatprep.subr.mxu0 0.0
        %8868 = vmatpush1.msra.mxu0 0.0
        %8869 = vmatprep.subr.mxu0 0.0
        %8870 = vmatpush1.msra.mxu0 0.0
        %8871 = vmatprep.subr.mxu0 0.0
        %8872 = vmatpush1.msra.mxu0 0.0
        %8873 = vmatprep.subr.mxu0 0.0
        %8874 = vmatpush1.msra.mxu0 0.0
        %8875 = vmatprep.subr.mxu0 0.0
        %8876 = vmatpush1.msra.mxu0 0.0
        %8877 = vmatprep.subr.mxu0 0.0
        %8878 = vmatpush1.msra.mxu0 0.0
        %8879 = vmatprep.subr.mxu0 0.0
        %8880 = vmatpush1.msra.mxu0 0.0
        %8881 = vmatprep.subr.mxu0 0.0
        %8882 = vmatpush1.msra.mxu0 0.0
        %8883 = vmatprep.subr.mxu0 0.0
        %8884 = vmatpush1.msra.mxu0 0.0
        %8885 = vmatprep.subr.mxu0 0.0
        %8886 = vmatpush1.msra.mxu0 0.0
        %8887 = vmatprep.subr.mxu0 0.0
        %8888 = vmatpush1.msra.mxu0 0.0
        %8889 = vmatprep.subr.mxu0 0.0
        %8890 = vmatpush1.msra.mxu0 0.0
        %8891 = vmatprep.subr.mxu0 0.0
        %8892 = vmatpush1.msra.mxu0 0.0
        %8893 = vmatprep.subr.mxu0 0.0
        %8894 = vmatpush1.msra.mxu0 0.0
        %8895 = vmatprep.subr.mxu0 0.0
        %8896 = vmatpush1.msra.mxu0 0.0
        %8897 = vmatprep.subr.mxu0 0.0
        %8898 = vmatpush1.msra.mxu0 0.0
        %8899 = vmatprep.subr.mxu0 0.0
        %8900 = vmatpush1.msra.mxu0 0.0
        %8901 = vmatprep.subr.mxu0 0.0
        %8902 = vmatpush1.msra.mxu0 0.0
        %8903 = vmatprep.mubr.f32.mxu0 0.0
        %8904 = vmatmul.mubr.f32.gmra.mrb[0].mxu0 %v8834
        %v8905 = vpop.f32.mrb[0].mxu0
        %v8906 = vadd.f32 0.0, %v8905
        %v8907 = vpop.f32.mrb[0].mxu0
        %8908 = vmatprep.mubr.f32.mxu0 0.0
        %8909 = vmatmul.mubr.f32.gmra.mrb[0].mxu0 %v8837
        %v8910 = vpop.f32.mrb[0].mxu0
        %v8911 = vadd.f32 0.0, %v8910
        %v8912 = vpop.f32.mrb[0].mxu0
        %8913 = vdwg.mxu0
        %v8915 = vsel %vm2026, %v7005, 0
        %v8918 = vsel %vm2026, %v7007, 0
        %8920 = vmatprep.subr.mxu0 0.0
        %8921 = vmatpush1.msra.mxu0 %v3745
        %8922 = vmatprep.subr.mxu0 0.0
        %8923 = vmatpush1.msra.mxu0 %v3881
        %8924 = vmatprep.subr.mxu0 0.0
        %8925 = vmatpush1.msra.mxu0 0.0
        %8926 = vmatprep.subr.mxu0 0.0
        %8927 = vmatpush1.msra.mxu0 0.0
        %8928 = vmatprep.subr.mxu0 0.0
        %8929 = vmatpush1.msra.mxu0 0.0
        %8930 = vmatprep.subr.mxu0 0.0
        %8931 = vmatpush1.msra.mxu0 0.0
        %8932 = vmatprep.subr.mxu0 0.0
        %8933 = vmatpush1.msra.mxu0 0.0
        %8934 = vmatprep.subr.mxu0 0.0
        %8935 = vmatpush1.msra.mxu0 0.0
        %8936 = vmatprep.subr.mxu0 0.0
        %8937 = vmatpush1.msra.mxu0 0.0
        %8938 = vmatprep.subr.mxu0 0.0
        %8939 = vmatpush1.msra.mxu0 0.0
        %8940 = vmatprep.subr.mxu0 0.0
        %8941 = vmatpush1.msra.mxu0 0.0
        %8942 = vmatprep.subr.mxu0 0.0
        %8943 = vmatpush1.msra.mxu0 0.0
        %8944 = vmatprep.subr.mxu0 0.0
        %8945 = vmatpush1.msra.mxu0 0.0
        %8946 = vmatprep.subr.mxu0 0.0
        %8947 = vmatpush1.msra.mxu0 0.0
        %8948 = vmatprep.subr.mxu0 0.0
        %8949 = vmatpush1.msra.mxu0 0.0
        %8950 = vmatprep.subr.mxu0 0.0
        %8951 = vmatpush1.msra.mxu0 0.0
        %8952 = vmatprep.subr.mxu0 0.0
        %8953 = vmatpush1.msra.mxu0 0.0
        %8954 = vmatprep.subr.mxu0 0.0
        %8955 = vmatpush1.msra.mxu0 0.0
        %8956 = vmatprep.subr.mxu0 0.0
        %8957 = vmatpush1.msra.mxu0 0.0
        %8958 = vmatprep.subr.mxu0 0.0
        %8959 = vmatpush1.msra.mxu0 0.0
        %8960 = vmatprep.subr.mxu0 0.0
        %8961 = vmatpush1.msra.mxu0 0.0
        %8962 = vmatprep.subr.mxu0 0.0
        %8963 = vmatpush1.msra.mxu0 0.0
        %8964 = vmatprep.subr.mxu0 0.0
        %8965 = vmatpush1.msra.mxu0 0.0
        %8966 = vmatprep.subr.mxu0 0.0
        %8967 = vmatpush1.msra.mxu0 0.0
        %8968 = vmatprep.subr.mxu0 0.0
        %8969 = vmatpush1.msra.mxu0 0.0
        %8970 = vmatprep.subr.mxu0 0.0
        %8971 = vmatpush1.msra.mxu0 0.0
        %8972 = vmatprep.subr.mxu0 0.0
        %8973 = vmatpush1.msra.mxu0 0.0
        %8974 = vmatprep.subr.mxu0 0.0
        %8975 = vmatpush1.msra.mxu0 0.0
        %8976 = vmatprep.subr.mxu0 0.0
        %8977 = vmatpush1.msra.mxu0 0.0
        %8978 = vmatprep.subr.mxu0 0.0
        %8979 = vmatpush1.msra.mxu0 0.0
        %8980 = vmatprep.subr.mxu0 0.0
        %8981 = vmatpush1.msra.mxu0 0.0
        %8982 = vmatprep.subr.mxu0 0.0
        %8983 = vmatpush1.msra.mxu0 0.0
        %8984 = vmatprep.mubr.f32.mxu0 0.0
        %8985 = vmatmul.mubr.f32.gmra.mrb[0].mxu0 %v8915
        %v8986 = vpop.f32.mrb[0].mxu0
        %v8987 = vadd.f32 0.0, %v8986
        %v8988 = vpop.f32.mrb[0].mxu0
        %8989 = vmatprep.mubr.f32.mxu0 0.0
        %8990 = vmatmul.mubr.f32.gmra.mrb[0].mxu0 %v8918
        %v8991 = vpop.f32.mrb[0].mxu0
        %v8992 = vadd.f32 0.0, %v8991
        %v8993 = vpop.f32.mrb[0].mxu0
        %8994 = vdwg.mxu0
        %v8996 = vsel %vm2026, %v7009, 0
        %v8999 = vsel %vm2026, %v7011, 0
        %9001 = vmatprep.subr.mxu0 0.0
        %9002 = vmatpush1.msra.mxu0 %v3746
        %9003 = vmatprep.subr.mxu0 0.0
        %9004 = vmatpush1.msra.mxu0 %v3882
        %9005 = vmatprep.subr.mxu0 0.0
        %9006 = vmatpush1.msra.mxu0 0.0
        %9007 = vmatprep.subr.mxu0 0.0
        %9008 = vmatpush1.msra.mxu0 0.0
        %9009 = vmatprep.subr.mxu0 0.0
        %9010 = vmatpush1.msra.mxu0 0.0
        %9011 = vmatprep.subr.mxu0 0.0
        %9012 = vmatpush1.msra.mxu0 0.0
        %9013 = vmatprep.subr.mxu0 0.0
        %9014 = vmatpush1.msra.mxu0 0.0
        %9015 = vmatprep.subr.mxu0 0.0
        %9016 = vmatpush1.msra.mxu0 0.0
        %9017 = vmatprep.subr.mxu0 0.0
        %9018 = vmatpush1.msra.mxu0 0.0
        %9019 = vmatprep.subr.mxu0 0.0
        %9020 = vmatpush1.msra.mxu0 0.0
        %9021 = vmatprep.subr.mxu0 0.0
        %9022 = vmatpush1.msra.mxu0 0.0
        %9023 = vmatprep.subr.mxu0 0.0
        %9024 = vmatpush1.msra.mxu0 0.0
        %9025 = vmatprep.subr.mxu0 0.0
        %9026 = vmatpush1.msra.mxu0 0.0
        %9027 = vmatprep.subr.mxu0 0.0
        %9028 = vmatpush1.msra.mxu0 0.0
        %9029 = vmatprep.subr.mxu0 0.0
        %9030 = vmatpush1.msra.mxu0 0.0
        %9031 = vmatprep.subr.mxu0 0.0
        %9032 = vmatpush1.msra.mxu0 0.0
        %9033 = vmatprep.subr.mxu0 0.0
        %9034 = vmatpush1.msra.mxu0 0.0
        %9035 = vmatprep.subr.mxu0 0.0
        %9036 = vmatpush1.msra.mxu0 0.0
        %9037 = vmatprep.subr.mxu0 0.0
        %9038 = vmatpush1.msra.mxu0 0.0
        %9039 = vmatprep.subr.mxu0 0.0
        %9040 = vmatpush1.msra.mxu0 0.0
        %9041 = vmatprep.subr.mxu0 0.0
        %9042 = vmatpush1.msra.mxu0 0.0
        %9043 = vmatprep.subr.mxu0 0.0
        %9044 = vmatpush1.msra.mxu0 0.0
        %9045 = vmatprep.subr.mxu0 0.0
        %9046 = vmatpush1.msra.mxu0 0.0
        %9047 = vmatprep.subr.mxu0 0.0
        %9048 = vmatpush1.msra.mxu0 0.0
        %9049 = vmatprep.subr.mxu0 0.0
        %9050 = vmatpush1.msra.mxu0 0.0
        %9051 = vmatprep.subr.mxu0 0.0
        %9052 = vmatpush1.msra.mxu0 0.0
        %9053 = vmatprep.subr.mxu0 0.0
        %9054 = vmatpush1.msra.mxu0 0.0
        %9055 = vmatprep.subr.mxu0 0.0
        %9056 = vmatpush1.msra.mxu0 0.0
        %9057 = vmatprep.subr.mxu0 0.0
        %9058 = vmatpush1.msra.mxu0 0.0
        %9059 = vmatprep.subr.mxu0 0.0
        %9060 = vmatpush1.msra.mxu0 0.0
        %9061 = vmatprep.subr.mxu0 0.0
        %9062 = vmatpush1.msra.mxu0 0.0
        %9063 = vmatprep.subr.mxu0 0.0
        %9064 = vmatpush1.msra.mxu0 0.0
        %9065 = vmatprep.mubr.f32.mxu0 0.0
        %9066 = vmatmul.mubr.f32.gmra.mrb[0].mxu0 %v8996
        %v9067 = vpop.f32.mrb[0].mxu0
        %v9068 = vadd.f32 0.0, %v9067
        %v9069 = vpop.f32.mrb[0].mxu0
        %9070 = vmatprep.mubr.f32.mxu0 0.0
        %9071 = vmatmul.mubr.f32.gmra.mrb[0].mxu0 %v8999
        %v9072 = vpop.f32.mrb[0].mxu0
        %v9073 = vadd.f32 0.0, %v9072
        %v9074 = vpop.f32.mrb[0].mxu0
        %9075 = vdwg.mxu0
        %v9076 = vcombine.low %v7853, %v8015
        %v9077 = vcombine.high %v7853, %v8015
        %v9079 = vunpack.c.l.s4 1983009808
        %v9080 = vunpack.c.0.s8 %v9079
        %v9081 = vlaneseq
        %v9082 = vshrl.u32 %v9081, 7
        %v9083 = vsub.s32 %v9080, %v9082
        %v9084 = vrot.slane %v9076, %v9083
        %v9086 = vunpack.c.l.s4 1983009808
        %v9087 = vunpack.c.0.s8 %v9086
        %v9088 = vlaneseq
        %v9089 = vshrl.u32 %v9088, 7
        %v9090 = vsub.s32 %v9087, %v9089
        %v9091 = vrot.slane %v9077, %v9090
        %v9092 = vcombine.low %v7934, %v8096
        %v9093 = vcombine.high %v7934, %v8096
        %v9095 = vunpack.c.l.s4 1983009808
        %v9096 = vunpack.c.0.s8 %v9095
        %v9097 = vlaneseq
        %v9098 = vshrl.u32 %v9097, 7
        %v9099 = vsub.s32 %v9096, %v9098
        %v9100 = vrot.slane %v9092, %v9099
        %v9102 = vunpack.c.l.s4 1983009808
        %v9103 = vunpack.c.0.s8 %v9102
        %v9104 = vlaneseq
        %v9105 = vshrl.u32 %v9104, 7
        %v9106 = vsub.s32 %v9103, %v9105
        %v9107 = vrot.slane %v9093, %v9106
        %v9108 = vcombine.low %v8177, %v8339
        %v9109 = vcombine.high %v8177, %v8339
        %v9111 = vunpack.c.l.s4 1983009808
        %v9112 = vunpack.c.0.s8 %v9111
        %v9113 = vlaneseq
        %v9114 = vshrl.u32 %v9113, 7
        %v9115 = vsub.s32 %v9112, %v9114
        %v9116 = vrot.slane %v9108, %v9115
        %v9118 = vunpack.c.l.s4 1983009808
        %v9119 = vunpack.c.0.s8 %v9118
        %v9120 = vlaneseq
        %v9121 = vshrl.u32 %v9120, 7
        %v9122 = vsub.s32 %v9119, %v9121
        %v9123 = vrot.slane %v9109, %v9122
        %v9124 = vcombine.low %v8258, %v8420
        %v9125 = vcombine.high %v8258, %v8420
        %v9127 = vunpack.c.l.s4 1983009808
        %v9128 = vunpack.c.0.s8 %v9127
        %v9129 = vlaneseq
        %v9130 = vshrl.u32 %v9129, 7
        %v9131 = vsub.s32 %v9128, %v9130
        %v9132 = vrot.slane %v9124, %v9131
        %v9134 = vunpack.c.l.s4 1983009808
        %v9135 = vunpack.c.0.s8 %v9134
        %v9136 = vlaneseq
        %v9137 = vshrl.u32 %v9136, 7
        %v9138 = vsub.s32 %v9135, %v9137
        %v9139 = vrot.slane %v9125, %v9138
        %v9140 = vcombine.low %v9084, %v9100
        %v9141 = vcombine.high %v9084, %v9100
        %v9143 = vunpack.c.l.s4 1934713408
        %v9144 = vunpack.c.0.s8 %v9143
        %v9145 = vlaneseq
        %v9146 = vshrl.u32 %v9145, 7
        %v9147 = vsub.s32 %v9144, %v9146
        %v9148 = vrot.slane %v9140, %v9147
        %v9150 = vunpack.c.l.s4 1934713408
        %v9151 = vunpack.c.0.s8 %v9150
        %v9152 = vlaneseq
        %v9153 = vshrl.u32 %v9152, 7
        %v9154 = vsub.s32 %v9151, %v9153
        %v9155 = vrot.slane %v9141, %v9154
        %v9156 = vcombine.low %v9091, %v9107
        %v9157 = vcombine.high %v9091, %v9107
        %v9159 = vunpack.c.l.s4 1934713408
        %v9160 = vunpack.c.0.s8 %v9159
        %v9161 = vlaneseq
        %v9162 = vshrl.u32 %v9161, 7
        %v9163 = vsub.s32 %v9160, %v9162
        %v9164 = vrot.slane %v9156, %v9163
        %v9166 = vunpack.c.l.s4 1934713408
        %v9167 = vunpack.c.0.s8 %v9166
        %v9168 = vlaneseq
        %v9169 = vshrl.u32 %v9168, 7
        %v9170 = vsub.s32 %v9167, %v9169
        %v9171 = vrot.slane %v9157, %v9170
        %v9172 = vcombine.low %v9116, %v9132
        %v9173 = vcombine.high %v9116, %v9132
        %v9175 = vunpack.c.l.s4 1934713408
        %v9176 = vunpack.c.0.s8 %v9175
        %v9177 = vlaneseq
        %v9178 = vshrl.u32 %v9177, 7
        %v9179 = vsub.s32 %v9176, %v9178
        %v9180 = vrot.slane %v9172, %v9179
        %v9182 = vunpack.c.l.s4 1934713408
        %v9183 = vunpack.c.0.s8 %v9182
        %v9184 = vlaneseq
        %v9185 = vshrl.u32 %v9184, 7
        %v9186 = vsub.s32 %v9183, %v9185
        %v9187 = vrot.slane %v9173, %v9186
        %v9188 = vcombine.low %v9123, %v9139
        %v9189 = vcombine.high %v9123, %v9139
        %v9191 = vunpack.c.l.s4 1934713408
        %v9192 = vunpack.c.0.s8 %v9191
        %v9193 = vlaneseq
        %v9194 = vshrl.u32 %v9193, 7
        %v9195 = vsub.s32 %v9192, %v9194
        %v9196 = vrot.slane %v9188, %v9195
        %v9198 = vunpack.c.l.s4 1934713408
        %v9199 = vunpack.c.0.s8 %v9198
        %v9200 = vlaneseq
        %v9201 = vshrl.u32 %v9200, 7
        %v9202 = vsub.s32 %v9199, %v9201
        %v9203 = vrot.slane %v9189, %v9202
        %v9204 = vcombine.low %v9148, %v9180
        %v9205 = vcombine.high %v9148, %v9180
        %v9206 = vcombine.low %v9155, %v9187
        %v9207 = vcombine.high %v9155, %v9187
        %v9208 = vcombine.low %v9164, %v9196
        %v9209 = vcombine.high %v9164, %v9196
        %v9210 = vcombine.low %v9171, %v9203
        %v9211 = vcombine.high %v9171, %v9203
        %v9212 = vcombine.low %v8501, %v8663
        %v9213 = vcombine.high %v8501, %v8663
        %v9215 = vunpack.c.l.s4 1983009808
        %v9216 = vunpack.c.0.s8 %v9215
        %v9217 = vlaneseq
        %v9218 = vshrl.u32 %v9217, 7
        %v9219 = vsub.s32 %v9216, %v9218
        %v9220 = vrot.slane %v9212, %v9219
        %v9222 = vunpack.c.l.s4 1983009808
        %v9223 = vunpack.c.0.s8 %v9222
        %v9224 = vlaneseq
        %v9225 = vshrl.u32 %v9224, 7
        %v9226 = vsub.s32 %v9223, %v9225
        %v9227 = vrot.slane %v9213, %v9226
        %v9228 = vcombine.low %v8582, %v8744
        %v9229 = vcombine.high %v8582, %v8744
        %v9231 = vunpack.c.l.s4 1983009808
        %v9232 = vunpack.c.0.s8 %v9231
        %v9233 = vlaneseq
        %v9234 = vshrl.u32 %v9233, 7
        %v9235 = vsub.s32 %v9232, %v9234
        %v9236 = vrot.slane %v9228, %v9235
        %v9238 = vunpack.c.l.s4 1983009808
        %v9239 = vunpack.c.0.s8 %v9238
        %v9240 = vlaneseq
        %v9241 = vshrl.u32 %v9240, 7
        %v9242 = vsub.s32 %v9239, %v9241
        %v9243 = vrot.slane %v9229, %v9242
        %v9244 = vcombine.low %v8825, %v8987
        %v9245 = vcombine.high %v8825, %v8987
        %v9247 = vunpack.c.l.s4 1983009808
        %v9248 = vunpack.c.0.s8 %v9247
        %v9249 = vlaneseq
        %v9250 = vshrl.u32 %v9249, 7
        %v9251 = vsub.s32 %v9248, %v9250
        %v9252 = vrot.slane %v9244, %v9251
        %v9254 = vunpack.c.l.s4 1983009808
        %v9255 = vunpack.c.0.s8 %v9254
        %v9256 = vlaneseq
        %v9257 = vshrl.u32 %v9256, 7
        %v9258 = vsub.s32 %v9255, %v9257
        %v9259 = vrot.slane %v9245, %v9258
        %v9260 = vcombine.low %v8906, %v9068
        %v9261 = vcombine.high %v8906, %v9068
        %v9263 = vunpack.c.l.s4 1983009808
        %v9264 = vunpack.c.0.s8 %v9263
        %v9265 = vlaneseq
        %v9266 = vshrl.u32 %v9265, 7
        %v9267 = vsub.s32 %v9264, %v9266
        %v9268 = vrot.slane %v9260, %v9267
        %v9270 = vunpack.c.l.s4 1983009808
        %v9271 = vunpack.c.0.s8 %v9270
        %v9272 = vlaneseq
        %v9273 = vshrl.u32 %v9272, 7
        %v9274 = vsub.s32 %v9271, %v9273
        %v9275 = vrot.slane %v9261, %v9274
        %v9276 = vcombine.low %v9220, %v9236
        %v9277 = vcombine.high %v9220, %v9236
        %v9279 = vunpack.c.l.s4 1934713408
        %v9280 = vunpack.c.0.s8 %v9279
        %v9281 = vlaneseq
        %v9282 = vshrl.u32 %v9281, 7
        %v9283 = vsub.s32 %v9280, %v9282
        %v9284 = vrot.slane %v9276, %v9283
        %v9286 = vunpack.c.l.s4 1934713408
        %v9287 = vunpack.c.0.s8 %v9286
        %v9288 = vlaneseq
        %v9289 = vshrl.u32 %v9288, 7
        %v9290 = vsub.s32 %v9287, %v9289
        %v9291 = vrot.slane %v9277, %v9290
        %v9292 = vcombine.low %v9227, %v9243
        %v9293 = vcombine.high %v9227, %v9243
        %v9295 = vunpack.c.l.s4 1934713408
        %v9296 = vunpack.c.0.s8 %v9295
        %v9297 = vlaneseq
        %v9298 = vshrl.u32 %v9297, 7
        %v9299 = vsub.s32 %v9296, %v9298
        %v9300 = vrot.slane %v9292, %v9299
        %v9302 = vunpack.c.l.s4 1934713408
        %v9303 = vunpack.c.0.s8 %v9302
        %v9304 = vlaneseq
        %v9305 = vshrl.u32 %v9304, 7
        %v9306 = vsub.s32 %v9303, %v9305
        %v9307 = vrot.slane %v9293, %v9306
        %v9308 = vcombine.low %v9252, %v9268
        %v9309 = vcombine.high %v9252, %v9268
        %v9311 = vunpack.c.l.s4 1934713408
        %v9312 = vunpack.c.0.s8 %v9311
        %v9313 = vlaneseq
        %v9314 = vshrl.u32 %v9313, 7
        %v9315 = vsub.s32 %v9312, %v9314
        %v9316 = vrot.slane %v9308, %v9315
        %v9318 = vunpack.c.l.s4 1934713408
        %v9319 = vunpack.c.0.s8 %v9318
        %v9320 = vlaneseq
        %v9321 = vshrl.u32 %v9320, 7
        %v9322 = vsub.s32 %v9319, %v9321
        %v9323 = vrot.slane %v9309, %v9322
        %v9324 = vcombine.low %v9259, %v9275
        %v9325 = vcombine.high %v9259, %v9275
        %v9327 = vunpack.c.l.s4 1934713408
        %v9328 = vunpack.c.0.s8 %v9327
        %v9329 = vlaneseq
        %v9330 = vshrl.u32 %v9329, 7
        %v9331 = vsub.s32 %v9328, %v9330
        %v9332 = vrot.slane %v9324, %v9331
        %v9334 = vunpack.c.l.s4 1934713408
        %v9335 = vunpack.c.0.s8 %v9334
        %v9336 = vlaneseq
        %v9337 = vshrl.u32 %v9336, 7
        %v9338 = vsub.s32 %v9335, %v9337
        %v9339 = vrot.slane %v9325, %v9338
        %v9340 = vcombine.low %v9284, %v9316
        %v9341 = vcombine.high %v9284, %v9316
        %v9342 = vcombine.low %v9291, %v9323
        %v9343 = vcombine.high %v9291, %v9323
        %v9344 = vcombine.low %v9300, %v9332
        %v9345 = vcombine.high %v9300, %v9332
        %v9346 = vcombine.low %v9307, %v9339
        %v9347 = vcombine.high %v9307, %v9339
        %v9348 = vcombine.low %v7858, %v8020
        %v9349 = vcombine.high %v7858, %v8020
        %v9351 = vunpack.c.l.s4 1983009808
        %v9352 = vunpack.c.0.s8 %v9351
        %v9353 = vlaneseq
        %v9354 = vshrl.u32 %v9353, 7
        %v9355 = vsub.s32 %v9352, %v9354
        %v9356 = vrot.slane %v9348, %v9355
        %v9358 = vunpack.c.l.s4 1983009808
        %v9359 = vunpack.c.0.s8 %v9358
        %v9360 = vlaneseq
        %v9361 = vshrl.u32 %v9360, 7
        %v9362 = vsub.s32 %v9359, %v9361
        %v9363 = vrot.slane %v9349, %v9362
        %v9364 = vcombine.low %v7939, %v8101
        %v9365 = vcombine.high %v7939, %v8101
        %v9367 = vunpack.c.l.s4 1983009808
        %v9368 = vunpack.c.0.s8 %v9367
        %v9369 = vlaneseq
        %v9370 = vshrl.u32 %v9369, 7
        %v9371 = vsub.s32 %v9368, %v9370
        %v9372 = vrot.slane %v9364, %v9371
        %v9374 = vunpack.c.l.s4 1983009808
        %v9375 = vunpack.c.0.s8 %v9374
        %v9376 = vlaneseq
        %v9377 = vshrl.u32 %v9376, 7
        %v9378 = vsub.s32 %v9375, %v9377
        %v9379 = vrot.slane %v9365, %v9378
        %v9380 = vcombine.low %v8182, %v8344
        %v9381 = vcombine.high %v8182, %v8344
        %v9383 = vunpack.c.l.s4 1983009808
        %v9384 = vunpack.c.0.s8 %v9383
        %v9385 = vlaneseq
        %v9386 = vshrl.u32 %v9385, 7
        %v9387 = vsub.s32 %v9384, %v9386
        %v9388 = vrot.slane %v9380, %v9387
        %v9390 = vunpack.c.l.s4 1983009808
        %v9391 = vunpack.c.0.s8 %v9390
        %v9392 = vlaneseq
        %v9393 = vshrl.u32 %v9392, 7
        %v9394 = vsub.s32 %v9391, %v9393
        %v9395 = vrot.slane %v9381, %v9394
        %v9396 = vcombine.low %v8263, %v8425
        %v9397 = vcombine.high %v8263, %v8425
        %v9399 = vunpack.c.l.s4 1983009808
        %v9400 = vunpack.c.0.s8 %v9399
        %v9401 = vlaneseq
        %v9402 = vshrl.u32 %v9401, 7
        %v9403 = vsub.s32 %v9400, %v9402
        %v9404 = vrot.slane %v9396, %v9403
        %v9406 = vunpack.c.l.s4 1983009808
        %v9407 = vunpack.c.0.s8 %v9406
        %v9408 = vlaneseq
        %v9409 = vshrl.u32 %v9408, 7
        %v9410 = vsub.s32 %v9407, %v9409
        %v9411 = vrot.slane %v9397, %v9410
        %v9412 = vcombine.low %v9356, %v9372
        %v9413 = vcombine.high %v9356, %v9372
        %v9415 = vunpack.c.l.s4 1934713408
        %v9416 = vunpack.c.0.s8 %v9415
        %v9417 = vlaneseq
        %v9418 = vshrl.u32 %v9417, 7
        %v9419 = vsub.s32 %v9416, %v9418
        %v9420 = vrot.slane %v9412, %v9419
        %v9422 = vunpack.c.l.s4 1934713408
        %v9423 = vunpack.c.0.s8 %v9422
        %v9424 = vlaneseq
        %v9425 = vshrl.u32 %v9424, 7
        %v9426 = vsub.s32 %v9423, %v9425
        %v9427 = vrot.slane %v9413, %v9426
        %v9428 = vcombine.low %v9363, %v9379
        %v9429 = vcombine.high %v9363, %v9379
        %v9431 = vunpack.c.l.s4 1934713408
        %v9432 = vunpack.c.0.s8 %v9431
        %v9433 = vlaneseq
        %v9434 = vshrl.u32 %v9433, 7
        %v9435 = vsub.s32 %v9432, %v9434
        %v9436 = vrot.slane %v9428, %v9435
        %v9438 = vunpack.c.l.s4 1934713408
        %v9439 = vunpack.c.0.s8 %v9438
        %v9440 = vlaneseq
        %v9441 = vshrl.u32 %v9440, 7
        %v9442 = vsub.s32 %v9439, %v9441
        %v9443 = vrot.slane %v9429, %v9442
        %v9444 = vcombine.low %v9388, %v9404
        %v9445 = vcombine.high %v9388, %v9404
        %v9447 = vunpack.c.l.s4 1934713408
        %v9448 = vunpack.c.0.s8 %v9447
        %v9449 = vlaneseq
        %v9450 = vshrl.u32 %v9449, 7
        %v9451 = vsub.s32 %v9448, %v9450
        %v9452 = vrot.slane %v9444, %v9451
        %v9454 = vunpack.c.l.s4 1934713408
        %v9455 = vunpack.c.0.s8 %v9454
        %v9456 = vlaneseq
        %v9457 = vshrl.u32 %v9456, 7
        %v9458 = vsub.s32 %v9455, %v9457
        %v9459 = vrot.slane %v9445, %v9458
        %v9460 = vcombine.low %v9395, %v9411
        %v9461 = vcombine.high %v9395, %v9411
        %v9463 = vunpack.c.l.s4 1934713408
        %v9464 = vunpack.c.0.s8 %v9463
        %v9465 = vlaneseq
        %v9466 = vshrl.u32 %v9465, 7
        %v9467 = vsub.s32 %v9464, %v9466
        %v9468 = vrot.slane %v9460, %v9467
        %v9470 = vunpack.c.l.s4 1934713408
        %v9471 = vunpack.c.0.s8 %v9470
        %v9472 = vlaneseq
        %v9473 = vshrl.u32 %v9472, 7
        %v9474 = vsub.s32 %v9471, %v9473
        %v9475 = vrot.slane %v9461, %v9474
        %v9476 = vcombine.low %v9420, %v9452
        %v9477 = vcombine.high %v9420, %v9452
        %v9478 = vcombine.low %v9427, %v9459
        %v9479 = vcombine.high %v9427, %v9459
        %v9480 = vcombine.low %v9436, %v9468
        %v9481 = vcombine.high %v9436, %v9468
        %v9482 = vcombine.low %v9443, %v9475
        %v9483 = vcombine.high %v9443, %v9475
        %v9484 = vcombine.low %v8506, %v8668
        %v9485 = vcombine.high %v8506, %v8668
        %v9487 = vunpack.c.l.s4 1983009808
        %v9488 = vunpack.c.0.s8 %v9487
        %v9489 = vlaneseq
        %v9490 = vshrl.u32 %v9489, 7
        %v9491 = vsub.s32 %v9488, %v9490
        %v9492 = vrot.slane %v9484, %v9491
        %v9494 = vunpack.c.l.s4 1983009808
        %v9495 = vunpack.c.0.s8 %v9494
        %v9496 = vlaneseq
        %v9497 = vshrl.u32 %v9496, 7
        %v9498 = vsub.s32 %v9495, %v9497
        %v9499 = vrot.slane %v9485, %v9498
        %v9500 = vcombine.low %v8587, %v8749
        %v9501 = vcombine.high %v8587, %v8749
        %v9503 = vunpack.c.l.s4 1983009808
        %v9504 = vunpack.c.0.s8 %v9503
        %v9505 = vlaneseq
        %v9506 = vshrl.u32 %v9505, 7
        %v9507 = vsub.s32 %v9504, %v9506
        %v9508 = vrot.slane %v9500, %v9507
        %v9510 = vunpack.c.l.s4 1983009808
        %v9511 = vunpack.c.0.s8 %v9510
        %v9512 = vlaneseq
        %v9513 = vshrl.u32 %v9512, 7
        %v9514 = vsub.s32 %v9511, %v9513
        %v9515 = vrot.slane %v9501, %v9514
        %v9516 = vcombine.low %v8830, %v8992
        %v9517 = vcombine.high %v8830, %v8992
        %v9519 = vunpack.c.l.s4 1983009808
        %v9520 = vunpack.c.0.s8 %v9519
        %v9521 = vlaneseq
        %v9522 = vshrl.u32 %v9521, 7
        %v9523 = vsub.s32 %v9520, %v9522
        %v9524 = vrot.slane %v9516, %v9523
        %v9526 = vunpack.c.l.s4 1983009808
        %v9527 = vunpack.c.0.s8 %v9526
        %v9528 = vlaneseq
        %v9529 = vshrl.u32 %v9528, 7
        %v9530 = vsub.s32 %v9527, %v9529
        %v9531 = vrot.slane %v9517, %v9530
        %v9532 = vcombine.low %v8911, %v9073
        %v9533 = vcombine.high %v8911, %v9073
        %v9535 = vunpack.c.l.s4 1983009808
        %v9536 = vunpack.c.0.s8 %v9535
        %v9537 = vlaneseq
        %v9538 = vshrl.u32 %v9537, 7
        %v9539 = vsub.s32 %v9536, %v9538
        %v9540 = vrot.slane %v9532, %v9539
        %v9542 = vunpack.c.l.s4 1983009808
        %v9543 = vunpack.c.0.s8 %v9542
        %v9544 = vlaneseq
        %v9545 = vshrl.u32 %v9544, 7
        %v9546 = vsub.s32 %v9543, %v9545
        %v9547 = vrot.slane %v9533, %v9546
        %v9548 = vcombine.low %v9492, %v9508
        %v9549 = vcombine.high %v9492, %v9508
        %v9551 = vunpack.c.l.s4 1934713408
        %v9552 = vunpack.c.0.s8 %v9551
        %v9553 = vlaneseq
        %v9554 = vshrl.u32 %v9553, 7
        %v9555 = vsub.s32 %v9552, %v9554
        %v9556 = vrot.slane %v9548, %v9555
        %v9558 = vunpack.c.l.s4 1934713408
        %v9559 = vunpack.c.0.s8 %v9558
        %v9560 = vlaneseq
        %v9561 = vshrl.u32 %v9560, 7
        %v9562 = vsub.s32 %v9559, %v9561
        %v9563 = vrot.slane %v9549, %v9562
        %v9564 = vcombine.low %v9499, %v9515
        %v9565 = vcombine.high %v9499, %v9515
        %v9567 = vunpack.c.l.s4 1934713408
        %v9568 = vunpack.c.0.s8 %v9567
        %v9569 = vlaneseq
        %v9570 = vshrl.u32 %v9569, 7
        %v9571 = vsub.s32 %v9568, %v9570
        %v9572 = vrot.slane %v9564, %v9571
        %v9574 = vunpack.c.l.s4 1934713408
        %v9575 = vunpack.c.0.s8 %v9574
        %v9576 = vlaneseq
        %v9577 = vshrl.u32 %v9576, 7
        %v9578 = vsub.s32 %v9575, %v9577
        %v9579 = vrot.slane %v9565, %v9578
        %v9580 = vcombine.low %v9524, %v9540
        %v9581 = vcombine.high %v9524, %v9540
        %v9583 = vunpack.c.l.s4 1934713408
        %v9584 = vunpack.c.0.s8 %v9583
        %v9585 = vlaneseq
        %v9586 = vshrl.u32 %v9585, 7
        %v9587 = vsub.s32 %v9584, %v9586
        %v9588 = vrot.slane %v9580, %v9587
        %v9590 = vunpack.c.l.s4 1934713408
        %v9591 = vunpack.c.0.s8 %v9590
        %v9592 = vlaneseq
        %v9593 = vshrl.u32 %v9592, 7
        %v9594 = vsub.s32 %v9591, %v9593
        %v9595 = vrot.slane %v9581, %v9594
        %v9596 = vcombine.low %v9531, %v9547
        %v9597 = vcombine.high %v9531, %v9547
        %v9599 = vunpack.c.l.s4 1934713408
        %v9600 = vunpack.c.0.s8 %v9599
        %v9601 = vlaneseq
        %v9602 = vshrl.u32 %v9601, 7
        %v9603 = vsub.s32 %v9600, %v9602
        %v9604 = vrot.slane %v9596, %v9603
        %v9606 = vunpack.c.l.s4 1934713408
        %v9607 = vunpack.c.0.s8 %v9606
        %v9608 = vlaneseq
        %v9609 = vshrl.u32 %v9608, 7
        %v9610 = vsub.s32 %v9607, %v9609
        %v9611 = vrot.slane %v9597, %v9610
        %v9612 = vcombine.low %v9556, %v9588
        %v9613 = vcombine.high %v9556, %v9588
        %v9614 = vcombine.low %v9563, %v9595
        %v9615 = vcombine.high %v9563, %v9595
        %v9616 = vcombine.low %v9572, %v9604
        %v9617 = vcombine.high %v9572, %v9604
        %v9618 = vcombine.low %v9579, %v9611
        %v9619 = vcombine.high %v9579, %v9611
        %v9621 = vsel %vm2026, %v6693, 0
        %v9624 = vsel %vm2026, %v6695, 0
        %9626 = vmatprep.subr.mxu0 0.0
        %9627 = vmatpush1.msra.mxu0 %v3244
        %9628 = vmatprep.subr.mxu0 0.0
        %9629 = vmatpush1.msra.mxu0 %v3246
        %9630 = vmatprep.subr.mxu0 0.0
        %9631 = vmatpush1.msra.mxu0 0.0
        %9632 = vmatprep.subr.mxu0 0.0
        %9633 = vmatpush1.msra.mxu0 0.0
        %9634 = vmatprep.subr.mxu0 0.0
        %9635 = vmatpush1.msra.mxu0 0.0
        %9636 = vmatprep.subr.mxu0 0.0
        %9637 = vmatpush1.msra.mxu0 0.0
        %9638 = vmatprep.subr.mxu0 0.0
        %9639 = vmatpush1.msra.mxu0 0.0
        %9640 = vmatprep.subr.mxu0 0.0
        %9641 = vmatpush1.msra.mxu0 0.0
        %9642 = vmatprep.subr.mxu0 0.0
        %9643 = vmatpush1.msra.mxu0 0.0
        %9644 = vmatprep.subr.mxu0 0.0
        %9645 = vmatpush1.msra.mxu0 0.0
        %9646 = vmatprep.subr.mxu0 0.0
        %9647 = vmatpush1.msra.mxu0 0.0
        %9648 = vmatprep.subr.mxu0 0.0
        %9649 = vmatpush1.msra.mxu0 0.0
        %9650 = vmatprep.subr.mxu0 0.0
        %9651 = vmatpush1.msra.mxu0 0.0
        %9652 = vmatprep.subr.mxu0 0.0
        %9653 = vmatpush1.msra.mxu0 0.0
        %9654 = vmatprep.subr.mxu0 0.0
        %9655 = vmatpush1.msra.mxu0 0.0
        %9656 = vmatprep.subr.mxu0 0.0
        %9657 = vmatpush1.msra.mxu0 0.0
        %9658 = vmatprep.subr.mxu0 0.0
        %9659 = vmatpush1.msra.mxu0 0.0
        %9660 = vmatprep.subr.mxu0 0.0
        %9661 = vmatpush1.msra.mxu0 0.0
        %9662 = vmatprep.subr.mxu0 0.0
        %9663 = vmatpush1.msra.mxu0 0.0
        %9664 = vmatprep.subr.mxu0 0.0
        %9665 = vmatpush1.msra.mxu0 0.0
        %9666 = vmatprep.subr.mxu0 0.0
        %9667 = vmatpush1.msra.mxu0 0.0
        %9668 = vmatprep.subr.mxu0 0.0
        %9669 = vmatpush1.msra.mxu0 0.0
        %9670 = vmatprep.subr.mxu0 0.0
        %9671 = vmatpush1.msra.mxu0 0.0
        %9672 = vmatprep.subr.mxu0 0.0
        %9673 = vmatpush1.msra.mxu0 0.0
        %9674 = vmatprep.subr.mxu0 0.0
        %9675 = vmatpush1.msra.mxu0 0.0
        %9676 = vmatprep.subr.mxu0 0.0
        %9677 = vmatpush1.msra.mxu0 0.0
        %9678 = vmatprep.subr.mxu0 0.0
        %9679 = vmatpush1.msra.mxu0 0.0
        %9680 = vmatprep.subr.mxu0 0.0
        %9681 = vmatpush1.msra.mxu0 0.0
        %9682 = vmatprep.subr.mxu0 0.0
        %9683 = vmatpush1.msra.mxu0 0.0
        %9684 = vmatprep.subr.mxu0 0.0
        %9685 = vmatpush1.msra.mxu0 0.0
        %9686 = vmatprep.subr.mxu0 0.0
        %9687 = vmatpush1.msra.mxu0 0.0
        %9688 = vmatprep.subr.mxu0 0.0
        %9689 = vmatpush1.msra.mxu0 0.0
        %9690 = vmatprep.mubr.f32.mxu0 0.0
        %9691 = vmatmul.mubr.f32.gmra.mrb[0].mxu0 %v9621
        %v9692 = vpop.f32.mrb[0].mxu0
        %v9693 = vadd.f32 %v9204, %v9692
        %v9694 = vpop.f32.mrb[0].mxu0
        %9695 = vmatprep.mubr.f32.mxu0 0.0
        %9696 = vmatmul.mubr.f32.gmra.mrb[0].mxu0 %v9624
        %v9697 = vpop.f32.mrb[0].mxu0
        %v9698 = vadd.f32 %v9340, %v9697
        %v9699 = vpop.f32.mrb[0].mxu0
        %9700 = vdwg.mxu0
        %v9702 = vsel %vm2026, %v6697, 0
        %v9705 = vsel %vm2026, %v6699, 0
        %9707 = vmatprep.subr.mxu0 0.0
        %9708 = vmatpush1.msra.mxu0 %v3248
        %9709 = vmatprep.subr.mxu0 0.0
        %9710 = vmatpush1.msra.mxu0 %v3250
        %9711 = vmatprep.subr.mxu0 0.0
        %9712 = vmatpush1.msra.mxu0 0.0
        %9713 = vmatprep.subr.mxu0 0.0
        %9714 = vmatpush1.msra.mxu0 0.0
        %9715 = vmatprep.subr.mxu0 0.0
        %9716 = vmatpush1.msra.mxu0 0.0
        %9717 = vmatprep.subr.mxu0 0.0
        %9718 = vmatpush1.msra.mxu0 0.0
        %9719 = vmatprep.subr.mxu0 0.0
        %9720 = vmatpush1.msra.mxu0 0.0
        %9721 = vmatprep.subr.mxu0 0.0
        %9722 = vmatpush1.msra.mxu0 0.0
        %9723 = vmatprep.subr.mxu0 0.0
        %9724 = vmatpush1.msra.mxu0 0.0
        %9725 = vmatprep.subr.mxu0 0.0
        %9726 = vmatpush1.msra.mxu0 0.0
        %9727 = vmatprep.subr.mxu0 0.0
        %9728 = vmatpush1.msra.mxu0 0.0
        %9729 = vmatprep.subr.mxu0 0.0
        %9730 = vmatpush1.msra.mxu0 0.0
        %9731 = vmatprep.subr.mxu0 0.0
        %9732 = vmatpush1.msra.mxu0 0.0
        %9733 = vmatprep.subr.mxu0 0.0
        %9734 = vmatpush1.msra.mxu0 0.0
        %9735 = vmatprep.subr.mxu0 0.0
        %9736 = vmatpush1.msra.mxu0 0.0
        %9737 = vmatprep.subr.mxu0 0.0
        %9738 = vmatpush1.msra.mxu0 0.0
        %9739 = vmatprep.subr.mxu0 0.0
        %9740 = vmatpush1.msra.mxu0 0.0
        %9741 = vmatprep.subr.mxu0 0.0
        %9742 = vmatpush1.msra.mxu0 0.0
        %9743 = vmatprep.subr.mxu0 0.0
        %9744 = vmatpush1.msra.mxu0 0.0
        %9745 = vmatprep.subr.mxu0 0.0
        %9746 = vmatpush1.msra.mxu0 0.0
        %9747 = vmatprep.subr.mxu0 0.0
        %9748 = vmatpush1.msra.mxu0 0.0
        %9749 = vmatprep.subr.mxu0 0.0
        %9750 = vmatpush1.msra.mxu0 0.0
        %9751 = vmatprep.subr.mxu0 0.0
        %9752 = vmatpush1.msra.mxu0 0.0
        %9753 = vmatprep.subr.mxu0 0.0
        %9754 = vmatpush1.msra.mxu0 0.0
        %9755 = vmatprep.subr.mxu0 0.0
        %9756 = vmatpush1.msra.mxu0 0.0
        %9757 = vmatprep.subr.mxu0 0.0
        %9758 = vmatpush1.msra.mxu0 0.0
        %9759 = vmatprep.subr.mxu0 0.0
        %9760 = vmatpush1.msra.mxu0 0.0
        %9761 = vmatprep.subr.mxu0 0.0
        %9762 = vmatpush1.msra.mxu0 0.0
        %9763 = vmatprep.subr.mxu0 0.0
        %9764 = vmatpush1.msra.mxu0 0.0
        %9765 = vmatprep.subr.mxu0 0.0
        %9766 = vmatpush1.msra.mxu0 0.0
        %9767 = vmatprep.subr.mxu0 0.0
        %9768 = vmatpush1.msra.mxu0 0.0
        %9769 = vmatprep.subr.mxu0 0.0
        %9770 = vmatpush1.msra.mxu0 0.0
        %9771 = vmatprep.mubr.f32.mxu0 0.0
        %9772 = vmatmul.mubr.f32.gmra.mrb[0].mxu0 %v9702
        %v9773 = vpop.f32.mrb[0].mxu0
        %v9774 = vadd.f32 %v9205, %v9773
        %v9775 = vpop.f32.mrb[0].mxu0
        %9776 = vmatprep.mubr.f32.mxu0 0.0
        %9777 = vmatmul.mubr.f32.gmra.mrb[0].mxu0 %v9705
        %v9778 = vpop.f32.mrb[0].mxu0
        %v9779 = vadd.f32 %v9341, %v9778
        %v9780 = vpop.f32.mrb[0].mxu0
        %9781 = vdwg.mxu0
        %v9783 = vsel %vm2026, %v6701, 0
        %v9786 = vsel %vm2026, %v6703, 0
        %9788 = vmatprep.subr.mxu0 0.0
        %9789 = vmatpush1.msra.mxu0 %v3252
        %9790 = vmatprep.subr.mxu0 0.0
        %9791 = vmatpush1.msra.mxu0 %v3254
        %9792 = vmatprep.subr.mxu0 0.0
        %9793 = vmatpush1.msra.mxu0 0.0
        %9794 = vmatprep.subr.mxu0 0.0
        %9795 = vmatpush1.msra.mxu0 0.0
        %9796 = vmatprep.subr.mxu0 0.0
        %9797 = vmatpush1.msra.mxu0 0.0
        %9798 = vmatprep.subr.mxu0 0.0
        %9799 = vmatpush1.msra.mxu0 0.0
        %9800 = vmatprep.subr.mxu0 0.0
        %9801 = vmatpush1.msra.mxu0 0.0
        %9802 = vmatprep.subr.mxu0 0.0
        %9803 = vmatpush1.msra.mxu0 0.0
        %9804 = vmatprep.subr.mxu0 0.0
        %9805 = vmatpush1.msra.mxu0 0.0
        %9806 = vmatprep.subr.mxu0 0.0
        %9807 = vmatpush1.msra.mxu0 0.0
        %9808 = vmatprep.subr.mxu0 0.0
        %9809 = vmatpush1.msra.mxu0 0.0
        %9810 = vmatprep.subr.mxu0 0.0
        %9811 = vmatpush1.msra.mxu0 0.0
        %9812 = vmatprep.subr.mxu0 0.0
        %9813 = vmatpush1.msra.mxu0 0.0
        %9814 = vmatprep.subr.mxu0 0.0
        %9815 = vmatpush1.msra.mxu0 0.0
        %9816 = vmatprep.subr.mxu0 0.0
        %9817 = vmatpush1.msra.mxu0 0.0
        %9818 = vmatprep.subr.mxu0 0.0
        %9819 = vmatpush1.msra.mxu0 0.0
        %9820 = vmatprep.subr.mxu0 0.0
        %9821 = vmatpush1.msra.mxu0 0.0
        %9822 = vmatprep.subr.mxu0 0.0
        %9823 = vmatpush1.msra.mxu0 0.0
        %9824 = vmatprep.subr.mxu0 0.0
        %9825 = vmatpush1.msra.mxu0 0.0
        %9826 = vmatprep.subr.mxu0 0.0
        %9827 = vmatpush1.msra.mxu0 0.0
        %9828 = vmatprep.subr.mxu0 0.0
        %9829 = vmatpush1.msra.mxu0 0.0
        %9830 = vmatprep.subr.mxu0 0.0
        %9831 = vmatpush1.msra.mxu0 0.0
        %9832 = vmatprep.subr.mxu0 0.0
        %9833 = vmatpush1.msra.mxu0 0.0
        %9834 = vmatprep.subr.mxu0 0.0
        %9835 = vmatpush1.msra.mxu0 0.0
        %9836 = vmatprep.subr.mxu0 0.0
        %9837 = vmatpush1.msra.mxu0 0.0
        %9838 = vmatprep.subr.mxu0 0.0
        %9839 = vmatpush1.msra.mxu0 0.0
        %9840 = vmatprep.subr.mxu0 0.0
        %9841 = vmatpush1.msra.mxu0 0.0
        %9842 = vmatprep.subr.mxu0 0.0
        %9843 = vmatpush1.msra.mxu0 0.0
        %9844 = vmatprep.subr.mxu0 0.0
        %9845 = vmatpush1.msra.mxu0 0.0
        %9846 = vmatprep.subr.mxu0 0.0
        %9847 = vmatpush1.msra.mxu0 0.0
        %9848 = vmatprep.subr.mxu0 0.0
        %9849 = vmatpush1.msra.mxu0 0.0
        %9850 = vmatprep.subr.mxu0 0.0
        %9851 = vmatpush1.msra.mxu0 0.0
        %9852 = vmatprep.mubr.f32.mxu0 0.0
        %9853 = vmatmul.mubr.f32.gmra.mrb[0].mxu0 %v9783
        %v9854 = vpop.f32.mrb[0].mxu0
        %v9855 = vadd.f32 %v9206, %v9854
        %v9856 = vpop.f32.mrb[0].mxu0
        %9857 = vmatprep.mubr.f32.mxu0 0.0
        %9858 = vmatmul.mubr.f32.gmra.mrb[0].mxu0 %v9786
        %v9859 = vpop.f32.mrb[0].mxu0
        %v9860 = vadd.f32 %v9342, %v9859
        %v9861 = vpop.f32.mrb[0].mxu0
        %9862 = vdwg.mxu0
        %v9864 = vsel %vm2026, %v6705, 0
        %v9867 = vsel %vm2026, %v6707, 0
        %9869 = vmatprep.subr.mxu0 0.0
        %9870 = vmatpush1.msra.mxu0 %v3256
        %9871 = vmatprep.subr.mxu0 0.0
        %9872 = vmatpush1.msra.mxu0 %v3258
        %9873 = vmatprep.subr.mxu0 0.0
        %9874 = vmatpush1.msra.mxu0 0.0
        %9875 = vmatprep.subr.mxu0 0.0
        %9876 = vmatpush1.msra.mxu0 0.0
        %9877 = vmatprep.subr.mxu0 0.0
        %9878 = vmatpush1.msra.mxu0 0.0
        %9879 = vmatprep.subr.mxu0 0.0
        %9880 = vmatpush1.msra.mxu0 0.0
        %9881 = vmatprep.subr.mxu0 0.0
        %9882 = vmatpush1.msra.mxu0 0.0
        %9883 = vmatprep.subr.mxu0 0.0
        %9884 = vmatpush1.msra.mxu0 0.0
        %9885 = vmatprep.subr.mxu0 0.0
        %9886 = vmatpush1.msra.mxu0 0.0
        %9887 = vmatprep.subr.mxu0 0.0
        %9888 = vmatpush1.msra.mxu0 0.0
        %9889 = vmatprep.subr.mxu0 0.0
        %9890 = vmatpush1.msra.mxu0 0.0
        %9891 = vmatprep.subr.mxu0 0.0
        %9892 = vmatpush1.msra.mxu0 0.0
        %9893 = vmatprep.subr.mxu0 0.0
        %9894 = vmatpush1.msra.mxu0 0.0
        %9895 = vmatprep.subr.mxu0 0.0
        %9896 = vmatpush1.msra.mxu0 0.0
        %9897 = vmatprep.subr.mxu0 0.0
        %9898 = vmatpush1.msra.mxu0 0.0
        %9899 = vmatprep.subr.mxu0 0.0
        %9900 = vmatpush1.msra.mxu0 0.0
        %9901 = vmatprep.subr.mxu0 0.0
        %9902 = vmatpush1.msra.mxu0 0.0
        %9903 = vmatprep.subr.mxu0 0.0
        %9904 = vmatpush1.msra.mxu0 0.0
        %9905 = vmatprep.subr.mxu0 0.0
        %9906 = vmatpush1.msra.mxu0 0.0
        %9907 = vmatprep.subr.mxu0 0.0
        %9908 = vmatpush1.msra.mxu0 0.0
        %9909 = vmatprep.subr.mxu0 0.0
        %9910 = vmatpush1.msra.mxu0 0.0
        %9911 = vmatprep.subr.mxu0 0.0
        %9912 = vmatpush1.msra.mxu0 0.0
        %9913 = vmatprep.subr.mxu0 0.0
        %9914 = vmatpush1.msra.mxu0 0.0
        %9915 = vmatprep.subr.mxu0 0.0
        %9916 = vmatpush1.msra.mxu0 0.0
        %9917 = vmatprep.subr.mxu0 0.0
        %9918 = vmatpush1.msra.mxu0 0.0
        %9919 = vmatprep.subr.mxu0 0.0
        %9920 = vmatpush1.msra.mxu0 0.0
        %9921 = vmatprep.subr.mxu0 0.0
        %9922 = vmatpush1.msra.mxu0 0.0
        %9923 = vmatprep.subr.mxu0 0.0
        %9924 = vmatpush1.msra.mxu0 0.0
        %9925 = vmatprep.subr.mxu0 0.0
        %9926 = vmatpush1.msra.mxu0 0.0
        %9927 = vmatprep.subr.mxu0 0.0
        %9928 = vmatpush1.msra.mxu0 0.0
        %9929 = vmatprep.subr.mxu0 0.0
        %9930 = vmatpush1.msra.mxu0 0.0
        %9931 = vmatprep.subr.mxu0 0.0
        %9932 = vmatpush1.msra.mxu0 0.0
        %9933 = vmatprep.mubr.f32.mxu0 0.0
        %9934 = vmatmul.mubr.f32.gmra.mrb[0].mxu0 %v9864
        %v9935 = vpop.f32.mrb[0].mxu0
        %v9936 = vadd.f32 %v9207, %v9935
        %v9937 = vpop.f32.mrb[0].mxu0
        %9938 = vmatprep.mubr.f32.mxu0 0.0
        %9939 = vmatmul.mubr.f32.gmra.mrb[0].mxu0 %v9867
        %v9940 = vpop.f32.mrb[0].mxu0
        %v9941 = vadd.f32 %v9343, %v9940
        %v9942 = vpop.f32.mrb[0].mxu0
        %9943 = vdwg.mxu0
        %v9945 = vsel %vm2026, %v6709, 0
        %v9948 = vsel %vm2026, %v6711, 0
        %9950 = vmatprep.subr.mxu0 0.0
        %9951 = vmatpush1.msra.mxu0 %v3260
        %9952 = vmatprep.subr.mxu0 0.0
        %9953 = vmatpush1.msra.mxu0 %v3262
        %9954 = vmatprep.subr.mxu0 0.0
        %9955 = vmatpush1.msra.mxu0 0.0
        %9956 = vmatprep.subr.mxu0 0.0
        %9957 = vmatpush1.msra.mxu0 0.0
        %9958 = vmatprep.subr.mxu0 0.0
        %9959 = vmatpush1.msra.mxu0 0.0
        %9960 = vmatprep.subr.mxu0 0.0
        %9961 = vmatpush1.msra.mxu0 0.0
        %9962 = vmatprep.subr.mxu0 0.0
        %9963 = vmatpush1.msra.mxu0 0.0
        %9964 = vmatprep.subr.mxu0 0.0
        %9965 = vmatpush1.msra.mxu0 0.0
        %9966 = vmatprep.subr.mxu0 0.0
        %9967 = vmatpush1.msra.mxu0 0.0
        %9968 = vmatprep.subr.mxu0 0.0
        %9969 = vmatpush1.msra.mxu0 0.0
        %9970 = vmatprep.subr.mxu0 0.0
        %9971 = vmatpush1.msra.mxu0 0.0
        %9972 = vmatprep.subr.mxu0 0.0
        %9973 = vmatpush1.msra.mxu0 0.0
        %9974 = vmatprep.subr.mxu0 0.0
        %9975 = vmatpush1.msra.mxu0 0.0
        %9976 = vmatprep.subr.mxu0 0.0
        %9977 = vmatpush1.msra.mxu0 0.0
        %9978 = vmatprep.subr.mxu0 0.0
        %9979 = vmatpush1.msra.mxu0 0.0
        %9980 = vmatprep.subr.mxu0 0.0
        %9981 = vmatpush1.msra.mxu0 0.0
        %9982 = vmatprep.subr.mxu0 0.0
        %9983 = vmatpush1.msra.mxu0 0.0
        %9984 = vmatprep.subr.mxu0 0.0
        %9985 = vmatpush1.msra.mxu0 0.0
        %9986 = vmatprep.subr.mxu0 0.0
        %9987 = vmatpush1.msra.mxu0 0.0
        %9988 = vmatprep.subr.mxu0 0.0
        %9989 = vmatpush1.msra.mxu0 0.0
        %9990 = vmatprep.subr.mxu0 0.0
        %9991 = vmatpush1.msra.mxu0 0.0
        %9992 = vmatprep.subr.mxu0 0.0
        %9993 = vmatpush1.msra.mxu0 0.0
        %9994 = vmatprep.subr.mxu0 0.0
        %9995 = vmatpush1.msra.mxu0 0.0
        %9996 = vmatprep.subr.mxu0 0.0
        %9997 = vmatpush1.msra.mxu0 0.0
        %9998 = vmatprep.subr.mxu0 0.0
        %9999 = vmatpush1.msra.mxu0 0.0
        %10000 = vmatprep.subr.mxu0 0.0
        %10001 = vmatpush1.msra.mxu0 0.0
        %10002 = vmatprep.subr.mxu0 0.0
        %10003 = vmatpush1.msra.mxu0 0.0
        %10004 = vmatprep.subr.mxu0 0.0
        %10005 = vmatpush1.msra.mxu0 0.0
        %10006 = vmatprep.subr.mxu0 0.0
        %10007 = vmatpush1.msra.mxu0 0.0
        %10008 = vmatprep.subr.mxu0 0.0
        %10009 = vmatpush1.msra.mxu0 0.0
        %10010 = vmatprep.subr.mxu0 0.0
        %10011 = vmatpush1.msra.mxu0 0.0
        %10012 = vmatprep.subr.mxu0 0.0
        %10013 = vmatpush1.msra.mxu0 0.0
        %10014 = vmatprep.mubr.f32.mxu0 0.0
        %10015 = vmatmul.mubr.f32.gmra.mrb[0].mxu0 %v9945
        %v10016 = vpop.f32.mrb[0].mxu0
        %v10017 = vadd.f32 %v9208, %v10016
        %v10018 = vpop.f32.mrb[0].mxu0
        %10019 = vmatprep.mubr.f32.mxu0 0.0
        %10020 = vmatmul.mubr.f32.gmra.mrb[0].mxu0 %v9948
        %v10021 = vpop.f32.mrb[0].mxu0
        %v10022 = vadd.f32 %v9344, %v10021
        %v10023 = vpop.f32.mrb[0].mxu0
        %10024 = vdwg.mxu0
        %v10026 = vsel %vm2026, %v6713, 0
        %v10029 = vsel %vm2026, %v6715, 0
        %10031 = vmatprep.subr.mxu0 0.0
        %10032 = vmatpush1.msra.mxu0 %v3264
        %10033 = vmatprep.subr.mxu0 0.0
        %10034 = vmatpush1.msra.mxu0 %v3266
        %10035 = vmatprep.subr.mxu0 0.0
        %10036 = vmatpush1.msra.mxu0 0.0
        %10037 = vmatprep.subr.mxu0 0.0
        %10038 = vmatpush1.msra.mxu0 0.0
        %10039 = vmatprep.subr.mxu0 0.0
        %10040 = vmatpush1.msra.mxu0 0.0
        %10041 = vmatprep.subr.mxu0 0.0
        %10042 = vmatpush1.msra.mxu0 0.0
        %10043 = vmatprep.subr.mxu0 0.0
        %10044 = vmatpush1.msra.mxu0 0.0
        %10045 = vmatprep.subr.mxu0 0.0
        %10046 = vmatpush1.msra.mxu0 0.0
        %10047 = vmatprep.subr.mxu0 0.0
        %10048 = vmatpush1.msra.mxu0 0.0
        %10049 = vmatprep.subr.mxu0 0.0
        %10050 = vmatpush1.msra.mxu0 0.0
        %10051 = vmatprep.subr.mxu0 0.0
        %10052 = vmatpush1.msra.mxu0 0.0
        %10053 = vmatprep.subr.mxu0 0.0
        %10054 = vmatpush1.msra.mxu0 0.0
        %10055 = vmatprep.subr.mxu0 0.0
        %10056 = vmatpush1.msra.mxu0 0.0
        %10057 = vmatprep.subr.mxu0 0.0
        %10058 = vmatpush1.msra.mxu0 0.0
        %10059 = vmatprep.subr.mxu0 0.0
        %10060 = vmatpush1.msra.mxu0 0.0
        %10061 = vmatprep.subr.mxu0 0.0
        %10062 = vmatpush1.msra.mxu0 0.0
        %10063 = vmatprep.subr.mxu0 0.0
        %10064 = vmatpush1.msra.mxu0 0.0
        %10065 = vmatprep.subr.mxu0 0.0
        %10066 = vmatpush1.msra.mxu0 0.0
        %10067 = vmatprep.subr.mxu0 0.0
        %10068 = vmatpush1.msra.mxu0 0.0
        %10069 = vmatprep.subr.mxu0 0.0
        %10070 = vmatpush1.msra.mxu0 0.0
        %10071 = vmatprep.subr.mxu0 0.0
        %10072 = vmatpush1.msra.mxu0 0.0
        %10073 = vmatprep.subr.mxu0 0.0
        %10074 = vmatpush1.msra.mxu0 0.0
        %10075 = vmatprep.subr.mxu0 0.0
        %10076 = vmatpush1.msra.mxu0 0.0
        %10077 = vmatprep.subr.mxu0 0.0
        %10078 = vmatpush1.msra.mxu0 0.0
        %10079 = vmatprep.subr.mxu0 0.0
        %10080 = vmatpush1.msra.mxu0 0.0
        %10081 = vmatprep.subr.mxu0 0.0
        %10082 = vmatpush1.msra.mxu0 0.0
        %10083 = vmatprep.subr.mxu0 0.0
        %10084 = vmatpush1.msra.mxu0 0.0
        %10085 = vmatprep.subr.mxu0 0.0
        %10086 = vmatpush1.msra.mxu0 0.0
        %10087 = vmatprep.subr.mxu0 0.0
        %10088 = vmatpush1.msra.mxu0 0.0
        %10089 = vmatprep.subr.mxu0 0.0
        %10090 = vmatpush1.msra.mxu0 0.0
        %10091 = vmatprep.subr.mxu0 0.0
        %10092 = vmatpush1.msra.mxu0 0.0
        %10093 = vmatprep.subr.mxu0 0.0
        %10094 = vmatpush1.msra.mxu0 0.0
        %10095 = vmatprep.mubr.f32.mxu0 0.0
        %10096 = vmatmul.mubr.f32.gmra.mrb[0].mxu0 %v10026
        %v10097 = vpop.f32.mrb[0].mxu0
        %v10098 = vadd.f32 %v9209, %v10097
        %v10099 = vpop.f32.mrb[0].mxu0
        %10100 = vmatprep.mubr.f32.mxu0 0.0
        %10101 = vmatmul.mubr.f32.gmra.mrb[0].mxu0 %v10029
        %v10102 = vpop.f32.mrb[0].mxu0
        %v10103 = vadd.f32 %v9345, %v10102
        %v10104 = vpop.f32.mrb[0].mxu0
        %10105 = vdwg.mxu0
        %v10107 = vsel %vm2026, %v6717, 0
        %v10110 = vsel %vm2026, %v6719, 0
        %10112 = vmatprep.subr.mxu0 0.0
        %10113 = vmatpush1.msra.mxu0 %v3268
        %10114 = vmatprep.subr.mxu0 0.0
        %10115 = vmatpush1.msra.mxu0 %v3270
        %10116 = vmatprep.subr.mxu0 0.0
        %10117 = vmatpush1.msra.mxu0 0.0
        %10118 = vmatprep.subr.mxu0 0.0
        %10119 = vmatpush1.msra.mxu0 0.0
        %10120 = vmatprep.subr.mxu0 0.0
        %10121 = vmatpush1.msra.mxu0 0.0
        %10122 = vmatprep.subr.mxu0 0.0
        %10123 = vmatpush1.msra.mxu0 0.0
        %10124 = vmatprep.subr.mxu0 0.0
        %10125 = vmatpush1.msra.mxu0 0.0
        %10126 = vmatprep.subr.mxu0 0.0
        %10127 = vmatpush1.msra.mxu0 0.0
        %10128 = vmatprep.subr.mxu0 0.0
        %10129 = vmatpush1.msra.mxu0 0.0
        %10130 = vmatprep.subr.mxu0 0.0
        %10131 = vmatpush1.msra.mxu0 0.0
        %10132 = vmatprep.subr.mxu0 0.0
        %10133 = vmatpush1.msra.mxu0 0.0
        %10134 = vmatprep.subr.mxu0 0.0
        %10135 = vmatpush1.msra.mxu0 0.0
        %10136 = vmatprep.subr.mxu0 0.0
        %10137 = vmatpush1.msra.mxu0 0.0
        %10138 = vmatprep.subr.mxu0 0.0
        %10139 = vmatpush1.msra.mxu0 0.0
        %10140 = vmatprep.subr.mxu0 0.0
        %10141 = vmatpush1.msra.mxu0 0.0
        %10142 = vmatprep.subr.mxu0 0.0
        %10143 = vmatpush1.msra.mxu0 0.0
        %10144 = vmatprep.subr.mxu0 0.0
        %10145 = vmatpush1.msra.mxu0 0.0
        %10146 = vmatprep.subr.mxu0 0.0
        %10147 = vmatpush1.msra.mxu0 0.0
        %10148 = vmatprep.subr.mxu0 0.0
        %10149 = vmatpush1.msra.mxu0 0.0
        %10150 = vmatprep.subr.mxu0 0.0
        %10151 = vmatpush1.msra.mxu0 0.0
        %10152 = vmatprep.subr.mxu0 0.0
        %10153 = vmatpush1.msra.mxu0 0.0
        %10154 = vmatprep.subr.mxu0 0.0
        %10155 = vmatpush1.msra.mxu0 0.0
        %10156 = vmatprep.subr.mxu0 0.0
        %10157 = vmatpush1.msra.mxu0 0.0
        %10158 = vmatprep.subr.mxu0 0.0
        %10159 = vmatpush1.msra.mxu0 0.0
        %10160 = vmatprep.subr.mxu0 0.0
        %10161 = vmatpush1.msra.mxu0 0.0
        %10162 = vmatprep.subr.mxu0 0.0
        %10163 = vmatpush1.msra.mxu0 0.0
        %10164 = vmatprep.subr.mxu0 0.0
        %10165 = vmatpush1.msra.mxu0 0.0
        %10166 = vmatprep.subr.mxu0 0.0
        %10167 = vmatpush1.msra.mxu0 0.0
        %10168 = vmatprep.subr.mxu0 0.0
        %10169 = vmatpush1.msra.mxu0 0.0
        %10170 = vmatprep.subr.mxu0 0.0
        %10171 = vmatpush1.msra.mxu0 0.0
        %10172 = vmatprep.subr.mxu0 0.0
        %10173 = vmatpush1.msra.mxu0 0.0
        %10174 = vmatprep.subr.mxu0 0.0
        %10175 = vmatpush1.msra.mxu0 0.0
        %10176 = vmatprep.mubr.f32.mxu0 0.0
        %10177 = vmatmul.mubr.f32.gmra.mrb[0].mxu0 %v10107
        %v10178 = vpop.f32.mrb[0].mxu0
        %v10179 = vadd.f32 %v9210, %v10178
        %v10180 = vpop.f32.mrb[0].mxu0
        %10181 = vmatprep.mubr.f32.mxu0 0.0
        %10182 = vmatmul.mubr.f32.gmra.mrb[0].mxu0 %v10110
        %v10183 = vpop.f32.mrb[0].mxu0
        %v10184 = vadd.f32 %v9346, %v10183
        %v10185 = vpop.f32.mrb[0].mxu0
        %10186 = vdwg.mxu0
        %v10188 = vsel %vm2026, %v6721, 0
        %v10191 = vsel %vm2026, %v6723, 0
        %10193 = vmatprep.subr.mxu0 0.0
        %10194 = vmatpush1.msra.mxu0 %v3272
        %10195 = vmatprep.subr.mxu0 0.0
        %10196 = vmatpush1.msra.mxu0 %v3274
        %10197 = vmatprep.subr.mxu0 0.0
        %10198 = vmatpush1.msra.mxu0 0.0
        %10199 = vmatprep.subr.mxu0 0.0
        %10200 = vmatpush1.msra.mxu0 0.0
        %10201 = vmatprep.subr.mxu0 0.0
        %10202 = vmatpush1.msra.mxu0 0.0
        %10203 = vmatprep.subr.mxu0 0.0
        %10204 = vmatpush1.msra.mxu0 0.0
        %10205 = vmatprep.subr.mxu0 0.0
        %10206 = vmatpush1.msra.mxu0 0.0
        %10207 = vmatprep.subr.mxu0 0.0
        %10208 = vmatpush1.msra.mxu0 0.0
        %10209 = vmatprep.subr.mxu0 0.0
        %10210 = vmatpush1.msra.mxu0 0.0
        %10211 = vmatprep.subr.mxu0 0.0
        %10212 = vmatpush1.msra.mxu0 0.0
        %10213 = vmatprep.subr.mxu0 0.0
        %10214 = vmatpush1.msra.mxu0 0.0
        %10215 = vmatprep.subr.mxu0 0.0
        %10216 = vmatpush1.msra.mxu0 0.0
        %10217 = vmatprep.subr.mxu0 0.0
        %10218 = vmatpush1.msra.mxu0 0.0
        %10219 = vmatprep.subr.mxu0 0.0
        %10220 = vmatpush1.msra.mxu0 0.0
        %10221 = vmatprep.subr.mxu0 0.0
        %10222 = vmatpush1.msra.mxu0 0.0
        %10223 = vmatprep.subr.mxu0 0.0
        %10224 = vmatpush1.msra.mxu0 0.0
        %10225 = vmatprep.subr.mxu0 0.0
        %10226 = vmatpush1.msra.mxu0 0.0
        %10227 = vmatprep.subr.mxu0 0.0
        %10228 = vmatpush1.msra.mxu0 0.0
        %10229 = vmatprep.subr.mxu0 0.0
        %10230 = vmatpush1.msra.mxu0 0.0
        %10231 = vmatprep.subr.mxu0 0.0
        %10232 = vmatpush1.msra.mxu0 0.0
        %10233 = vmatprep.subr.mxu0 0.0
        %10234 = vmatpush1.msra.mxu0 0.0
        %10235 = vmatprep.subr.mxu0 0.0
        %10236 = vmatpush1.msra.mxu0 0.0
        %10237 = vmatprep.subr.mxu0 0.0
        %10238 = vmatpush1.msra.mxu0 0.0
        %10239 = vmatprep.subr.mxu0 0.0
        %10240 = vmatpush1.msra.mxu0 0.0
        %10241 = vmatprep.subr.mxu0 0.0
        %10242 = vmatpush1.msra.mxu0 0.0
        %10243 = vmatprep.subr.mxu0 0.0
        %10244 = vmatpush1.msra.mxu0 0.0
        %10245 = vmatprep.subr.mxu0 0.0
        %10246 = vmatpush1.msra.mxu0 0.0
        %10247 = vmatprep.subr.mxu0 0.0
        %10248 = vmatpush1.msra.mxu0 0.0
        %10249 = vmatprep.subr.mxu0 0.0
        %10250 = vmatpush1.msra.mxu0 0.0
        %10251 = vmatprep.subr.mxu0 0.0
        %10252 = vmatpush1.msra.mxu0 0.0
        %10253 = vmatprep.subr.mxu0 0.0
        %10254 = vmatpush1.msra.mxu0 0.0
        %10255 = vmatprep.subr.mxu0 0.0
        %10256 = vmatpush1.msra.mxu0 0.0
        %10257 = vmatprep.mubr.f32.mxu0 0.0
        %10258 = vmatmul.mubr.f32.gmra.mrb[0].mxu0 %v10188
        %v10259 = vpop.f32.mrb[0].mxu0
        %v10260 = vadd.f32 %v9211, %v10259
        %v10261 = vpop.f32.mrb[0].mxu0
        %10262 = vmatprep.mubr.f32.mxu0 0.0
        %10263 = vmatmul.mubr.f32.gmra.mrb[0].mxu0 %v10191
        %v10264 = vpop.f32.mrb[0].mxu0
        %v10265 = vadd.f32 %v9347, %v10264
        %v10266 = vpop.f32.mrb[0].mxu0
        %10267 = vdwg.mxu0
        %v10269 = vsel %vm2026, %v6725, 0
        %v10272 = vsel %vm2026, %v6727, 0
        %10274 = vmatprep.subr.mxu0 0.0
        %10275 = vmatpush1.msra.mxu0 %v3276
        %10276 = vmatprep.subr.mxu0 0.0
        %10277 = vmatpush1.msra.mxu0 %v3278
        %10278 = vmatprep.subr.mxu0 0.0
        %10279 = vmatpush1.msra.mxu0 0.0
        %10280 = vmatprep.subr.mxu0 0.0
        %10281 = vmatpush1.msra.mxu0 0.0
        %10282 = vmatprep.subr.mxu0 0.0
        %10283 = vmatpush1.msra.mxu0 0.0
        %10284 = vmatprep.subr.mxu0 0.0
        %10285 = vmatpush1.msra.mxu0 0.0
        %10286 = vmatprep.subr.mxu0 0.0
        %10287 = vmatpush1.msra.mxu0 0.0
        %10288 = vmatprep.subr.mxu0 0.0
        %10289 = vmatpush1.msra.mxu0 0.0
        %10290 = vmatprep.subr.mxu0 0.0
        %10291 = vmatpush1.msra.mxu0 0.0
        %10292 = vmatprep.subr.mxu0 0.0
        %10293 = vmatpush1.msra.mxu0 0.0
        %10294 = vmatprep.subr.mxu0 0.0
        %10295 = vmatpush1.msra.mxu0 0.0
        %10296 = vmatprep.subr.mxu0 0.0
        %10297 = vmatpush1.msra.mxu0 0.0
        %10298 = vmatprep.subr.mxu0 0.0
        %10299 = vmatpush1.msra.mxu0 0.0
        %10300 = vmatprep.subr.mxu0 0.0
        %10301 = vmatpush1.msra.mxu0 0.0
        %10302 = vmatprep.subr.mxu0 0.0
        %10303 = vmatpush1.msra.mxu0 0.0
        %10304 = vmatprep.subr.mxu0 0.0
        %10305 = vmatpush1.msra.mxu0 0.0
        %10306 = vmatprep.subr.mxu0 0.0
        %10307 = vmatpush1.msra.mxu0 0.0
        %10308 = vmatprep.subr.mxu0 0.0
        %10309 = vmatpush1.msra.mxu0 0.0
        %10310 = vmatprep.subr.mxu0 0.0
        %10311 = vmatpush1.msra.mxu0 0.0
        %10312 = vmatprep.subr.mxu0 0.0
        %10313 = vmatpush1.msra.mxu0 0.0
        %10314 = vmatprep.subr.mxu0 0.0
        %10315 = vmatpush1.msra.mxu0 0.0
        %10316 = vmatprep.subr.mxu0 0.0
        %10317 = vmatpush1.msra.mxu0 0.0
        %10318 = vmatprep.subr.mxu0 0.0
        %10319 = vmatpush1.msra.mxu0 0.0
        %10320 = vmatprep.subr.mxu0 0.0
        %10321 = vmatpush1.msra.mxu0 0.0
        %10322 = vmatprep.subr.mxu0 0.0
        %10323 = vmatpush1.msra.mxu0 0.0
        %10324 = vmatprep.subr.mxu0 0.0
        %10325 = vmatpush1.msra.mxu0 0.0
        %10326 = vmatprep.subr.mxu0 0.0
        %10327 = vmatpush1.msra.mxu0 0.0
        %10328 = vmatprep.subr.mxu0 0.0
        %10329 = vmatpush1.msra.mxu0 0.0
        %10330 = vmatprep.subr.mxu0 0.0
        %10331 = vmatpush1.msra.mxu0 0.0
        %10332 = vmatprep.subr.mxu0 0.0
        %10333 = vmatpush1.msra.mxu0 0.0
        %10334 = vmatprep.subr.mxu0 0.0
        %10335 = vmatpush1.msra.mxu0 0.0
        %10336 = vmatprep.subr.mxu0 0.0
        %10337 = vmatpush1.msra.mxu0 0.0
        %10338 = vmatprep.mubr.f32.mxu0 0.0
        %10339 = vmatmul.mubr.f32.gmra.mrb[0].mxu0 %v10269
        %v10340 = vpop.f32.mrb[0].mxu0
        %v10341 = vadd.f32 %v9476, %v10340
        %v10342 = vpop.f32.mrb[0].mxu0
        %10343 = vmatprep.mubr.f32.mxu0 0.0
        %10344 = vmatmul.mubr.f32.gmra.mrb[0].mxu0 %v10272
        %v10345 = vpop.f32.mrb[0].mxu0
        %v10346 = vadd.f32 %v9612, %v10345
        %v10347 = vpop.f32.mrb[0].mxu0
        %10348 = vdwg.mxu0
        %v10350 = vsel %vm2026, %v6729, 0
        %v10353 = vsel %vm2026, %v6731, 0
        %10355 = vmatprep.subr.mxu0 0.0
        %10356 = vmatpush1.msra.mxu0 %v3280
        %10357 = vmatprep.subr.mxu0 0.0
        %10358 = vmatpush1.msra.mxu0 %v3282
        %10359 = vmatprep.subr.mxu0 0.0
        %10360 = vmatpush1.msra.mxu0 0.0
        %10361 = vmatprep.subr.mxu0 0.0
        %10362 = vmatpush1.msra.mxu0 0.0
        %10363 = vmatprep.subr.mxu0 0.0
        %10364 = vmatpush1.msra.mxu0 0.0
        %10365 = vmatprep.subr.mxu0 0.0
        %10366 = vmatpush1.msra.mxu0 0.0
        %10367 = vmatprep.subr.mxu0 0.0
        %10368 = vmatpush1.msra.mxu0 0.0
        %10369 = vmatprep.subr.mxu0 0.0
        %10370 = vmatpush1.msra.mxu0 0.0
        %10371 = vmatprep.subr.mxu0 0.0
        %10372 = vmatpush1.msra.mxu0 0.0
        %10373 = vmatprep.subr.mxu0 0.0
        %10374 = vmatpush1.msra.mxu0 0.0
        %10375 = vmatprep.subr.mxu0 0.0
        %10376 = vmatpush1.msra.mxu0 0.0
        %10377 = vmatprep.subr.mxu0 0.0
        %10378 = vmatpush1.msra.mxu0 0.0
        %10379 = vmatprep.subr.mxu0 0.0
        %10380 = vmatpush1.msra.mxu0 0.0
        %10381 = vmatprep.subr.mxu0 0.0
        %10382 = vmatpush1.msra.mxu0 0.0
        %10383 = vmatprep.subr.mxu0 0.0
        %10384 = vmatpush1.msra.mxu0 0.0
        %10385 = vmatprep.subr.mxu0 0.0
        %10386 = vmatpush1.msra.mxu0 0.0
        %10387 = vmatprep.subr.mxu0 0.0
        %10388 = vmatpush1.msra.mxu0 0.0
        %10389 = vmatprep.subr.mxu0 0.0
        %10390 = vmatpush1.msra.mxu0 0.0
        %10391 = vmatprep.subr.mxu0 0.0
        %10392 = vmatpush1.msra.mxu0 0.0
        %10393 = vmatprep.subr.mxu0 0.0
        %10394 = vmatpush1.msra.mxu0 0.0
        %10395 = vmatprep.subr.mxu0 0.0
        %10396 = vmatpush1.msra.mxu0 0.0
        %10397 = vmatprep.subr.mxu0 0.0
        %10398 = vmatpush1.msra.mxu0 0.0
        %10399 = vmatprep.subr.mxu0 0.0
        %10400 = vmatpush1.msra.mxu0 0.0
        %10401 = vmatprep.subr.mxu0 0.0
        %10402 = vmatpush1.msra.mxu0 0.0
        %10403 = vmatprep.subr.mxu0 0.0
        %10404 = vmatpush1.msra.mxu0 0.0
        %10405 = vmatprep.subr.mxu0 0.0
        %10406 = vmatpush1.msra.mxu0 0.0
        %10407 = vmatprep.subr.mxu0 0.0
        %10408 = vmatpush1.msra.mxu0 0.0
        %10409 = vmatprep.subr.mxu0 0.0
        %10410 = vmatpush1.msra.mxu0 0.0
        %10411 = vmatprep.subr.mxu0 0.0
        %10412 = vmatpush1.msra.mxu0 0.0
        %10413 = vmatprep.subr.mxu0 0.0
        %10414 = vmatpush1.msra.mxu0 0.0
        %10415 = vmatprep.subr.mxu0 0.0
        %10416 = vmatpush1.msra.mxu0 0.0
        %10417 = vmatprep.subr.mxu0 0.0
        %10418 = vmatpush1.msra.mxu0 0.0
        %10419 = vmatprep.mubr.f32.mxu0 0.0
        %10420 = vmatmul.mubr.f32.gmra.mrb[0].mxu0 %v10350
        %v10421 = vpop.f32.mrb[0].mxu0
        %v10422 = vadd.f32 %v9477, %v10421
        %v10423 = vpop.f32.mrb[0].mxu0
        %10424 = vmatprep.mubr.f32.mxu0 0.0
        %10425 = vmatmul.mubr.f32.gmra.mrb[0].mxu0 %v10353
        %v10426 = vpop.f32.mrb[0].mxu0
        %v10427 = vadd.f32 %v9613, %v10426
        %v10428 = vpop.f32.mrb[0].mxu0
        %10429 = vdwg.mxu0
        %v10431 = vsel %vm2026, %v6733, 0
        %v10434 = vsel %vm2026, %v6735, 0
        %10436 = vmatprep.subr.mxu0 0.0
        %10437 = vmatpush1.msra.mxu0 %v3284
        %10438 = vmatprep.subr.mxu0 0.0
        %10439 = vmatpush1.msra.mxu0 %v3286
        %10440 = vmatprep.subr.mxu0 0.0
        %10441 = vmatpush1.msra.mxu0 0.0
        %10442 = vmatprep.subr.mxu0 0.0
        %10443 = vmatpush1.msra.mxu0 0.0
        %10444 = vmatprep.subr.mxu0 0.0
        %10445 = vmatpush1.msra.mxu0 0.0
        %10446 = vmatprep.subr.mxu0 0.0
        %10447 = vmatpush1.msra.mxu0 0.0
        %10448 = vmatprep.subr.mxu0 0.0
        %10449 = vmatpush1.msra.mxu0 0.0
        %10450 = vmatprep.subr.mxu0 0.0
        %10451 = vmatpush1.msra.mxu0 0.0
        %10452 = vmatprep.subr.mxu0 0.0
        %10453 = vmatpush1.msra.mxu0 0.0
        %10454 = vmatprep.subr.mxu0 0.0
        %10455 = vmatpush1.msra.mxu0 0.0
        %10456 = vmatprep.subr.mxu0 0.0
        %10457 = vmatpush1.msra.mxu0 0.0
        %10458 = vmatprep.subr.mxu0 0.0
        %10459 = vmatpush1.msra.mxu0 0.0
        %10460 = vmatprep.subr.mxu0 0.0
        %10461 = vmatpush1.msra.mxu0 0.0
        %10462 = vmatprep.subr.mxu0 0.0
        %10463 = vmatpush1.msra.mxu0 0.0
        %10464 = vmatprep.subr.mxu0 0.0
        %10465 = vmatpush1.msra.mxu0 0.0
        %10466 = vmatprep.subr.mxu0 0.0
        %10467 = vmatpush1.msra.mxu0 0.0
        %10468 = vmatprep.subr.mxu0 0.0
        %10469 = vmatpush1.msra.mxu0 0.0
        %10470 = vmatprep.subr.mxu0 0.0
        %10471 = vmatpush1.msra.mxu0 0.0
        %10472 = vmatprep.subr.mxu0 0.0
        %10473 = vmatpush1.msra.mxu0 0.0
        %10474 = vmatprep.subr.mxu0 0.0
        %10475 = vmatpush1.msra.mxu0 0.0
        %10476 = vmatprep.subr.mxu0 0.0
        %10477 = vmatpush1.msra.mxu0 0.0
        %10478 = vmatprep.subr.mxu0 0.0
        %10479 = vmatpush1.msra.mxu0 0.0
        %10480 = vmatprep.subr.mxu0 0.0
        %10481 = vmatpush1.msra.mxu0 0.0
        %10482 = vmatprep.subr.mxu0 0.0
        %10483 = vmatpush1.msra.mxu0 0.0
        %10484 = vmatprep.subr.mxu0 0.0
        %10485 = vmatpush1.msra.mxu0 0.0
        %10486 = vmatprep.subr.mxu0 0.0
        %10487 = vmatpush1.msra.mxu0 0.0
        %10488 = vmatprep.subr.mxu0 0.0
        %10489 = vmatpush1.msra.mxu0 0.0
        %10490 = vmatprep.subr.mxu0 0.0
        %10491 = vmatpush1.msra.mxu0 0.0
        %10492 = vmatprep.subr.mxu0 0.0
        %10493 = vmatpush1.msra.mxu0 0.0
        %10494 = vmatprep.subr.mxu0 0.0
        %10495 = vmatpush1.msra.mxu0 0.0
        %10496 = vmatprep.subr.mxu0 0.0
        %10497 = vmatpush1.msra.mxu0 0.0
        %10498 = vmatprep.subr.mxu0 0.0
        %10499 = vmatpush1.msra.mxu0 0.0
        %10500 = vmatprep.mubr.f32.mxu0 0.0
        %10501 = vmatmul.mubr.f32.gmra.mrb[0].mxu0 %v10431
        %v10502 = vpop.f32.mrb[0].mxu0
        %v10503 = vadd.f32 %v9478, %v10502
        %v10504 = vpop.f32.mrb[0].mxu0
        %10505 = vmatprep.mubr.f32.mxu0 0.0
        %10506 = vmatmul.mubr.f32.gmra.mrb[0].mxu0 %v10434
        %v10507 = vpop.f32.mrb[0].mxu0
        %v10508 = vadd.f32 %v9614, %v10507
        %v10509 = vpop.f32.mrb[0].mxu0
        %10510 = vdwg.mxu0
        %v10512 = vsel %vm2026, %v6737, 0
        %v10515 = vsel %vm2026, %v6739, 0
        %10517 = vmatprep.subr.mxu0 0.0
        %10518 = vmatpush1.msra.mxu0 %v3288
        %10519 = vmatprep.subr.mxu0 0.0
        %10520 = vmatpush1.msra.mxu0 %v3290
        %10521 = vmatprep.subr.mxu0 0.0
        %10522 = vmatpush1.msra.mxu0 0.0
        %10523 = vmatprep.subr.mxu0 0.0
        %10524 = vmatpush1.msra.mxu0 0.0
        %10525 = vmatprep.subr.mxu0 0.0
        %10526 = vmatpush1.msra.mxu0 0.0
        %10527 = vmatprep.subr.mxu0 0.0
        %10528 = vmatpush1.msra.mxu0 0.0
        %10529 = vmatprep.subr.mxu0 0.0
        %10530 = vmatpush1.msra.mxu0 0.0
        %10531 = vmatprep.subr.mxu0 0.0
        %10532 = vmatpush1.msra.mxu0 0.0
        %10533 = vmatprep.subr.mxu0 0.0
        %10534 = vmatpush1.msra.mxu0 0.0
        %10535 = vmatprep.subr.mxu0 0.0
        %10536 = vmatpush1.msra.mxu0 0.0
        %10537 = vmatprep.subr.mxu0 0.0
        %10538 = vmatpush1.msra.mxu0 0.0
        %10539 = vmatprep.subr.mxu0 0.0
        %10540 = vmatpush1.msra.mxu0 0.0
        %10541 = vmatprep.subr.mxu0 0.0
        %10542 = vmatpush1.msra.mxu0 0.0
        %10543 = vmatprep.subr.mxu0 0.0
        %10544 = vmatpush1.msra.mxu0 0.0
        %10545 = vmatprep.subr.mxu0 0.0
        %10546 = vmatpush1.msra.mxu0 0.0
        %10547 = vmatprep.subr.mxu0 0.0
        %10548 = vmatpush1.msra.mxu0 0.0
        %10549 = vmatprep.subr.mxu0 0.0
        %10550 = vmatpush1.msra.mxu0 0.0
        %10551 = vmatprep.subr.mxu0 0.0
        %10552 = vmatpush1.msra.mxu0 0.0
        %10553 = vmatprep.subr.mxu0 0.0
        %10554 = vmatpush1.msra.mxu0 0.0
        %10555 = vmatprep.subr.mxu0 0.0
        %10556 = vmatpush1.msra.mxu0 0.0
        %10557 = vmatprep.subr.mxu0 0.0
        %10558 = vmatpush1.msra.mxu0 0.0
        %10559 = vmatprep.subr.mxu0 0.0
        %10560 = vmatpush1.msra.mxu0 0.0
        %10561 = vmatprep.subr.mxu0 0.0
        %10562 = vmatpush1.msra.mxu0 0.0
        %10563 = vmatprep.subr.mxu0 0.0
        %10564 = vmatpush1.msra.mxu0 0.0
        %10565 = vmatprep.subr.mxu0 0.0
        %10566 = vmatpush1.msra.mxu0 0.0
        %10567 = vmatprep.subr.mxu0 0.0
        %10568 = vmatpush1.msra.mxu0 0.0
        %10569 = vmatprep.subr.mxu0 0.0
        %10570 = vmatpush1.msra.mxu0 0.0
        %10571 = vmatprep.subr.mxu0 0.0
        %10572 = vmatpush1.msra.mxu0 0.0
        %10573 = vmatprep.subr.mxu0 0.0
        %10574 = vmatpush1.msra.mxu0 0.0
        %10575 = vmatprep.subr.mxu0 0.0
        %10576 = vmatpush1.msra.mxu0 0.0
        %10577 = vmatprep.subr.mxu0 0.0
        %10578 = vmatpush1.msra.mxu0 0.0
        %10579 = vmatprep.subr.mxu0 0.0
        %10580 = vmatpush1.msra.mxu0 0.0
        %10581 = vmatprep.mubr.f32.mxu0 0.0
        %10582 = vmatmul.mubr.f32.gmra.mrb[0].mxu0 %v10512
        %v10583 = vpop.f32.mrb[0].mxu0
        %v10584 = vadd.f32 %v9479, %v10583
        %v10585 = vpop.f32.mrb[0].mxu0
        %10586 = vmatprep.mubr.f32.mxu0 0.0
        %10587 = vmatmul.mubr.f32.gmra.mrb[0].mxu0 %v10515
        %v10588 = vpop.f32.mrb[0].mxu0
        %v10589 = vadd.f32 %v9615, %v10588
        %v10590 = vpop.f32.mrb[0].mxu0
        %10591 = vdwg.mxu0
        %v10593 = vsel %vm2026, %v6741, 0
        %v10596 = vsel %vm2026, %v6743, 0
        %10598 = vmatprep.subr.mxu0 0.0
        %10599 = vmatpush1.msra.mxu0 %v3292
        %10600 = vmatprep.subr.mxu0 0.0
        %10601 = vmatpush1.msra.mxu0 %v3294
        %10602 = vmatprep.subr.mxu0 0.0
        %10603 = vmatpush1.msra.mxu0 0.0
        %10604 = vmatprep.subr.mxu0 0.0
        %10605 = vmatpush1.msra.mxu0 0.0
        %10606 = vmatprep.subr.mxu0 0.0
        %10607 = vmatpush1.msra.mxu0 0.0
        %10608 = vmatprep.subr.mxu0 0.0
        %10609 = vmatpush1.msra.mxu0 0.0
        %10610 = vmatprep.subr.mxu0 0.0
        %10611 = vmatpush1.msra.mxu0 0.0
        %10612 = vmatprep.subr.mxu0 0.0
        %10613 = vmatpush1.msra.mxu0 0.0
        %10614 = vmatprep.subr.mxu0 0.0
        %10615 = vmatpush1.msra.mxu0 0.0
        %10616 = vmatprep.subr.mxu0 0.0
        %10617 = vmatpush1.msra.mxu0 0.0
        %10618 = vmatprep.subr.mxu0 0.0
        %10619 = vmatpush1.msra.mxu0 0.0
        %10620 = vmatprep.subr.mxu0 0.0
        %10621 = vmatpush1.msra.mxu0 0.0
        %10622 = vmatprep.subr.mxu0 0.0
        %10623 = vmatpush1.msra.mxu0 0.0
        %10624 = vmatprep.subr.mxu0 0.0
        %10625 = vmatpush1.msra.mxu0 0.0
        %10626 = vmatprep.subr.mxu0 0.0
        %10627 = vmatpush1.msra.mxu0 0.0
        %10628 = vmatprep.subr.mxu0 0.0
        %10629 = vmatpush1.msra.mxu0 0.0
        %10630 = vmatprep.subr.mxu0 0.0
        %10631 = vmatpush1.msra.mxu0 0.0
        %10632 = vmatprep.subr.mxu0 0.0
        %10633 = vmatpush1.msra.mxu0 0.0
        %10634 = vmatprep.subr.mxu0 0.0
        %10635 = vmatpush1.msra.mxu0 0.0
        %10636 = vmatprep.subr.mxu0 0.0
        %10637 = vmatpush1.msra.mxu0 0.0
        %10638 = vmatprep.subr.mxu0 0.0
        %10639 = vmatpush1.msra.mxu0 0.0
        %10640 = vmatprep.subr.mxu0 0.0
        %10641 = vmatpush1.msra.mxu0 0.0
        %10642 = vmatprep.subr.mxu0 0.0
        %10643 = vmatpush1.msra.mxu0 0.0
        %10644 = vmatprep.subr.mxu0 0.0
        %10645 = vmatpush1.msra.mxu0 0.0
        %10646 = vmatprep.subr.mxu0 0.0
        %10647 = vmatpush1.msra.mxu0 0.0
        %10648 = vmatprep.subr.mxu0 0.0
        %10649 = vmatpush1.msra.mxu0 0.0
        %10650 = vmatprep.subr.mxu0 0.0
        %10651 = vmatpush1.msra.mxu0 0.0
        %10652 = vmatprep.subr.mxu0 0.0
        %10653 = vmatpush1.msra.mxu0 0.0
        %10654 = vmatprep.subr.mxu0 0.0
        %10655 = vmatpush1.msra.mxu0 0.0
        %10656 = vmatprep.subr.mxu0 0.0
        %10657 = vmatpush1.msra.mxu0 0.0
        %10658 = vmatprep.subr.mxu0 0.0
        %10659 = vmatpush1.msra.mxu0 0.0
        %10660 = vmatprep.subr.mxu0 0.0
        %10661 = vmatpush1.msra.mxu0 0.0
        %10662 = vmatprep.mubr.f32.mxu0 0.0
        %10663 = vmatmul.mubr.f32.gmra.mrb[0].mxu0 %v10593
        %v10664 = vpop.f32.mrb[0].mxu0
        %v10665 = vadd.f32 %v9480, %v10664
        %v10666 = vpop.f32.mrb[0].mxu0
        %10667 = vmatprep.mubr.f32.mxu0 0.0
        %10668 = vmatmul.mubr.f32.gmra.mrb[0].mxu0 %v10596
        %v10669 = vpop.f32.mrb[0].mxu0
        %v10670 = vadd.f32 %v9616, %v10669
        %v10671 = vpop.f32.mrb[0].mxu0
        %10672 = vdwg.mxu0
        %v10674 = vsel %vm2026, %v6745, 0
        %v10677 = vsel %vm2026, %v6747, 0
        %10679 = vmatprep.subr.mxu0 0.0
        %10680 = vmatpush1.msra.mxu0 %v3296
        %10681 = vmatprep.subr.mxu0 0.0
        %10682 = vmatpush1.msra.mxu0 %v3298
        %10683 = vmatprep.subr.mxu0 0.0
        %10684 = vmatpush1.msra.mxu0 0.0
        %10685 = vmatprep.subr.mxu0 0.0
        %10686 = vmatpush1.msra.mxu0 0.0
        %10687 = vmatprep.subr.mxu0 0.0
        %10688 = vmatpush1.msra.mxu0 0.0
        %10689 = vmatprep.subr.mxu0 0.0
        %10690 = vmatpush1.msra.mxu0 0.0
        %10691 = vmatprep.subr.mxu0 0.0
        %10692 = vmatpush1.msra.mxu0 0.0
        %10693 = vmatprep.subr.mxu0 0.0
        %10694 = vmatpush1.msra.mxu0 0.0
        %10695 = vmatprep.subr.mxu0 0.0
        %10696 = vmatpush1.msra.mxu0 0.0
        %10697 = vmatprep.subr.mxu0 0.0
        %10698 = vmatpush1.msra.mxu0 0.0
        %10699 = vmatprep.subr.mxu0 0.0
        %10700 = vmatpush1.msra.mxu0 0.0
        %10701 = vmatprep.subr.mxu0 0.0
        %10702 = vmatpush1.msra.mxu0 0.0
        %10703 = vmatprep.subr.mxu0 0.0
        %10704 = vmatpush1.msra.mxu0 0.0
        %10705 = vmatprep.subr.mxu0 0.0
        %10706 = vmatpush1.msra.mxu0 0.0
        %10707 = vmatprep.subr.mxu0 0.0
        %10708 = vmatpush1.msra.mxu0 0.0
        %10709 = vmatprep.subr.mxu0 0.0
        %10710 = vmatpush1.msra.mxu0 0.0
        %10711 = vmatprep.subr.mxu0 0.0
        %10712 = vmatpush1.msra.mxu0 0.0
        %10713 = vmatprep.subr.mxu0 0.0
        %10714 = vmatpush1.msra.mxu0 0.0
        %10715 = vmatprep.subr.mxu0 0.0
        %10716 = vmatpush1.msra.mxu0 0.0
        %10717 = vmatprep.subr.mxu0 0.0
        %10718 = vmatpush1.msra.mxu0 0.0
        %10719 = vmatprep.subr.mxu0 0.0
        %10720 = vmatpush1.msra.mxu0 0.0
        %10721 = vmatprep.subr.mxu0 0.0
        %10722 = vmatpush1.msra.mxu0 0.0
        %10723 = vmatprep.subr.mxu0 0.0
        %10724 = vmatpush1.msra.mxu0 0.0
        %10725 = vmatprep.subr.mxu0 0.0
        %10726 = vmatpush1.msra.mxu0 0.0
        %10727 = vmatprep.subr.mxu0 0.0
        %10728 = vmatpush1.msra.mxu0 0.0
        %10729 = vmatprep.subr.mxu0 0.0
        %10730 = vmatpush1.msra.mxu0 0.0
        %10731 = vmatprep.subr.mxu0 0.0
        %10732 = vmatpush1.msra.mxu0 0.0
        %10733 = vmatprep.subr.mxu0 0.0
        %10734 = vmatpush1.msra.mxu0 0.0
        %10735 = vmatprep.subr.mxu0 0.0
        %10736 = vmatpush1.msra.mxu0 0.0
        %10737 = vmatprep.subr.mxu0 0.0
        %10738 = vmatpush1.msra.mxu0 0.0
        %10739 = vmatprep.subr.mxu0 0.0
        %10740 = vmatpush1.msra.mxu0 0.0
        %10741 = vmatprep.subr.mxu0 0.0
        %10742 = vmatpush1.msra.mxu0 0.0
        %10743 = vmatprep.mubr.f32.mxu0 0.0
        %10744 = vmatmul.mubr.f32.gmra.mrb[0].mxu0 %v10674
        %v10745 = vpop.f32.mrb[0].mxu0
        %v10746 = vadd.f32 %v9481, %v10745
        %v10747 = vpop.f32.mrb[0].mxu0
        %10748 = vmatprep.mubr.f32.mxu0 0.0
        %10749 = vmatmul.mubr.f32.gmra.mrb[0].mxu0 %v10677
        %v10750 = vpop.f32.mrb[0].mxu0
        %v10751 = vadd.f32 %v9617, %v10750
        %v10752 = vpop.f32.mrb[0].mxu0
        %10753 = vdwg.mxu0
        %v10755 = vsel %vm2026, %v6749, 0
        %v10758 = vsel %vm2026, %v6751, 0
        %10760 = vmatprep.subr.mxu0 0.0
        %10761 = vmatpush1.msra.mxu0 %v3300
        %10762 = vmatprep.subr.mxu0 0.0
        %10763 = vmatpush1.msra.mxu0 %v3302
        %10764 = vmatprep.subr.mxu0 0.0
        %10765 = vmatpush1.msra.mxu0 0.0
        %10766 = vmatprep.subr.mxu0 0.0
        %10767 = vmatpush1.msra.mxu0 0.0
        %10768 = vmatprep.subr.mxu0 0.0
        %10769 = vmatpush1.msra.mxu0 0.0
        %10770 = vmatprep.subr.mxu0 0.0
        %10771 = vmatpush1.msra.mxu0 0.0
        %10772 = vmatprep.subr.mxu0 0.0
        %10773 = vmatpush1.msra.mxu0 0.0
        %10774 = vmatprep.subr.mxu0 0.0
        %10775 = vmatpush1.msra.mxu0 0.0
        %10776 = vmatprep.subr.mxu0 0.0
        %10777 = vmatpush1.msra.mxu0 0.0
        %10778 = vmatprep.subr.mxu0 0.0
        %10779 = vmatpush1.msra.mxu0 0.0
        %10780 = vmatprep.subr.mxu0 0.0
        %10781 = vmatpush1.msra.mxu0 0.0
        %10782 = vmatprep.subr.mxu0 0.0
        %10783 = vmatpush1.msra.mxu0 0.0
        %10784 = vmatprep.subr.mxu0 0.0
        %10785 = vmatpush1.msra.mxu0 0.0
        %10786 = vmatprep.subr.mxu0 0.0
        %10787 = vmatpush1.msra.mxu0 0.0
        %10788 = vmatprep.subr.mxu0 0.0
        %10789 = vmatpush1.msra.mxu0 0.0
        %10790 = vmatprep.subr.mxu0 0.0
        %10791 = vmatpush1.msra.mxu0 0.0
        %10792 = vmatprep.subr.mxu0 0.0
        %10793 = vmatpush1.msra.mxu0 0.0
        %10794 = vmatprep.subr.mxu0 0.0
        %10795 = vmatpush1.msra.mxu0 0.0
        %10796 = vmatprep.subr.mxu0 0.0
        %10797 = vmatpush1.msra.mxu0 0.0
        %10798 = vmatprep.subr.mxu0 0.0
        %10799 = vmatpush1.msra.mxu0 0.0
        %10800 = vmatprep.subr.mxu0 0.0
        %10801 = vmatpush1.msra.mxu0 0.0
        %10802 = vmatprep.subr.mxu0 0.0
        %10803 = vmatpush1.msra.mxu0 0.0
        %10804 = vmatprep.subr.mxu0 0.0
        %10805 = vmatpush1.msra.mxu0 0.0
        %10806 = vmatprep.subr.mxu0 0.0
        %10807 = vmatpush1.msra.mxu0 0.0
        %10808 = vmatprep.subr.mxu0 0.0
        %10809 = vmatpush1.msra.mxu0 0.0
        %10810 = vmatprep.subr.mxu0 0.0
        %10811 = vmatpush1.msra.mxu0 0.0
        %10812 = vmatprep.subr.mxu0 0.0
        %10813 = vmatpush1.msra.mxu0 0.0
        %10814 = vmatprep.subr.mxu0 0.0
        %10815 = vmatpush1.msra.mxu0 0.0
        %10816 = vmatprep.subr.mxu0 0.0
        %10817 = vmatpush1.msra.mxu0 0.0
        %10818 = vmatprep.subr.mxu0 0.0
        %10819 = vmatpush1.msra.mxu0 0.0
        %10820 = vmatprep.subr.mxu0 0.0
        %10821 = vmatpush1.msra.mxu0 0.0
        %10822 = vmatprep.subr.mxu0 0.0
        %10823 = vmatpush1.msra.mxu0 0.0
        %10824 = vmatprep.mubr.f32.mxu0 0.0
        %10825 = vmatmul.mubr.f32.gmra.mrb[0].mxu0 %v10755
        %v10826 = vpop.f32.mrb[0].mxu0
        %v10827 = vadd.f32 %v9482, %v10826
        %v10828 = vpop.f32.mrb[0].mxu0
        %10829 = vmatprep.mubr.f32.mxu0 0.0
        %10830 = vmatmul.mubr.f32.gmra.mrb[0].mxu0 %v10758
        %v10831 = vpop.f32.mrb[0].mxu0
        %v10832 = vadd.f32 %v9618, %v10831
        %v10833 = vpop.f32.mrb[0].mxu0
        %10834 = vdwg.mxu0
        %v10836 = vsel %vm2026, %v6753, 0
        %v10839 = vsel %vm2026, %v6755, 0
        %10841 = vmatprep.subr.mxu0 0.0
        %10842 = vmatpush1.msra.mxu0 %v3304
        %10843 = vmatprep.subr.mxu0 0.0
        %10844 = vmatpush1.msra.mxu0 %v3306
        %10845 = vmatprep.subr.mxu0 0.0
        %10846 = vmatpush1.msra.mxu0 0.0
        %10847 = vmatprep.subr.mxu0 0.0
        %10848 = vmatpush1.msra.mxu0 0.0
        %10849 = vmatprep.subr.mxu0 0.0
        %10850 = vmatpush1.msra.mxu0 0.0
        %10851 = vmatprep.subr.mxu0 0.0
        %10852 = vmatpush1.msra.mxu0 0.0
        %10853 = vmatprep.subr.mxu0 0.0
        %10854 = vmatpush1.msra.mxu0 0.0
        %10855 = vmatprep.subr.mxu0 0.0
        %10856 = vmatpush1.msra.mxu0 0.0
        %10857 = vmatprep.subr.mxu0 0.0
        %10858 = vmatpush1.msra.mxu0 0.0
        %10859 = vmatprep.subr.mxu0 0.0
        %10860 = vmatpush1.msra.mxu0 0.0
        %10861 = vmatprep.subr.mxu0 0.0
        %10862 = vmatpush1.msra.mxu0 0.0
        %10863 = vmatprep.subr.mxu0 0.0
        %10864 = vmatpush1.msra.mxu0 0.0
        %10865 = vmatprep.subr.mxu0 0.0
        %10866 = vmatpush1.msra.mxu0 0.0
        %10867 = vmatprep.subr.mxu0 0.0
        %10868 = vmatpush1.msra.mxu0 0.0
        %10869 = vmatprep.subr.mxu0 0.0
        %10870 = vmatpush1.msra.mxu0 0.0
        %10871 = vmatprep.subr.mxu0 0.0
        %10872 = vmatpush1.msra.mxu0 0.0
        %10873 = vmatprep.subr.mxu0 0.0
        %10874 = vmatpush1.msra.mxu0 0.0
        %10875 = vmatprep.subr.mxu0 0.0
        %10876 = vmatpush1.msra.mxu0 0.0
        %10877 = vmatprep.subr.mxu0 0.0
        %10878 = vmatpush1.msra.mxu0 0.0
        %10879 = vmatprep.subr.mxu0 0.0
        %10880 = vmatpush1.msra.mxu0 0.0
        %10881 = vmatprep.subr.mxu0 0.0
        %10882 = vmatpush1.msra.mxu0 0.0
        %10883 = vmatprep.subr.mxu0 0.0
        %10884 = vmatpush1.msra.mxu0 0.0
        %10885 = vmatprep.subr.mxu0 0.0
        %10886 = vmatpush1.msra.mxu0 0.0
        %10887 = vmatprep.subr.mxu0 0.0
        %10888 = vmatpush1.msra.mxu0 0.0
        %10889 = vmatprep.subr.mxu0 0.0
        %10890 = vmatpush1.msra.mxu0 0.0
        %10891 = vmatprep.subr.mxu0 0.0
        %10892 = vmatpush1.msra.mxu0 0.0
        %10893 = vmatprep.subr.mxu0 0.0
        %10894 = vmatpush1.msra.mxu0 0.0
        %10895 = vmatprep.subr.mxu0 0.0
        %10896 = vmatpush1.msra.mxu0 0.0
        %10897 = vmatprep.subr.mxu0 0.0
        %10898 = vmatpush1.msra.mxu0 0.0
        %10899 = vmatprep.subr.mxu0 0.0
        %10900 = vmatpush1.msra.mxu0 0.0
        %10901 = vmatprep.subr.mxu0 0.0
        %10902 = vmatpush1.msra.mxu0 0.0
        %10903 = vmatprep.subr.mxu0 0.0
        %10904 = vmatpush1.msra.mxu0 0.0
        %10905 = vmatprep.mubr.f32.mxu0 0.0
        %10906 = vmatmul.mubr.f32.gmra.mrb[0].mxu0 %v10836
        %v10907 = vpop.f32.mrb[0].mxu0
        %v10908 = vadd.f32 %v9483, %v10907
        %v10909 = vpop.f32.mrb[0].mxu0
        %10910 = vmatprep.mubr.f32.mxu0 0.0
        %10911 = vmatmul.mubr.f32.gmra.mrb[0].mxu0 %v10839
        %v10912 = vpop.f32.mrb[0].mxu0
        %v10913 = vadd.f32 %v9619, %v10912
        %v10914 = vpop.f32.mrb[0].mxu0
        %10915 = vdwg.mxu0
        %v10916 = vrcp.pop %v7748
        %v10917 = vrcp.pop %v7749
        %v10918 = vrcp.pop %v7750
        %v10919 = vrcp.pop %v7751
        %v10920 = vrcp.pop %v7752
        %v10921 = vrcp.pop %v7753
        %v10922 = vrcp.pop %v7754
        %v10923 = vrcp.pop %v7755
        %v10924 = vrcp.pop %v7756
        %v10925 = vrcp.pop %v7757
        %v10926 = vrcp.pop %v7758
        %v10927 = vrcp.pop %v7759
        %v10928 = vrcp.pop %v7760
        %v10929 = vrcp.pop %v7761
        %v10930 = vrcp.pop %v7762
        %v10931 = vrcp.pop %v7763
        %v10932 = vrcp.pop %v7764
        %v10933 = vrcp.pop %v7765
        %v10934 = vrcp.pop %v7766
        %v10935 = vrcp.pop %v7767
        %v10936 = vrcp.pop %v7768
        %v10937 = vrcp.pop %v7769
        %v10938 = vrcp.pop %v7770
        %v10939 = vrcp.pop %v7771
        %v10940 = vrcp.pop %v7772
        %v10941 = vrcp.pop %v7773
        %v10942 = vrcp.pop %v7774
        %v10943 = vrcp.pop %v7775
        %v10944 = vrcp.pop %v7776
        %v10945 = vrcp.pop %v7777
        %v10946 = vrcp.pop %v7778
        %v10947 = vrcp.pop %v7779
        %v10948 = vmul.f32 %v7748, %v10916
        %v10949 = vmul.f32 %v7749, %v10917
        %v10950 = vmul.f32 %v7750, %v10918
        %v10951 = vmul.f32 %v7751, %v10919
        %v10952 = vmul.f32 %v7752, %v10920
        %v10953 = vmul.f32 %v7753, %v10921
        %v10954 = vmul.f32 %v7754, %v10922
        %v10955 = vmul.f32 %v7755, %v10923
        %v10956 = vmul.f32 %v7756, %v10924
        %v10957 = vmul.f32 %v7757, %v10925
        %v10958 = vmul.f32 %v7758, %v10926
        %v10959 = vmul.f32 %v7759, %v10927
        %v10960 = vmul.f32 %v7760, %v10928
        %v10961 = vmul.f32 %v7761, %v10929
        %v10962 = vmul.f32 %v7762, %v10930
        %v10963 = vmul.f32 %v7763, %v10931
        %v10964 = vmul.f32 %v7764, %v10932
        %v10965 = vmul.f32 %v7765, %v10933
        %v10966 = vmul.f32 %v7766, %v10934
        %v10967 = vmul.f32 %v7767, %v10935
        %v10968 = vmul.f32 %v7768, %v10936
        %v10969 = vmul.f32 %v7769, %v10937
        %v10970 = vmul.f32 %v7770, %v10938
        %v10971 = vmul.f32 %v7771, %v10939
        %v10972 = vmul.f32 %v7772, %v10940
        %v10973 = vmul.f32 %v7773, %v10941
        %v10974 = vmul.f32 %v7774, %v10942
        %v10975 = vmul.f32 %v7775, %v10943
        %v10976 = vmul.f32 %v7776, %v10944
        %v10977 = vmul.f32 %v7777, %v10945
        %v10978 = vmul.f32 %v7778, %v10946
        %v10979 = vmul.f32 %v7779, %v10947
        %v10980 = vsub.f32 2.0, %v10948
        %v10981 = vsub.f32 2.0, %v10949
        %v10982 = vsub.f32 2.0, %v10950
        %v10983 = vsub.f32 2.0, %v10951
        %v10984 = vsub.f32 2.0, %v10952
        %v10985 = vsub.f32 2.0, %v10953
        %v10986 = vsub.f32 2.0, %v10954
        %v10987 = vsub.f32 2.0, %v10955
        %v10988 = vsub.f32 2.0, %v10956
        %v10989 = vsub.f32 2.0, %v10957
        %v10990 = vsub.f32 2.0, %v10958
        %v10991 = vsub.f32 2.0, %v10959
        %v10992 = vsub.f32 2.0, %v10960
        %v10993 = vsub.f32 2.0, %v10961
        %v10994 = vsub.f32 2.0, %v10962
        %v10995 = vsub.f32 2.0, %v10963
        %v10996 = vsub.f32 2.0, %v10964
        %v10997 = vsub.f32 2.0, %v10965
        %v10998 = vsub.f32 2.0, %v10966
        %v10999 = vsub.f32 2.0, %v10967
        %v11000 = vsub.f32 2.0, %v10968
        %v11001 = vsub.f32 2.0, %v10969
        %v11002 = vsub.f32 2.0, %v10970
        %v11003 = vsub.f32 2.0, %v10971
        %v11004 = vsub.f32 2.0, %v10972
        %v11005 = vsub.f32 2.0, %v10973
        %v11006 = vsub.f32 2.0, %v10974
        %v11007 = vsub.f32 2.0, %v10975
        %v11008 = vsub.f32 2.0, %v10976
        %v11009 = vsub.f32 2.0, %v10977
        %v11010 = vsub.f32 2.0, %v10978
        %v11011 = vsub.f32 2.0, %v10979
        %v11012 = vmul.f32 %v10916, %v10980
        %v11013 = vmul.f32 %v10917, %v10981
        %v11014 = vmul.f32 %v10918, %v10982
        %v11015 = vmul.f32 %v10919, %v10983
        %v11016 = vmul.f32 %v10920, %v10984
        %v11017 = vmul.f32 %v10921, %v10985
        %v11018 = vmul.f32 %v10922, %v10986
        %v11019 = vmul.f32 %v10923, %v10987
        %v11020 = vmul.f32 %v10924, %v10988
        %v11021 = vmul.f32 %v10925, %v10989
        %v11022 = vmul.f32 %v10926, %v10990
        %v11023 = vmul.f32 %v10927, %v10991
        %v11024 = vmul.f32 %v10928, %v10992
        %v11025 = vmul.f32 %v10929, %v10993
        %v11026 = vmul.f32 %v10930, %v10994
        %v11027 = vmul.f32 %v10931, %v10995
        %v11028 = vmul.f32 %v10932, %v10996
        %v11029 = vmul.f32 %v10933, %v10997
        %v11030 = vmul.f32 %v10934, %v10998
        %v11031 = vmul.f32 %v10935, %v10999
        %v11032 = vmul.f32 %v10936, %v11000
        %v11033 = vmul.f32 %v10937, %v11001
        %v11034 = vmul.f32 %v10938, %v11002
        %v11035 = vmul.f32 %v10939, %v11003
        %v11036 = vmul.f32 %v10940, %v11004
        %v11037 = vmul.f32 %v10941, %v11005
        %v11038 = vmul.f32 %v10942, %v11006
        %v11039 = vmul.f32 %v10943, %v11007
        %v11040 = vmul.f32 %v10944, %v11008
        %v11041 = vmul.f32 %v10945, %v11009
        %v11042 = vmul.f32 %v10946, %v11010
        %v11043 = vmul.f32 %v10947, %v11011
        %11045 = vset.pattern.permute.xlu0 0
        %11046 = vperm.xlu0 %11045, %v11012
        %v11047 = vpop.permute.xlu0 %11046
        %11050 = vset.pattern.permute.xlu0 0
        %11051 = vperm.xlu0 %11050, %v11013
        %v11052 = vpop.permute.xlu0 %11051
        %11055 = vset.pattern.permute.xlu0 0
        %11056 = vperm.xlu0 %11055, %v11014
        %v11057 = vpop.permute.xlu0 %11056
        %11060 = vset.pattern.permute.xlu0 0
        %11061 = vperm.xlu0 %11060, %v11015
        %v11062 = vpop.permute.xlu0 %11061
        %11065 = vset.pattern.permute.xlu0 0
        %11066 = vperm.xlu0 %11065, %v11016
        %v11067 = vpop.permute.xlu0 %11066
        %11070 = vset.pattern.permute.xlu0 0
        %11071 = vperm.xlu0 %11070, %v11017
        %v11072 = vpop.permute.xlu0 %11071
        %11075 = vset.pattern.permute.xlu0 0
        %11076 = vperm.xlu0 %11075, %v11018
        %v11077 = vpop.permute.xlu0 %11076
        %11080 = vset.pattern.permute.xlu0 0
        %11081 = vperm.xlu0 %11080, %v11019
        %v11082 = vpop.permute.xlu0 %11081
        %11085 = vset.pattern.permute.xlu0 0
        %11086 = vperm.xlu0 %11085, %v11020
        %v11087 = vpop.permute.xlu0 %11086
        %11090 = vset.pattern.permute.xlu0 0
        %11091 = vperm.xlu0 %11090, %v11021
        %v11092 = vpop.permute.xlu0 %11091
        %11095 = vset.pattern.permute.xlu0 0
        %11096 = vperm.xlu0 %11095, %v11022
        %v11097 = vpop.permute.xlu0 %11096
        %11100 = vset.pattern.permute.xlu0 0
        %11101 = vperm.xlu0 %11100, %v11023
        %v11102 = vpop.permute.xlu0 %11101
        %11105 = vset.pattern.permute.xlu0 0
        %11106 = vperm.xlu0 %11105, %v11024
        %v11107 = vpop.permute.xlu0 %11106
        %11110 = vset.pattern.permute.xlu0 0
        %11111 = vperm.xlu0 %11110, %v11025
        %v11112 = vpop.permute.xlu0 %11111
        %11115 = vset.pattern.permute.xlu0 0
        %11116 = vperm.xlu0 %11115, %v11026
        %v11117 = vpop.permute.xlu0 %11116
        %11120 = vset.pattern.permute.xlu0 0
        %11121 = vperm.xlu0 %11120, %v11027
        %v11122 = vpop.permute.xlu0 %11121
        %11125 = vset.pattern.permute.xlu0 0
        %11126 = vperm.xlu0 %11125, %v11028
        %v11127 = vpop.permute.xlu0 %11126
        %11130 = vset.pattern.permute.xlu0 0
        %11131 = vperm.xlu0 %11130, %v11029
        %v11132 = vpop.permute.xlu0 %11131
        %11135 = vset.pattern.permute.xlu0 0
        %11136 = vperm.xlu0 %11135, %v11030
        %v11137 = vpop.permute.xlu0 %11136
        %11140 = vset.pattern.permute.xlu0 0
        %11141 = vperm.xlu0 %11140, %v11031
        %v11142 = vpop.permute.xlu0 %11141
        %11145 = vset.pattern.permute.xlu0 0
        %11146 = vperm.xlu0 %11145, %v11032
        %v11147 = vpop.permute.xlu0 %11146
        %11150 = vset.pattern.permute.xlu0 0
        %11151 = vperm.xlu0 %11150, %v11033
        %v11152 = vpop.permute.xlu0 %11151
        %11155 = vset.pattern.permute.xlu0 0
        %11156 = vperm.xlu0 %11155, %v11034
        %v11157 = vpop.permute.xlu0 %11156
        %11160 = vset.pattern.permute.xlu0 0
        %11161 = vperm.xlu0 %11160, %v11035
        %v11162 = vpop.permute.xlu0 %11161
        %11165 = vset.pattern.permute.xlu0 0
        %11166 = vperm.xlu0 %11165, %v11036
        %v11167 = vpop.permute.xlu0 %11166
        %11170 = vset.pattern.permute.xlu0 0
        %11171 = vperm.xlu0 %11170, %v11037
        %v11172 = vpop.permute.xlu0 %11171
        %11175 = vset.pattern.permute.xlu0 0
        %11176 = vperm.xlu0 %11175, %v11038
        %v11177 = vpop.permute.xlu0 %11176
        %11180 = vset.pattern.permute.xlu0 0
        %11181 = vperm.xlu0 %11180, %v11039
        %v11182 = vpop.permute.xlu0 %11181
        %11185 = vset.pattern.permute.xlu0 0
        %11186 = vperm.xlu0 %11185, %v11040
        %v11187 = vpop.permute.xlu0 %11186
        %11190 = vset.pattern.permute.xlu0 0
        %11191 = vperm.xlu0 %11190, %v11041
        %v11192 = vpop.permute.xlu0 %11191
        %11195 = vset.pattern.permute.xlu0 0
        %11196 = vperm.xlu0 %11195, %v11042
        %v11197 = vpop.permute.xlu0 %11196
        %11200 = vset.pattern.permute.xlu0 0
        %11201 = vperm.xlu0 %11200, %v11043
        %v11202 = vpop.permute.xlu0 %11201
        %v11204 = vmul.f32 %v9693, %v11047
        %v11205 = vmul.f32 %v9698, %v11052
        %v11206 = vmul.f32 %v9774, %v11057
        %v11207 = vmul.f32 %v9779, %v11062
        %v11208 = vmul.f32 %v9855, %v11067
        %v11209 = vmul.f32 %v9860, %v11072
        %v11210 = vmul.f32 %v9936, %v11077
        %v11211 = vmul.f32 %v9941, %v11082
        %v11212 = vmul.f32 %v10017, %v11087
        %v11213 = vmul.f32 %v10022, %v11092
        %v11214 = vmul.f32 %v10098, %v11097
        %v11215 = vmul.f32 %v10103, %v11102
        %v11216 = vmul.f32 %v10179, %v11107
        %v11217 = vmul.f32 %v10184, %v11112
        %v11218 = vmul.f32 %v10260, %v11117
        %v11219 = vmul.f32 %v10265, %v11122
        %v11220 = vmul.f32 %v10341, %v11127
        %v11221 = vmul.f32 %v10346, %v11132
        %v11222 = vmul.f32 %v10422, %v11137
        %v11223 = vmul.f32 %v10427, %v11142
        %v11224 = vmul.f32 %v10503, %v11147
        %v11225 = vmul.f32 %v10508, %v11152
        %v11226 = vmul.f32 %v10584, %v11157
        %v11227 = vmul.f32 %v10589, %v11162
        %v11228 = vmul.f32 %v10665, %v11167
        %v11229 = vmul.f32 %v10670, %v11172
        %v11230 = vmul.f32 %v10746, %v11177
        %v11231 = vmul.f32 %v10751, %v11182
        %v11232 = vmul.f32 %v10827, %v11187
        %v11233 = vmul.f32 %v10832, %v11192
        %v11234 = vmul.f32 %v10908, %v11197
        %v11235 = vmul.f32 %v10913, %v11202
        %v11236 = vmul.f32 %v11204, 0.6
        %v11237 = vmul.f32 %v11205, 0.6
        %v11238 = vmul.f32 %v11206, 0.6
        %v11239 = vmul.f32 %v11207, 0.6
        %v11240 = vmul.f32 %v11208, 0.6
        %v11241 = vmul.f32 %v11209, 0.6
        %v11242 = vmul.f32 %v11210, 0.6
        %v11243 = vmul.f32 %v11211, 0.6
        %v11244 = vmul.f32 %v11212, 0.6
        %v11245 = vmul.f32 %v11213, 0.6
        %v11246 = vmul.f32 %v11214, 0.6
        %v11247 = vmul.f32 %v11215, 0.6
        %v11248 = vmul.f32 %v11216, 0.6
        %v11249 = vmul.f32 %v11217, 0.6
        %v11250 = vmul.f32 %v11218, 0.6
        %v11251 = vmul.f32 %v11219, 0.6
        %v11252 = vmul.f32 %v11220, 0.6
        %v11253 = vmul.f32 %v11221, 0.6
        %v11254 = vmul.f32 %v11222, 0.6
        %v11255 = vmul.f32 %v11223, 0.6
        %v11256 = vmul.f32 %v11224, 0.6
        %v11257 = vmul.f32 %v11225, 0.6
        %v11258 = vmul.f32 %v11226, 0.6
        %v11259 = vmul.f32 %v11227, 0.6
        %v11260 = vmul.f32 %v11228, 0.6
        %v11261 = vmul.f32 %v11229, 0.6
        %v11262 = vmul.f32 %v11230, 0.6
        %v11263 = vmul.f32 %v11231, 0.6
        %v11264 = vmul.f32 %v11232, 0.6
        %v11265 = vmul.f32 %v11233, 0.6
        %v11266 = vmul.f32 %v11234, 0.6
        %v11267 = vmul.f32 %v11235, 0.6
        %v11268 = vadd.f32 %v11236, %v220
        %v11269 = vadd.f32 %v11237, %v221
        %v11270 = vadd.f32 %v11238, %v222
        %v11271 = vadd.f32 %v11239, %v223
        %v11272 = vadd.f32 %v11240, %v224
        %v11273 = vadd.f32 %v11241, %v225
        %v11274 = vadd.f32 %v11242, %v226
        %v11275 = vadd.f32 %v11243, %v227
        %v11276 = vadd.f32 %v11244, %v228
        %v11277 = vadd.f32 %v11245, %v229
        %v11278 = vadd.f32 %v11246, %v230
        %v11279 = vadd.f32 %v11247, %v231
        %v11280 = vadd.f32 %v11248, %v232
        %v11281 = vadd.f32 %v11249, %v233
        %v11282 = vadd.f32 %v11250, %v234
        %v11283 = vadd.f32 %v11251, %v235
        %v11284 = vadd.f32 %v11252, %v252
        %v11285 = vadd.f32 %v11253, %v253
        %v11286 = vadd.f32 %v11254, %v254
        %v11287 = vadd.f32 %v11255, %v255
        %v11288 = vadd.f32 %v11256, %v256
        %v11289 = vadd.f32 %v11257, %v257
        %v11290 = vadd.f32 %v11258, %v258
        %v11291 = vadd.f32 %v11259, %v259
        %v11292 = vadd.f32 %v11260, %v260
        %v11293 = vadd.f32 %v11261, %v261
        %v11294 = vadd.f32 %v11262, %v262
        %v11295 = vadd.f32 %v11263, %v263
        %v11296 = vadd.f32 %v11264, %v264
        %v11297 = vadd.f32 %v11265, %v265
        %v11298 = vadd.f32 %v11266, %v266
        %v11299 = vadd.f32 %v11267, %v267
        %11300 = vxpose.xlu0.b32.start [1/16] %v11268, 128
        %11301 = vxpose.xlu0.b32.cont [2/16] %v11269, 128
        %11302 = vxpose.xlu0.b32.cont [3/16] %v11270, 128
        %11303 = vxpose.xlu0.b32.cont [4/16] %v11271, 128
        %11304 = vxpose.xlu0.b32.cont [5/16] %v11272, 128
        %11305 = vxpose.xlu0.b32.cont [6/16] %v11273, 128
        %11306 = vxpose.xlu0.b32.cont [7/16] %v11274, 128
        %11307 = vxpose.xlu0.b32.cont [8/16] %v11275, 128
        %11308 = vxpose.xlu0.b32.cont [9/16] %v11276, 128
        %11309 = vxpose.xlu0.b32.cont [10/16] %v11277, 128
        %11310 = vxpose.xlu0.b32.cont [11/16] %v11278, 128
        %11311 = vxpose.xlu0.b32.cont [12/16] %v11279, 128
        %11312 = vxpose.xlu0.b32.cont [13/16] %v11280, 128
        %11313 = vxpose.xlu0.b32.cont [14/16] %v11281, 128
        %11314 = vxpose.xlu0.b32.cont [15/16] %v11282, 128
        %11315 = vxpose.xlu0.b32.end [16/16] %v11283, 128
        %v11316 = vpop.trf.xlu0
        %v11317 = vpop.trf.xlu0
        %v11318 = vpop.trf.xlu0
        %v11319 = vpop.trf.xlu0
        %v11320 = vpop.trf.xlu0
        %v11321 = vpop.trf.xlu0
        %v11322 = vpop.trf.xlu0
        %v11323 = vpop.trf.xlu0
        %v11324 = vpop.trf.xlu0
        %v11325 = vpop.trf.xlu0
        %v11326 = vpop.trf.xlu0
        %v11327 = vpop.trf.xlu0
        %v11328 = vpop.trf.xlu0
        %v11329 = vpop.trf.xlu0
        %v11330 = vpop.trf.xlu0
        %v11331 = vpop.trf.xlu0
        %11332 = vxpose.xlu0.b32.start [1/16] %v11284, 128
        %11333 = vxpose.xlu0.b32.cont [2/16] %v11285, 128
        %11334 = vxpose.xlu0.b32.cont [3/16] %v11286, 128
        %11335 = vxpose.xlu0.b32.cont [4/16] %v11287, 128
        %11336 = vxpose.xlu0.b32.cont [5/16] %v11288, 128
        %11337 = vxpose.xlu0.b32.cont [6/16] %v11289, 128
        %11338 = vxpose.xlu0.b32.cont [7/16] %v11290, 128
        %11339 = vxpose.xlu0.b32.cont [8/16] %v11291, 128
        %11340 = vxpose.xlu0.b32.cont [9/16] %v11292, 128
        %11341 = vxpose.xlu0.b32.cont [10/16] %v11293, 128
        %11342 = vxpose.xlu0.b32.cont [11/16] %v11294, 128
        %11343 = vxpose.xlu0.b32.cont [12/16] %v11295, 128
        %11344 = vxpose.xlu0.b32.cont [13/16] %v11296, 128
        %11345 = vxpose.xlu0.b32.cont [14/16] %v11297, 128
        %11346 = vxpose.xlu0.b32.cont [15/16] %v11298, 128
        %11347 = vxpose.xlu0.b32.end [16/16] %v11299, 128
        %v11348 = vpop.trf.xlu0
        %v11349 = vpop.trf.xlu0
        %v11350 = vpop.trf.xlu0
        %v11351 = vpop.trf.xlu0
        %v11352 = vpop.trf.xlu0
        %v11353 = vpop.trf.xlu0
        %v11354 = vpop.trf.xlu0
        %v11355 = vpop.trf.xlu0
        %v11356 = vpop.trf.xlu0
        %v11357 = vpop.trf.xlu0
        %v11358 = vpop.trf.xlu0
        %v11359 = vpop.trf.xlu0
        %v11360 = vpop.trf.xlu0
        %v11361 = vpop.trf.xlu0
        %v11362 = vpop.trf.xlu0
        %v11363 = vpop.trf.xlu0
        %v11366 = vcombine.low %v11316, %v11348
        %11368 = vst [vmem:[%s199] sm:$0xff] %v11366
        %s11369 = sand.u32 %s97, 1
        %s11370 = scalar_lea.sflag [#allocation4], %s11369
        %s11371 = sand.u32 %s97, 1
        %s11372 = smul.addr %s11371, 8
        %s11373 = scalar_lea.vmem [#allocation7], %s11372
        // Predicated region
        $region41: #{tpu_custom_call.1} parent=31 // pred_check
          %p11374 = pneg %p107
        $region42: #{tpu_custom_call.1} parent=31 // pred_check_branch
          %11376 = sbr.rel (%p11374) target = $region44
        $region43: #{tpu_custom_call.1} parent=31 // pred_region
          %s11378 = ssub.s32 128, 128
          %11379 = vsyncadd %s11370, %s11378
          %s11380 = smul.addr %s21, 2
          %s11381 = smul.addr %s11380, 64
          %s11382 = scalar_lea.hbm %s3, %s11381
          %s11384 = sshll.u32 %s11373, 4
          %s11385 = int_to_ptr.vmem [resolvable:$true] %s11384
          %11387 = dma.vmem_to_hbm [thread:$0]  %s11385, 128, %s11382, %s11370
        $region44: #{tpu_custom_call.1} parent=31 // pred_fallthru
          _
      $region32: #{tpu_custom_call.1} parent=5 // pred_fallthru
        _
      %p11388 = scmp.le.s32.totalorder 2, %s16
      // Predicated region
      $region45: #{tpu_custom_call.1} parent=5 // pred_check
        %p11389 = pneg %p11388
      $region46: #{tpu_custom_call.1} parent=5 // pred_check_branch
        %11391 = sbr.rel (%p11389) target = $region48
      $region47: #{tpu_custom_call.1} parent=5 // pred_region
        %s11392 = ssub.s32 %s16, 2
        // Predicated region
        $region49: #{tpu_custom_call.1} parent=47 // pred_check
          %p11393 = pneg %p113
        $region50: #{tpu_custom_call.1} parent=47 // pred_check_branch
          %11395 = sbr.rel (%p11393) target = $region52
        $region51: #{tpu_custom_call.1} parent=47 // pred_region
          %s11396 = sand.u32 %s98, 1
          %s11397 = scalar_lea.sflag [#allocation4], %s11396
          %s11398 = sand.u32 %s98, 1
          %s11399 = smul.addr %s11398, 8
          %s11400 = scalar_lea.vmem [#allocation7], %s11399
          %11401 = dma.done %s11397, 128
        $region52: #{tpu_custom_call.1} parent=47 // pred_fallthru
          _
      $region48: #{tpu_custom_call.1} parent=5 // pred_fallthru
        _
    $region6: #{tpu_custom_call.1} parent=1 // loop_footer
      %s20 = sadd.s32 1, %s16
    $region7: #{tpu_custom_call.1} parent=1 // loop_footer_branch
      %15 = sbr.rel target = $region3
    $region8: #{tpu_custom_call.1} parent=1 // loop_exit
      _
    %11402 = vsyncpa [#allocation3], 1
    %s11403 = scalar_lea.sflag [#allocation3], 1
    %11404 = vsyncpa %s11403, 1
    %11405 = vsyncpa [#allocation6], 1
    %11406 = vsyncpa [#allocation4], 1
    %s11407 = scalar_lea.sflag [#allocation4], 1
    %11408 = vsyncpa %s11407, 1

</llo_original>
